<compile_context>
chip_gen: v7x
topology: tpu7x:2x2x1
jax: 0.10.0
libtpu: 0.0.40
codegen_flags: <defaults>
</compile_context>

<pallas_src>
import jax
import jax.numpy as jnp
from jax import lax
from jax.experimental import pallas as pl
from jax.experimental.pallas import tpu as pltpu

_LANES = 128


def _round_up(v, m):
    return ((v + m - 1) // m) * m


def _conv3x3_halo_matmul(a_f32, w_ref, H, Wp):
    """'Same' 3x3 conv as 9 accumulating MXU matmuls on a halo-padded tile.

    a_f32 : (MA, Cp) f32 value, MA = (H+2)*Wp, row-major over (row, col).
            Valid activations live at rows 1..H, cols 0..W-1; every halo
            entry (top/bottom rows, cols >= W) is exactly zero.
    w_ref : (9, Cp, Cp) bf16 Ref; tap k = dh*3 + dw, each block (cin, cout).
    Returns the conv output at rows 1..H (all Wp columns): (H*Wp, Cp) f32.
    """
    MA, Cp = a_f32.shape
    Mout = H * Wp
    # Column-shifted copies: a_l[q] = a[q-1], a_r[q] = a[q+1].  The circular
    # wrap elements land on zero halo entries, so no masking is needed.
    a_l = pltpu.roll(a_f32, 1, axis=0)
    a_r = pltpu.roll(a_f32, MA - 1, axis=0)
    srcs = (a_l.astype(jnp.bfloat16),       # dw = 0 (left taps)
            a_f32.astype(jnp.bfloat16),     # dw = 1 (center taps)
            a_r.astype(jnp.bfloat16))       # dw = 2 (right taps)
    acc = None
    for dh in range(3):
        base = dh * Wp                      # sublane-aligned (Wp % 8 == 0)
        for dw in range(3):
            tap = srcs[dw][base:base + Mout, :]
            part = jnp.dot(tap, w_ref[dh * 3 + dw],
                           preferred_element_type=jnp.float32)
            acc = part if acc is None else acc + part
    return acc


def basic_block_kernel(x_ref, w1_ref, w2_ref, sb_ref, o_ref, halo_ref):
    # x_ref   : (1, H, W, Cp)  bf16   channel-padded NHWC input tile
    # w1_ref  : (9, Cp, Cp)    bf16   conv1 weights, tap-major (dh*3 + dw)
    # w2_ref  : (9, Cp, Cp)    bf16   conv2 weights
    # sb_ref  : (4, Cp)        f32    rows = [scale1, bias1, scale2, bias2]
    # o_ref   : (1, H, W, Cp)  bf16
    # halo_ref: (H+2, Wp, Cp)  f32    zero-halo scratch, Wp % 8 == 0, Wp >= W+1
    _, H, W, Cp = x_ref.shape
    Hp, Wp, _ = halo_ref.shape
    MA = Hp * Wp

    x_f32 = x_ref[0].astype(jnp.float32)               # residual identity

    # ---- conv1 input: place x inside the zero halo -----------------------
    halo_ref[...] = jnp.zeros_like(halo_ref)
    halo_ref[1:H + 1, 0:W, :] = x_f32
    a1 = halo_ref[...].reshape(MA, Cp)

    # ---- conv1 -> bn1 -> relu ---------------------------------------------
    y = _conv3x3_halo_matmul(a1, w1_ref, H, Wp)        # (H*Wp, Cp) f32
    y = jnp.maximum(y * sb_ref[0:1, :] + sb_ref[1:2, :], 0.0)

    # ---- conv2 input: valid columns of y back into the (still-zero) halo --
    halo_ref[1:H + 1, 0:W, :] = y.reshape(H, Wp, Cp)[:, 0:W, :]
    a2 = halo_ref[...].reshape(MA, Cp)

    # ---- conv2 -> bn2 -> residual add -> relu ------------------------------
    z = _conv3x3_halo_matmul(a2, w2_ref, H, Wp)
    z = z * sb_ref[2:3, :] + sb_ref[3:4, :]
    out = jnp.maximum(z.reshape(H, Wp, Cp)[:, 0:W, :] + x_f32, 0.0)
    o_ref[0] = out.astype(o_ref.dtype)


def basic_block_forward(x_nchw,
                        w1_oihw, gamma1, beta1, mean1, var1,
                        w2_oihw, gamma2, beta2, mean2, var2,
                        eps=1e-5):
    """x_nchw: (N, C, H, W) float32; returns (N, C, H, W) float32."""
    N, C, H, W = x_nchw.shape
    Cout = w1_oihw.shape[0]
    assert Cout == C, "identity residual requires inplanes == planes (stride=1)"

    Cp = _round_up(max(C, _LANES), _LANES)
    Wp = _round_up(W + 1, 8)          # >= 1 zero pad column, sublane aligned
    Hp = H + 2

    # NCHW -> NHWC, bf16 activations, channels zero-padded to a lane multiple.
    x_nhwc = jnp.transpose(x_nchw, (0, 2, 3, 1)).astype(jnp.bfloat16)
    x_p = jnp.pad(x_nhwc, ((0, 0), (0, 0), (0, 0), (0, Cp - C)))

    def pack_w(w_oihw):
        # OIHW -> HWIO, zero-pad cin/cout to Cp, tap-major (9, Cp, Cp) bf16.
        w_hwio = jnp.transpose(w_oihw, (2, 3, 1, 0)).astype(jnp.float32)
        w_hwio = jnp.pad(w_hwio, ((0, 0), (0, 0), (0, Cp - C), (0, Cp - Cout)))
        return w_hwio.reshape(9, Cp, Cp).astype(jnp.bfloat16)

    w1m = pack_w(w1_oihw)
    w2m = pack_w(w2_oihw)

    def fold_bn(gamma, beta, mean, var):
        inv = gamma.astype(jnp.float32) / jnp.sqrt(var.astype(jnp.float32) + eps)
        s = jnp.pad(inv, (0, Cp - Cout))
        b = jnp.pad(beta.astype(jnp.float32) - mean.astype(jnp.float32) * inv,
                    (0, Cp - Cout))
        return s, b

    s1, b1 = fold_bn(gamma1, beta1, mean1, var1)
    s2, b2 = fold_bn(gamma2, beta2, mean2, var2)
    sb = jnp.stack([s1, b1, s2, b2], axis=0)            # (4, Cp) f32

    # Rough per-step working set (double-buffered I/O tiles and weights, f32
    # halo scratch, shifted copies, accumulators), with generous headroom.
    est = (4 * H * W * Cp * 2          # x/o tiles, double buffered, bf16
           + 4 * 9 * Cp * Cp * 2       # both weight tensors, double buffered
           + 24 * Hp * Wp * Cp)        # halo + rolled/bf16 copies + f32 accums
    vmem_limit = int(min(max(2 * est, 32 * 1024 * 1024), 48 * 1024 * 1024))

    out_nhwc = pl.pallas_call(
        basic_block_kernel,
        out_shape=jax.ShapeDtypeStruct((N, H, W, Cp), jnp.bfloat16),
        grid_spec=pltpu.PrefetchScalarGridSpec(
            num_scalar_prefetch=0,
            grid=(N,),
            in_specs=[
                pl.BlockSpec((1, H, W, Cp), lambda n: (n, 0, 0, 0)),
                pl.BlockSpec((9, Cp, Cp), lambda n: (0, 0, 0)),
                pl.BlockSpec((9, Cp, Cp), lambda n: (0, 0, 0)),
                pl.BlockSpec((4, Cp), lambda n: (0, 0)),
            ],
            out_specs=pl.BlockSpec((1, H, W, Cp), lambda n: (n, 0, 0, 0)),
            scratch_shapes=[pltpu.VMEM((Hp, Wp, Cp), jnp.float32)],
        ),
        compiler_params=pltpu.CompilerParams(
            dimension_semantics=("parallel",),
            vmem_limit_bytes=vmem_limit),
    )(x_p, w1m, w2m, sb)

    # Drop channel padding, NHWC -> NCHW, back to f32.
    return jnp.transpose(out_nhwc[..., :Cout], (0, 3, 1, 2)).astype(jnp.float32)


def _reference_forward(x, w1, s1, b1, w2, s2, b2):
    """Pure-JAX NCHW reference matching the kernel's precision policy:
    bf16 activations/conv operands, f32 accumulation + BN/ReLU/residual,
    bf16 output rounding."""
    xb = x.astype(jnp.bfloat16).astype(jnp.float32)

    def conv_bf16(v, w):
        return lax.conv_general_dilated(
            v.astype(jnp.bfloat16), w.astype(jnp.bfloat16),
            window_strides=(1, 1), padding=((1, 1), (1, 1)),
            dimension_numbers=("NCHW", "OIHW", "NCHW"),
            preferred_element_type=jnp.float32)

    y = conv_bf16(xb, w1) * s1[None, :, None, None] + b1[None, :, None, None]
    y = jnp.maximum(y, 0.0)
    z = conv_bf16(y, w2) * s2[None, :, None, None] + b2[None, :, None, None]
    out = jnp.maximum(z + xb, 0.0)
    return out.astype(jnp.bfloat16).astype(jnp.float32)


if __name__ == "__main__":
    # Small shapes consistent with BasicBlock(inplanes=4, planes=4, stride=1).
    N, C, H, W = 2, 4, 16, 16
    planes = C
    eps = 1e-5

    key = jax.random.PRNGKey(0)
    ks = jax.random.split(key, 10)

    x = jax.random.normal(ks[0], (N, C, H, W), dtype=jnp.float32)

    w1 = jax.random.normal(ks[1], (planes, C, 3, 3), dtype=jnp.float32) * 0.1
    w2 = jax.random.normal(ks[2], (planes, planes, 3, 3), dtype=jnp.float32) * 0.1

    gamma1 = jax.random.uniform(ks[3], (planes,), minval=0.5, maxval=1.5)
    beta1 = jax.random.normal(ks[4], (planes,)) * 0.1
    mean1 = jax.random.normal(ks[5], (planes,)) * 0.1
    var1 = jax.random.uniform(ks[6], (planes,), minval=0.5, maxval=1.5)

    gamma2 = jax.random.uniform(ks[7], (planes,), minval=0.5, maxval=1.5)
    beta2 = jax.random.normal(ks[8], (planes,)) * 0.1
    mean2 = jax.random.normal(ks[9], (planes,)) * 0.1
    var2 = jnp.ones((planes,), jnp.float32) * 0.9

    out = basic_block_forward(x, w1, gamma1, beta1, mean1, var1,
                              w2, gamma2, beta2, mean2, var2, eps=eps)
    out = jax.block_until_ready(out)

    # Check against the pure-JAX reference (same folded-BN / bf16 policy).
    inv1 = gamma1 / jnp.sqrt(var1 + eps)
    inv2 = gamma2 / jnp.sqrt(var2 + eps)
    ref = _reference_forward(x, w1, inv1, beta1 - mean1 * inv1,
                             w2, inv2, beta2 - mean2 * inv2)
    ref = jax.block_until_ready(ref)

    assert out.shape == (N, C, H, W), out.shape
    err = float(jnp.max(jnp.abs(out - ref)))
    assert err < 2e-2, f"mismatch vs reference: max abs err {err}"

    print("KERNEL_OK")
</pallas_src>

<mosaic_0001>
module attributes {stable_mosaic.version = 11 : i64} {
  func.func @basic_block_kernel(%arg0: i32, %arg1: memref<1x16x16x128xbf16, #tpu.memory_space<vmem>>, %arg2: memref<9x128x128xbf16, #tpu.memory_space<vmem>>, %arg3: memref<9x128x128xbf16, #tpu.memory_space<vmem>>, %arg4: memref<4x128xf32, #tpu.memory_space<vmem>>, %arg5: memref<1x16x16x128xbf16, #tpu.memory_space<vmem>>, %arg6: memref<18x24x128xf32, #tpu.memory_space<vmem>>) attributes {dimension_semantics = [#tpu.dimension_semantics<parallel>], iteration_bounds = array<i64: 2>, scalar_prefetch = 0 : i64, scratch_operands = 1 : i64, tpu.core_type = #tpu.core_type<tc>, window_params = [{transform_indices = @transform_0, window_bounds = array<i64: 1, 16, 16, 128>}, {pipeline_mode = #tpu.pipeline_mode<synchronous>, transform_indices = @transform_1, window_bounds = array<i64: 9, 128, 128>}, {pipeline_mode = #tpu.pipeline_mode<synchronous>, transform_indices = @transform_2, window_bounds = array<i64: 9, 128, 128>}, {pipeline_mode = #tpu.pipeline_mode<synchronous>, transform_indices = @transform_3, window_bounds = array<i64: 4, 128>}, {transform_indices = @transform_4, window_bounds = array<i64: 1, 16, 16, 128>}]} {
    %c0 = arith.constant 0 : index
    %c0_0 = arith.constant 0 : index
    %c0_1 = arith.constant 0 : index
    %c0_2 = arith.constant 0 : index
    %0 = vector.load %arg1[%c0, %c0_0, %c0_1, %c0_2] : memref<1x16x16x128xbf16, #tpu.memory_space<vmem>>, vector<1x16x16x128xbf16>
    %1 = vector.shape_cast %0 : vector<1x16x16x128xbf16> to vector<16x16x128xbf16>
    %2 = arith.extf %1 : vector<16x16x128xbf16> to vector<16x16x128xf32>
    %cst = arith.constant 0.000000e+00 : f32
    %3 = vector.broadcast %cst : f32 to vector<18x24x128xf32>
    %c0_3 = arith.constant 0 : index
    %c0_4 = arith.constant 0 : index
    %c0_5 = arith.constant 0 : index
    %4 = vector.load %arg6[%c0_3, %c0_4, %c0_5] : memref<18x24x128xf32, #tpu.memory_space<vmem>>, vector<18x24x128xf32>
    tpu.vector_store %arg6[%c0_3, %c0_4, %c0_5], %3 {strides = array<i32>} : memref<18x24x128xf32, #tpu.memory_space<vmem>>, vector<18x24x128xf32>,
    %c1 = arith.constant 1 : index
    %c0_6 = arith.constant 0 : index
    %c0_7 = arith.constant 0 : index
    %5 = vector.load %arg6[%c1, %c0_6, %c0_7] : memref<18x24x128xf32, #tpu.memory_space<vmem>>, vector<16x16x128xf32>
    tpu.vector_store %arg6[%c1, %c0_6, %c0_7], %2 {strides = array<i32>} : memref<18x24x128xf32, #tpu.memory_space<vmem>>, vector<16x16x128xf32>,
    %c0_8 = arith.constant 0 : index
    %c0_9 = arith.constant 0 : index
    %c0_10 = arith.constant 0 : index
    %6 = vector.load %arg6[%c0_8, %c0_9, %c0_10] : memref<18x24x128xf32, #tpu.memory_space<vmem>>, vector<18x24x128xf32>
    %7 = vector.shape_cast %6 : vector<18x24x128xf32> to vector<432x128xf32>
    %c1_i32 = arith.constant 1 : i32
    %8 = tpu.dynamic_rotate %7 by %c1_i32 dim 0 : vector<432x128xf32>, i32 -> vector<432x128xf32>
    %c431_i32 = arith.constant 431 : i32
    %9 = tpu.dynamic_rotate %7 by %c431_i32 dim 0 : vector<432x128xf32>, i32 -> vector<432x128xf32>
    %10 = arith.truncf %8 : vector<432x128xf32> to vector<432x128xbf16>
    %11 = arith.truncf %7 : vector<432x128xf32> to vector<432x128xbf16>
    %12 = arith.truncf %9 : vector<432x128xf32> to vector<432x128xbf16>
    %13 = vector.extract_strided_slice %10 {offsets = [0, 0], sizes = [384, 128], strides = [1, 1]} : vector<432x128xbf16> to vector<384x128xbf16>
    %c0_11 = arith.constant 0 : index
    %c0_12 = arith.constant 0 : index
    %c0_13 = arith.constant 0 : index
    %14 = vector.load %arg2[%c0_11, %c0_12, %c0_13] : memref<9x128x128xbf16, #tpu.memory_space<vmem>>, vector<1x128x128xbf16>
    %15 = vector.shape_cast %14 : vector<1x128x128xbf16> to vector<128x128xbf16>
    %cst_14 = arith.constant dense<0.000000e+00> : vector<384x128xf32>
    %16 = tpu.matmul %13, %15, %cst_14 {dimension_numbers = #tpu.dot_dimension_numbers<[1], [0], [0], [1], [0, 0, 1, 1], [], []>} : vector<384x128xbf16>, vector<128x128xbf16>, vector<384x128xf32> -> vector<384x128xf32>
    %17 = vector.extract_strided_slice %11 {offsets = [0, 0], sizes = [384, 128], strides = [1, 1]} : vector<432x128xbf16> to vector<384x128xbf16>
    %c1_15 = arith.constant 1 : index
    %c0_16 = arith.constant 0 : index
    %c0_17 = arith.constant 0 : index
    %18 = vector.load %arg2[%c1_15, %c0_16, %c0_17] : memref<9x128x128xbf16, #tpu.memory_space<vmem>>, vector<1x128x128xbf16>
    %19 = vector.shape_cast %18 : vector<1x128x128xbf16> to vector<128x128xbf16>
    %cst_18 = arith.constant dense<0.000000e+00> : vector<384x128xf32>
    %20 = tpu.matmul %17, %19, %cst_18 {dimension_numbers = #tpu.dot_dimension_numbers<[1], [0], [0], [1], [0, 0, 1, 1], [], []>} : vector<384x128xbf16>, vector<128x128xbf16>, vector<384x128xf32> -> vector<384x128xf32>
    %21 = arith.addf %16, %20 : vector<384x128xf32>
    %22 = vector.extract_strided_slice %12 {offsets = [0, 0], sizes = [384, 128], strides = [1, 1]} : vector<432x128xbf16> to vector<384x128xbf16>
    %c2 = arith.constant 2 : index
    %c0_19 = arith.constant 0 : index
    %c0_20 = arith.constant 0 : index
    %23 = vector.load %arg2[%c2, %c0_19, %c0_20] : memref<9x128x128xbf16, #tpu.memory_space<vmem>>, vector<1x128x128xbf16>
    %24 = vector.shape_cast %23 : vector<1x128x128xbf16> to vector<128x128xbf16>
    %cst_21 = arith.constant dense<0.000000e+00> : vector<384x128xf32>
    %25 = tpu.matmul %22, %24, %cst_21 {dimension_numbers = #tpu.dot_dimension_numbers<[1], [0], [0], [1], [0, 0, 1, 1], [], []>} : vector<384x128xbf16>, vector<128x128xbf16>, vector<384x128xf32> -> vector<384x128xf32>
    %26 = arith.addf %21, %25 : vector<384x128xf32>
    %27 = vector.extract_strided_slice %10 {offsets = [24, 0], sizes = [384, 128], strides = [1, 1]} : vector<432x128xbf16> to vector<384x128xbf16>
    %c3 = arith.constant 3 : index
    %c0_22 = arith.constant 0 : index
    %c0_23 = arith.constant 0 : index
    %28 = vector.load %arg2[%c3, %c0_22, %c0_23] : memref<9x128x128xbf16, #tpu.memory_space<vmem>>, vector<1x128x128xbf16>
    %29 = vector.shape_cast %28 : vector<1x128x128xbf16> to vector<128x128xbf16>
    %cst_24 = arith.constant dense<0.000000e+00> : vector<384x128xf32>
    %30 = tpu.matmul %27, %29, %cst_24 {dimension_numbers = #tpu.dot_dimension_numbers<[1], [0], [0], [1], [0, 0, 1, 1], [], []>} : vector<384x128xbf16>, vector<128x128xbf16>, vector<384x128xf32> -> vector<384x128xf32>
    %31 = arith.addf %26, %30 : vector<384x128xf32>
    %32 = vector.extract_strided_slice %11 {offsets = [24, 0], sizes = [384, 128], strides = [1, 1]} : vector<432x128xbf16> to vector<384x128xbf16>
    %c4 = arith.constant 4 : index
    %c0_25 = arith.constant 0 : index
    %c0_26 = arith.constant 0 : index
    %33 = vector.load %arg2[%c4, %c0_25, %c0_26] : memref<9x128x128xbf16, #tpu.memory_space<vmem>>, vector<1x128x128xbf16>
    %34 = vector.shape_cast %33 : vector<1x128x128xbf16> to vector<128x128xbf16>
    %cst_27 = arith.constant dense<0.000000e+00> : vector<384x128xf32>
    %35 = tpu.matmul %32, %34, %cst_27 {dimension_numbers = #tpu.dot_dimension_numbers<[1], [0], [0], [1], [0, 0, 1, 1], [], []>} : vector<384x128xbf16>, vector<128x128xbf16>, vector<384x128xf32> -> vector<384x128xf32>
    %36 = arith.addf %31, %35 : vector<384x128xf32>
    %37 = vector.extract_strided_slice %12 {offsets = [24, 0], sizes = [384, 128], strides = [1, 1]} : vector<432x128xbf16> to vector<384x128xbf16>
    %c5 = arith.constant 5 : index
    %c0_28 = arith.constant 0 : index
    %c0_29 = arith.constant 0 : index
    %38 = vector.load %arg2[%c5, %c0_28, %c0_29] : memref<9x128x128xbf16, #tpu.memory_space<vmem>>, vector<1x128x128xbf16>
    %39 = vector.shape_cast %38 : vector<1x128x128xbf16> to vector<128x128xbf16>
    %cst_30 = arith.constant dense<0.000000e+00> : vector<384x128xf32>
    %40 = tpu.matmul %37, %39, %cst_30 {dimension_numbers = #tpu.dot_dimension_numbers<[1], [0], [0], [1], [0, 0, 1, 1], [], []>} : vector<384x128xbf16>, vector<128x128xbf16>, vector<384x128xf32> -> vector<384x128xf32>
    %41 = arith.addf %36, %40 : vector<384x128xf32>
    %42 = vector.extract_strided_slice %10 {offsets = [48, 0], sizes = [384, 128], strides = [1, 1]} : vector<432x128xbf16> to vector<384x128xbf16>
    %c6 = arith.constant 6 : index
    %c0_31 = arith.constant 0 : index
    %c0_32 = arith.constant 0 : index
    %43 = vector.load %arg2[%c6, %c0_31, %c0_32] : memref<9x128x128xbf16, #tpu.memory_space<vmem>>, vector<1x128x128xbf16>
    %44 = vector.shape_cast %43 : vector<1x128x128xbf16> to vector<128x128xbf16>
    %cst_33 = arith.constant dense<0.000000e+00> : vector<384x128xf32>
    %45 = tpu.matmul %42, %44, %cst_33 {dimension_numbers = #tpu.dot_dimension_numbers<[1], [0], [0], [1], [0, 0, 1, 1], [], []>} : vector<384x128xbf16>, vector<128x128xbf16>, vector<384x128xf32> -> vector<384x128xf32>
    %46 = arith.addf %41, %45 : vector<384x128xf32>
    %47 = vector.extract_strided_slice %11 {offsets = [48, 0], sizes = [384, 128], strides = [1, 1]} : vector<432x128xbf16> to vector<384x128xbf16>
    %c7 = arith.constant 7 : index
    %c0_34 = arith.constant 0 : index
    %c0_35 = arith.constant 0 : index
    %48 = vector.load %arg2[%c7, %c0_34, %c0_35] : memref<9x128x128xbf16, #tpu.memory_space<vmem>>, vector<1x128x128xbf16>
    %49 = vector.shape_cast %48 : vector<1x128x128xbf16> to vector<128x128xbf16>
    %cst_36 = arith.constant dense<0.000000e+00> : vector<384x128xf32>
    %50 = tpu.matmul %47, %49, %cst_36 {dimension_numbers = #tpu.dot_dimension_numbers<[1], [0], [0], [1], [0, 0, 1, 1], [], []>} : vector<384x128xbf16>, vector<128x128xbf16>, vector<384x128xf32> -> vector<384x128xf32>
    %51 = arith.addf %46, %50 : vector<384x128xf32>
    %52 = vector.extract_strided_slice %12 {offsets = [48, 0], sizes = [384, 128], strides = [1, 1]} : vector<432x128xbf16> to vector<384x128xbf16>
    %c8 = arith.constant 8 : index
    %c0_37 = arith.constant 0 : index
    %c0_38 = arith.constant 0 : index
    %53 = vector.load %arg2[%c8, %c0_37, %c0_38] : memref<9x128x128xbf16, #tpu.memory_space<vmem>>, vector<1x128x128xbf16>
    %54 = vector.shape_cast %53 : vector<1x128x128xbf16> to vector<128x128xbf16>
    %cst_39 = arith.constant dense<0.000000e+00> : vector<384x128xf32>
    %55 = tpu.matmul %52, %54, %cst_39 {dimension_numbers = #tpu.dot_dimension_numbers<[1], [0], [0], [1], [0, 0, 1, 1], [], []>} : vector<384x128xbf16>, vector<128x128xbf16>, vector<384x128xf32> -> vector<384x128xf32>
    %56 = arith.addf %51, %55 : vector<384x128xf32>
    %c0_40 = arith.constant 0 : index
    %c0_41 = arith.constant 0 : index
    %57 = vector.load %arg4[%c0_40, %c0_41] : memref<4x128xf32, #tpu.memory_space<vmem>>, vector<1x128xf32>
    %58 = vector.broadcast %57 : vector<1x128xf32> to vector<384x128xf32>
    %59 = arith.mulf %56, %58 : vector<384x128xf32>
    %c1_42 = arith.constant 1 : index
    %c0_43 = arith.constant 0 : index
    %60 = vector.load %arg4[%c1_42, %c0_43] : memref<4x128xf32, #tpu.memory_space<vmem>>, vector<1x128xf32>
    %61 = vector.broadcast %60 : vector<1x128xf32> to vector<384x128xf32>
    %62 = arith.addf %59, %61 : vector<384x128xf32>
    %cst_44 = arith.constant 0.000000e+00 : f32
    %63 = vector.broadcast %cst_44 : f32 to vector<384x128xf32>
    %64 = arith.maximumf %62, %63 : vector<384x128xf32>
    %65 = vector.shape_cast %64 : vector<384x128xf32> to vector<16x24x128xf32>
    %66 = vector.extract_strided_slice %65 {offsets = [0, 0, 0], sizes = [16, 16, 128], strides = [1, 1, 1]} : vector<16x24x128xf32> to vector<16x16x128xf32>
    %c1_45 = arith.constant 1 : index
    %c0_46 = arith.constant 0 : index
    %c0_47 = arith.constant 0 : index
    %67 = vector.load %arg6[%c1_45, %c0_46, %c0_47] : memref<18x24x128xf32, #tpu.memory_space<vmem>>, vector<16x16x128xf32>
    tpu.vector_store %arg6[%c1_45, %c0_46, %c0_47], %66 {strides = array<i32>} : memref<18x24x128xf32, #tpu.memory_space<vmem>>, vector<16x16x128xf32>,
    %c0_48 = arith.constant 0 : index
    %c0_49 = arith.constant 0 : index
    %c0_50 = arith.constant 0 : index
    %68 = vector.load %arg6[%c0_48, %c0_49, %c0_50] : memref<18x24x128xf32, #tpu.memory_space<vmem>>, vector<18x24x128xf32>
    %69 = vector.shape_cast %68 : vector<18x24x128xf32> to vector<432x128xf32>
    %c1_i32_51 = arith.constant 1 : i32
    %70 = tpu.dynamic_rotate %69 by %c1_i32_51 dim 0 : vector<432x128xf32>, i32 -> vector<432x128xf32>
    %c431_i32_52 = arith.constant 431 : i32
    %71 = tpu.dynamic_rotate %69 by %c431_i32_52 dim 0 : vector<432x128xf32>, i32 -> vector<432x128xf32>
    %72 = arith.truncf %70 : vector<432x128xf32> to vector<432x128xbf16>
    %73 = arith.truncf %69 : vector<432x128xf32> to vector<432x128xbf16>
    %74 = arith.truncf %71 : vector<432x128xf32> to vector<432x128xbf16>
    %75 = vector.extract_strided_slice %72 {offsets = [0, 0], sizes = [384, 128], strides = [1, 1]} : vector<432x128xbf16> to vector<384x128xbf16>
    %c0_53 = arith.constant 0 : index
    %c0_54 = arith.constant 0 : index
    %c0_55 = arith.constant 0 : index
    %76 = vector.load %arg3[%c0_53, %c0_54, %c0_55] : memref<9x128x128xbf16, #tpu.memory_space<vmem>>, vector<1x128x128xbf16>
    %77 = vector.shape_cast %76 : vector<1x128x128xbf16> to vector<128x128xbf16>
    %cst_56 = arith.constant dense<0.000000e+00> : vector<384x128xf32>
    %78 = tpu.matmul %75, %77, %cst_56 {dimension_numbers = #tpu.dot_dimension_numbers<[1], [0], [0], [1], [0, 0, 1, 1], [], []>} : vector<384x128xbf16>, vector<128x128xbf16>, vector<384x128xf32> -> vector<384x128xf32>
    %79 = vector.extract_strided_slice %73 {offsets = [0, 0], sizes = [384, 128], strides = [1, 1]} : vector<432x128xbf16> to vector<384x128xbf16>
    %c1_57 = arith.constant 1 : index
    %c0_58 = arith.constant 0 : index
    %c0_59 = arith.constant 0 : index
    %80 = vector.load %arg3[%c1_57, %c0_58, %c0_59] : memref<9x128x128xbf16, #tpu.memory_space<vmem>>, vector<1x128x128xbf16>
    %81 = vector.shape_cast %80 : vector<1x128x128xbf16> to vector<128x128xbf16>
    %cst_60 = arith.constant dense<0.000000e+00> : vector<384x128xf32>
    %82 = tpu.matmul %79, %81, %cst_60 {dimension_numbers = #tpu.dot_dimension_numbers<[1], [0], [0], [1], [0, 0, 1, 1], [], []>} : vector<384x128xbf16>, vector<128x128xbf16>, vector<384x128xf32> -> vector<384x128xf32>
    %83 = arith.addf %78, %82 : vector<384x128xf32>
    %84 = vector.extract_strided_slice %74 {offsets = [0, 0], sizes = [384, 128], strides = [1, 1]} : vector<432x128xbf16> to vector<384x128xbf16>
    %c2_61 = arith.constant 2 : index
    %c0_62 = arith.constant 0 : index
    %c0_63 = arith.constant 0 : index
    %85 = vector.load %arg3[%c2_61, %c0_62, %c0_63] : memref<9x128x128xbf16, #tpu.memory_space<vmem>>, vector<1x128x128xbf16>
    %86 = vector.shape_cast %85 : vector<1x128x128xbf16> to vector<128x128xbf16>
    %cst_64 = arith.constant dense<0.000000e+00> : vector<384x128xf32>
    %87 = tpu.matmul %84, %86, %cst_64 {dimension_numbers = #tpu.dot_dimension_numbers<[1], [0], [0], [1], [0, 0, 1, 1], [], []>} : vector<384x128xbf16>, vector<128x128xbf16>, vector<384x128xf32> -> vector<384x128xf32>
    %88 = arith.addf %83, %87 : vector<384x128xf32>
    %89 = vector.extract_strided_slice %72 {offsets = [24, 0], sizes = [384, 128], strides = [1, 1]} : vector<432x128xbf16> to vector<384x128xbf16>
    %c3_65 = arith.constant 3 : index
    %c0_66 = arith.constant 0 : index
    %c0_67 = arith.constant 0 : index
    %90 = vector.load %arg3[%c3_65, %c0_66, %c0_67] : memref<9x128x128xbf16, #tpu.memory_space<vmem>>, vector<1x128x128xbf16>
    %91 = vector.shape_cast %90 : vector<1x128x128xbf16> to vector<128x128xbf16>
    %cst_68 = arith.constant dense<0.000000e+00> : vector<384x128xf32>
    %92 = tpu.matmul %89, %91, %cst_68 {dimension_numbers = #tpu.dot_dimension_numbers<[1], [0], [0], [1], [0, 0, 1, 1], [], []>} : vector<384x128xbf16>, vector<128x128xbf16>, vector<384x128xf32> -> vector<384x128xf32>
    %93 = arith.addf %88, %92 : vector<384x128xf32>
    %94 = vector.extract_strided_slice %73 {offsets = [24, 0], sizes = [384, 128], strides = [1, 1]} : vector<432x128xbf16> to vector<384x128xbf16>
    %c4_69 = arith.constant 4 : index
    %c0_70 = arith.constant 0 : index
    %c0_71 = arith.constant 0 : index
    %95 = vector.load %arg3[%c4_69, %c0_70, %c0_71] : memref<9x128x128xbf16, #tpu.memory_space<vmem>>, vector<1x128x128xbf16>
    %96 = vector.shape_cast %95 : vector<1x128x128xbf16> to vector<128x128xbf16>
    %cst_72 = arith.constant dense<0.000000e+00> : vector<384x128xf32>
    %97 = tpu.matmul %94, %96, %cst_72 {dimension_numbers = #tpu.dot_dimension_numbers<[1], [0], [0], [1], [0, 0, 1, 1], [], []>} : vector<384x128xbf16>, vector<128x128xbf16>, vector<384x128xf32> -> vector<384x128xf32>
    %98 = arith.addf %93, %97 : vector<384x128xf32>
    %99 = vector.extract_strided_slice %74 {offsets = [24, 0], sizes = [384, 128], strides = [1, 1]} : vector<432x128xbf16> to vector<384x128xbf16>
    %c5_73 = arith.constant 5 : index
    %c0_74 = arith.constant 0 : index
    %c0_75 = arith.constant 0 : index
    %100 = vector.load %arg3[%c5_73, %c0_74, %c0_75] : memref<9x128x128xbf16, #tpu.memory_space<vmem>>, vector<1x128x128xbf16>
    %101 = vector.shape_cast %100 : vector<1x128x128xbf16> to vector<128x128xbf16>
    %cst_76 = arith.constant dense<0.000000e+00> : vector<384x128xf32>
    %102 = tpu.matmul %99, %101, %cst_76 {dimension_numbers = #tpu.dot_dimension_numbers<[1], [0], [0], [1], [0, 0, 1, 1], [], []>} : vector<384x128xbf16>, vector<128x128xbf16>, vector<384x128xf32> -> vector<384x128xf32>
    %103 = arith.addf %98, %102 : vector<384x128xf32>
    %104 = vector.extract_strided_slice %72 {offsets = [48, 0], sizes = [384, 128], strides = [1, 1]} : vector<432x128xbf16> to vector<384x128xbf16>
    %c6_77 = arith.constant 6 : index
    %c0_78 = arith.constant 0 : index
    %c0_79 = arith.constant 0 : index
    %105 = vector.load %arg3[%c6_77, %c0_78, %c0_79] : memref<9x128x128xbf16, #tpu.memory_space<vmem>>, vector<1x128x128xbf16>
    %106 = vector.shape_cast %105 : vector<1x128x128xbf16> to vector<128x128xbf16>
    %cst_80 = arith.constant dense<0.000000e+00> : vector<384x128xf32>
    %107 = tpu.matmul %104, %106, %cst_80 {dimension_numbers = #tpu.dot_dimension_numbers<[1], [0], [0], [1], [0, 0, 1, 1], [], []>} : vector<384x128xbf16>, vector<128x128xbf16>, vector<384x128xf32> -> vector<384x128xf32>
    %108 = arith.addf %103, %107 : vector<384x128xf32>
    %109 = vector.extract_strided_slice %73 {offsets = [48, 0], sizes = [384, 128], strides = [1, 1]} : vector<432x128xbf16> to vector<384x128xbf16>
    %c7_81 = arith.constant 7 : index
    %c0_82 = arith.constant 0 : index
    %c0_83 = arith.constant 0 : index
    %110 = vector.load %arg3[%c7_81, %c0_82, %c0_83] : memref<9x128x128xbf16, #tpu.memory_space<vmem>>, vector<1x128x128xbf16>
    %111 = vector.shape_cast %110 : vector<1x128x128xbf16> to vector<128x128xbf16>
    %cst_84 = arith.constant dense<0.000000e+00> : vector<384x128xf32>
    %112 = tpu.matmul %109, %111, %cst_84 {dimension_numbers = #tpu.dot_dimension_numbers<[1], [0], [0], [1], [0, 0, 1, 1], [], []>} : vector<384x128xbf16>, vector<128x128xbf16>, vector<384x128xf32> -> vector<384x128xf32>
    %113 = arith.addf %108, %112 : vector<384x128xf32>
    %114 = vector.extract_strided_slice %74 {offsets = [48, 0], sizes = [384, 128], strides = [1, 1]} : vector<432x128xbf16> to vector<384x128xbf16>
    %c8_85 = arith.constant 8 : index
    %c0_86 = arith.constant 0 : index
    %c0_87 = arith.constant 0 : index
    %115 = vector.load %arg3[%c8_85, %c0_86, %c0_87] : memref<9x128x128xbf16, #tpu.memory_space<vmem>>, vector<1x128x128xbf16>
    %116 = vector.shape_cast %115 : vector<1x128x128xbf16> to vector<128x128xbf16>
    %cst_88 = arith.constant dense<0.000000e+00> : vector<384x128xf32>
    %117 = tpu.matmul %114, %116, %cst_88 {dimension_numbers = #tpu.dot_dimension_numbers<[1], [0], [0], [1], [0, 0, 1, 1], [], []>} : vector<384x128xbf16>, vector<128x128xbf16>, vector<384x128xf32> -> vector<384x128xf32>
    %118 = arith.addf %113, %117 : vector<384x128xf32>
    %c2_89 = arith.constant 2 : index
    %c0_90 = arith.constant 0 : index
    %119 = vector.load %arg4[%c2_89, %c0_90] : memref<4x128xf32, #tpu.memory_space<vmem>>, vector<1x128xf32>
    %120 = vector.broadcast %119 : vector<1x128xf32> to vector<384x128xf32>
    %121 = arith.mulf %118, %120 : vector<384x128xf32>
    %c3_91 = arith.constant 3 : index
    %c0_92 = arith.constant 0 : index
    %122 = vector.load %arg4[%c3_91, %c0_92] : memref<4x128xf32, #tpu.memory_space<vmem>>, vector<1x128xf32>
    %123 = vector.broadcast %122 : vector<1x128xf32> to vector<384x128xf32>
    %124 = arith.addf %121, %123 : vector<384x128xf32>
    %125 = vector.shape_cast %124 : vector<384x128xf32> to vector<16x24x128xf32>
    %126 = vector.extract_strided_slice %125 {offsets = [0, 0, 0], sizes = [16, 16, 128], strides = [1, 1, 1]} : vector<16x24x128xf32> to vector<16x16x128xf32>
    %127 = arith.addf %126, %2 : vector<16x16x128xf32>
    %cst_93 = arith.constant 0.000000e+00 : f32
    %128 = vector.broadcast %cst_93 : f32 to vector<16x16x128xf32>
    %129 = arith.maximumf %127, %128 : vector<16x16x128xf32>
    %130 = arith.truncf %129 : vector<16x16x128xf32> to vector<16x16x128xbf16>
    %c0_94 = arith.constant 0 : index
    %c0_95 = arith.constant 0 : index
    %c0_96 = arith.constant 0 : index
    %c0_97 = arith.constant 0 : index
    %131 = vector.load %arg5[%c0_94, %c0_95, %c0_96, %c0_97] : memref<1x16x16x128xbf16, #tpu.memory_space<vmem>>, vector<1x16x16x128xbf16>
    %132 = vector.shape_cast %131 : vector<1x16x16x128xbf16> to vector<16x16x128xbf16>
    %133 = vector.shape_cast %130 : vector<16x16x128xbf16> to vector<1x16x16x128xbf16>
    tpu.vector_store %arg5[%c0_94, %c0_95, %c0_96, %c0_97], %133 {strides = array<i32>} : memref<1x16x16x128xbf16, #tpu.memory_space<vmem>>, vector<1x16x16x128xbf16>,
    return
  }
  func.func @transform_0(%arg0: i32) -> (i32, i32, i32, i32) {
    %c0_i32 = arith.constant 0 : i32
    %c0_i32_0 = arith.constant 0 : i32
    %c0_i32_1 = arith.constant 0 : i32
    %c0_i32_2 = arith.constant 0 : i32
    return %arg0, %c0_i32, %c0_i32_0, %c0_i32_1 : i32, i32, i32, i32
  }
  func.func @transform_1(%arg0: i32) -> (i32, i32, i32) {
    %c0_i32 = arith.constant 0 : i32
    %c0_i32_0 = arith.constant 0 : i32
    %c0_i32_1 = arith.constant 0 : i32
    %c0_i32_2 = arith.constant 0 : i32
    return %c0_i32, %c0_i32_0, %c0_i32_1 : i32, i32, i32
  }
  func.func @transform_2(%arg0: i32) -> (i32, i32, i32) {
    %c0_i32 = arith.constant 0 : i32
    %c0_i32_0 = arith.constant 0 : i32
    %c0_i32_1 = arith.constant 0 : i32
    %c0_i32_2 = arith.constant 0 : i32
    return %c0_i32, %c0_i32_0, %c0_i32_1 : i32, i32, i32
  }
  func.func @transform_3(%arg0: i32) -> (i32, i32) {
    %c0_i32 = arith.constant 0 : i32
    %c0_i32_0 = arith.constant 0 : i32
    %c0_i32_1 = arith.constant 0 : i32
    return %c0_i32, %c0_i32_0 : i32, i32
  }
  func.func @transform_4(%arg0: i32) -> (i32, i32, i32, i32) {
    %c0_i32 = arith.constant 0 : i32
    %c0_i32_0 = arith.constant 0 : i32
    %c0_i32_1 = arith.constant 0 : i32
    %c0_i32_2 = arith.constant 0 : i32
    return %arg0, %c0_i32, %c0_i32_0, %c0_i32_1 : i32, i32, i32, i32
  }
}

</mosaic_0001>

<llo_original>
// kernel: tpu_custom_call.1
$region0: #{tpu_custom_call.1}
  #allocation0 [shape = 'u32[]', space=smem, size = 0x4, offset = 0x4, fixed_abs, tag = 'smem constant byte address 0x4 - core index']
  #allocation1 [shape = 'u32[144,128]{1,0:T(1,128)}', space=vmem, size = 0x12000, scoped, tag = 'internal scratch']
  #allocation2 [shape = 'f32[18,24,128]{2,1,0:T(8,128)}', space=vmem, size = 0x36000, scoped, tag = 'scratch operand']
  %s0 = inlined_call_operand.hbm [shape: bf16[2,16,16,128], index: 0, kind: input, shape index: {}]
  %s1 = inlined_call_operand.hbm [shape: bf16[9,128,128], index: 1, kind: input, shape index: {}]
  %s2 = inlined_call_operand.hbm [shape: bf16[9,128,128], index: 2, kind: input, shape index: {}]
  %s3 = inlined_call_operand.vmem [shape: f32[4,128], index: 3, kind: input, shape index: {}]
  %s4 = inlined_call_operand.hbm [shape: bf16[2,16,16,128], index: 4, kind: output, shape index: {}]
  %s5 = sld [smem:[#allocation0]]
  $region61: #{tpu_custom_call.1} parent=0
    _
  %s7 = ssub.s32 1, %s5
  %s8 = scalar_select 0, %s7, %s5
  $region1: #{tpu_custom_call.1} parent=0
    #allocation3 [shape = 'u8[131072]{0}', space=vmem, size = 0x20000, scoped, tag = 'input window, operand 0']
    #allocation4 [shape = 's32[2]{0}', space=sflag, size = 0x8, scoped, tag = 'scoped memory for tpu_custom_call.1']
    #allocation5 [shape = 's32[2]{0}', space=sflag, size = 0x8, scoped, tag = 'scoped memory for tpu_custom_call.1']
    #allocation6 [shape = 'u8[294912]{0}', space=vmem, size = 0x48000, scoped, tag = 'input window, operand 1, single buffered']
    #allocation7 [shape = 's32[1]{0}', space=sflag, size = 0x4, scoped, tag = 'scoped memory for tpu_custom_call.1']
    #allocation8 [shape = 'u8[294912]{0}', space=vmem, size = 0x48000, scoped, tag = 'input window, operand 2, single buffered']
    #allocation9 [shape = 'u8[131072]{0}', space=vmem, size = 0x20000, scoped, tag = 'output window, operand 0']
    %9 = vsyncpa [#allocation4], 0
    %s10 = scalar_lea.sflag [#allocation4], 1
    %11 = vsyncpa %s10, 0
    %12 = vsyncpa [#allocation7], 0
    %13 = vsyncpa [#allocation5], 0
    %s14 = scalar_lea.sflag [#allocation5], 1
    %15 = vsyncpa %s14, 0
    loop: start=0, step=1, limit=4
    $region2: #{tpu_custom_call.1} parent=1 // loop_pre_header
      _
    $region3: #{tpu_custom_call.1} parent=1 // loop_header
      %s17 = sphi 0, %s21
      %p18 = scmp.ge.s32.totalorder %s17, 4
      %s27 = sphi 0, %s29
      %s30 = sphi 0, %s27
      %s31 = sphi 0, %s30
      %s47 = sphi 0, %s31
      %s51 = sphi 0, %s51
      %s53 = sphi 0, %s51
      %s54 = sphi 0, %s53
      %s68 = sphi 0, %s54
      %s72 = sphi 0, %s72
      %s74 = sphi 0, %s72
      %s75 = sphi 0, %s74
      %s89 = sphi 0, %s75
      %s93 = sphi 0, %s93
      %s95 = sphi 0, %s93
      %s96 = sphi 0, %s95
      %s110 = sphi 0, %s96
      %s116 = sphi 0, %s118
      %s119 = sphi 0, %s116
      %s120 = sphi 0, %s119
      %s136 = sphi 0, %s120
    $region4: #{tpu_custom_call.1} parent=1 // loop_header_branch
      %20 = sbr.rel (%p18) target = $region8
    $region5: #{tpu_custom_call.1} parent=1 // loop_body
      %s22 = ssub.s32 %s17, 1
      %s23 = ssub.s32 %s17, 2
      %s24 = sadd.s32 %s17, 1
      %s25 = ssub.s32 %s17, %s24
      %p26 = scmp.eq.s32.totalorder %s25, 0
      %s28 = sadd.s32 %s27, 1
      %s29 = scalar_select %p26, %s27, %s28
      %p32 = pneg %p26
      %p33 = scmp.eq.s32.totalorder %s17, 1
      %p34 = por %p32, %p33
      %p35 = scmp.ne.s32.totalorder %s27, %s30
      %p36 = scmp.eq.s32.totalorder %s17, 0
      %p37 = por %p35, %p36
      %p38 = scmp.ne.s32.totalorder %s27, %s30
      %p39 = scmp.eq.s32.totalorder %s22, 1
      %p40 = por %p38, %p39
      %p41 = scmp.ne.s32.totalorder %s30, %s31
      %p42 = scmp.eq.s32.totalorder %s22, 0
      %p43 = por %p41, %p42
      %p44 = scmp.ne.s32.totalorder %s30, %s31
      %p45 = scmp.eq.s32.totalorder %s23, 1
      %p46 = por %p44, %p45
      %p48 = scmp.ne.s32.totalorder %s31, %s47
      %p49 = scmp.eq.s32.totalorder %s23, 0
      %p50 = por %p48, %p49
      %s52 = sadd.s32 %s51, 1
      %p55 = scmp.eq.s32.totalorder %s17, 1
      %p56 = scmp.ne.s32.totalorder %s51, %s53
      %p57 = scmp.eq.s32.totalorder %s17, 0
      %p58 = por %p56, %p57
      %p59 = scmp.ne.s32.totalorder %s51, %s53
      %p60 = scmp.eq.s32.totalorder %s22, 1
      %p61 = por %p59, %p60
      %p62 = scmp.ne.s32.totalorder %s53, %s54
      %p63 = scmp.eq.s32.totalorder %s22, 0
      %p64 = por %p62, %p63
      %p65 = scmp.ne.s32.totalorder %s53, %s54
      %p66 = scmp.eq.s32.totalorder %s23, 1
      %p67 = por %p65, %p66
      %p69 = scmp.ne.s32.totalorder %s54, %s68
      %p70 = scmp.eq.s32.totalorder %s23, 0
      %p71 = por %p69, %p70
      %s73 = sadd.s32 %s72, 1
      %p76 = scmp.eq.s32.totalorder %s17, 1
      %p77 = scmp.ne.s32.totalorder %s72, %s74
      %p78 = scmp.eq.s32.totalorder %s17, 0
      %p79 = por %p77, %p78
      %p80 = scmp.ne.s32.totalorder %s72, %s74
      %p81 = scmp.eq.s32.totalorder %s22, 1
      %p82 = por %p80, %p81
      %p83 = scmp.ne.s32.totalorder %s74, %s75
      %p84 = scmp.eq.s32.totalorder %s22, 0
      %p85 = por %p83, %p84
      %p86 = scmp.ne.s32.totalorder %s74, %s75
      %p87 = scmp.eq.s32.totalorder %s23, 1
      %p88 = por %p86, %p87
      %p90 = scmp.ne.s32.totalorder %s75, %s89
      %p91 = scmp.eq.s32.totalorder %s23, 0
      %p92 = por %p90, %p91
      %s94 = sadd.s32 %s93, 1
      %p97 = scmp.eq.s32.totalorder %s17, 1
      %p98 = scmp.ne.s32.totalorder %s93, %s95
      %p99 = scmp.eq.s32.totalorder %s17, 0
      %p100 = por %p98, %p99
      %p101 = scmp.ne.s32.totalorder %s93, %s95
      %p102 = scmp.eq.s32.totalorder %s22, 1
      %p103 = por %p101, %p102
      %p104 = scmp.ne.s32.totalorder %s95, %s96
      %p105 = scmp.eq.s32.totalorder %s22, 0
      %p106 = por %p104, %p105
      %p107 = scmp.ne.s32.totalorder %s95, %s96
      %p108 = scmp.eq.s32.totalorder %s23, 1
      %p109 = por %p107, %p108
      %p111 = scmp.ne.s32.totalorder %s96, %s110
      %p112 = scmp.eq.s32.totalorder %s23, 0
      %p113 = por %p111, %p112
      %s114 = ssub.s32 %s17, %s24
      %p115 = scmp.eq.s32.totalorder %s114, 0
      %s117 = sadd.s32 %s116, 1
      %s118 = scalar_select %p115, %s116, %s117
      %p121 = pneg %p115
      %p122 = scmp.eq.s32.totalorder %s17, 1
      %p123 = por %p121, %p122
      %p124 = scmp.ne.s32.totalorder %s116, %s119
      %p125 = scmp.eq.s32.totalorder %s17, 0
      %p126 = por %p124, %p125
      %p127 = scmp.ne.s32.totalorder %s116, %s119
      %p128 = scmp.eq.s32.totalorder %s22, 1
      %p129 = por %p127, %p128
      %p130 = scmp.ne.s32.totalorder %s119, %s120
      %p131 = scmp.eq.s32.totalorder %s22, 0
      %p132 = por %p130, %p131
      %p133 = scmp.ne.s32.totalorder %s119, %s120
      %p134 = scmp.eq.s32.totalorder %s23, 1
      %p135 = por %p133, %p134
      %p137 = scmp.ne.s32.totalorder %s120, %s136
      %p138 = scmp.eq.s32.totalorder %s23, 0
      %p139 = por %p137, %p138
      %p140 = scmp.le.s32.totalorder 1, %s17
      %p141 = scmp.lt.s32.totalorder %s17, 3
      %p142 = pnand %p140, %p141
      %p143 = pneg %p142
      // Predicated region
      $region9: #{tpu_custom_call.1} parent=5 // pred_check
        _
      $region10: #{tpu_custom_call.1} parent=5 // pred_check_branch
        %145 = sbr.rel (%p142) target = $region12
      $region11: #{tpu_custom_call.1} parent=5 // pred_region
        %s146 = ssub.s32 %s17, 1
        // Predicated region
        $region13: #{tpu_custom_call.1} parent=11 // pred_check
          %p147 = pneg %p64
        $region14: #{tpu_custom_call.1} parent=11 // pred_check_branch
          %149 = sbr.rel (%p147) target = $region16
        $region15: #{tpu_custom_call.1} parent=11 // pred_region
          %s151 = ssub.s32 9216, 9216
          %152 = vsyncadd [#allocation7], %s151
          %s153 = sshll.u32 [#allocation6], 4
          %s154 = int_to_ptr.vmem [resolvable:$true] %s153
          %159 = dma.hbm_to_vmem [thread:$0]  %s1, 9216, %s154, [#allocation7], 64, 64, 4
        $region16: #{tpu_custom_call.1} parent=11 // pred_fallthru
          _
        // Predicated region
        $region17: #{tpu_custom_call.1} parent=11 // pred_check
          %p160 = pneg %p85
        $region18: #{tpu_custom_call.1} parent=11 // pred_check_branch
          %162 = sbr.rel (%p160) target = $region20
        $region19: #{tpu_custom_call.1} parent=11 // pred_region
          %s164 = ssub.s32 9216, 9216
          %165 = vsyncadd [#allocation7], %s164
          %s166 = sshll.u32 [#allocation8], 4
          %s167 = int_to_ptr.vmem [resolvable:$true] %s166
          %172 = dma.hbm_to_vmem [thread:$0]  %s2, 9216, %s167, [#allocation7], 64, 64, 4
        $region20: #{tpu_custom_call.1} parent=11 // pred_fallthru
          _
        // Predicated region
        $region21: #{tpu_custom_call.1} parent=11 // pred_check
          %p173 = pneg %p106
        $region22: #{tpu_custom_call.1} parent=11 // pred_check_branch
          %175 = sbr.rel (%p173) target = $region24
        $region23: #{tpu_custom_call.1} parent=11 // pred_region
          _
        $region24: #{tpu_custom_call.1} parent=11 // pred_fallthru
          _
      $region12: #{tpu_custom_call.1} parent=5 // pred_fallthru
        _
      %p176 = scmp.lt.s32.totalorder %s17, 2
      // Predicated region
      $region25: #{tpu_custom_call.1} parent=5 // pred_check
        %p177 = pneg %p176
      $region26: #{tpu_custom_call.1} parent=5 // pred_check_branch
        %179 = sbr.rel (%p177) target = $region28
      $region27: #{tpu_custom_call.1} parent=5 // pred_region
        // Predicated region
        $region29: #{tpu_custom_call.1} parent=27 // pred_check
          %p180 = pneg %p37
        $region30: #{tpu_custom_call.1} parent=27 // pred_check_branch
          %182 = sbr.rel (%p180) target = $region32
        $region31: #{tpu_custom_call.1} parent=27 // pred_region
          %s183 = sand.u32 %s27, 1
          %s184 = scalar_lea.sflag [#allocation4], %s183
          %s185 = sand.u32 %s27, 1
          %s186 = smul.addr %s185, 128
          %s187 = scalar_lea.vmem [#allocation3], %s186
          %s189 = ssub.s32 2048, 2048
          %190 = vsyncadd %s184, %s189
          %s191 = smul.addr %s17, 32
          %s192 = smul.addr %s191, 64
          %s193 = scalar_lea.hbm %s0, %s192
          %s194 = sshll.u32 %s187, 4
          %s195 = int_to_ptr.vmem [resolvable:$true] %s194
          %200 = dma.hbm_to_vmem [thread:$0]  %s193, 2048, %s195, %s184, 64, 64, 4
        $region32: #{tpu_custom_call.1} parent=27 // pred_fallthru
          _
      $region28: #{tpu_custom_call.1} parent=5 // pred_fallthru
        _
      %p201 = scmp.le.s32.totalorder 1, %s17
      %p202 = scmp.lt.s32.totalorder %s17, 3
      %p203 = pnand %p201, %p202
      %p204 = pneg %p203
      // Predicated region
      $region33: #{tpu_custom_call.1} parent=5 // pred_check
        _
      $region34: #{tpu_custom_call.1} parent=5 // pred_check_branch
        %206 = sbr.rel (%p203) target = $region36
      $region35: #{tpu_custom_call.1} parent=5 // pred_region
        %s207 = ssub.s32 %s17, 1
        %s208 = sand.u32 %s30, 1
        %s209 = scalar_lea.sflag [#allocation4], %s208
        %s210 = sand.u32 %s30, 1
        %s211 = smul.addr %s210, 128
        %s212 = scalar_lea.vmem [#allocation3], %s211
        // Predicated region
        $region37: #{tpu_custom_call.1} parent=35 // pred_check
          %p213 = pneg %p43
        $region38: #{tpu_custom_call.1} parent=35 // pred_check_branch
          %215 = sbr.rel (%p213) target = $region40
        $region39: #{tpu_custom_call.1} parent=35 // pred_region
          %216 = dma.done %s209, 2048
        $region40: #{tpu_custom_call.1} parent=35 // pred_fallthru
          _
        // Predicated region
        $region41: #{tpu_custom_call.1} parent=35 // pred_check
          %p217 = pneg %p64
        $region42: #{tpu_custom_call.1} parent=35 // pred_check_branch
          %219 = sbr.rel (%p217) target = $region44
        $region43: #{tpu_custom_call.1} parent=35 // pred_region
          %220 = dma.done [#allocation7], 9216
        $region44: #{tpu_custom_call.1} parent=35 // pred_fallthru
          _
        // Predicated region
        $region45: #{tpu_custom_call.1} parent=35 // pred_check
          %p221 = pneg %p85
        $region46: #{tpu_custom_call.1} parent=35 // pred_check_branch
          %223 = sbr.rel (%p221) target = $region48
        $region47: #{tpu_custom_call.1} parent=35 // pred_region
          %224 = dma.done [#allocation7], 9216
        $region48: #{tpu_custom_call.1} parent=35 // pred_fallthru
          _
        %s225 = sand.u32 %s30, 1
        %s226 = scalar_lea.sflag [#allocation4], %s225
        %s227 = sand.u32 %s30, 1
        %s228 = smul.addr %s227, 128
        %s229 = scalar_lea.vmem [#allocation3], %s228
        %p230 = pneg %p43
        %p231 = pneg %p40
        %p232 = pneg %p64
        %p233 = pneg %p61
        %p234 = pneg %p85
        %p235 = pneg %p82
        %p236 = pneg %p106
        %p237 = pneg %p103
        %p238 = pneg %p132
        %p239 = pneg %p129
        %s240 = sand.u32 %s119, 1
        %s241 = scalar_lea.sflag [#allocation5], %s240
        %s242 = sand.u32 %s119, 1
        %s243 = smul.addr %s242, 128
        %s244 = scalar_lea.vmem [#allocation9], %s243
        %v246 = vld [vmem:[%s212] sm:$0xf]
        %v247 = vld [vmem:[%s212 + $0x4] sm:$0xf]
        %v248 = vld [vmem:[%s212 + $0x8] sm:$0xf]
        %v249 = vld [vmem:[%s212 + $0xc] sm:$0xf]
        %v250 = vld [vmem:[%s212 + $0x10] sm:$0xf]
        %v251 = vld [vmem:[%s212 + $0x14] sm:$0xf]
        %v252 = vld [vmem:[%s212 + $0x18] sm:$0xf]
        %v253 = vld [vmem:[%s212 + $0x1c] sm:$0xf]
        %v254 = vld [vmem:[%s212 + $0x20] sm:$0xf]
        %v255 = vld [vmem:[%s212 + $0x24] sm:$0xf]
        %v256 = vld [vmem:[%s212 + $0x28] sm:$0xf]
        %v257 = vld [vmem:[%s212 + $0x2c] sm:$0xf]
        %v258 = vld [vmem:[%s212 + $0x30] sm:$0xf]
        %v259 = vld [vmem:[%s212 + $0x34] sm:$0xf]
        %v260 = vld [vmem:[%s212 + $0x38] sm:$0xf]
        %v261 = vld [vmem:[%s212 + $0x3c] sm:$0xf]
        %v262 = vld [vmem:[%s212 + $0x40] sm:$0xf]
        %v263 = vld [vmem:[%s212 + $0x44] sm:$0xf]
        %v264 = vld [vmem:[%s212 + $0x48] sm:$0xf]
        %v265 = vld [vmem:[%s212 + $0x4c] sm:$0xf]
        %v266 = vld [vmem:[%s212 + $0x50] sm:$0xf]
        %v267 = vld [vmem:[%s212 + $0x54] sm:$0xf]
        %v268 = vld [vmem:[%s212 + $0x58] sm:$0xf]
        %v269 = vld [vmem:[%s212 + $0x5c] sm:$0xf]
        %v270 = vld [vmem:[%s212 + $0x60] sm:$0xf]
        %v271 = vld [vmem:[%s212 + $0x64] sm:$0xf]
        %v272 = vld [vmem:[%s212 + $0x68] sm:$0xf]
        %v273 = vld [vmem:[%s212 + $0x6c] sm:$0xf]
        %v274 = vld [vmem:[%s212 + $0x70] sm:$0xf]
        %v275 = vld [vmem:[%s212 + $0x74] sm:$0xf]
        %v276 = vld [vmem:[%s212 + $0x78] sm:$0xf]
        %v277 = vld [vmem:[%s212 + $0x7c] sm:$0xf]
        %v278 = vunpack.c.l.bf16 %v246
        %v279 = vunpack.c.l.bf16 %v247
        %v280 = vunpack.c.l.bf16 %v248
        %v281 = vunpack.c.l.bf16 %v249
        %v282 = vunpack.c.l.bf16 %v250
        %v283 = vunpack.c.l.bf16 %v251
        %v284 = vunpack.c.l.bf16 %v252
        %v285 = vunpack.c.l.bf16 %v253
        %v286 = vunpack.c.l.bf16 %v254
        %v287 = vunpack.c.l.bf16 %v255
        %v288 = vunpack.c.l.bf16 %v256
        %v289 = vunpack.c.l.bf16 %v257
        %v290 = vunpack.c.l.bf16 %v258
        %v291 = vunpack.c.l.bf16 %v259
        %v292 = vunpack.c.l.bf16 %v260
        %v293 = vunpack.c.l.bf16 %v261
        %v294 = vunpack.c.l.bf16 %v262
        %v295 = vunpack.c.l.bf16 %v263
        %v296 = vunpack.c.l.bf16 %v264
        %v297 = vunpack.c.l.bf16 %v265
        %v298 = vunpack.c.l.bf16 %v266
        %v299 = vunpack.c.l.bf16 %v267
        %v300 = vunpack.c.l.bf16 %v268
        %v301 = vunpack.c.l.bf16 %v269
        %v302 = vunpack.c.l.bf16 %v270
        %v303 = vunpack.c.l.bf16 %v271
        %v304 = vunpack.c.l.bf16 %v272
        %v305 = vunpack.c.l.bf16 %v273
        %v306 = vunpack.c.l.bf16 %v274
        %v307 = vunpack.c.l.bf16 %v275
        %v308 = vunpack.c.l.bf16 %v276
        %v309 = vunpack.c.l.bf16 %v277
        %310 = vst [vmem:[#allocation2] sm:$0xff] 0.0
        %311 = vst [vmem:[#allocation2 + $0x8] sm:$0xff] 0.0
        %312 = vst [vmem:[#allocation2 + $0x10] sm:$0xff] 0.0
        %313 = vst [vmem:[#allocation2 + $0x18] sm:$0xff] 0.0
        %314 = vst [vmem:[#allocation2 + $0x20] sm:$0xff] 0.0
        %315 = vst [vmem:[#allocation2 + $0x28] sm:$0xff] 0.0
        %316 = vst [vmem:[#allocation2 + $0x30] sm:$0xff] 0.0
        %317 = vst [vmem:[#allocation2 + $0x38] sm:$0xff] 0.0
        %318 = vst [vmem:[#allocation2 + $0x40] sm:$0xff] 0.0
        %319 = vst [vmem:[#allocation2 + $0x48] sm:$0xff] 0.0
        %320 = vst [vmem:[#allocation2 + $0x50] sm:$0xff] 0.0
        %321 = vst [vmem:[#allocation2 + $0x58] sm:$0xff] 0.0
        %322 = vst [vmem:[#allocation2 + $0x60] sm:$0xff] 0.0
        %323 = vst [vmem:[#allocation2 + $0x68] sm:$0xff] 0.0
        %324 = vst [vmem:[#allocation2 + $0x70] sm:$0xff] 0.0
        %325 = vst [vmem:[#allocation2 + $0x78] sm:$0xff] 0.0
        %326 = vst [vmem:[#allocation2 + $0x80] sm:$0xff] 0.0
        %327 = vst [vmem:[#allocation2 + $0x88] sm:$0xff] 0.0
        %328 = vst [vmem:[#allocation2 + $0x90] sm:$0xff] 0.0
        %329 = vst [vmem:[#allocation2 + $0x98] sm:$0xff] 0.0
        %330 = vst [vmem:[#allocation2 + $0xa0] sm:$0xff] 0.0
        %331 = vst [vmem:[#allocation2 + $0xa8] sm:$0xff] 0.0
        %332 = vst [vmem:[#allocation2 + $0xb0] sm:$0xff] 0.0
        %333 = vst [vmem:[#allocation2 + $0xb8] sm:$0xff] 0.0
        %334 = vst [vmem:[#allocation2 + $0xc0] sm:$0xff] 0.0
        %335 = vst [vmem:[#allocation2 + $0xc8] sm:$0xff] 0.0
        %336 = vst [vmem:[#allocation2 + $0xd0] sm:$0xff] 0.0
        %337 = vst [vmem:[#allocation2 + $0xd8] sm:$0xff] 0.0
        %338 = vst [vmem:[#allocation2 + $0xe0] sm:$0xff] 0.0
        %339 = vst [vmem:[#allocation2 + $0xe8] sm:$0xff] 0.0
        %340 = vst [vmem:[#allocation2 + $0xf0] sm:$0xff] 0.0
        %341 = vst [vmem:[#allocation2 + $0xf8] sm:$0xff] 0.0
        %342 = vst [vmem:[#allocation2 + $0x100] sm:$0xff] 0.0
        %343 = vst [vmem:[#allocation2 + $0x108] sm:$0xff] 0.0
        %344 = vst [vmem:[#allocation2 + $0x110] sm:$0xff] 0.0
        %345 = vst [vmem:[#allocation2 + $0x118] sm:$0xff] 0.0
        %346 = vst [vmem:[#allocation2 + $0x120] sm:$0xff] 0.0
        %347 = vst [vmem:[#allocation2 + $0x128] sm:$0xff] 0.0
        %348 = vst [vmem:[#allocation2 + $0x130] sm:$0xff] 0.0
        %349 = vst [vmem:[#allocation2 + $0x138] sm:$0xff] 0.0
        %350 = vst [vmem:[#allocation2 + $0x140] sm:$0xff] 0.0
        %351 = vst [vmem:[#allocation2 + $0x148] sm:$0xff] 0.0
        %352 = vst [vmem:[#allocation2 + $0x150] sm:$0xff] 0.0
        %353 = vst [vmem:[#allocation2 + $0x158] sm:$0xff] 0.0
        %354 = vst [vmem:[#allocation2 + $0x160] sm:$0xff] 0.0
        %355 = vst [vmem:[#allocation2 + $0x168] sm:$0xff] 0.0
        %356 = vst [vmem:[#allocation2 + $0x170] sm:$0xff] 0.0
        %357 = vst [vmem:[#allocation2 + $0x178] sm:$0xff] 0.0
        %358 = vst [vmem:[#allocation2 + $0x180] sm:$0xff] 0.0
        %359 = vst [vmem:[#allocation2 + $0x188] sm:$0xff] 0.0
        %360 = vst [vmem:[#allocation2 + $0x190] sm:$0xff] 0.0
        %361 = vst [vmem:[#allocation2 + $0x198] sm:$0xff] 0.0
        %362 = vst [vmem:[#allocation2 + $0x1a0] sm:$0xff] 0.0
        %363 = vst [vmem:[#allocation2 + $0x1a8] sm:$0xff] 0.0
        %s364 = scalar_lea.vmem [#allocation2], 24
        %365 = vst [vmem:[%s364] sm:$0xff] %v278
        %366 = vst [vmem:[%s364 + $0x8] sm:$0xff] %v279
        %367 = vst [vmem:[%s364 + $0x18] sm:$0xff] %v280
        %368 = vst [vmem:[%s364 + $0x20] sm:$0xff] %v281
        %369 = vst [vmem:[%s364 + $0x30] sm:$0xff] %v282
        %370 = vst [vmem:[%s364 + $0x38] sm:$0xff] %v283
        %371 = vst [vmem:[%s364 + $0x48] sm:$0xff] %v284
        %372 = vst [vmem:[%s364 + $0x50] sm:$0xff] %v285
        %373 = vst [vmem:[%s364 + $0x60] sm:$0xff] %v286
        %374 = vst [vmem:[%s364 + $0x68] sm:$0xff] %v287
        %375 = vst [vmem:[%s364 + $0x78] sm:$0xff] %v288
        %376 = vst [vmem:[%s364 + $0x80] sm:$0xff] %v289
        %377 = vst [vmem:[%s364 + $0x90] sm:$0xff] %v290
        %378 = vst [vmem:[%s364 + $0x98] sm:$0xff] %v291
        %379 = vst [vmem:[%s364 + $0xa8] sm:$0xff] %v292
        %380 = vst [vmem:[%s364 + $0xb0] sm:$0xff] %v293
        %381 = vst [vmem:[%s364 + $0xc0] sm:$0xff] %v294
        %382 = vst [vmem:[%s364 + $0xc8] sm:$0xff] %v295
        %383 = vst [vmem:[%s364 + $0xd8] sm:$0xff] %v296
        %384 = vst [vmem:[%s364 + $0xe0] sm:$0xff] %v297
        %385 = vst [vmem:[%s364 + $0xf0] sm:$0xff] %v298
        %386 = vst [vmem:[%s364 + $0xf8] sm:$0xff] %v299
        %387 = vst [vmem:[%s364 + $0x108] sm:$0xff] %v300
        %388 = vst [vmem:[%s364 + $0x110] sm:$0xff] %v301
        %389 = vst [vmem:[%s364 + $0x120] sm:$0xff] %v302
        %390 = vst [vmem:[%s364 + $0x128] sm:$0xff] %v303
        %391 = vst [vmem:[%s364 + $0x138] sm:$0xff] %v304
        %392 = vst [vmem:[%s364 + $0x140] sm:$0xff] %v305
        %393 = vst [vmem:[%s364 + $0x150] sm:$0xff] %v306
        %394 = vst [vmem:[%s364 + $0x158] sm:$0xff] %v307
        %395 = vst [vmem:[%s364 + $0x168] sm:$0xff] %v308
        %396 = vst [vmem:[%s364 + $0x170] sm:$0xff] %v309
        %v397 = vld [vmem:[#allocation2] sm:$0xff]
        %v398 = vld [vmem:[#allocation2 + $0x8] sm:$0xff]
        %v399 = vld [vmem:[#allocation2 + $0x10] sm:$0xff]
        %v400 = vld [vmem:[#allocation2 + $0x18] sm:$0xff]
        %v401 = vld [vmem:[#allocation2 + $0x20] sm:$0xff]
        %v402 = vld [vmem:[#allocation2 + $0x28] sm:$0xff]
        %v403 = vld [vmem:[#allocation2 + $0x30] sm:$0xff]
        %v404 = vld [vmem:[#allocation2 + $0x38] sm:$0xff]
        %v405 = vld [vmem:[#allocation2 + $0x40] sm:$0xff]
        %v406 = vld [vmem:[#allocation2 + $0x48] sm:$0xff]
        %v407 = vld [vmem:[#allocation2 + $0x50] sm:$0xff]
        %v408 = vld [vmem:[#allocation2 + $0x58] sm:$0xff]
        %v409 = vld [vmem:[#allocation2 + $0x60] sm:$0xff]
        %v410 = vld [vmem:[#allocation2 + $0x68] sm:$0xff]
        %v411 = vld [vmem:[#allocation2 + $0x70] sm:$0xff]
        %v412 = vld [vmem:[#allocation2 + $0x78] sm:$0xff]
        %v413 = vld [vmem:[#allocation2 + $0x80] sm:$0xff]
        %v414 = vld [vmem:[#allocation2 + $0x88] sm:$0xff]
        %v415 = vld [vmem:[#allocation2 + $0x90] sm:$0xff]
        %v416 = vld [vmem:[#allocation2 + $0x98] sm:$0xff]
        %v417 = vld [vmem:[#allocation2 + $0xa0] sm:$0xff]
        %v418 = vld [vmem:[#allocation2 + $0xa8] sm:$0xff]
        %v419 = vld [vmem:[#allocation2 + $0xb0] sm:$0xff]
        %v420 = vld [vmem:[#allocation2 + $0xb8] sm:$0xff]
        %v421 = vld [vmem:[#allocation2 + $0xc0] sm:$0xff]
        %v422 = vld [vmem:[#allocation2 + $0xc8] sm:$0xff]
        %v423 = vld [vmem:[#allocation2 + $0xd0] sm:$0xff]
        %v424 = vld [vmem:[#allocation2 + $0xd8] sm:$0xff]
        %v425 = vld [vmem:[#allocation2 + $0xe0] sm:$0xff]
        %v426 = vld [vmem:[#allocation2 + $0xe8] sm:$0xff]
        %v427 = vld [vmem:[#allocation2 + $0xf0] sm:$0xff]
        %v428 = vld [vmem:[#allocation2 + $0xf8] sm:$0xff]
        %v429 = vld [vmem:[#allocation2 + $0x100] sm:$0xff]
        %v430 = vld [vmem:[#allocation2 + $0x108] sm:$0xff]
        %v431 = vld [vmem:[#allocation2 + $0x110] sm:$0xff]
        %v432 = vld [vmem:[#allocation2 + $0x118] sm:$0xff]
        %v433 = vld [vmem:[#allocation2 + $0x120] sm:$0xff]
        %v434 = vld [vmem:[#allocation2 + $0x128] sm:$0xff]
        %v435 = vld [vmem:[#allocation2 + $0x130] sm:$0xff]
        %v436 = vld [vmem:[#allocation2 + $0x138] sm:$0xff]
        %v437 = vld [vmem:[#allocation2 + $0x140] sm:$0xff]
        %v438 = vld [vmem:[#allocation2 + $0x148] sm:$0xff]
        %v439 = vld [vmem:[#allocation2 + $0x150] sm:$0xff]
        %v440 = vld [vmem:[#allocation2 + $0x158] sm:$0xff]
        %v441 = vld [vmem:[#allocation2 + $0x160] sm:$0xff]
        %v442 = vld [vmem:[#allocation2 + $0x168] sm:$0xff]
        %v443 = vld [vmem:[#allocation2 + $0x170] sm:$0xff]
        %v444 = vld [vmem:[#allocation2 + $0x178] sm:$0xff]
        %v445 = vld [vmem:[#allocation2 + $0x180] sm:$0xff]
        %v446 = vld [vmem:[#allocation2 + $0x188] sm:$0xff]
        %v447 = vld [vmem:[#allocation2 + $0x190] sm:$0xff]
        %v448 = vld [vmem:[#allocation2 + $0x198] sm:$0xff]
        %v449 = vld [vmem:[#allocation2 + $0x1a0] sm:$0xff]
        %v450 = vld [vmem:[#allocation2 + $0x1a8] sm:$0xff]
        %v451 = vrot.slane %v397, 7
        %v452 = vrot.slane %v398, 7
        %v453 = vrot.slane %v399, 7
        %v454 = vrot.slane %v400, 7
        %v455 = vrot.slane %v401, 7
        %v456 = vrot.slane %v402, 7
        %v457 = vrot.slane %v403, 7
        %v458 = vrot.slane %v404, 7
        %v459 = vrot.slane %v405, 7
        %v460 = vrot.slane %v406, 7
        %v461 = vrot.slane %v407, 7
        %v462 = vrot.slane %v408, 7
        %v463 = vrot.slane %v409, 7
        %v464 = vrot.slane %v410, 7
        %v465 = vrot.slane %v411, 7
        %v466 = vrot.slane %v412, 7
        %v467 = vrot.slane %v413, 7
        %v468 = vrot.slane %v414, 7
        %v469 = vrot.slane %v415, 7
        %v470 = vrot.slane %v416, 7
        %v471 = vrot.slane %v417, 7
        %v472 = vrot.slane %v418, 7
        %v473 = vrot.slane %v419, 7
        %v474 = vrot.slane %v420, 7
        %v475 = vrot.slane %v421, 7
        %v476 = vrot.slane %v422, 7
        %v477 = vrot.slane %v423, 7
        %v478 = vrot.slane %v424, 7
        %v479 = vrot.slane %v425, 7
        %v480 = vrot.slane %v426, 7
        %v481 = vrot.slane %v427, 7
        %v482 = vrot.slane %v428, 7
        %v483 = vrot.slane %v429, 7
        %v484 = vrot.slane %v430, 7
        %v485 = vrot.slane %v431, 7
        %v486 = vrot.slane %v432, 7
        %v487 = vrot.slane %v433, 7
        %v488 = vrot.slane %v434, 7
        %v489 = vrot.slane %v435, 7
        %v490 = vrot.slane %v436, 7
        %v491 = vrot.slane %v437, 7
        %v492 = vrot.slane %v438, 7
        %v493 = vrot.slane %v439, 7
        %v494 = vrot.slane %v440, 7
        %v495 = vrot.slane %v441, 7
        %v496 = vrot.slane %v442, 7
        %v497 = vrot.slane %v443, 7
        %v498 = vrot.slane %v444, 7
        %v499 = vrot.slane %v445, 7
        %v500 = vrot.slane %v446, 7
        %v501 = vrot.slane %v447, 7
        %v502 = vrot.slane %v448, 7
        %v503 = vrot.slane %v449, 7
        %v504 = vrot.slane %v450, 7
        %v505 = vlaneseq
        %v506 = vshrl.u32 %v505, 7
        %vm507 = vcmp.lt.s32.totalorder %v506, 1
        %v508 = vsel %vm507, %v503, %v504
        %v509 = vsel %vm507, %v502, %v503
        %v510 = vsel %vm507, %v501, %v502
        %v511 = vsel %vm507, %v500, %v501
        %v512 = vsel %vm507, %v499, %v500
        %v513 = vsel %vm507, %v498, %v499
        %v514 = vsel %vm507, %v497, %v498
        %v515 = vsel %vm507, %v496, %v497
        %v516 = vsel %vm507, %v495, %v496
        %v517 = vsel %vm507, %v494, %v495
        %v518 = vsel %vm507, %v493, %v494
        %v519 = vsel %vm507, %v492, %v493
        %v520 = vsel %vm507, %v491, %v492
        %v521 = vsel %vm507, %v490, %v491
        %v522 = vsel %vm507, %v489, %v490
        %v523 = vsel %vm507, %v488, %v489
        %v524 = vsel %vm507, %v487, %v488
        %v525 = vsel %vm507, %v486, %v487
        %v526 = vsel %vm507, %v485, %v486
        %v527 = vsel %vm507, %v484, %v485
        %v528 = vsel %vm507, %v483, %v484
        %v529 = vsel %vm507, %v482, %v483
        %v530 = vsel %vm507, %v481, %v482
        %v531 = vsel %vm507, %v480, %v481
        %v532 = vsel %vm507, %v479, %v480
        %v533 = vsel %vm507, %v478, %v479
        %v534 = vsel %vm507, %v477, %v478
        %v535 = vsel %vm507, %v476, %v477
        %v536 = vsel %vm507, %v475, %v476
        %v537 = vsel %vm507, %v474, %v475
        %v538 = vsel %vm507, %v473, %v474
        %v539 = vsel %vm507, %v472, %v473
        %v540 = vsel %vm507, %v471, %v472
        %v541 = vsel %vm507, %v470, %v471
        %v542 = vsel %vm507, %v469, %v470
        %v543 = vsel %vm507, %v468, %v469
        %v544 = vsel %vm507, %v467, %v468
        %v545 = vsel %vm507, %v466, %v467
        %v546 = vsel %vm507, %v465, %v466
        %v547 = vsel %vm507, %v464, %v465
        %v548 = vsel %vm507, %v463, %v464
        %v549 = vsel %vm507, %v462, %v463
        %v550 = vsel %vm507, %v461, %v462
        %v551 = vsel %vm507, %v460, %v461
        %v552 = vsel %vm507, %v459, %v460
        %v553 = vsel %vm507, %v458, %v459
        %v554 = vsel %vm507, %v457, %v458
        %v555 = vsel %vm507, %v456, %v457
        %v556 = vsel %vm507, %v455, %v456
        %v557 = vsel %vm507, %v454, %v455
        %v558 = vsel %vm507, %v453, %v454
        %v559 = vsel %vm507, %v452, %v453
        %v560 = vsel %vm507, %v451, %v452
        %v561 = vsel %vm507, %v504, %v451
        %v562 = vrot.slane %v397, 1
        %v563 = vrot.slane %v398, 1
        %v564 = vrot.slane %v399, 1
        %v565 = vrot.slane %v400, 1
        %v566 = vrot.slane %v401, 1
        %v567 = vrot.slane %v402, 1
        %v568 = vrot.slane %v403, 1
        %v569 = vrot.slane %v404, 1
        %v570 = vrot.slane %v405, 1
        %v571 = vrot.slane %v406, 1
        %v572 = vrot.slane %v407, 1
        %v573 = vrot.slane %v408, 1
        %v574 = vrot.slane %v409, 1
        %v575 = vrot.slane %v410, 1
        %v576 = vrot.slane %v411, 1
        %v577 = vrot.slane %v412, 1
        %v578 = vrot.slane %v413, 1
        %v579 = vrot.slane %v414, 1
        %v580 = vrot.slane %v415, 1
        %v581 = vrot.slane %v416, 1
        %v582 = vrot.slane %v417, 1
        %v583 = vrot.slane %v418, 1
        %v584 = vrot.slane %v419, 1
        %v585 = vrot.slane %v420, 1
        %v586 = vrot.slane %v421, 1
        %v587 = vrot.slane %v422, 1
        %v588 = vrot.slane %v423, 1
        %v589 = vrot.slane %v424, 1
        %v590 = vrot.slane %v425, 1
        %v591 = vrot.slane %v426, 1
        %v592 = vrot.slane %v427, 1
        %v593 = vrot.slane %v428, 1
        %v594 = vrot.slane %v429, 1
        %v595 = vrot.slane %v430, 1
        %v596 = vrot.slane %v431, 1
        %v597 = vrot.slane %v432, 1
        %v598 = vrot.slane %v433, 1
        %v599 = vrot.slane %v434, 1
        %v600 = vrot.slane %v435, 1
        %v601 = vrot.slane %v436, 1
        %v602 = vrot.slane %v437, 1
        %v603 = vrot.slane %v438, 1
        %v604 = vrot.slane %v439, 1
        %v605 = vrot.slane %v440, 1
        %v606 = vrot.slane %v441, 1
        %v607 = vrot.slane %v442, 1
        %v608 = vrot.slane %v443, 1
        %v609 = vrot.slane %v444, 1
        %v610 = vrot.slane %v445, 1
        %v611 = vrot.slane %v446, 1
        %v612 = vrot.slane %v447, 1
        %v613 = vrot.slane %v448, 1
        %v614 = vrot.slane %v449, 1
        %v615 = vrot.slane %v450, 1
        %vm616 = vcmp.lt.s32.totalorder %v506, 7
        %v617 = vsel %vm616, %v614, %v615
        %v618 = vsel %vm616, %v613, %v614
        %v619 = vsel %vm616, %v612, %v613
        %v620 = vsel %vm616, %v611, %v612
        %v621 = vsel %vm616, %v610, %v611
        %v622 = vsel %vm616, %v609, %v610
        %v623 = vsel %vm616, %v608, %v609
        %v624 = vsel %vm616, %v607, %v608
        %v625 = vsel %vm616, %v606, %v607
        %v626 = vsel %vm616, %v605, %v606
        %v627 = vsel %vm616, %v604, %v605
        %v628 = vsel %vm616, %v603, %v604
        %v629 = vsel %vm616, %v602, %v603
        %v630 = vsel %vm616, %v601, %v602
        %v631 = vsel %vm616, %v600, %v601
        %v632 = vsel %vm616, %v599, %v600
        %v633 = vsel %vm616, %v598, %v599
        %v634 = vsel %vm616, %v597, %v598
        %v635 = vsel %vm616, %v596, %v597
        %v636 = vsel %vm616, %v595, %v596
        %v637 = vsel %vm616, %v594, %v595
        %v638 = vsel %vm616, %v593, %v594
        %v639 = vsel %vm616, %v592, %v593
        %v640 = vsel %vm616, %v591, %v592
        %v641 = vsel %vm616, %v590, %v591
        %v642 = vsel %vm616, %v589, %v590
        %v643 = vsel %vm616, %v588, %v589
        %v644 = vsel %vm616, %v587, %v588
        %v645 = vsel %vm616, %v586, %v587
        %v646 = vsel %vm616, %v585, %v586
        %v647 = vsel %vm616, %v584, %v585
        %v648 = vsel %vm616, %v583, %v584
        %v649 = vsel %vm616, %v582, %v583
        %v650 = vsel %vm616, %v581, %v582
        %v651 = vsel %vm616, %v580, %v581
        %v652 = vsel %vm616, %v579, %v580
        %v653 = vsel %vm616, %v578, %v579
        %v654 = vsel %vm616, %v577, %v578
        %v655 = vsel %vm616, %v576, %v577
        %v656 = vsel %vm616, %v575, %v576
        %v657 = vsel %vm616, %v574, %v575
        %v658 = vsel %vm616, %v573, %v574
        %v659 = vsel %vm616, %v572, %v573
        %v660 = vsel %vm616, %v571, %v572
        %v661 = vsel %vm616, %v570, %v571
        %v662 = vsel %vm616, %v569, %v570
        %v663 = vsel %vm616, %v568, %v569
        %v664 = vsel %vm616, %v567, %v568
        %v665 = vsel %vm616, %v566, %v567
        %v666 = vsel %vm616, %v565, %v566
        %v667 = vsel %vm616, %v564, %v565
        %v668 = vsel %vm616, %v563, %v564
        %v669 = vsel %vm616, %v562, %v563
        %v670 = vsel %vm616, %v615, %v562
        %v671 = vpack.c.bf16 %v560, %v561
        %v672 = vpack.c.bf16 %v558, %v559
        %v673 = vpack.c.bf16 %v556, %v557
        %v674 = vpack.c.bf16 %v554, %v555
        %v675 = vpack.c.bf16 %v552, %v553
        %v676 = vpack.c.bf16 %v550, %v551
        %v677 = vpack.c.bf16 %v548, %v549
        %v678 = vpack.c.bf16 %v546, %v547
        %v679 = vpack.c.bf16 %v544, %v545
        %v680 = vpack.c.bf16 %v542, %v543
        %v681 = vpack.c.bf16 %v540, %v541
        %v682 = vpack.c.bf16 %v538, %v539
        %v683 = vpack.c.bf16 %v536, %v537
        %v684 = vpack.c.bf16 %v534, %v535
        %v685 = vpack.c.bf16 %v532, %v533
        %v686 = vpack.c.bf16 %v530, %v531
        %v687 = vpack.c.bf16 %v528, %v529
        %v688 = vpack.c.bf16 %v526, %v527
        %v689 = vpack.c.bf16 %v524, %v525
        %v690 = vpack.c.bf16 %v522, %v523
        %v691 = vpack.c.bf16 %v520, %v521
        %v692 = vpack.c.bf16 %v518, %v519
        %v693 = vpack.c.bf16 %v516, %v517
        %v694 = vpack.c.bf16 %v514, %v515
        %v695 = vpack.c.bf16 %v512, %v513
        %v696 = vpack.c.bf16 %v510, %v511
        %v697 = vpack.c.bf16 %v508, %v509
        %v698 = vpack.c.bf16 %v398, %v397
        %v699 = vpack.c.bf16 %v400, %v399
        %v700 = vpack.c.bf16 %v402, %v401
        %v701 = vpack.c.bf16 %v404, %v403
        %v702 = vpack.c.bf16 %v406, %v405
        %v703 = vpack.c.bf16 %v408, %v407
        %v704 = vpack.c.bf16 %v410, %v409
        %v705 = vpack.c.bf16 %v412, %v411
        %v706 = vpack.c.bf16 %v414, %v413
        %v707 = vpack.c.bf16 %v416, %v415
        %v708 = vpack.c.bf16 %v418, %v417
        %v709 = vpack.c.bf16 %v420, %v419
        %v710 = vpack.c.bf16 %v422, %v421
        %v711 = vpack.c.bf16 %v424, %v423
        %v712 = vpack.c.bf16 %v426, %v425
        %v713 = vpack.c.bf16 %v428, %v427
        %v714 = vpack.c.bf16 %v430, %v429
        %v715 = vpack.c.bf16 %v432, %v431
        %v716 = vpack.c.bf16 %v434, %v433
        %v717 = vpack.c.bf16 %v436, %v435
        %v718 = vpack.c.bf16 %v438, %v437
        %v719 = vpack.c.bf16 %v440, %v439
        %v720 = vpack.c.bf16 %v442, %v441
        %v721 = vpack.c.bf16 %v444, %v443
        %v722 = vpack.c.bf16 %v446, %v445
        %v723 = vpack.c.bf16 %v448, %v447
        %v724 = vpack.c.bf16 %v450, %v449
        %v725 = vpack.c.bf16 %v668, %v669
        %v726 = vpack.c.bf16 %v666, %v667
        %v727 = vpack.c.bf16 %v664, %v665
        %v728 = vpack.c.bf16 %v662, %v663
        %v729 = vpack.c.bf16 %v660, %v661
        %v730 = vpack.c.bf16 %v658, %v659
        %v731 = vpack.c.bf16 %v656, %v657
        %v732 = vpack.c.bf16 %v654, %v655
        %v733 = vpack.c.bf16 %v652, %v653
        %v734 = vpack.c.bf16 %v650, %v651
        %v735 = vpack.c.bf16 %v648, %v649
        %v736 = vpack.c.bf16 %v646, %v647
        %v737 = vpack.c.bf16 %v644, %v645
        %v738 = vpack.c.bf16 %v642, %v643
        %v739 = vpack.c.bf16 %v640, %v641
        %v740 = vpack.c.bf16 %v638, %v639
        %v741 = vpack.c.bf16 %v636, %v637
        %v742 = vpack.c.bf16 %v634, %v635
        %v743 = vpack.c.bf16 %v632, %v633
        %v744 = vpack.c.bf16 %v630, %v631
        %v745 = vpack.c.bf16 %v628, %v629
        %v746 = vpack.c.bf16 %v626, %v627
        %v747 = vpack.c.bf16 %v624, %v625
        %v748 = vpack.c.bf16 %v622, %v623
        %v749 = vpack.c.bf16 %v620, %v621
        %v750 = vpack.c.bf16 %v618, %v619
        %v751 = vpack.c.bf16 %v670, %v617
        %v752 = vld [vmem:[#allocation6] sm:$0xf]
        %v753 = vld [vmem:[#allocation6 + $0x4] sm:$0xf]
        %v754 = vld [vmem:[#allocation6 + $0x8] sm:$0xf]
        %v755 = vld [vmem:[#allocation6 + $0xc] sm:$0xf]
        %v756 = vld [vmem:[#allocation6 + $0x10] sm:$0xf]
        %v757 = vld [vmem:[#allocation6 + $0x14] sm:$0xf]
        %v758 = vld [vmem:[#allocation6 + $0x18] sm:$0xf]
        %v759 = vld [vmem:[#allocation6 + $0x1c] sm:$0xf]
        %v760 = vld [vmem:[#allocation6 + $0x20] sm:$0xf]
        %v761 = vld [vmem:[#allocation6 + $0x24] sm:$0xf]
        %v762 = vld [vmem:[#allocation6 + $0x28] sm:$0xf]
        %v763 = vld [vmem:[#allocation6 + $0x2c] sm:$0xf]
        %v764 = vld [vmem:[#allocation6 + $0x30] sm:$0xf]
        %v765 = vld [vmem:[#allocation6 + $0x34] sm:$0xf]
        %v766 = vld [vmem:[#allocation6 + $0x38] sm:$0xf]
        %v767 = vld [vmem:[#allocation6 + $0x3c] sm:$0xf]
        %s768 = scalar_lea.vmem [#allocation6], 64
        %v769 = vld [vmem:[%s768] sm:$0xf]
        %v770 = vld [vmem:[%s768 + $0x4] sm:$0xf]
        %v771 = vld [vmem:[%s768 + $0x8] sm:$0xf]
        %v772 = vld [vmem:[%s768 + $0xc] sm:$0xf]
        %v773 = vld [vmem:[%s768 + $0x10] sm:$0xf]
        %v774 = vld [vmem:[%s768 + $0x14] sm:$0xf]
        %v775 = vld [vmem:[%s768 + $0x18] sm:$0xf]
        %v776 = vld [vmem:[%s768 + $0x1c] sm:$0xf]
        %v777 = vld [vmem:[%s768 + $0x20] sm:$0xf]
        %v778 = vld [vmem:[%s768 + $0x24] sm:$0xf]
        %v779 = vld [vmem:[%s768 + $0x28] sm:$0xf]
        %v780 = vld [vmem:[%s768 + $0x2c] sm:$0xf]
        %v781 = vld [vmem:[%s768 + $0x30] sm:$0xf]
        %v782 = vld [vmem:[%s768 + $0x34] sm:$0xf]
        %v783 = vld [vmem:[%s768 + $0x38] sm:$0xf]
        %v784 = vld [vmem:[%s768 + $0x3c] sm:$0xf]
        %v801 = vunpack.c.l.b16 %v769
        %v802 = vunpack.c.l.b16 %v770
        %v803 = vunpack.c.l.b16 %v771
        %v804 = vunpack.c.l.b16 %v772
        %v805 = vunpack.c.l.b16 %v773
        %v806 = vunpack.c.l.b16 %v774
        %v807 = vunpack.c.l.b16 %v775
        %v808 = vunpack.c.l.b16 %v776
        %v809 = vunpack.c.l.b16 %v777
        %v810 = vunpack.c.l.b16 %v778
        %v811 = vunpack.c.l.b16 %v779
        %v812 = vunpack.c.l.b16 %v780
        %v813 = vunpack.c.l.b16 %v781
        %v814 = vunpack.c.l.b16 %v782
        %v815 = vunpack.c.l.b16 %v783
        %v816 = vunpack.c.l.b16 %v784
        %v817 = vpack.c.b16 %v802, %v801
        %v818 = vpack.c.b16 %v804, %v803
        %v819 = vpack.c.b16 %v806, %v805
        %v820 = vpack.c.b16 %v808, %v807
        %v821 = vpack.c.b16 %v810, %v809
        %v822 = vpack.c.b16 %v812, %v811
        %v823 = vpack.c.b16 %v814, %v813
        %v824 = vpack.c.b16 %v816, %v815
        %833 = vmatprep.subr.bf16.mxu0 0
        %834 = vmatpush1.bf16.msra.mxu0 %v817
        %835 = vmatprep.subr.bf16.mxu0 0
        %836 = vmatpush1.bf16.msra.mxu0 %v818
        %837 = vmatprep.subr.bf16.mxu0 0
        %838 = vmatpush1.bf16.msra.mxu0 %v819
        %839 = vmatprep.subr.bf16.mxu0 0
        %840 = vmatpush1.bf16.msra.mxu0 %v820
        %841 = vmatprep.subr.bf16.mxu0 0
        %842 = vmatpush1.bf16.msra.mxu0 %v821
        %843 = vmatprep.subr.bf16.mxu0 0
        %844 = vmatpush1.bf16.msra.mxu0 %v822
        %845 = vmatprep.subr.bf16.mxu0 0
        %846 = vmatpush1.bf16.msra.mxu0 %v823
        %847 = vmatprep.subr.bf16.mxu0 0
        %848 = vmatpush1.bf16.msra.mxu0 %v824
        %849 = vmatprep.subr.bf16.mxu0 0
        %850 = vmatpush1.bf16.msra.mxu0 0
        %851 = vmatprep.subr.bf16.mxu0 0
        %852 = vmatpush1.bf16.msra.mxu0 0
        %853 = vmatprep.subr.bf16.mxu0 0
        %854 = vmatpush1.bf16.msra.mxu0 0
        %855 = vmatprep.subr.bf16.mxu0 0
        %856 = vmatpush1.bf16.msra.mxu0 0
        %857 = vmatprep.subr.bf16.mxu0 0
        %858 = vmatpush1.bf16.msra.mxu0 0
        %859 = vmatprep.subr.bf16.mxu0 0
        %860 = vmatpush1.bf16.msra.mxu0 0
        %861 = vmatprep.subr.bf16.mxu0 0
        %862 = vmatpush1.bf16.msra.mxu0 0
        %863 = vmatprep.subr.bf16.mxu0 0
        %864 = vmatpush1.bf16.msra.mxu0 0
        %865 = vmatprep.mubr.bf16.mxu0 0
        %866 = vmatmul.mubr.bf16.gmra.mrb[0].mxu0 %v698
        %v867 = vpop.f32.mrb[0].mxu0
        %v868 = vadd.f32 0.0, %v867
        %v869 = vpop.f32.mrb[0].mxu0
        %v870 = vpop.f32.mrb[0].mxu0
        %v871 = vadd.f32 0.0, %v870
        %v872 = vpop.f32.mrb[0].mxu0
        %873 = vmatprep.mubr.bf16.mxu0 0
        %874 = vmatmul.mubr.bf16.gmra.mrb[0].mxu0 %v699
        %v875 = vpop.f32.mrb[0].mxu0
        %v876 = vpop.f32.mrb[0].mxu0
        %v877 = vpop.f32.mrb[0].mxu0
        %v878 = vadd.f32 0.0, %v877
        %v879 = vpop.f32.mrb[0].mxu0
        %880 = vmatprep.mubr.bf16.mxu0 0
        %881 = vmatmul.mubr.bf16.gmra.mrb[0].mxu0 %v700
        %v882 = vpop.f32.mrb[0].mxu0
        %v883 = vadd.f32 0.0, %v882
        %v884 = vpop.f32.mrb[0].mxu0
        %v885 = vpop.f32.mrb[0].mxu0
        %v886 = vpop.f32.mrb[0].mxu0
        %887 = vmatprep.mubr.bf16.mxu0 0
        %888 = vmatmul.mubr.bf16.gmra.mrb[0].mxu0 %v701
        %v889 = vpop.f32.mrb[0].mxu0
        %v890 = vadd.f32 0.0, %v889
        %v891 = vpop.f32.mrb[0].mxu0
        %v892 = vpop.f32.mrb[0].mxu0
        %v893 = vadd.f32 0.0, %v892
        %v894 = vpop.f32.mrb[0].mxu0
        %895 = vmatprep.mubr.bf16.mxu0 0
        %896 = vmatmul.mubr.bf16.gmra.mrb[0].mxu0 %v702
        %v897 = vpop.f32.mrb[0].mxu0
        %v898 = vpop.f32.mrb[0].mxu0
        %v899 = vpop.f32.mrb[0].mxu0
        %v900 = vadd.f32 0.0, %v899
        %v901 = vpop.f32.mrb[0].mxu0
        %902 = vmatprep.mubr.bf16.mxu0 0
        %903 = vmatmul.mubr.bf16.gmra.mrb[0].mxu0 %v703
        %v904 = vpop.f32.mrb[0].mxu0
        %v905 = vadd.f32 0.0, %v904
        %v906 = vpop.f32.mrb[0].mxu0
        %v907 = vpop.f32.mrb[0].mxu0
        %v908 = vpop.f32.mrb[0].mxu0
        %909 = vmatprep.mubr.bf16.mxu0 0
        %910 = vmatmul.mubr.bf16.gmra.mrb[0].mxu0 %v704
        %v911 = vpop.f32.mrb[0].mxu0
        %v912 = vadd.f32 0.0, %v911
        %v913 = vpop.f32.mrb[0].mxu0
        %v914 = vpop.f32.mrb[0].mxu0
        %v915 = vadd.f32 0.0, %v914
        %v916 = vpop.f32.mrb[0].mxu0
        %917 = vmatprep.mubr.bf16.mxu0 0
        %918 = vmatmul.mubr.bf16.gmra.mrb[0].mxu0 %v705
        %v919 = vpop.f32.mrb[0].mxu0
        %v920 = vpop.f32.mrb[0].mxu0
        %v921 = vpop.f32.mrb[0].mxu0
        %v922 = vadd.f32 0.0, %v921
        %v923 = vpop.f32.mrb[0].mxu0
        %924 = vmatprep.mubr.bf16.mxu0 0
        %925 = vmatmul.mubr.bf16.gmra.mrb[0].mxu0 %v706
        %v926 = vpop.f32.mrb[0].mxu0
        %v927 = vadd.f32 0.0, %v926
        %v928 = vpop.f32.mrb[0].mxu0
        %v929 = vpop.f32.mrb[0].mxu0
        %v930 = vpop.f32.mrb[0].mxu0
        %931 = vmatprep.mubr.bf16.mxu0 0
        %932 = vmatmul.mubr.bf16.gmra.mrb[0].mxu0 %v707
        %v933 = vpop.f32.mrb[0].mxu0
        %v934 = vadd.f32 0.0, %v933
        %v935 = vpop.f32.mrb[0].mxu0
        %v936 = vpop.f32.mrb[0].mxu0
        %v937 = vadd.f32 0.0, %v936
        %v938 = vpop.f32.mrb[0].mxu0
        %939 = vmatprep.mubr.bf16.mxu0 0
        %940 = vmatmul.mubr.bf16.gmra.mrb[0].mxu0 %v708
        %v941 = vpop.f32.mrb[0].mxu0
        %v942 = vpop.f32.mrb[0].mxu0
        %v943 = vpop.f32.mrb[0].mxu0
        %v944 = vadd.f32 0.0, %v943
        %v945 = vpop.f32.mrb[0].mxu0
        %946 = vmatprep.mubr.bf16.mxu0 0
        %947 = vmatmul.mubr.bf16.gmra.mrb[0].mxu0 %v709
        %v948 = vpop.f32.mrb[0].mxu0
        %v949 = vadd.f32 0.0, %v948
        %v950 = vpop.f32.mrb[0].mxu0
        %v951 = vpop.f32.mrb[0].mxu0
        %v952 = vpop.f32.mrb[0].mxu0
        %953 = vmatprep.mubr.bf16.mxu0 0
        %954 = vmatmul.mubr.bf16.gmra.mrb[0].mxu0 %v710
        %v955 = vpop.f32.mrb[0].mxu0
        %v956 = vadd.f32 0.0, %v955
        %v957 = vpop.f32.mrb[0].mxu0
        %v958 = vpop.f32.mrb[0].mxu0
        %v959 = vadd.f32 0.0, %v958
        %v960 = vpop.f32.mrb[0].mxu0
        %961 = vmatprep.mubr.bf16.mxu0 0
        %962 = vmatmul.mubr.bf16.gmra.mrb[0].mxu0 %v711
        %v963 = vpop.f32.mrb[0].mxu0
        %v964 = vpop.f32.mrb[0].mxu0
        %v965 = vpop.f32.mrb[0].mxu0
        %v966 = vadd.f32 0.0, %v965
        %v967 = vpop.f32.mrb[0].mxu0
        %968 = vmatprep.mubr.bf16.mxu0 0
        %969 = vmatmul.mubr.bf16.gmra.mrb[0].mxu0 %v712
        %v970 = vpop.f32.mrb[0].mxu0
        %v971 = vadd.f32 0.0, %v970
        %v972 = vpop.f32.mrb[0].mxu0
        %v973 = vpop.f32.mrb[0].mxu0
        %v974 = vpop.f32.mrb[0].mxu0
        %975 = vmatprep.mubr.bf16.mxu0 0
        %976 = vmatmul.mubr.bf16.gmra.mrb[0].mxu0 %v713
        %v977 = vpop.f32.mrb[0].mxu0
        %v978 = vadd.f32 0.0, %v977
        %v979 = vpop.f32.mrb[0].mxu0
        %v980 = vpop.f32.mrb[0].mxu0
        %v981 = vadd.f32 0.0, %v980
        %v982 = vpop.f32.mrb[0].mxu0
        %983 = vmatprep.mubr.bf16.mxu0 0
        %984 = vmatmul.mubr.bf16.gmra.mrb[0].mxu0 %v714
        %v985 = vpop.f32.mrb[0].mxu0
        %v986 = vpop.f32.mrb[0].mxu0
        %v987 = vpop.f32.mrb[0].mxu0
        %v988 = vadd.f32 0.0, %v987
        %v989 = vpop.f32.mrb[0].mxu0
        %990 = vmatprep.mubr.bf16.mxu0 0
        %991 = vmatmul.mubr.bf16.gmra.mrb[0].mxu0 %v715
        %v992 = vpop.f32.mrb[0].mxu0
        %v993 = vadd.f32 0.0, %v992
        %v994 = vpop.f32.mrb[0].mxu0
        %v995 = vpop.f32.mrb[0].mxu0
        %v996 = vpop.f32.mrb[0].mxu0
        %997 = vmatprep.mubr.bf16.mxu0 0
        %998 = vmatmul.mubr.bf16.gmra.mrb[0].mxu0 %v716
        %v999 = vpop.f32.mrb[0].mxu0
        %v1000 = vadd.f32 0.0, %v999
        %v1001 = vpop.f32.mrb[0].mxu0
        %v1002 = vpop.f32.mrb[0].mxu0
        %v1003 = vadd.f32 0.0, %v1002
        %v1004 = vpop.f32.mrb[0].mxu0
        %1005 = vmatprep.mubr.bf16.mxu0 0
        %1006 = vmatmul.mubr.bf16.gmra.mrb[0].mxu0 %v717
        %v1007 = vpop.f32.mrb[0].mxu0
        %v1008 = vpop.f32.mrb[0].mxu0
        %v1009 = vpop.f32.mrb[0].mxu0
        %v1010 = vadd.f32 0.0, %v1009
        %v1011 = vpop.f32.mrb[0].mxu0
        %1012 = vmatprep.mubr.bf16.mxu0 0
        %1013 = vmatmul.mubr.bf16.gmra.mrb[0].mxu0 %v718
        %v1014 = vpop.f32.mrb[0].mxu0
        %v1015 = vadd.f32 0.0, %v1014
        %v1016 = vpop.f32.mrb[0].mxu0
        %v1017 = vpop.f32.mrb[0].mxu0
        %v1018 = vpop.f32.mrb[0].mxu0
        %1019 = vmatprep.mubr.bf16.mxu0 0
        %1020 = vmatmul.mubr.bf16.gmra.mrb[0].mxu0 %v719
        %v1021 = vpop.f32.mrb[0].mxu0
        %v1022 = vadd.f32 0.0, %v1021
        %v1023 = vpop.f32.mrb[0].mxu0
        %v1024 = vpop.f32.mrb[0].mxu0
        %v1025 = vadd.f32 0.0, %v1024
        %v1026 = vpop.f32.mrb[0].mxu0
        %1027 = vmatprep.mubr.bf16.mxu0 0
        %1028 = vmatmul.mubr.bf16.gmra.mrb[0].mxu0 %v720
        %v1029 = vpop.f32.mrb[0].mxu0
        %v1030 = vpop.f32.mrb[0].mxu0
        %v1031 = vpop.f32.mrb[0].mxu0
        %v1032 = vadd.f32 0.0, %v1031
        %v1033 = vpop.f32.mrb[0].mxu0
        %1034 = vmatprep.mubr.bf16.mxu0 0
        %1035 = vmatmul.mubr.bf16.gmra.mrb[0].mxu0 %v721
        %v1036 = vpop.f32.mrb[0].mxu0
        %v1037 = vadd.f32 0.0, %v1036
        %v1038 = vpop.f32.mrb[0].mxu0
        %v1039 = vpop.f32.mrb[0].mxu0
        %v1040 = vpop.f32.mrb[0].mxu0
        %1041 = vdwg.mxu0
        %v1058 = vunpack.c.l.b16 %v752
        %v1059 = vunpack.c.l.b16 %v753
        %v1060 = vunpack.c.l.b16 %v754
        %v1061 = vunpack.c.l.b16 %v755
        %v1062 = vunpack.c.l.b16 %v756
        %v1063 = vunpack.c.l.b16 %v757
        %v1064 = vunpack.c.l.b16 %v758
        %v1065 = vunpack.c.l.b16 %v759
        %v1066 = vunpack.c.l.b16 %v760
        %v1067 = vunpack.c.l.b16 %v761
        %v1068 = vunpack.c.l.b16 %v762
        %v1069 = vunpack.c.l.b16 %v763
        %v1070 = vunpack.c.l.b16 %v764
        %v1071 = vunpack.c.l.b16 %v765
        %v1072 = vunpack.c.l.b16 %v766
        %v1073 = vunpack.c.l.b16 %v767
        %v1074 = vpack.c.b16 %v1059, %v1058
        %v1075 = vpack.c.b16 %v1061, %v1060
        %v1076 = vpack.c.b16 %v1063, %v1062
        %v1077 = vpack.c.b16 %v1065, %v1064
        %v1078 = vpack.c.b16 %v1067, %v1066
        %v1079 = vpack.c.b16 %v1069, %v1068
        %v1080 = vpack.c.b16 %v1071, %v1070
        %v1081 = vpack.c.b16 %v1073, %v1072
        %1090 = vmatprep.subr.bf16.mxu0 0
        %1091 = vmatpush1.bf16.msra.mxu0 %v1074
        %1092 = vmatprep.subr.bf16.mxu0 0
        %1093 = vmatpush1.bf16.msra.mxu0 %v1075
        %1094 = vmatprep.subr.bf16.mxu0 0
        %1095 = vmatpush1.bf16.msra.mxu0 %v1076
        %1096 = vmatprep.subr.bf16.mxu0 0
        %1097 = vmatpush1.bf16.msra.mxu0 %v1077
        %1098 = vmatprep.subr.bf16.mxu0 0
        %1099 = vmatpush1.bf16.msra.mxu0 %v1078
        %1100 = vmatprep.subr.bf16.mxu0 0
        %1101 = vmatpush1.bf16.msra.mxu0 %v1079
        %1102 = vmatprep.subr.bf16.mxu0 0
        %1103 = vmatpush1.bf16.msra.mxu0 %v1080
        %1104 = vmatprep.subr.bf16.mxu0 0
        %1105 = vmatpush1.bf16.msra.mxu0 %v1081
        %1106 = vmatprep.subr.bf16.mxu0 0
        %1107 = vmatpush1.bf16.msra.mxu0 0
        %1108 = vmatprep.subr.bf16.mxu0 0
        %1109 = vmatpush1.bf16.msra.mxu0 0
        %1110 = vmatprep.subr.bf16.mxu0 0
        %1111 = vmatpush1.bf16.msra.mxu0 0
        %1112 = vmatprep.subr.bf16.mxu0 0
        %1113 = vmatpush1.bf16.msra.mxu0 0
        %1114 = vmatprep.subr.bf16.mxu0 0
        %1115 = vmatpush1.bf16.msra.mxu0 0
        %1116 = vmatprep.subr.bf16.mxu0 0
        %1117 = vmatpush1.bf16.msra.mxu0 0
        %1118 = vmatprep.subr.bf16.mxu0 0
        %1119 = vmatpush1.bf16.msra.mxu0 0
        %1120 = vmatprep.subr.bf16.mxu0 0
        %1121 = vmatpush1.bf16.msra.mxu0 0
        %1122 = vmatprep.mubr.bf16.mxu0 0
        %1123 = vmatmul.mubr.bf16.gmra.mrb[0].mxu0 %v671
        %v1124 = vpop.f32.mrb[0].mxu0
        %v1125 = vadd.f32 %v868, %v1124
        %v1126 = vpop.f32.mrb[0].mxu0
        %v1127 = vpop.f32.mrb[0].mxu0
        %v1128 = vadd.f32 %v871, %v1127
        %v1129 = vpop.f32.mrb[0].mxu0
        %1130 = vmatprep.mubr.bf16.mxu0 0
        %1131 = vmatmul.mubr.bf16.gmra.mrb[0].mxu0 %v672
        %v1132 = vpop.f32.mrb[0].mxu0
        %v1133 = vpop.f32.mrb[0].mxu0
        %v1134 = vpop.f32.mrb[0].mxu0
        %v1135 = vadd.f32 %v878, %v1134
        %v1136 = vpop.f32.mrb[0].mxu0
        %1137 = vmatprep.mubr.bf16.mxu0 0
        %1138 = vmatmul.mubr.bf16.gmra.mrb[0].mxu0 %v673
        %v1139 = vpop.f32.mrb[0].mxu0
        %v1140 = vadd.f32 %v883, %v1139
        %v1141 = vpop.f32.mrb[0].mxu0
        %v1142 = vpop.f32.mrb[0].mxu0
        %v1143 = vpop.f32.mrb[0].mxu0
        %1144 = vmatprep.mubr.bf16.mxu0 0
        %1145 = vmatmul.mubr.bf16.gmra.mrb[0].mxu0 %v674
        %v1146 = vpop.f32.mrb[0].mxu0
        %v1147 = vadd.f32 %v890, %v1146
        %v1148 = vpop.f32.mrb[0].mxu0
        %v1149 = vpop.f32.mrb[0].mxu0
        %v1150 = vadd.f32 %v893, %v1149
        %v1151 = vpop.f32.mrb[0].mxu0
        %1152 = vmatprep.mubr.bf16.mxu0 0
        %1153 = vmatmul.mubr.bf16.gmra.mrb[0].mxu0 %v675
        %v1154 = vpop.f32.mrb[0].mxu0
        %v1155 = vpop.f32.mrb[0].mxu0
        %v1156 = vpop.f32.mrb[0].mxu0
        %v1157 = vadd.f32 %v900, %v1156
        %v1158 = vpop.f32.mrb[0].mxu0
        %1159 = vmatprep.mubr.bf16.mxu0 0
        %1160 = vmatmul.mubr.bf16.gmra.mrb[0].mxu0 %v676
        %v1161 = vpop.f32.mrb[0].mxu0
        %v1162 = vadd.f32 %v905, %v1161
        %v1163 = vpop.f32.mrb[0].mxu0
        %v1164 = vpop.f32.mrb[0].mxu0
        %v1165 = vpop.f32.mrb[0].mxu0
        %1166 = vmatprep.mubr.bf16.mxu0 0
        %1167 = vmatmul.mubr.bf16.gmra.mrb[0].mxu0 %v677
        %v1168 = vpop.f32.mrb[0].mxu0
        %v1169 = vadd.f32 %v912, %v1168
        %v1170 = vpop.f32.mrb[0].mxu0
        %v1171 = vpop.f32.mrb[0].mxu0
        %v1172 = vadd.f32 %v915, %v1171
        %v1173 = vpop.f32.mrb[0].mxu0
        %1174 = vmatprep.mubr.bf16.mxu0 0
        %1175 = vmatmul.mubr.bf16.gmra.mrb[0].mxu0 %v678
        %v1176 = vpop.f32.mrb[0].mxu0
        %v1177 = vpop.f32.mrb[0].mxu0
        %v1178 = vpop.f32.mrb[0].mxu0
        %v1179 = vadd.f32 %v922, %v1178
        %v1180 = vpop.f32.mrb[0].mxu0
        %1181 = vmatprep.mubr.bf16.mxu0 0
        %1182 = vmatmul.mubr.bf16.gmra.mrb[0].mxu0 %v679
        %v1183 = vpop.f32.mrb[0].mxu0
        %v1184 = vadd.f32 %v927, %v1183
        %v1185 = vpop.f32.mrb[0].mxu0
        %v1186 = vpop.f32.mrb[0].mxu0
        %v1187 = vpop.f32.mrb[0].mxu0
        %1188 = vmatprep.mubr.bf16.mxu0 0
        %1189 = vmatmul.mubr.bf16.gmra.mrb[0].mxu0 %v680
        %v1190 = vpop.f32.mrb[0].mxu0
        %v1191 = vadd.f32 %v934, %v1190
        %v1192 = vpop.f32.mrb[0].mxu0
        %v1193 = vpop.f32.mrb[0].mxu0
        %v1194 = vadd.f32 %v937, %v1193
        %v1195 = vpop.f32.mrb[0].mxu0
        %1196 = vmatprep.mubr.bf16.mxu0 0
        %1197 = vmatmul.mubr.bf16.gmra.mrb[0].mxu0 %v681
        %v1198 = vpop.f32.mrb[0].mxu0
        %v1199 = vpop.f32.mrb[0].mxu0
        %v1200 = vpop.f32.mrb[0].mxu0
        %v1201 = vadd.f32 %v944, %v1200
        %v1202 = vpop.f32.mrb[0].mxu0
        %1203 = vmatprep.mubr.bf16.mxu0 0
        %1204 = vmatmul.mubr.bf16.gmra.mrb[0].mxu0 %v682
        %v1205 = vpop.f32.mrb[0].mxu0
        %v1206 = vadd.f32 %v949, %v1205
        %v1207 = vpop.f32.mrb[0].mxu0
        %v1208 = vpop.f32.mrb[0].mxu0
        %v1209 = vpop.f32.mrb[0].mxu0
        %1210 = vmatprep.mubr.bf16.mxu0 0
        %1211 = vmatmul.mubr.bf16.gmra.mrb[0].mxu0 %v683
        %v1212 = vpop.f32.mrb[0].mxu0
        %v1213 = vadd.f32 %v956, %v1212
        %v1214 = vpop.f32.mrb[0].mxu0
        %v1215 = vpop.f32.mrb[0].mxu0
        %v1216 = vadd.f32 %v959, %v1215
        %v1217 = vpop.f32.mrb[0].mxu0
        %1218 = vmatprep.mubr.bf16.mxu0 0
        %1219 = vmatmul.mubr.bf16.gmra.mrb[0].mxu0 %v684
        %v1220 = vpop.f32.mrb[0].mxu0
        %v1221 = vpop.f32.mrb[0].mxu0
        %v1222 = vpop.f32.mrb[0].mxu0
        %v1223 = vadd.f32 %v966, %v1222
        %v1224 = vpop.f32.mrb[0].mxu0
        %1225 = vmatprep.mubr.bf16.mxu0 0
        %1226 = vmatmul.mubr.bf16.gmra.mrb[0].mxu0 %v685
        %v1227 = vpop.f32.mrb[0].mxu0
        %v1228 = vadd.f32 %v971, %v1227
        %v1229 = vpop.f32.mrb[0].mxu0
        %v1230 = vpop.f32.mrb[0].mxu0
        %v1231 = vpop.f32.mrb[0].mxu0
        %1232 = vmatprep.mubr.bf16.mxu0 0
        %1233 = vmatmul.mubr.bf16.gmra.mrb[0].mxu0 %v686
        %v1234 = vpop.f32.mrb[0].mxu0
        %v1235 = vadd.f32 %v978, %v1234
        %v1236 = vpop.f32.mrb[0].mxu0
        %v1237 = vpop.f32.mrb[0].mxu0
        %v1238 = vadd.f32 %v981, %v1237
        %v1239 = vpop.f32.mrb[0].mxu0
        %1240 = vmatprep.mubr.bf16.mxu0 0
        %1241 = vmatmul.mubr.bf16.gmra.mrb[0].mxu0 %v687
        %v1242 = vpop.f32.mrb[0].mxu0
        %v1243 = vpop.f32.mrb[0].mxu0
        %v1244 = vpop.f32.mrb[0].mxu0
        %v1245 = vadd.f32 %v988, %v1244
        %v1246 = vpop.f32.mrb[0].mxu0
        %1247 = vmatprep.mubr.bf16.mxu0 0
        %1248 = vmatmul.mubr.bf16.gmra.mrb[0].mxu0 %v688
        %v1249 = vpop.f32.mrb[0].mxu0
        %v1250 = vadd.f32 %v993, %v1249
        %v1251 = vpop.f32.mrb[0].mxu0
        %v1252 = vpop.f32.mrb[0].mxu0
        %v1253 = vpop.f32.mrb[0].mxu0
        %1254 = vmatprep.mubr.bf16.mxu0 0
        %1255 = vmatmul.mubr.bf16.gmra.mrb[0].mxu0 %v689
        %v1256 = vpop.f32.mrb[0].mxu0
        %v1257 = vadd.f32 %v1000, %v1256
        %v1258 = vpop.f32.mrb[0].mxu0
        %v1259 = vpop.f32.mrb[0].mxu0
        %v1260 = vadd.f32 %v1003, %v1259
        %v1261 = vpop.f32.mrb[0].mxu0
        %1262 = vmatprep.mubr.bf16.mxu0 0
        %1263 = vmatmul.mubr.bf16.gmra.mrb[0].mxu0 %v690
        %v1264 = vpop.f32.mrb[0].mxu0
        %v1265 = vpop.f32.mrb[0].mxu0
        %v1266 = vpop.f32.mrb[0].mxu0
        %v1267 = vadd.f32 %v1010, %v1266
        %v1268 = vpop.f32.mrb[0].mxu0
        %1269 = vmatprep.mubr.bf16.mxu0 0
        %1270 = vmatmul.mubr.bf16.gmra.mrb[0].mxu0 %v691
        %v1271 = vpop.f32.mrb[0].mxu0
        %v1272 = vadd.f32 %v1015, %v1271
        %v1273 = vpop.f32.mrb[0].mxu0
        %v1274 = vpop.f32.mrb[0].mxu0
        %v1275 = vpop.f32.mrb[0].mxu0
        %1276 = vmatprep.mubr.bf16.mxu0 0
        %1277 = vmatmul.mubr.bf16.gmra.mrb[0].mxu0 %v692
        %v1278 = vpop.f32.mrb[0].mxu0
        %v1279 = vadd.f32 %v1022, %v1278
        %v1280 = vpop.f32.mrb[0].mxu0
        %v1281 = vpop.f32.mrb[0].mxu0
        %v1282 = vadd.f32 %v1025, %v1281
        %v1283 = vpop.f32.mrb[0].mxu0
        %1284 = vmatprep.mubr.bf16.mxu0 0
        %1285 = vmatmul.mubr.bf16.gmra.mrb[0].mxu0 %v693
        %v1286 = vpop.f32.mrb[0].mxu0
        %v1287 = vpop.f32.mrb[0].mxu0
        %v1288 = vpop.f32.mrb[0].mxu0
        %v1289 = vadd.f32 %v1032, %v1288
        %v1290 = vpop.f32.mrb[0].mxu0
        %1291 = vmatprep.mubr.bf16.mxu0 0
        %1292 = vmatmul.mubr.bf16.gmra.mrb[0].mxu0 %v694
        %v1293 = vpop.f32.mrb[0].mxu0
        %v1294 = vadd.f32 %v1037, %v1293
        %v1295 = vpop.f32.mrb[0].mxu0
        %v1296 = vpop.f32.mrb[0].mxu0
        %v1297 = vpop.f32.mrb[0].mxu0
        %1298 = vdwg.mxu0
        %s1299 = scalar_lea.vmem [#allocation6], 128
        %v1300 = vld [vmem:[%s1299] sm:$0xf]
        %v1301 = vld [vmem:[%s1299 + $0x4] sm:$0xf]
        %v1302 = vld [vmem:[%s1299 + $0x8] sm:$0xf]
        %v1303 = vld [vmem:[%s1299 + $0xc] sm:$0xf]
        %v1304 = vld [vmem:[%s1299 + $0x10] sm:$0xf]
        %v1305 = vld [vmem:[%s1299 + $0x14] sm:$0xf]
        %v1306 = vld [vmem:[%s1299 + $0x18] sm:$0xf]
        %v1307 = vld [vmem:[%s1299 + $0x1c] sm:$0xf]
        %v1308 = vld [vmem:[%s1299 + $0x20] sm:$0xf]
        %v1309 = vld [vmem:[%s1299 + $0x24] sm:$0xf]
        %v1310 = vld [vmem:[%s1299 + $0x28] sm:$0xf]
        %v1311 = vld [vmem:[%s1299 + $0x2c] sm:$0xf]
        %v1312 = vld [vmem:[%s1299 + $0x30] sm:$0xf]
        %v1313 = vld [vmem:[%s1299 + $0x34] sm:$0xf]
        %v1314 = vld [vmem:[%s1299 + $0x38] sm:$0xf]
        %v1315 = vld [vmem:[%s1299 + $0x3c] sm:$0xf]
        %v1332 = vunpack.c.l.b16 %v1300
        %v1333 = vunpack.c.l.b16 %v1301
        %v1334 = vunpack.c.l.b16 %v1302
        %v1335 = vunpack.c.l.b16 %v1303
        %v1336 = vunpack.c.l.b16 %v1304
        %v1337 = vunpack.c.l.b16 %v1305
        %v1338 = vunpack.c.l.b16 %v1306
        %v1339 = vunpack.c.l.b16 %v1307
        %v1340 = vunpack.c.l.b16 %v1308
        %v1341 = vunpack.c.l.b16 %v1309
        %v1342 = vunpack.c.l.b16 %v1310
        %v1343 = vunpack.c.l.b16 %v1311
        %v1344 = vunpack.c.l.b16 %v1312
        %v1345 = vunpack.c.l.b16 %v1313
        %v1346 = vunpack.c.l.b16 %v1314
        %v1347 = vunpack.c.l.b16 %v1315
        %v1348 = vpack.c.b16 %v1333, %v1332
        %v1349 = vpack.c.b16 %v1335, %v1334
        %v1350 = vpack.c.b16 %v1337, %v1336
        %v1351 = vpack.c.b16 %v1339, %v1338
        %v1352 = vpack.c.b16 %v1341, %v1340
        %v1353 = vpack.c.b16 %v1343, %v1342
        %v1354 = vpack.c.b16 %v1345, %v1344
        %v1355 = vpack.c.b16 %v1347, %v1346
        %1364 = vmatprep.subr.bf16.mxu0 0
        %1365 = vmatpush1.bf16.msra.mxu0 %v1348
        %1366 = vmatprep.subr.bf16.mxu0 0
        %1367 = vmatpush1.bf16.msra.mxu0 %v1349
        %1368 = vmatprep.subr.bf16.mxu0 0
        %1369 = vmatpush1.bf16.msra.mxu0 %v1350
        %1370 = vmatprep.subr.bf16.mxu0 0
        %1371 = vmatpush1.bf16.msra.mxu0 %v1351
        %1372 = vmatprep.subr.bf16.mxu0 0
        %1373 = vmatpush1.bf16.msra.mxu0 %v1352
        %1374 = vmatprep.subr.bf16.mxu0 0
        %1375 = vmatpush1.bf16.msra.mxu0 %v1353
        %1376 = vmatprep.subr.bf16.mxu0 0
        %1377 = vmatpush1.bf16.msra.mxu0 %v1354
        %1378 = vmatprep.subr.bf16.mxu0 0
        %1379 = vmatpush1.bf16.msra.mxu0 %v1355
        %1380 = vmatprep.subr.bf16.mxu0 0
        %1381 = vmatpush1.bf16.msra.mxu0 0
        %1382 = vmatprep.subr.bf16.mxu0 0
        %1383 = vmatpush1.bf16.msra.mxu0 0
        %1384 = vmatprep.subr.bf16.mxu0 0
        %1385 = vmatpush1.bf16.msra.mxu0 0
        %1386 = vmatprep.subr.bf16.mxu0 0
        %1387 = vmatpush1.bf16.msra.mxu0 0
        %1388 = vmatprep.subr.bf16.mxu0 0
        %1389 = vmatpush1.bf16.msra.mxu0 0
        %1390 = vmatprep.subr.bf16.mxu0 0
        %1391 = vmatpush1.bf16.msra.mxu0 0
        %1392 = vmatprep.subr.bf16.mxu0 0
        %1393 = vmatpush1.bf16.msra.mxu0 0
        %1394 = vmatprep.subr.bf16.mxu0 0
        %1395 = vmatpush1.bf16.msra.mxu0 0
        %1396 = vmatprep.mubr.bf16.mxu0 0
        %1397 = vmatmul.mubr.bf16.gmra.mrb[0].mxu0 %v725
        %v1398 = vpop.f32.mrb[0].mxu0
        %v1399 = vadd.f32 0.0, %v1398
        %v1400 = vpop.f32.mrb[0].mxu0
        %v1401 = vpop.f32.mrb[0].mxu0
        %v1402 = vadd.f32 0.0, %v1401
        %v1403 = vpop.f32.mrb[0].mxu0
        %1404 = vmatprep.mubr.bf16.mxu0 0
        %1405 = vmatmul.mubr.bf16.gmra.mrb[0].mxu0 %v726
        %v1406 = vpop.f32.mrb[0].mxu0
        %v1407 = vpop.f32.mrb[0].mxu0
        %v1408 = vpop.f32.mrb[0].mxu0
        %v1409 = vadd.f32 0.0, %v1408
        %v1410 = vpop.f32.mrb[0].mxu0
        %1411 = vmatprep.mubr.bf16.mxu0 0
        %1412 = vmatmul.mubr.bf16.gmra.mrb[0].mxu0 %v727
        %v1413 = vpop.f32.mrb[0].mxu0
        %v1414 = vadd.f32 0.0, %v1413
        %v1415 = vpop.f32.mrb[0].mxu0
        %v1416 = vpop.f32.mrb[0].mxu0
        %v1417 = vpop.f32.mrb[0].mxu0
        %1418 = vmatprep.mubr.bf16.mxu0 0
        %1419 = vmatmul.mubr.bf16.gmra.mrb[0].mxu0 %v728
        %v1420 = vpop.f32.mrb[0].mxu0
        %v1421 = vadd.f32 0.0, %v1420
        %v1422 = vpop.f32.mrb[0].mxu0
        %v1423 = vpop.f32.mrb[0].mxu0
        %v1424 = vadd.f32 0.0, %v1423
        %v1425 = vpop.f32.mrb[0].mxu0
        %1426 = vmatprep.mubr.bf16.mxu0 0
        %1427 = vmatmul.mubr.bf16.gmra.mrb[0].mxu0 %v729
        %v1428 = vpop.f32.mrb[0].mxu0
        %v1429 = vpop.f32.mrb[0].mxu0
        %v1430 = vpop.f32.mrb[0].mxu0
        %v1431 = vadd.f32 0.0, %v1430
        %v1432 = vpop.f32.mrb[0].mxu0
        %1433 = vmatprep.mubr.bf16.mxu0 0
        %1434 = vmatmul.mubr.bf16.gmra.mrb[0].mxu0 %v730
        %v1435 = vpop.f32.mrb[0].mxu0
        %v1436 = vadd.f32 0.0, %v1435
        %v1437 = vpop.f32.mrb[0].mxu0
        %v1438 = vpop.f32.mrb[0].mxu0
        %v1439 = vpop.f32.mrb[0].mxu0
        %1440 = vmatprep.mubr.bf16.mxu0 0
        %1441 = vmatmul.mubr.bf16.gmra.mrb[0].mxu0 %v731
        %v1442 = vpop.f32.mrb[0].mxu0
        %v1443 = vadd.f32 0.0, %v1442
        %v1444 = vpop.f32.mrb[0].mxu0
        %v1445 = vpop.f32.mrb[0].mxu0
        %v1446 = vadd.f32 0.0, %v1445
        %v1447 = vpop.f32.mrb[0].mxu0
        %1448 = vmatprep.mubr.bf16.mxu0 0
        %1449 = vmatmul.mubr.bf16.gmra.mrb[0].mxu0 %v732
        %v1450 = vpop.f32.mrb[0].mxu0
        %v1451 = vpop.f32.mrb[0].mxu0
        %v1452 = vpop.f32.mrb[0].mxu0
        %v1453 = vadd.f32 0.0, %v1452
        %v1454 = vpop.f32.mrb[0].mxu0
        %1455 = vmatprep.mubr.bf16.mxu0 0
        %1456 = vmatmul.mubr.bf16.gmra.mrb[0].mxu0 %v733
        %v1457 = vpop.f32.mrb[0].mxu0
        %v1458 = vadd.f32 0.0, %v1457
        %v1459 = vpop.f32.mrb[0].mxu0
        %v1460 = vpop.f32.mrb[0].mxu0
        %v1461 = vpop.f32.mrb[0].mxu0
        %1462 = vmatprep.mubr.bf16.mxu0 0
        %1463 = vmatmul.mubr.bf16.gmra.mrb[0].mxu0 %v734
        %v1464 = vpop.f32.mrb[0].mxu0
        %v1465 = vadd.f32 0.0, %v1464
        %v1466 = vpop.f32.mrb[0].mxu0
        %v1467 = vpop.f32.mrb[0].mxu0
        %v1468 = vadd.f32 0.0, %v1467
        %v1469 = vpop.f32.mrb[0].mxu0
        %1470 = vmatprep.mubr.bf16.mxu0 0
        %1471 = vmatmul.mubr.bf16.gmra.mrb[0].mxu0 %v735
        %v1472 = vpop.f32.mrb[0].mxu0
        %v1473 = vpop.f32.mrb[0].mxu0
        %v1474 = vpop.f32.mrb[0].mxu0
        %v1475 = vadd.f32 0.0, %v1474
        %v1476 = vpop.f32.mrb[0].mxu0
        %1477 = vmatprep.mubr.bf16.mxu0 0
        %1478 = vmatmul.mubr.bf16.gmra.mrb[0].mxu0 %v736
        %v1479 = vpop.f32.mrb[0].mxu0
        %v1480 = vadd.f32 0.0, %v1479
        %v1481 = vpop.f32.mrb[0].mxu0
        %v1482 = vpop.f32.mrb[0].mxu0
        %v1483 = vpop.f32.mrb[0].mxu0
        %1484 = vmatprep.mubr.bf16.mxu0 0
        %1485 = vmatmul.mubr.bf16.gmra.mrb[0].mxu0 %v737
        %v1486 = vpop.f32.mrb[0].mxu0
        %v1487 = vadd.f32 0.0, %v1486
        %v1488 = vpop.f32.mrb[0].mxu0
        %v1489 = vpop.f32.mrb[0].mxu0
        %v1490 = vadd.f32 0.0, %v1489
        %v1491 = vpop.f32.mrb[0].mxu0
        %1492 = vmatprep.mubr.bf16.mxu0 0
        %1493 = vmatmul.mubr.bf16.gmra.mrb[0].mxu0 %v738
        %v1494 = vpop.f32.mrb[0].mxu0
        %v1495 = vpop.f32.mrb[0].mxu0
        %v1496 = vpop.f32.mrb[0].mxu0
        %v1497 = vadd.f32 0.0, %v1496
        %v1498 = vpop.f32.mrb[0].mxu0
        %1499 = vmatprep.mubr.bf16.mxu0 0
        %1500 = vmatmul.mubr.bf16.gmra.mrb[0].mxu0 %v739
        %v1501 = vpop.f32.mrb[0].mxu0
        %v1502 = vadd.f32 0.0, %v1501
        %v1503 = vpop.f32.mrb[0].mxu0
        %v1504 = vpop.f32.mrb[0].mxu0
        %v1505 = vpop.f32.mrb[0].mxu0
        %1506 = vmatprep.mubr.bf16.mxu0 0
        %1507 = vmatmul.mubr.bf16.gmra.mrb[0].mxu0 %v740
        %v1508 = vpop.f32.mrb[0].mxu0
        %v1509 = vadd.f32 0.0, %v1508
        %v1510 = vpop.f32.mrb[0].mxu0
        %v1511 = vpop.f32.mrb[0].mxu0
        %v1512 = vadd.f32 0.0, %v1511
        %v1513 = vpop.f32.mrb[0].mxu0
        %1514 = vmatprep.mubr.bf16.mxu0 0
        %1515 = vmatmul.mubr.bf16.gmra.mrb[0].mxu0 %v741
        %v1516 = vpop.f32.mrb[0].mxu0
        %v1517 = vpop.f32.mrb[0].mxu0
        %v1518 = vpop.f32.mrb[0].mxu0
        %v1519 = vadd.f32 0.0, %v1518
        %v1520 = vpop.f32.mrb[0].mxu0
        %1521 = vmatprep.mubr.bf16.mxu0 0
        %1522 = vmatmul.mubr.bf16.gmra.mrb[0].mxu0 %v742
        %v1523 = vpop.f32.mrb[0].mxu0
        %v1524 = vadd.f32 0.0, %v1523
        %v1525 = vpop.f32.mrb[0].mxu0
        %v1526 = vpop.f32.mrb[0].mxu0
        %v1527 = vpop.f32.mrb[0].mxu0
        %1528 = vmatprep.mubr.bf16.mxu0 0
        %1529 = vmatmul.mubr.bf16.gmra.mrb[0].mxu0 %v743
        %v1530 = vpop.f32.mrb[0].mxu0
        %v1531 = vadd.f32 0.0, %v1530
        %v1532 = vpop.f32.mrb[0].mxu0
        %v1533 = vpop.f32.mrb[0].mxu0
        %v1534 = vadd.f32 0.0, %v1533
        %v1535 = vpop.f32.mrb[0].mxu0
        %1536 = vmatprep.mubr.bf16.mxu0 0
        %1537 = vmatmul.mubr.bf16.gmra.mrb[0].mxu0 %v744
        %v1538 = vpop.f32.mrb[0].mxu0
        %v1539 = vpop.f32.mrb[0].mxu0
        %v1540 = vpop.f32.mrb[0].mxu0
        %v1541 = vadd.f32 0.0, %v1540
        %v1542 = vpop.f32.mrb[0].mxu0
        %1543 = vmatprep.mubr.bf16.mxu0 0
        %1544 = vmatmul.mubr.bf16.gmra.mrb[0].mxu0 %v745
        %v1545 = vpop.f32.mrb[0].mxu0
        %v1546 = vadd.f32 0.0, %v1545
        %v1547 = vpop.f32.mrb[0].mxu0
        %v1548 = vpop.f32.mrb[0].mxu0
        %v1549 = vpop.f32.mrb[0].mxu0
        %1550 = vmatprep.mubr.bf16.mxu0 0
        %1551 = vmatmul.mubr.bf16.gmra.mrb[0].mxu0 %v746
        %v1552 = vpop.f32.mrb[0].mxu0
        %v1553 = vadd.f32 0.0, %v1552
        %v1554 = vpop.f32.mrb[0].mxu0
        %v1555 = vpop.f32.mrb[0].mxu0
        %v1556 = vadd.f32 0.0, %v1555
        %v1557 = vpop.f32.mrb[0].mxu0
        %1558 = vmatprep.mubr.bf16.mxu0 0
        %1559 = vmatmul.mubr.bf16.gmra.mrb[0].mxu0 %v747
        %v1560 = vpop.f32.mrb[0].mxu0
        %v1561 = vpop.f32.mrb[0].mxu0
        %v1562 = vpop.f32.mrb[0].mxu0
        %v1563 = vadd.f32 0.0, %v1562
        %v1564 = vpop.f32.mrb[0].mxu0
        %1565 = vmatprep.mubr.bf16.mxu0 0
        %1566 = vmatmul.mubr.bf16.gmra.mrb[0].mxu0 %v748
        %v1567 = vpop.f32.mrb[0].mxu0
        %v1568 = vadd.f32 0.0, %v1567
        %v1569 = vpop.f32.mrb[0].mxu0
        %v1570 = vpop.f32.mrb[0].mxu0
        %v1571 = vpop.f32.mrb[0].mxu0
        %1572 = vdwg.mxu0
        %v1573 = vadd.f32 %v1125, %v1399
        %v1574 = vadd.f32 %v1128, %v1402
        %v1575 = vadd.f32 %v1135, %v1409
        %v1576 = vadd.f32 %v1140, %v1414
        %v1577 = vadd.f32 %v1147, %v1421
        %v1578 = vadd.f32 %v1150, %v1424
        %v1579 = vadd.f32 %v1157, %v1431
        %v1580 = vadd.f32 %v1162, %v1436
        %v1581 = vadd.f32 %v1169, %v1443
        %v1582 = vadd.f32 %v1172, %v1446
        %v1583 = vadd.f32 %v1179, %v1453
        %v1584 = vadd.f32 %v1184, %v1458
        %v1585 = vadd.f32 %v1191, %v1465
        %v1586 = vadd.f32 %v1194, %v1468
        %v1587 = vadd.f32 %v1201, %v1475
        %v1588 = vadd.f32 %v1206, %v1480
        %v1589 = vadd.f32 %v1213, %v1487
        %v1590 = vadd.f32 %v1216, %v1490
        %v1591 = vadd.f32 %v1223, %v1497
        %v1592 = vadd.f32 %v1228, %v1502
        %v1593 = vadd.f32 %v1235, %v1509
        %v1594 = vadd.f32 %v1238, %v1512
        %v1595 = vadd.f32 %v1245, %v1519
        %v1596 = vadd.f32 %v1250, %v1524
        %v1597 = vadd.f32 %v1257, %v1531
        %v1598 = vadd.f32 %v1260, %v1534
        %v1599 = vadd.f32 %v1267, %v1541
        %v1600 = vadd.f32 %v1272, %v1546
        %v1601 = vadd.f32 %v1279, %v1553
        %v1602 = vadd.f32 %v1282, %v1556
        %v1603 = vadd.f32 %v1289, %v1563
        %v1604 = vadd.f32 %v1294, %v1568
        %s1605 = scalar_lea.vmem [#allocation6], 192
        %v1606 = vld [vmem:[%s1605] sm:$0xf]
        %v1607 = vld [vmem:[%s1605 + $0x4] sm:$0xf]
        %v1608 = vld [vmem:[%s1605 + $0x8] sm:$0xf]
        %v1609 = vld [vmem:[%s1605 + $0xc] sm:$0xf]
        %v1610 = vld [vmem:[%s1605 + $0x10] sm:$0xf]
        %v1611 = vld [vmem:[%s1605 + $0x14] sm:$0xf]
        %v1612 = vld [vmem:[%s1605 + $0x18] sm:$0xf]
        %v1613 = vld [vmem:[%s1605 + $0x1c] sm:$0xf]
        %v1614 = vld [vmem:[%s1605 + $0x20] sm:$0xf]
        %v1615 = vld [vmem:[%s1605 + $0x24] sm:$0xf]
        %v1616 = vld [vmem:[%s1605 + $0x28] sm:$0xf]
        %v1617 = vld [vmem:[%s1605 + $0x2c] sm:$0xf]
        %v1618 = vld [vmem:[%s1605 + $0x30] sm:$0xf]
        %v1619 = vld [vmem:[%s1605 + $0x34] sm:$0xf]
        %v1620 = vld [vmem:[%s1605 + $0x38] sm:$0xf]
        %v1621 = vld [vmem:[%s1605 + $0x3c] sm:$0xf]
        %vm1647 = vcmask 1043456
        %v1648 = vrot.slane %v672, 4
        %v1649 = vrot.slane %v673, 4
        %v1650 = vsel %vm1647, %v1648, %v1649
        %v1651 = vrot.slane %v674, 4
        %v1652 = vsel %vm1647, %v1649, %v1651
        %v1653 = vrot.slane %v675, 4
        %v1654 = vsel %vm1647, %v1651, %v1653
        %v1655 = vrot.slane %v676, 4
        %v1656 = vsel %vm1647, %v1653, %v1655
        %v1657 = vrot.slane %v677, 4
        %v1658 = vsel %vm1647, %v1655, %v1657
        %v1659 = vrot.slane %v678, 4
        %v1660 = vsel %vm1647, %v1657, %v1659
        %v1661 = vrot.slane %v679, 4
        %v1662 = vsel %vm1647, %v1659, %v1661
        %v1663 = vrot.slane %v680, 4
        %v1664 = vsel %vm1647, %v1661, %v1663
        %v1665 = vrot.slane %v681, 4
        %v1666 = vsel %vm1647, %v1663, %v1665
        %v1667 = vrot.slane %v682, 4
        %v1668 = vsel %vm1647, %v1665, %v1667
        %v1669 = vrot.slane %v683, 4
        %v1670 = vsel %vm1647, %v1667, %v1669
        %v1671 = vrot.slane %v684, 4
        %v1672 = vsel %vm1647, %v1669, %v1671
        %v1673 = vrot.slane %v685, 4
        %v1674 = vsel %vm1647, %v1671, %v1673
        %v1675 = vrot.slane %v686, 4
        %v1676 = vsel %vm1647, %v1673, %v1675
        %v1677 = vrot.slane %v687, 4
        %v1678 = vsel %vm1647, %v1675, %v1677
        %v1679 = vrot.slane %v688, 4
        %v1680 = vsel %vm1647, %v1677, %v1679
        %v1681 = vrot.slane %v689, 4
        %v1682 = vsel %vm1647, %v1679, %v1681
        %v1683 = vrot.slane %v690, 4
        %v1684 = vsel %vm1647, %v1681, %v1683
        %v1685 = vrot.slane %v691, 4
        %v1686 = vsel %vm1647, %v1683, %v1685
        %v1687 = vrot.slane %v692, 4
        %v1688 = vsel %vm1647, %v1685, %v1687
        %v1689 = vrot.slane %v693, 4
        %v1690 = vsel %vm1647, %v1687, %v1689
        %v1691 = vrot.slane %v694, 4
        %v1692 = vsel %vm1647, %v1689, %v1691
        %v1693 = vrot.slane %v695, 4
        %v1694 = vsel %vm1647, %v1691, %v1693
        %v1695 = vrot.slane %v696, 4
        %v1696 = vsel %vm1647, %v1693, %v1695
        %v1737 = vunpack.c.l.b16 %v1606
        %v1738 = vunpack.c.l.b16 %v1607
        %v1739 = vunpack.c.l.b16 %v1608
        %v1740 = vunpack.c.l.b16 %v1609
        %v1741 = vunpack.c.l.b16 %v1610
        %v1742 = vunpack.c.l.b16 %v1611
        %v1743 = vunpack.c.l.b16 %v1612
        %v1744 = vunpack.c.l.b16 %v1613
        %v1745 = vunpack.c.l.b16 %v1614
        %v1746 = vunpack.c.l.b16 %v1615
        %v1747 = vunpack.c.l.b16 %v1616
        %v1748 = vunpack.c.l.b16 %v1617
        %v1749 = vunpack.c.l.b16 %v1618
        %v1750 = vunpack.c.l.b16 %v1619
        %v1751 = vunpack.c.l.b16 %v1620
        %v1752 = vunpack.c.l.b16 %v1621
        %v1753 = vpack.c.b16 %v1738, %v1737
        %v1754 = vpack.c.b16 %v1740, %v1739
        %v1755 = vpack.c.b16 %v1742, %v1741
        %v1756 = vpack.c.b16 %v1744, %v1743
        %v1757 = vpack.c.b16 %v1746, %v1745
        %v1758 = vpack.c.b16 %v1748, %v1747
        %v1759 = vpack.c.b16 %v1750, %v1749
        %v1760 = vpack.c.b16 %v1752, %v1751
        %1769 = vmatprep.subr.bf16.mxu0 0
        %1770 = vmatpush1.bf16.msra.mxu0 %v1753
        %1771 = vmatprep.subr.bf16.mxu0 0
        %1772 = vmatpush1.bf16.msra.mxu0 %v1754
        %1773 = vmatprep.subr.bf16.mxu0 0
        %1774 = vmatpush1.bf16.msra.mxu0 %v1755
        %1775 = vmatprep.subr.bf16.mxu0 0
        %1776 = vmatpush1.bf16.msra.mxu0 %v1756
        %1777 = vmatprep.subr.bf16.mxu0 0
        %1778 = vmatpush1.bf16.msra.mxu0 %v1757
        %1779 = vmatprep.subr.bf16.mxu0 0
        %1780 = vmatpush1.bf16.msra.mxu0 %v1758
        %1781 = vmatprep.subr.bf16.mxu0 0
        %1782 = vmatpush1.bf16.msra.mxu0 %v1759
        %1783 = vmatprep.subr.bf16.mxu0 0
        %1784 = vmatpush1.bf16.msra.mxu0 %v1760
        %1785 = vmatprep.subr.bf16.mxu0 0
        %1786 = vmatpush1.bf16.msra.mxu0 0
        %1787 = vmatprep.subr.bf16.mxu0 0
        %1788 = vmatpush1.bf16.msra.mxu0 0
        %1789 = vmatprep.subr.bf16.mxu0 0
        %1790 = vmatpush1.bf16.msra.mxu0 0
        %1791 = vmatprep.subr.bf16.mxu0 0
        %1792 = vmatpush1.bf16.msra.mxu0 0
        %1793 = vmatprep.subr.bf16.mxu0 0
        %1794 = vmatpush1.bf16.msra.mxu0 0
        %1795 = vmatprep.subr.bf16.mxu0 0
        %1796 = vmatpush1.bf16.msra.mxu0 0
        %1797 = vmatprep.subr.bf16.mxu0 0
        %1798 = vmatpush1.bf16.msra.mxu0 0
        %1799 = vmatprep.subr.bf16.mxu0 0
        %1800 = vmatpush1.bf16.msra.mxu0 0
        %1801 = vmatprep.mubr.bf16.mxu0 0
        %1802 = vmatmul.mubr.bf16.gmra.mrb[0].mxu0 %v1650
        %v1803 = vpop.f32.mrb[0].mxu0
        %v1804 = vadd.f32 0.0, %v1803
        %v1805 = vpop.f32.mrb[0].mxu0
        %v1806 = vpop.f32.mrb[0].mxu0
        %v1807 = vadd.f32 0.0, %v1806
        %v1808 = vpop.f32.mrb[0].mxu0
        %1809 = vmatprep.mubr.bf16.mxu0 0
        %1810 = vmatmul.mubr.bf16.gmra.mrb[0].mxu0 %v1652
        %v1811 = vpop.f32.mrb[0].mxu0
        %v1812 = vpop.f32.mrb[0].mxu0
        %v1813 = vpop.f32.mrb[0].mxu0
        %v1814 = vadd.f32 0.0, %v1813
        %v1815 = vpop.f32.mrb[0].mxu0
        %1816 = vmatprep.mubr.bf16.mxu0 0
        %1817 = vmatmul.mubr.bf16.gmra.mrb[0].mxu0 %v1654
        %v1818 = vpop.f32.mrb[0].mxu0
        %v1819 = vadd.f32 0.0, %v1818
        %v1820 = vpop.f32.mrb[0].mxu0
        %v1821 = vpop.f32.mrb[0].mxu0
        %v1822 = vpop.f32.mrb[0].mxu0
        %1823 = vmatprep.mubr.bf16.mxu0 0
        %1824 = vmatmul.mubr.bf16.gmra.mrb[0].mxu0 %v1656
        %v1825 = vpop.f32.mrb[0].mxu0
        %v1826 = vadd.f32 0.0, %v1825
        %v1827 = vpop.f32.mrb[0].mxu0
        %v1828 = vpop.f32.mrb[0].mxu0
        %v1829 = vadd.f32 0.0, %v1828
        %v1830 = vpop.f32.mrb[0].mxu0
        %1831 = vmatprep.mubr.bf16.mxu0 0
        %1832 = vmatmul.mubr.bf16.gmra.mrb[0].mxu0 %v1658
        %v1833 = vpop.f32.mrb[0].mxu0
        %v1834 = vpop.f32.mrb[0].mxu0
        %v1835 = vpop.f32.mrb[0].mxu0
        %v1836 = vadd.f32 0.0, %v1835
        %v1837 = vpop.f32.mrb[0].mxu0
        %1838 = vmatprep.mubr.bf16.mxu0 0
        %1839 = vmatmul.mubr.bf16.gmra.mrb[0].mxu0 %v1660
        %v1840 = vpop.f32.mrb[0].mxu0
        %v1841 = vadd.f32 0.0, %v1840
        %v1842 = vpop.f32.mrb[0].mxu0
        %v1843 = vpop.f32.mrb[0].mxu0
        %v1844 = vpop.f32.mrb[0].mxu0
        %1845 = vmatprep.mubr.bf16.mxu0 0
        %1846 = vmatmul.mubr.bf16.gmra.mrb[0].mxu0 %v1662
        %v1847 = vpop.f32.mrb[0].mxu0
        %v1848 = vadd.f32 0.0, %v1847
        %v1849 = vpop.f32.mrb[0].mxu0
        %v1850 = vpop.f32.mrb[0].mxu0
        %v1851 = vadd.f32 0.0, %v1850
        %v1852 = vpop.f32.mrb[0].mxu0
        %1853 = vmatprep.mubr.bf16.mxu0 0
        %1854 = vmatmul.mubr.bf16.gmra.mrb[0].mxu0 %v1664
        %v1855 = vpop.f32.mrb[0].mxu0
        %v1856 = vpop.f32.mrb[0].mxu0
        %v1857 = vpop.f32.mrb[0].mxu0
        %v1858 = vadd.f32 0.0, %v1857
        %v1859 = vpop.f32.mrb[0].mxu0
        %1860 = vmatprep.mubr.bf16.mxu0 0
        %1861 = vmatmul.mubr.bf16.gmra.mrb[0].mxu0 %v1666
        %v1862 = vpop.f32.mrb[0].mxu0
        %v1863 = vadd.f32 0.0, %v1862
        %v1864 = vpop.f32.mrb[0].mxu0
        %v1865 = vpop.f32.mrb[0].mxu0
        %v1866 = vpop.f32.mrb[0].mxu0
        %1867 = vmatprep.mubr.bf16.mxu0 0
        %1868 = vmatmul.mubr.bf16.gmra.mrb[0].mxu0 %v1668
        %v1869 = vpop.f32.mrb[0].mxu0
        %v1870 = vadd.f32 0.0, %v1869
        %v1871 = vpop.f32.mrb[0].mxu0
        %v1872 = vpop.f32.mrb[0].mxu0
        %v1873 = vadd.f32 0.0, %v1872
        %v1874 = vpop.f32.mrb[0].mxu0
        %1875 = vmatprep.mubr.bf16.mxu0 0
        %1876 = vmatmul.mubr.bf16.gmra.mrb[0].mxu0 %v1670
        %v1877 = vpop.f32.mrb[0].mxu0
        %v1878 = vpop.f32.mrb[0].mxu0
        %v1879 = vpop.f32.mrb[0].mxu0
        %v1880 = vadd.f32 0.0, %v1879
        %v1881 = vpop.f32.mrb[0].mxu0
        %1882 = vmatprep.mubr.bf16.mxu0 0
        %1883 = vmatmul.mubr.bf16.gmra.mrb[0].mxu0 %v1672
        %v1884 = vpop.f32.mrb[0].mxu0
        %v1885 = vadd.f32 0.0, %v1884
        %v1886 = vpop.f32.mrb[0].mxu0
        %v1887 = vpop.f32.mrb[0].mxu0
        %v1888 = vpop.f32.mrb[0].mxu0
        %1889 = vmatprep.mubr.bf16.mxu0 0
        %1890 = vmatmul.mubr.bf16.gmra.mrb[0].mxu0 %v1674
        %v1891 = vpop.f32.mrb[0].mxu0
        %v1892 = vadd.f32 0.0, %v1891
        %v1893 = vpop.f32.mrb[0].mxu0
        %v1894 = vpop.f32.mrb[0].mxu0
        %v1895 = vadd.f32 0.0, %v1894
        %v1896 = vpop.f32.mrb[0].mxu0
        %1897 = vmatprep.mubr.bf16.mxu0 0
        %1898 = vmatmul.mubr.bf16.gmra.mrb[0].mxu0 %v1676
        %v1899 = vpop.f32.mrb[0].mxu0
        %v1900 = vpop.f32.mrb[0].mxu0
        %v1901 = vpop.f32.mrb[0].mxu0
        %v1902 = vadd.f32 0.0, %v1901
        %v1903 = vpop.f32.mrb[0].mxu0
        %1904 = vmatprep.mubr.bf16.mxu0 0
        %1905 = vmatmul.mubr.bf16.gmra.mrb[0].mxu0 %v1678
        %v1906 = vpop.f32.mrb[0].mxu0
        %v1907 = vadd.f32 0.0, %v1906
        %v1908 = vpop.f32.mrb[0].mxu0
        %v1909 = vpop.f32.mrb[0].mxu0
        %v1910 = vpop.f32.mrb[0].mxu0
        %1911 = vmatprep.mubr.bf16.mxu0 0
        %1912 = vmatmul.mubr.bf16.gmra.mrb[0].mxu0 %v1680
        %v1913 = vpop.f32.mrb[0].mxu0
        %v1914 = vadd.f32 0.0, %v1913
        %v1915 = vpop.f32.mrb[0].mxu0
        %v1916 = vpop.f32.mrb[0].mxu0
        %v1917 = vadd.f32 0.0, %v1916
        %v1918 = vpop.f32.mrb[0].mxu0
        %1919 = vmatprep.mubr.bf16.mxu0 0
        %1920 = vmatmul.mubr.bf16.gmra.mrb[0].mxu0 %v1682
        %v1921 = vpop.f32.mrb[0].mxu0
        %v1922 = vpop.f32.mrb[0].mxu0
        %v1923 = vpop.f32.mrb[0].mxu0
        %v1924 = vadd.f32 0.0, %v1923
        %v1925 = vpop.f32.mrb[0].mxu0
        %1926 = vmatprep.mubr.bf16.mxu0 0
        %1927 = vmatmul.mubr.bf16.gmra.mrb[0].mxu0 %v1684
        %v1928 = vpop.f32.mrb[0].mxu0
        %v1929 = vadd.f32 0.0, %v1928
        %v1930 = vpop.f32.mrb[0].mxu0
        %v1931 = vpop.f32.mrb[0].mxu0
        %v1932 = vpop.f32.mrb[0].mxu0
        %1933 = vmatprep.mubr.bf16.mxu0 0
        %1934 = vmatmul.mubr.bf16.gmra.mrb[0].mxu0 %v1686
        %v1935 = vpop.f32.mrb[0].mxu0
        %v1936 = vadd.f32 0.0, %v1935
        %v1937 = vpop.f32.mrb[0].mxu0
        %v1938 = vpop.f32.mrb[0].mxu0
        %v1939 = vadd.f32 0.0, %v1938
        %v1940 = vpop.f32.mrb[0].mxu0
        %1941 = vmatprep.mubr.bf16.mxu0 0
        %1942 = vmatmul.mubr.bf16.gmra.mrb[0].mxu0 %v1688
        %v1943 = vpop.f32.mrb[0].mxu0
        %v1944 = vpop.f32.mrb[0].mxu0
        %v1945 = vpop.f32.mrb[0].mxu0
        %v1946 = vadd.f32 0.0, %v1945
        %v1947 = vpop.f32.mrb[0].mxu0
        %1948 = vmatprep.mubr.bf16.mxu0 0
        %1949 = vmatmul.mubr.bf16.gmra.mrb[0].mxu0 %v1690
        %v1950 = vpop.f32.mrb[0].mxu0
        %v1951 = vadd.f32 0.0, %v1950
        %v1952 = vpop.f32.mrb[0].mxu0
        %v1953 = vpop.f32.mrb[0].mxu0
        %v1954 = vpop.f32.mrb[0].mxu0
        %1955 = vmatprep.mubr.bf16.mxu0 0
        %1956 = vmatmul.mubr.bf16.gmra.mrb[0].mxu0 %v1692
        %v1957 = vpop.f32.mrb[0].mxu0
        %v1958 = vadd.f32 0.0, %v1957
        %v1959 = vpop.f32.mrb[0].mxu0
        %v1960 = vpop.f32.mrb[0].mxu0
        %v1961 = vadd.f32 0.0, %v1960
        %v1962 = vpop.f32.mrb[0].mxu0
        %1963 = vmatprep.mubr.bf16.mxu0 0
        %1964 = vmatmul.mubr.bf16.gmra.mrb[0].mxu0 %v1694
        %v1965 = vpop.f32.mrb[0].mxu0
        %v1966 = vpop.f32.mrb[0].mxu0
        %v1967 = vpop.f32.mrb[0].mxu0
        %v1968 = vadd.f32 0.0, %v1967
        %v1969 = vpop.f32.mrb[0].mxu0
        %1970 = vmatprep.mubr.bf16.mxu0 0
        %1971 = vmatmul.mubr.bf16.gmra.mrb[0].mxu0 %v1696
        %v1972 = vpop.f32.mrb[0].mxu0
        %v1973 = vadd.f32 0.0, %v1972
        %v1974 = vpop.f32.mrb[0].mxu0
        %v1975 = vpop.f32.mrb[0].mxu0
        %v1976 = vpop.f32.mrb[0].mxu0
        %1977 = vdwg.mxu0
        %v1978 = vadd.f32 %v1573, %v1804
        %v1979 = vadd.f32 %v1574, %v1807
        %v1980 = vadd.f32 %v1575, %v1814
        %v1981 = vadd.f32 %v1576, %v1819
        %v1982 = vadd.f32 %v1577, %v1826
        %v1983 = vadd.f32 %v1578, %v1829
        %v1984 = vadd.f32 %v1579, %v1836
        %v1985 = vadd.f32 %v1580, %v1841
        %v1986 = vadd.f32 %v1581, %v1848
        %v1987 = vadd.f32 %v1582, %v1851
        %v1988 = vadd.f32 %v1583, %v1858
        %v1989 = vadd.f32 %v1584, %v1863
        %v1990 = vadd.f32 %v1585, %v1870
        %v1991 = vadd.f32 %v1586, %v1873
        %v1992 = vadd.f32 %v1587, %v1880
        %v1993 = vadd.f32 %v1588, %v1885
        %v1994 = vadd.f32 %v1589, %v1892
        %v1995 = vadd.f32 %v1590, %v1895
        %v1996 = vadd.f32 %v1591, %v1902
        %v1997 = vadd.f32 %v1592, %v1907
        %v1998 = vadd.f32 %v1593, %v1914
        %v1999 = vadd.f32 %v1594, %v1917
        %v2000 = vadd.f32 %v1595, %v1924
        %v2001 = vadd.f32 %v1596, %v1929
        %v2002 = vadd.f32 %v1597, %v1936
        %v2003 = vadd.f32 %v1598, %v1939
        %v2004 = vadd.f32 %v1599, %v1946
        %v2005 = vadd.f32 %v1600, %v1951
        %v2006 = vadd.f32 %v1601, %v1958
        %v2007 = vadd.f32 %v1602, %v1961
        %v2008 = vadd.f32 %v1603, %v1968
        %v2009 = vadd.f32 %v1604, %v1973
        %s2010 = scalar_lea.vmem [#allocation6], 256
        %v2011 = vld [vmem:[%s2010] sm:$0xf]
        %v2012 = vld [vmem:[%s2010 + $0x4] sm:$0xf]
        %v2013 = vld [vmem:[%s2010 + $0x8] sm:$0xf]
        %v2014 = vld [vmem:[%s2010 + $0xc] sm:$0xf]
        %v2015 = vld [vmem:[%s2010 + $0x10] sm:$0xf]
        %v2016 = vld [vmem:[%s2010 + $0x14] sm:$0xf]
        %v2017 = vld [vmem:[%s2010 + $0x18] sm:$0xf]
        %v2018 = vld [vmem:[%s2010 + $0x1c] sm:$0xf]
        %v2019 = vld [vmem:[%s2010 + $0x20] sm:$0xf]
        %v2020 = vld [vmem:[%s2010 + $0x24] sm:$0xf]
        %v2021 = vld [vmem:[%s2010 + $0x28] sm:$0xf]
        %v2022 = vld [vmem:[%s2010 + $0x2c] sm:$0xf]
        %v2023 = vld [vmem:[%s2010 + $0x30] sm:$0xf]
        %v2024 = vld [vmem:[%s2010 + $0x34] sm:$0xf]
        %v2025 = vld [vmem:[%s2010 + $0x38] sm:$0xf]
        %v2026 = vld [vmem:[%s2010 + $0x3c] sm:$0xf]
        %v2052 = vrot.slane %v699, 4
        %v2053 = vrot.slane %v700, 4
        %v2054 = vsel %vm1647, %v2052, %v2053
        %v2055 = vrot.slane %v701, 4
        %v2056 = vsel %vm1647, %v2053, %v2055
        %v2057 = vrot.slane %v702, 4
        %v2058 = vsel %vm1647, %v2055, %v2057
        %v2059 = vrot.slane %v703, 4
        %v2060 = vsel %vm1647, %v2057, %v2059
        %v2061 = vrot.slane %v704, 4
        %v2062 = vsel %vm1647, %v2059, %v2061
        %v2063 = vrot.slane %v705, 4
        %v2064 = vsel %vm1647, %v2061, %v2063
        %v2065 = vrot.slane %v706, 4
        %v2066 = vsel %vm1647, %v2063, %v2065
        %v2067 = vrot.slane %v707, 4
        %v2068 = vsel %vm1647, %v2065, %v2067
        %v2069 = vrot.slane %v708, 4
        %v2070 = vsel %vm1647, %v2067, %v2069
        %v2071 = vrot.slane %v709, 4
        %v2072 = vsel %vm1647, %v2069, %v2071
        %v2073 = vrot.slane %v710, 4
        %v2074 = vsel %vm1647, %v2071, %v2073
        %v2075 = vrot.slane %v711, 4
        %v2076 = vsel %vm1647, %v2073, %v2075
        %v2077 = vrot.slane %v712, 4
        %v2078 = vsel %vm1647, %v2075, %v2077
        %v2079 = vrot.slane %v713, 4
        %v2080 = vsel %vm1647, %v2077, %v2079
        %v2081 = vrot.slane %v714, 4
        %v2082 = vsel %vm1647, %v2079, %v2081
        %v2083 = vrot.slane %v715, 4
        %v2084 = vsel %vm1647, %v2081, %v2083
        %v2085 = vrot.slane %v716, 4
        %v2086 = vsel %vm1647, %v2083, %v2085
        %v2087 = vrot.slane %v717, 4
        %v2088 = vsel %vm1647, %v2085, %v2087
        %v2089 = vrot.slane %v718, 4
        %v2090 = vsel %vm1647, %v2087, %v2089
        %v2091 = vrot.slane %v719, 4
        %v2092 = vsel %vm1647, %v2089, %v2091
        %v2093 = vrot.slane %v720, 4
        %v2094 = vsel %vm1647, %v2091, %v2093
        %v2095 = vrot.slane %v721, 4
        %v2096 = vsel %vm1647, %v2093, %v2095
        %v2097 = vrot.slane %v722, 4
        %v2098 = vsel %vm1647, %v2095, %v2097
        %v2099 = vrot.slane %v723, 4
        %v2100 = vsel %vm1647, %v2097, %v2099
        %v2141 = vunpack.c.l.b16 %v2011
        %v2142 = vunpack.c.l.b16 %v2012
        %v2143 = vunpack.c.l.b16 %v2013
        %v2144 = vunpack.c.l.b16 %v2014
        %v2145 = vunpack.c.l.b16 %v2015
        %v2146 = vunpack.c.l.b16 %v2016
        %v2147 = vunpack.c.l.b16 %v2017
        %v2148 = vunpack.c.l.b16 %v2018
        %v2149 = vunpack.c.l.b16 %v2019
        %v2150 = vunpack.c.l.b16 %v2020
        %v2151 = vunpack.c.l.b16 %v2021
        %v2152 = vunpack.c.l.b16 %v2022
        %v2153 = vunpack.c.l.b16 %v2023
        %v2154 = vunpack.c.l.b16 %v2024
        %v2155 = vunpack.c.l.b16 %v2025
        %v2156 = vunpack.c.l.b16 %v2026
        %v2157 = vpack.c.b16 %v2142, %v2141
        %v2158 = vpack.c.b16 %v2144, %v2143
        %v2159 = vpack.c.b16 %v2146, %v2145
        %v2160 = vpack.c.b16 %v2148, %v2147
        %v2161 = vpack.c.b16 %v2150, %v2149
        %v2162 = vpack.c.b16 %v2152, %v2151
        %v2163 = vpack.c.b16 %v2154, %v2153
        %v2164 = vpack.c.b16 %v2156, %v2155
        %2173 = vmatprep.subr.bf16.mxu0 0
        %2174 = vmatpush1.bf16.msra.mxu0 %v2157
        %2175 = vmatprep.subr.bf16.mxu0 0
        %2176 = vmatpush1.bf16.msra.mxu0 %v2158
        %2177 = vmatprep.subr.bf16.mxu0 0
        %2178 = vmatpush1.bf16.msra.mxu0 %v2159
        %2179 = vmatprep.subr.bf16.mxu0 0
        %2180 = vmatpush1.bf16.msra.mxu0 %v2160
        %2181 = vmatprep.subr.bf16.mxu0 0
        %2182 = vmatpush1.bf16.msra.mxu0 %v2161
        %2183 = vmatprep.subr.bf16.mxu0 0
        %2184 = vmatpush1.bf16.msra.mxu0 %v2162
        %2185 = vmatprep.subr.bf16.mxu0 0
        %2186 = vmatpush1.bf16.msra.mxu0 %v2163
        %2187 = vmatprep.subr.bf16.mxu0 0
        %2188 = vmatpush1.bf16.msra.mxu0 %v2164
        %2189 = vmatprep.subr.bf16.mxu0 0
        %2190 = vmatpush1.bf16.msra.mxu0 0
        %2191 = vmatprep.subr.bf16.mxu0 0
        %2192 = vmatpush1.bf16.msra.mxu0 0
        %2193 = vmatprep.subr.bf16.mxu0 0
        %2194 = vmatpush1.bf16.msra.mxu0 0
        %2195 = vmatprep.subr.bf16.mxu0 0
        %2196 = vmatpush1.bf16.msra.mxu0 0
        %2197 = vmatprep.subr.bf16.mxu0 0
        %2198 = vmatpush1.bf16.msra.mxu0 0
        %2199 = vmatprep.subr.bf16.mxu0 0
        %2200 = vmatpush1.bf16.msra.mxu0 0
        %2201 = vmatprep.subr.bf16.mxu0 0
        %2202 = vmatpush1.bf16.msra.mxu0 0
        %2203 = vmatprep.subr.bf16.mxu0 0
        %2204 = vmatpush1.bf16.msra.mxu0 0
        %2205 = vmatprep.mubr.bf16.mxu0 0
        %2206 = vmatmul.mubr.bf16.gmra.mrb[0].mxu0 %v2054
        %v2207 = vpop.f32.mrb[0].mxu0
        %v2208 = vadd.f32 0.0, %v2207
        %v2209 = vpop.f32.mrb[0].mxu0
        %v2210 = vpop.f32.mrb[0].mxu0
        %v2211 = vadd.f32 0.0, %v2210
        %v2212 = vpop.f32.mrb[0].mxu0
        %2213 = vmatprep.mubr.bf16.mxu0 0
        %2214 = vmatmul.mubr.bf16.gmra.mrb[0].mxu0 %v2056
        %v2215 = vpop.f32.mrb[0].mxu0
        %v2216 = vpop.f32.mrb[0].mxu0
        %v2217 = vpop.f32.mrb[0].mxu0
        %v2218 = vadd.f32 0.0, %v2217
        %v2219 = vpop.f32.mrb[0].mxu0
        %2220 = vmatprep.mubr.bf16.mxu0 0
        %2221 = vmatmul.mubr.bf16.gmra.mrb[0].mxu0 %v2058
        %v2222 = vpop.f32.mrb[0].mxu0
        %v2223 = vadd.f32 0.0, %v2222
        %v2224 = vpop.f32.mrb[0].mxu0
        %v2225 = vpop.f32.mrb[0].mxu0
        %v2226 = vpop.f32.mrb[0].mxu0
        %2227 = vmatprep.mubr.bf16.mxu0 0
        %2228 = vmatmul.mubr.bf16.gmra.mrb[0].mxu0 %v2060
        %v2229 = vpop.f32.mrb[0].mxu0
        %v2230 = vadd.f32 0.0, %v2229
        %v2231 = vpop.f32.mrb[0].mxu0
        %v2232 = vpop.f32.mrb[0].mxu0
        %v2233 = vadd.f32 0.0, %v2232
        %v2234 = vpop.f32.mrb[0].mxu0
        %2235 = vmatprep.mubr.bf16.mxu0 0
        %2236 = vmatmul.mubr.bf16.gmra.mrb[0].mxu0 %v2062
        %v2237 = vpop.f32.mrb[0].mxu0
        %v2238 = vpop.f32.mrb[0].mxu0
        %v2239 = vpop.f32.mrb[0].mxu0
        %v2240 = vadd.f32 0.0, %v2239
        %v2241 = vpop.f32.mrb[0].mxu0
        %2242 = vmatprep.mubr.bf16.mxu0 0
        %2243 = vmatmul.mubr.bf16.gmra.mrb[0].mxu0 %v2064
        %v2244 = vpop.f32.mrb[0].mxu0
        %v2245 = vadd.f32 0.0, %v2244
        %v2246 = vpop.f32.mrb[0].mxu0
        %v2247 = vpop.f32.mrb[0].mxu0
        %v2248 = vpop.f32.mrb[0].mxu0
        %2249 = vmatprep.mubr.bf16.mxu0 0
        %2250 = vmatmul.mubr.bf16.gmra.mrb[0].mxu0 %v2066
        %v2251 = vpop.f32.mrb[0].mxu0
        %v2252 = vadd.f32 0.0, %v2251
        %v2253 = vpop.f32.mrb[0].mxu0
        %v2254 = vpop.f32.mrb[0].mxu0
        %v2255 = vadd.f32 0.0, %v2254
        %v2256 = vpop.f32.mrb[0].mxu0
        %2257 = vmatprep.mubr.bf16.mxu0 0
        %2258 = vmatmul.mubr.bf16.gmra.mrb[0].mxu0 %v2068
        %v2259 = vpop.f32.mrb[0].mxu0
        %v2260 = vpop.f32.mrb[0].mxu0
        %v2261 = vpop.f32.mrb[0].mxu0
        %v2262 = vadd.f32 0.0, %v2261
        %v2263 = vpop.f32.mrb[0].mxu0
        %2264 = vmatprep.mubr.bf16.mxu0 0
        %2265 = vmatmul.mubr.bf16.gmra.mrb[0].mxu0 %v2070
        %v2266 = vpop.f32.mrb[0].mxu0
        %v2267 = vadd.f32 0.0, %v2266
        %v2268 = vpop.f32.mrb[0].mxu0
        %v2269 = vpop.f32.mrb[0].mxu0
        %v2270 = vpop.f32.mrb[0].mxu0
        %2271 = vmatprep.mubr.bf16.mxu0 0
        %2272 = vmatmul.mubr.bf16.gmra.mrb[0].mxu0 %v2072
        %v2273 = vpop.f32.mrb[0].mxu0
        %v2274 = vadd.f32 0.0, %v2273
        %v2275 = vpop.f32.mrb[0].mxu0
        %v2276 = vpop.f32.mrb[0].mxu0
        %v2277 = vadd.f32 0.0, %v2276
        %v2278 = vpop.f32.mrb[0].mxu0
        %2279 = vmatprep.mubr.bf16.mxu0 0
        %2280 = vmatmul.mubr.bf16.gmra.mrb[0].mxu0 %v2074
        %v2281 = vpop.f32.mrb[0].mxu0
        %v2282 = vpop.f32.mrb[0].mxu0
        %v2283 = vpop.f32.mrb[0].mxu0
        %v2284 = vadd.f32 0.0, %v2283
        %v2285 = vpop.f32.mrb[0].mxu0
        %2286 = vmatprep.mubr.bf16.mxu0 0
        %2287 = vmatmul.mubr.bf16.gmra.mrb[0].mxu0 %v2076
        %v2288 = vpop.f32.mrb[0].mxu0
        %v2289 = vadd.f32 0.0, %v2288
        %v2290 = vpop.f32.mrb[0].mxu0
        %v2291 = vpop.f32.mrb[0].mxu0
        %v2292 = vpop.f32.mrb[0].mxu0
        %2293 = vmatprep.mubr.bf16.mxu0 0
        %2294 = vmatmul.mubr.bf16.gmra.mrb[0].mxu0 %v2078
        %v2295 = vpop.f32.mrb[0].mxu0
        %v2296 = vadd.f32 0.0, %v2295
        %v2297 = vpop.f32.mrb[0].mxu0
        %v2298 = vpop.f32.mrb[0].mxu0
        %v2299 = vadd.f32 0.0, %v2298
        %v2300 = vpop.f32.mrb[0].mxu0
        %2301 = vmatprep.mubr.bf16.mxu0 0
        %2302 = vmatmul.mubr.bf16.gmra.mrb[0].mxu0 %v2080
        %v2303 = vpop.f32.mrb[0].mxu0
        %v2304 = vpop.f32.mrb[0].mxu0
        %v2305 = vpop.f32.mrb[0].mxu0
        %v2306 = vadd.f32 0.0, %v2305
        %v2307 = vpop.f32.mrb[0].mxu0
        %2308 = vmatprep.mubr.bf16.mxu0 0
        %2309 = vmatmul.mubr.bf16.gmra.mrb[0].mxu0 %v2082
        %v2310 = vpop.f32.mrb[0].mxu0
        %v2311 = vadd.f32 0.0, %v2310
        %v2312 = vpop.f32.mrb[0].mxu0
        %v2313 = vpop.f32.mrb[0].mxu0
        %v2314 = vpop.f32.mrb[0].mxu0
        %2315 = vmatprep.mubr.bf16.mxu0 0
        %2316 = vmatmul.mubr.bf16.gmra.mrb[0].mxu0 %v2084
        %v2317 = vpop.f32.mrb[0].mxu0
        %v2318 = vadd.f32 0.0, %v2317
        %v2319 = vpop.f32.mrb[0].mxu0
        %v2320 = vpop.f32.mrb[0].mxu0
        %v2321 = vadd.f32 0.0, %v2320
        %v2322 = vpop.f32.mrb[0].mxu0
        %2323 = vmatprep.mubr.bf16.mxu0 0
        %2324 = vmatmul.mubr.bf16.gmra.mrb[0].mxu0 %v2086
        %v2325 = vpop.f32.mrb[0].mxu0
        %v2326 = vpop.f32.mrb[0].mxu0
        %v2327 = vpop.f32.mrb[0].mxu0
        %v2328 = vadd.f32 0.0, %v2327
        %v2329 = vpop.f32.mrb[0].mxu0
        %2330 = vmatprep.mubr.bf16.mxu0 0
        %2331 = vmatmul.mubr.bf16.gmra.mrb[0].mxu0 %v2088
        %v2332 = vpop.f32.mrb[0].mxu0
        %v2333 = vadd.f32 0.0, %v2332
        %v2334 = vpop.f32.mrb[0].mxu0
        %v2335 = vpop.f32.mrb[0].mxu0
        %v2336 = vpop.f32.mrb[0].mxu0
        %2337 = vmatprep.mubr.bf16.mxu0 0
        %2338 = vmatmul.mubr.bf16.gmra.mrb[0].mxu0 %v2090
        %v2339 = vpop.f32.mrb[0].mxu0
        %v2340 = vadd.f32 0.0, %v2339
        %v2341 = vpop.f32.mrb[0].mxu0
        %v2342 = vpop.f32.mrb[0].mxu0
        %v2343 = vadd.f32 0.0, %v2342
        %v2344 = vpop.f32.mrb[0].mxu0
        %2345 = vmatprep.mubr.bf16.mxu0 0
        %2346 = vmatmul.mubr.bf16.gmra.mrb[0].mxu0 %v2092
        %v2347 = vpop.f32.mrb[0].mxu0
        %v2348 = vpop.f32.mrb[0].mxu0
        %v2349 = vpop.f32.mrb[0].mxu0
        %v2350 = vadd.f32 0.0, %v2349
        %v2351 = vpop.f32.mrb[0].mxu0
        %2352 = vmatprep.mubr.bf16.mxu0 0
        %2353 = vmatmul.mubr.bf16.gmra.mrb[0].mxu0 %v2094
        %v2354 = vpop.f32.mrb[0].mxu0
        %v2355 = vadd.f32 0.0, %v2354
        %v2356 = vpop.f32.mrb[0].mxu0
        %v2357 = vpop.f32.mrb[0].mxu0
        %v2358 = vpop.f32.mrb[0].mxu0
        %2359 = vmatprep.mubr.bf16.mxu0 0
        %2360 = vmatmul.mubr.bf16.gmra.mrb[0].mxu0 %v2096
        %v2361 = vpop.f32.mrb[0].mxu0
        %v2362 = vadd.f32 0.0, %v2361
        %v2363 = vpop.f32.mrb[0].mxu0
        %v2364 = vpop.f32.mrb[0].mxu0
        %v2365 = vadd.f32 0.0, %v2364
        %v2366 = vpop.f32.mrb[0].mxu0
        %2367 = vmatprep.mubr.bf16.mxu0 0
        %2368 = vmatmul.mubr.bf16.gmra.mrb[0].mxu0 %v2098
        %v2369 = vpop.f32.mrb[0].mxu0
        %v2370 = vpop.f32.mrb[0].mxu0
        %v2371 = vpop.f32.mrb[0].mxu0
        %v2372 = vadd.f32 0.0, %v2371
        %v2373 = vpop.f32.mrb[0].mxu0
        %2374 = vmatprep.mubr.bf16.mxu0 0
        %2375 = vmatmul.mubr.bf16.gmra.mrb[0].mxu0 %v2100
        %v2376 = vpop.f32.mrb[0].mxu0
        %v2377 = vadd.f32 0.0, %v2376
        %v2378 = vpop.f32.mrb[0].mxu0
        %v2379 = vpop.f32.mrb[0].mxu0
        %v2380 = vpop.f32.mrb[0].mxu0
        %2381 = vdwg.mxu0
        %v2382 = vadd.f32 %v1978, %v2208
        %v2383 = vadd.f32 %v1979, %v2211
        %v2384 = vadd.f32 %v1980, %v2218
        %v2385 = vadd.f32 %v1981, %v2223
        %v2386 = vadd.f32 %v1982, %v2230
        %v2387 = vadd.f32 %v1983, %v2233
        %v2388 = vadd.f32 %v1984, %v2240
        %v2389 = vadd.f32 %v1985, %v2245
        %v2390 = vadd.f32 %v1986, %v2252
        %v2391 = vadd.f32 %v1987, %v2255
        %v2392 = vadd.f32 %v1988, %v2262
        %v2393 = vadd.f32 %v1989, %v2267
        %v2394 = vadd.f32 %v1990, %v2274
        %v2395 = vadd.f32 %v1991, %v2277
        %v2396 = vadd.f32 %v1992, %v2284
        %v2397 = vadd.f32 %v1993, %v2289
        %v2398 = vadd.f32 %v1994, %v2296
        %v2399 = vadd.f32 %v1995, %v2299
        %v2400 = vadd.f32 %v1996, %v2306
        %v2401 = vadd.f32 %v1997, %v2311
        %v2402 = vadd.f32 %v1998, %v2318
        %v2403 = vadd.f32 %v1999, %v2321
        %v2404 = vadd.f32 %v2000, %v2328
        %v2405 = vadd.f32 %v2001, %v2333
        %v2406 = vadd.f32 %v2002, %v2340
        %v2407 = vadd.f32 %v2003, %v2343
        %v2408 = vadd.f32 %v2004, %v2350
        %v2409 = vadd.f32 %v2005, %v2355
        %v2410 = vadd.f32 %v2006, %v2362
        %v2411 = vadd.f32 %v2007, %v2365
        %v2412 = vadd.f32 %v2008, %v2372
        %v2413 = vadd.f32 %v2009, %v2377
        %s2414 = scalar_lea.vmem [#allocation6], 320
        %v2415 = vld [vmem:[%s2414] sm:$0xf]
        %v2416 = vld [vmem:[%s2414 + $0x4] sm:$0xf]
        %v2417 = vld [vmem:[%s2414 + $0x8] sm:$0xf]
        %v2418 = vld [vmem:[%s2414 + $0xc] sm:$0xf]
        %v2419 = vld [vmem:[%s2414 + $0x10] sm:$0xf]
        %v2420 = vld [vmem:[%s2414 + $0x14] sm:$0xf]
        %v2421 = vld [vmem:[%s2414 + $0x18] sm:$0xf]
        %v2422 = vld [vmem:[%s2414 + $0x1c] sm:$0xf]
        %v2423 = vld [vmem:[%s2414 + $0x20] sm:$0xf]
        %v2424 = vld [vmem:[%s2414 + $0x24] sm:$0xf]
        %v2425 = vld [vmem:[%s2414 + $0x28] sm:$0xf]
        %v2426 = vld [vmem:[%s2414 + $0x2c] sm:$0xf]
        %v2427 = vld [vmem:[%s2414 + $0x30] sm:$0xf]
        %v2428 = vld [vmem:[%s2414 + $0x34] sm:$0xf]
        %v2429 = vld [vmem:[%s2414 + $0x38] sm:$0xf]
        %v2430 = vld [vmem:[%s2414 + $0x3c] sm:$0xf]
        %v2456 = vrot.slane %v726, 4
        %v2457 = vrot.slane %v727, 4
        %v2458 = vsel %vm1647, %v2456, %v2457
        %v2459 = vrot.slane %v728, 4
        %v2460 = vsel %vm1647, %v2457, %v2459
        %v2461 = vrot.slane %v729, 4
        %v2462 = vsel %vm1647, %v2459, %v2461
        %v2463 = vrot.slane %v730, 4
        %v2464 = vsel %vm1647, %v2461, %v2463
        %v2465 = vrot.slane %v731, 4
        %v2466 = vsel %vm1647, %v2463, %v2465
        %v2467 = vrot.slane %v732, 4
        %v2468 = vsel %vm1647, %v2465, %v2467
        %v2469 = vrot.slane %v733, 4
        %v2470 = vsel %vm1647, %v2467, %v2469
        %v2471 = vrot.slane %v734, 4
        %v2472 = vsel %vm1647, %v2469, %v2471
        %v2473 = vrot.slane %v735, 4
        %v2474 = vsel %vm1647, %v2471, %v2473
        %v2475 = vrot.slane %v736, 4
        %v2476 = vsel %vm1647, %v2473, %v2475
        %v2477 = vrot.slane %v737, 4
        %v2478 = vsel %vm1647, %v2475, %v2477
        %v2479 = vrot.slane %v738, 4
        %v2480 = vsel %vm1647, %v2477, %v2479
        %v2481 = vrot.slane %v739, 4
        %v2482 = vsel %vm1647, %v2479, %v2481
        %v2483 = vrot.slane %v740, 4
        %v2484 = vsel %vm1647, %v2481, %v2483
        %v2485 = vrot.slane %v741, 4
        %v2486 = vsel %vm1647, %v2483, %v2485
        %v2487 = vrot.slane %v742, 4
        %v2488 = vsel %vm1647, %v2485, %v2487
        %v2489 = vrot.slane %v743, 4
        %v2490 = vsel %vm1647, %v2487, %v2489
        %v2491 = vrot.slane %v744, 4
        %v2492 = vsel %vm1647, %v2489, %v2491
        %v2493 = vrot.slane %v745, 4
        %v2494 = vsel %vm1647, %v2491, %v2493
        %v2495 = vrot.slane %v746, 4
        %v2496 = vsel %vm1647, %v2493, %v2495
        %v2497 = vrot.slane %v747, 4
        %v2498 = vsel %vm1647, %v2495, %v2497
        %v2499 = vrot.slane %v748, 4
        %v2500 = vsel %vm1647, %v2497, %v2499
        %v2501 = vrot.slane %v749, 4
        %v2502 = vsel %vm1647, %v2499, %v2501
        %v2503 = vrot.slane %v750, 4
        %v2504 = vsel %vm1647, %v2501, %v2503
        %v2545 = vunpack.c.l.b16 %v2415
        %v2546 = vunpack.c.l.b16 %v2416
        %v2547 = vunpack.c.l.b16 %v2417
        %v2548 = vunpack.c.l.b16 %v2418
        %v2549 = vunpack.c.l.b16 %v2419
        %v2550 = vunpack.c.l.b16 %v2420
        %v2551 = vunpack.c.l.b16 %v2421
        %v2552 = vunpack.c.l.b16 %v2422
        %v2553 = vunpack.c.l.b16 %v2423
        %v2554 = vunpack.c.l.b16 %v2424
        %v2555 = vunpack.c.l.b16 %v2425
        %v2556 = vunpack.c.l.b16 %v2426
        %v2557 = vunpack.c.l.b16 %v2427
        %v2558 = vunpack.c.l.b16 %v2428
        %v2559 = vunpack.c.l.b16 %v2429
        %v2560 = vunpack.c.l.b16 %v2430
        %v2561 = vpack.c.b16 %v2546, %v2545
        %v2562 = vpack.c.b16 %v2548, %v2547
        %v2563 = vpack.c.b16 %v2550, %v2549
        %v2564 = vpack.c.b16 %v2552, %v2551
        %v2565 = vpack.c.b16 %v2554, %v2553
        %v2566 = vpack.c.b16 %v2556, %v2555
        %v2567 = vpack.c.b16 %v2558, %v2557
        %v2568 = vpack.c.b16 %v2560, %v2559
        %2577 = vmatprep.subr.bf16.mxu0 0
        %2578 = vmatpush1.bf16.msra.mxu0 %v2561
        %2579 = vmatprep.subr.bf16.mxu0 0
        %2580 = vmatpush1.bf16.msra.mxu0 %v2562
        %2581 = vmatprep.subr.bf16.mxu0 0
        %2582 = vmatpush1.bf16.msra.mxu0 %v2563
        %2583 = vmatprep.subr.bf16.mxu0 0
        %2584 = vmatpush1.bf16.msra.mxu0 %v2564
        %2585 = vmatprep.subr.bf16.mxu0 0
        %2586 = vmatpush1.bf16.msra.mxu0 %v2565
        %2587 = vmatprep.subr.bf16.mxu0 0
        %2588 = vmatpush1.bf16.msra.mxu0 %v2566
        %2589 = vmatprep.subr.bf16.mxu0 0
        %2590 = vmatpush1.bf16.msra.mxu0 %v2567
        %2591 = vmatprep.subr.bf16.mxu0 0
        %2592 = vmatpush1.bf16.msra.mxu0 %v2568
        %2593 = vmatprep.subr.bf16.mxu0 0
        %2594 = vmatpush1.bf16.msra.mxu0 0
        %2595 = vmatprep.subr.bf16.mxu0 0
        %2596 = vmatpush1.bf16.msra.mxu0 0
        %2597 = vmatprep.subr.bf16.mxu0 0
        %2598 = vmatpush1.bf16.msra.mxu0 0
        %2599 = vmatprep.subr.bf16.mxu0 0
        %2600 = vmatpush1.bf16.msra.mxu0 0
        %2601 = vmatprep.subr.bf16.mxu0 0
        %2602 = vmatpush1.bf16.msra.mxu0 0
        %2603 = vmatprep.subr.bf16.mxu0 0
        %2604 = vmatpush1.bf16.msra.mxu0 0
        %2605 = vmatprep.subr.bf16.mxu0 0
        %2606 = vmatpush1.bf16.msra.mxu0 0
        %2607 = vmatprep.subr.bf16.mxu0 0
        %2608 = vmatpush1.bf16.msra.mxu0 0
        %2609 = vmatprep.mubr.bf16.mxu0 0
        %2610 = vmatmul.mubr.bf16.gmra.mrb[0].mxu0 %v2458
        %v2611 = vpop.f32.mrb[0].mxu0
        %v2612 = vadd.f32 0.0, %v2611
        %v2613 = vpop.f32.mrb[0].mxu0
        %v2614 = vpop.f32.mrb[0].mxu0
        %v2615 = vadd.f32 0.0, %v2614
        %v2616 = vpop.f32.mrb[0].mxu0
        %2617 = vmatprep.mubr.bf16.mxu0 0
        %2618 = vmatmul.mubr.bf16.gmra.mrb[0].mxu0 %v2460
        %v2619 = vpop.f32.mrb[0].mxu0
        %v2620 = vpop.f32.mrb[0].mxu0
        %v2621 = vpop.f32.mrb[0].mxu0
        %v2622 = vadd.f32 0.0, %v2621
        %v2623 = vpop.f32.mrb[0].mxu0
        %2624 = vmatprep.mubr.bf16.mxu0 0
        %2625 = vmatmul.mubr.bf16.gmra.mrb[0].mxu0 %v2462
        %v2626 = vpop.f32.mrb[0].mxu0
        %v2627 = vadd.f32 0.0, %v2626
        %v2628 = vpop.f32.mrb[0].mxu0
        %v2629 = vpop.f32.mrb[0].mxu0
        %v2630 = vpop.f32.mrb[0].mxu0
        %2631 = vmatprep.mubr.bf16.mxu0 0
        %2632 = vmatmul.mubr.bf16.gmra.mrb[0].mxu0 %v2464
        %v2633 = vpop.f32.mrb[0].mxu0
        %v2634 = vadd.f32 0.0, %v2633
        %v2635 = vpop.f32.mrb[0].mxu0
        %v2636 = vpop.f32.mrb[0].mxu0
        %v2637 = vadd.f32 0.0, %v2636
        %v2638 = vpop.f32.mrb[0].mxu0
        %2639 = vmatprep.mubr.bf16.mxu0 0
        %2640 = vmatmul.mubr.bf16.gmra.mrb[0].mxu0 %v2466
        %v2641 = vpop.f32.mrb[0].mxu0
        %v2642 = vpop.f32.mrb[0].mxu0
        %v2643 = vpop.f32.mrb[0].mxu0
        %v2644 = vadd.f32 0.0, %v2643
        %v2645 = vpop.f32.mrb[0].mxu0
        %2646 = vmatprep.mubr.bf16.mxu0 0
        %2647 = vmatmul.mubr.bf16.gmra.mrb[0].mxu0 %v2468
        %v2648 = vpop.f32.mrb[0].mxu0
        %v2649 = vadd.f32 0.0, %v2648
        %v2650 = vpop.f32.mrb[0].mxu0
        %v2651 = vpop.f32.mrb[0].mxu0
        %v2652 = vpop.f32.mrb[0].mxu0
        %2653 = vmatprep.mubr.bf16.mxu0 0
        %2654 = vmatmul.mubr.bf16.gmra.mrb[0].mxu0 %v2470
        %v2655 = vpop.f32.mrb[0].mxu0
        %v2656 = vadd.f32 0.0, %v2655
        %v2657 = vpop.f32.mrb[0].mxu0
        %v2658 = vpop.f32.mrb[0].mxu0
        %v2659 = vadd.f32 0.0, %v2658
        %v2660 = vpop.f32.mrb[0].mxu0
        %2661 = vmatprep.mubr.bf16.mxu0 0
        %2662 = vmatmul.mubr.bf16.gmra.mrb[0].mxu0 %v2472
        %v2663 = vpop.f32.mrb[0].mxu0
        %v2664 = vpop.f32.mrb[0].mxu0
        %v2665 = vpop.f32.mrb[0].mxu0
        %v2666 = vadd.f32 0.0, %v2665
        %v2667 = vpop.f32.mrb[0].mxu0
        %2668 = vmatprep.mubr.bf16.mxu0 0
        %2669 = vmatmul.mubr.bf16.gmra.mrb[0].mxu0 %v2474
        %v2670 = vpop.f32.mrb[0].mxu0
        %v2671 = vadd.f32 0.0, %v2670
        %v2672 = vpop.f32.mrb[0].mxu0
        %v2673 = vpop.f32.mrb[0].mxu0
        %v2674 = vpop.f32.mrb[0].mxu0
        %2675 = vmatprep.mubr.bf16.mxu0 0
        %2676 = vmatmul.mubr.bf16.gmra.mrb[0].mxu0 %v2476
        %v2677 = vpop.f32.mrb[0].mxu0
        %v2678 = vadd.f32 0.0, %v2677
        %v2679 = vpop.f32.mrb[0].mxu0
        %v2680 = vpop.f32.mrb[0].mxu0
        %v2681 = vadd.f32 0.0, %v2680
        %v2682 = vpop.f32.mrb[0].mxu0
        %2683 = vmatprep.mubr.bf16.mxu0 0
        %2684 = vmatmul.mubr.bf16.gmra.mrb[0].mxu0 %v2478
        %v2685 = vpop.f32.mrb[0].mxu0
        %v2686 = vpop.f32.mrb[0].mxu0
        %v2687 = vpop.f32.mrb[0].mxu0
        %v2688 = vadd.f32 0.0, %v2687
        %v2689 = vpop.f32.mrb[0].mxu0
        %2690 = vmatprep.mubr.bf16.mxu0 0
        %2691 = vmatmul.mubr.bf16.gmra.mrb[0].mxu0 %v2480
        %v2692 = vpop.f32.mrb[0].mxu0
        %v2693 = vadd.f32 0.0, %v2692
        %v2694 = vpop.f32.mrb[0].mxu0
        %v2695 = vpop.f32.mrb[0].mxu0
        %v2696 = vpop.f32.mrb[0].mxu0
        %2697 = vmatprep.mubr.bf16.mxu0 0
        %2698 = vmatmul.mubr.bf16.gmra.mrb[0].mxu0 %v2482
        %v2699 = vpop.f32.mrb[0].mxu0
        %v2700 = vadd.f32 0.0, %v2699
        %v2701 = vpop.f32.mrb[0].mxu0
        %v2702 = vpop.f32.mrb[0].mxu0
        %v2703 = vadd.f32 0.0, %v2702
        %v2704 = vpop.f32.mrb[0].mxu0
        %2705 = vmatprep.mubr.bf16.mxu0 0
        %2706 = vmatmul.mubr.bf16.gmra.mrb[0].mxu0 %v2484
        %v2707 = vpop.f32.mrb[0].mxu0
        %v2708 = vpop.f32.mrb[0].mxu0
        %v2709 = vpop.f32.mrb[0].mxu0
        %v2710 = vadd.f32 0.0, %v2709
        %v2711 = vpop.f32.mrb[0].mxu0
        %2712 = vmatprep.mubr.bf16.mxu0 0
        %2713 = vmatmul.mubr.bf16.gmra.mrb[0].mxu0 %v2486
        %v2714 = vpop.f32.mrb[0].mxu0
        %v2715 = vadd.f32 0.0, %v2714
        %v2716 = vpop.f32.mrb[0].mxu0
        %v2717 = vpop.f32.mrb[0].mxu0
        %v2718 = vpop.f32.mrb[0].mxu0
        %2719 = vmatprep.mubr.bf16.mxu0 0
        %2720 = vmatmul.mubr.bf16.gmra.mrb[0].mxu0 %v2488
        %v2721 = vpop.f32.mrb[0].mxu0
        %v2722 = vadd.f32 0.0, %v2721
        %v2723 = vpop.f32.mrb[0].mxu0
        %v2724 = vpop.f32.mrb[0].mxu0
        %v2725 = vadd.f32 0.0, %v2724
        %v2726 = vpop.f32.mrb[0].mxu0
        %2727 = vmatprep.mubr.bf16.mxu0 0
        %2728 = vmatmul.mubr.bf16.gmra.mrb[0].mxu0 %v2490
        %v2729 = vpop.f32.mrb[0].mxu0
        %v2730 = vpop.f32.mrb[0].mxu0
        %v2731 = vpop.f32.mrb[0].mxu0
        %v2732 = vadd.f32 0.0, %v2731
        %v2733 = vpop.f32.mrb[0].mxu0
        %2734 = vmatprep.mubr.bf16.mxu0 0
        %2735 = vmatmul.mubr.bf16.gmra.mrb[0].mxu0 %v2492
        %v2736 = vpop.f32.mrb[0].mxu0
        %v2737 = vadd.f32 0.0, %v2736
        %v2738 = vpop.f32.mrb[0].mxu0
        %v2739 = vpop.f32.mrb[0].mxu0
        %v2740 = vpop.f32.mrb[0].mxu0
        %2741 = vmatprep.mubr.bf16.mxu0 0
        %2742 = vmatmul.mubr.bf16.gmra.mrb[0].mxu0 %v2494
        %v2743 = vpop.f32.mrb[0].mxu0
        %v2744 = vadd.f32 0.0, %v2743
        %v2745 = vpop.f32.mrb[0].mxu0
        %v2746 = vpop.f32.mrb[0].mxu0
        %v2747 = vadd.f32 0.0, %v2746
        %v2748 = vpop.f32.mrb[0].mxu0
        %2749 = vmatprep.mubr.bf16.mxu0 0
        %2750 = vmatmul.mubr.bf16.gmra.mrb[0].mxu0 %v2496
        %v2751 = vpop.f32.mrb[0].mxu0
        %v2752 = vpop.f32.mrb[0].mxu0
        %v2753 = vpop.f32.mrb[0].mxu0
        %v2754 = vadd.f32 0.0, %v2753
        %v2755 = vpop.f32.mrb[0].mxu0
        %2756 = vmatprep.mubr.bf16.mxu0 0
        %2757 = vmatmul.mubr.bf16.gmra.mrb[0].mxu0 %v2498
        %v2758 = vpop.f32.mrb[0].mxu0
        %v2759 = vadd.f32 0.0, %v2758
        %v2760 = vpop.f32.mrb[0].mxu0
        %v2761 = vpop.f32.mrb[0].mxu0
        %v2762 = vpop.f32.mrb[0].mxu0
        %2763 = vmatprep.mubr.bf16.mxu0 0
        %2764 = vmatmul.mubr.bf16.gmra.mrb[0].mxu0 %v2500
        %v2765 = vpop.f32.mrb[0].mxu0
        %v2766 = vadd.f32 0.0, %v2765
        %v2767 = vpop.f32.mrb[0].mxu0
        %v2768 = vpop.f32.mrb[0].mxu0
        %v2769 = vadd.f32 0.0, %v2768
        %v2770 = vpop.f32.mrb[0].mxu0
        %2771 = vmatprep.mubr.bf16.mxu0 0
        %2772 = vmatmul.mubr.bf16.gmra.mrb[0].mxu0 %v2502
        %v2773 = vpop.f32.mrb[0].mxu0
        %v2774 = vpop.f32.mrb[0].mxu0
        %v2775 = vpop.f32.mrb[0].mxu0
        %v2776 = vadd.f32 0.0, %v2775
        %v2777 = vpop.f32.mrb[0].mxu0
        %2778 = vmatprep.mubr.bf16.mxu0 0
        %2779 = vmatmul.mubr.bf16.gmra.mrb[0].mxu0 %v2504
        %v2780 = vpop.f32.mrb[0].mxu0
        %v2781 = vadd.f32 0.0, %v2780
        %v2782 = vpop.f32.mrb[0].mxu0
        %v2783 = vpop.f32.mrb[0].mxu0
        %v2784 = vpop.f32.mrb[0].mxu0
        %2785 = vdwg.mxu0
        %v2786 = vadd.f32 %v2382, %v2612
        %v2787 = vadd.f32 %v2383, %v2615
        %v2788 = vadd.f32 %v2384, %v2622
        %v2789 = vadd.f32 %v2385, %v2627
        %v2790 = vadd.f32 %v2386, %v2634
        %v2791 = vadd.f32 %v2387, %v2637
        %v2792 = vadd.f32 %v2388, %v2644
        %v2793 = vadd.f32 %v2389, %v2649
        %v2794 = vadd.f32 %v2390, %v2656
        %v2795 = vadd.f32 %v2391, %v2659
        %v2796 = vadd.f32 %v2392, %v2666
        %v2797 = vadd.f32 %v2393, %v2671
        %v2798 = vadd.f32 %v2394, %v2678
        %v2799 = vadd.f32 %v2395, %v2681
        %v2800 = vadd.f32 %v2396, %v2688
        %v2801 = vadd.f32 %v2397, %v2693
        %v2802 = vadd.f32 %v2398, %v2700
        %v2803 = vadd.f32 %v2399, %v2703
        %v2804 = vadd.f32 %v2400, %v2710
        %v2805 = vadd.f32 %v2401, %v2715
        %v2806 = vadd.f32 %v2402, %v2722
        %v2807 = vadd.f32 %v2403, %v2725
        %v2808 = vadd.f32 %v2404, %v2732
        %v2809 = vadd.f32 %v2405, %v2737
        %v2810 = vadd.f32 %v2406, %v2744
        %v2811 = vadd.f32 %v2407, %v2747
        %v2812 = vadd.f32 %v2408, %v2754
        %v2813 = vadd.f32 %v2409, %v2759
        %v2814 = vadd.f32 %v2410, %v2766
        %v2815 = vadd.f32 %v2411, %v2769
        %v2816 = vadd.f32 %v2412, %v2776
        %v2817 = vadd.f32 %v2413, %v2781
        %s2818 = scalar_lea.vmem [#allocation6], 384
        %v2819 = vld [vmem:[%s2818] sm:$0xf]
        %v2820 = vld [vmem:[%s2818 + $0x4] sm:$0xf]
        %v2821 = vld [vmem:[%s2818 + $0x8] sm:$0xf]
        %v2822 = vld [vmem:[%s2818 + $0xc] sm:$0xf]
        %v2823 = vld [vmem:[%s2818 + $0x10] sm:$0xf]
        %v2824 = vld [vmem:[%s2818 + $0x14] sm:$0xf]
        %v2825 = vld [vmem:[%s2818 + $0x18] sm:$0xf]
        %v2826 = vld [vmem:[%s2818 + $0x1c] sm:$0xf]
        %v2827 = vld [vmem:[%s2818 + $0x20] sm:$0xf]
        %v2828 = vld [vmem:[%s2818 + $0x24] sm:$0xf]
        %v2829 = vld [vmem:[%s2818 + $0x28] sm:$0xf]
        %v2830 = vld [vmem:[%s2818 + $0x2c] sm:$0xf]
        %v2831 = vld [vmem:[%s2818 + $0x30] sm:$0xf]
        %v2832 = vld [vmem:[%s2818 + $0x34] sm:$0xf]
        %v2833 = vld [vmem:[%s2818 + $0x38] sm:$0xf]
        %v2834 = vld [vmem:[%s2818 + $0x3c] sm:$0xf]
        %v2851 = vunpack.c.l.b16 %v2819
        %v2852 = vunpack.c.l.b16 %v2820
        %v2853 = vunpack.c.l.b16 %v2821
        %v2854 = vunpack.c.l.b16 %v2822
        %v2855 = vunpack.c.l.b16 %v2823
        %v2856 = vunpack.c.l.b16 %v2824
        %v2857 = vunpack.c.l.b16 %v2825
        %v2858 = vunpack.c.l.b16 %v2826
        %v2859 = vunpack.c.l.b16 %v2827
        %v2860 = vunpack.c.l.b16 %v2828
        %v2861 = vunpack.c.l.b16 %v2829
        %v2862 = vunpack.c.l.b16 %v2830
        %v2863 = vunpack.c.l.b16 %v2831
        %v2864 = vunpack.c.l.b16 %v2832
        %v2865 = vunpack.c.l.b16 %v2833
        %v2866 = vunpack.c.l.b16 %v2834
        %v2867 = vpack.c.b16 %v2852, %v2851
        %v2868 = vpack.c.b16 %v2854, %v2853
        %v2869 = vpack.c.b16 %v2856, %v2855
        %v2870 = vpack.c.b16 %v2858, %v2857
        %v2871 = vpack.c.b16 %v2860, %v2859
        %v2872 = vpack.c.b16 %v2862, %v2861
        %v2873 = vpack.c.b16 %v2864, %v2863
        %v2874 = vpack.c.b16 %v2866, %v2865
        %2883 = vmatprep.subr.bf16.mxu0 0
        %2884 = vmatpush1.bf16.msra.mxu0 %v2867
        %2885 = vmatprep.subr.bf16.mxu0 0
        %2886 = vmatpush1.bf16.msra.mxu0 %v2868
        %2887 = vmatprep.subr.bf16.mxu0 0
        %2888 = vmatpush1.bf16.msra.mxu0 %v2869
        %2889 = vmatprep.subr.bf16.mxu0 0
        %2890 = vmatpush1.bf16.msra.mxu0 %v2870
        %2891 = vmatprep.subr.bf16.mxu0 0
        %2892 = vmatpush1.bf16.msra.mxu0 %v2871
        %2893 = vmatprep.subr.bf16.mxu0 0
        %2894 = vmatpush1.bf16.msra.mxu0 %v2872
        %2895 = vmatprep.subr.bf16.mxu0 0
        %2896 = vmatpush1.bf16.msra.mxu0 %v2873
        %2897 = vmatprep.subr.bf16.mxu0 0
        %2898 = vmatpush1.bf16.msra.mxu0 %v2874
        %2899 = vmatprep.subr.bf16.mxu0 0
        %2900 = vmatpush1.bf16.msra.mxu0 0
        %2901 = vmatprep.subr.bf16.mxu0 0
        %2902 = vmatpush1.bf16.msra.mxu0 0
        %2903 = vmatprep.subr.bf16.mxu0 0
        %2904 = vmatpush1.bf16.msra.mxu0 0
        %2905 = vmatprep.subr.bf16.mxu0 0
        %2906 = vmatpush1.bf16.msra.mxu0 0
        %2907 = vmatprep.subr.bf16.mxu0 0
        %2908 = vmatpush1.bf16.msra.mxu0 0
        %2909 = vmatprep.subr.bf16.mxu0 0
        %2910 = vmatpush1.bf16.msra.mxu0 0
        %2911 = vmatprep.subr.bf16.mxu0 0
        %2912 = vmatpush1.bf16.msra.mxu0 0
        %2913 = vmatprep.subr.bf16.mxu0 0
        %2914 = vmatpush1.bf16.msra.mxu0 0
        %2915 = vmatprep.mubr.bf16.mxu0 0
        %2916 = vmatmul.mubr.bf16.gmra.mrb[0].mxu0 %v674
        %v2917 = vpop.f32.mrb[0].mxu0
        %v2918 = vadd.f32 0.0, %v2917
        %v2919 = vpop.f32.mrb[0].mxu0
        %v2920 = vpop.f32.mrb[0].mxu0
        %v2921 = vadd.f32 0.0, %v2920
        %v2922 = vpop.f32.mrb[0].mxu0
        %2923 = vmatprep.mubr.bf16.mxu0 0
        %2924 = vmatmul.mubr.bf16.gmra.mrb[0].mxu0 %v675
        %v2925 = vpop.f32.mrb[0].mxu0
        %v2926 = vpop.f32.mrb[0].mxu0
        %v2927 = vpop.f32.mrb[0].mxu0
        %v2928 = vadd.f32 0.0, %v2927
        %v2929 = vpop.f32.mrb[0].mxu0
        %2930 = vmatprep.mubr.bf16.mxu0 0
        %2931 = vmatmul.mubr.bf16.gmra.mrb[0].mxu0 %v676
        %v2932 = vpop.f32.mrb[0].mxu0
        %v2933 = vadd.f32 0.0, %v2932
        %v2934 = vpop.f32.mrb[0].mxu0
        %v2935 = vpop.f32.mrb[0].mxu0
        %v2936 = vpop.f32.mrb[0].mxu0
        %2937 = vmatprep.mubr.bf16.mxu0 0
        %2938 = vmatmul.mubr.bf16.gmra.mrb[0].mxu0 %v677
        %v2939 = vpop.f32.mrb[0].mxu0
        %v2940 = vadd.f32 0.0, %v2939
        %v2941 = vpop.f32.mrb[0].mxu0
        %v2942 = vpop.f32.mrb[0].mxu0
        %v2943 = vadd.f32 0.0, %v2942
        %v2944 = vpop.f32.mrb[0].mxu0
        %2945 = vmatprep.mubr.bf16.mxu0 0
        %2946 = vmatmul.mubr.bf16.gmra.mrb[0].mxu0 %v678
        %v2947 = vpop.f32.mrb[0].mxu0
        %v2948 = vpop.f32.mrb[0].mxu0
        %v2949 = vpop.f32.mrb[0].mxu0
        %v2950 = vadd.f32 0.0, %v2949
        %v2951 = vpop.f32.mrb[0].mxu0
        %2952 = vmatprep.mubr.bf16.mxu0 0
        %2953 = vmatmul.mubr.bf16.gmra.mrb[0].mxu0 %v679
        %v2954 = vpop.f32.mrb[0].mxu0
        %v2955 = vadd.f32 0.0, %v2954
        %v2956 = vpop.f32.mrb[0].mxu0
        %v2957 = vpop.f32.mrb[0].mxu0
        %v2958 = vpop.f32.mrb[0].mxu0
        %2959 = vmatprep.mubr.bf16.mxu0 0
        %2960 = vmatmul.mubr.bf16.gmra.mrb[0].mxu0 %v680
        %v2961 = vpop.f32.mrb[0].mxu0
        %v2962 = vadd.f32 0.0, %v2961
        %v2963 = vpop.f32.mrb[0].mxu0
        %v2964 = vpop.f32.mrb[0].mxu0
        %v2965 = vadd.f32 0.0, %v2964
        %v2966 = vpop.f32.mrb[0].mxu0
        %2967 = vmatprep.mubr.bf16.mxu0 0
        %2968 = vmatmul.mubr.bf16.gmra.mrb[0].mxu0 %v681
        %v2969 = vpop.f32.mrb[0].mxu0
        %v2970 = vpop.f32.mrb[0].mxu0
        %v2971 = vpop.f32.mrb[0].mxu0
        %v2972 = vadd.f32 0.0, %v2971
        %v2973 = vpop.f32.mrb[0].mxu0
        %2974 = vmatprep.mubr.bf16.mxu0 0
        %2975 = vmatmul.mubr.bf16.gmra.mrb[0].mxu0 %v682
        %v2976 = vpop.f32.mrb[0].mxu0
        %v2977 = vadd.f32 0.0, %v2976
        %v2978 = vpop.f32.mrb[0].mxu0
        %v2979 = vpop.f32.mrb[0].mxu0
        %v2980 = vpop.f32.mrb[0].mxu0
        %2981 = vmatprep.mubr.bf16.mxu0 0
        %2982 = vmatmul.mubr.bf16.gmra.mrb[0].mxu0 %v683
        %v2983 = vpop.f32.mrb[0].mxu0
        %v2984 = vadd.f32 0.0, %v2983
        %v2985 = vpop.f32.mrb[0].mxu0
        %v2986 = vpop.f32.mrb[0].mxu0
        %v2987 = vadd.f32 0.0, %v2986
        %v2988 = vpop.f32.mrb[0].mxu0
        %2989 = vmatprep.mubr.bf16.mxu0 0
        %2990 = vmatmul.mubr.bf16.gmra.mrb[0].mxu0 %v684
        %v2991 = vpop.f32.mrb[0].mxu0
        %v2992 = vpop.f32.mrb[0].mxu0
        %v2993 = vpop.f32.mrb[0].mxu0
        %v2994 = vadd.f32 0.0, %v2993
        %v2995 = vpop.f32.mrb[0].mxu0
        %2996 = vmatprep.mubr.bf16.mxu0 0
        %2997 = vmatmul.mubr.bf16.gmra.mrb[0].mxu0 %v685
        %v2998 = vpop.f32.mrb[0].mxu0
        %v2999 = vadd.f32 0.0, %v2998
        %v3000 = vpop.f32.mrb[0].mxu0
        %v3001 = vpop.f32.mrb[0].mxu0
        %v3002 = vpop.f32.mrb[0].mxu0
        %3003 = vmatprep.mubr.bf16.mxu0 0
        %3004 = vmatmul.mubr.bf16.gmra.mrb[0].mxu0 %v686
        %v3005 = vpop.f32.mrb[0].mxu0
        %v3006 = vadd.f32 0.0, %v3005
        %v3007 = vpop.f32.mrb[0].mxu0
        %v3008 = vpop.f32.mrb[0].mxu0
        %v3009 = vadd.f32 0.0, %v3008
        %v3010 = vpop.f32.mrb[0].mxu0
        %3011 = vmatprep.mubr.bf16.mxu0 0
        %3012 = vmatmul.mubr.bf16.gmra.mrb[0].mxu0 %v687
        %v3013 = vpop.f32.mrb[0].mxu0
        %v3014 = vpop.f32.mrb[0].mxu0
        %v3015 = vpop.f32.mrb[0].mxu0
        %v3016 = vadd.f32 0.0, %v3015
        %v3017 = vpop.f32.mrb[0].mxu0
        %3018 = vmatprep.mubr.bf16.mxu0 0
        %3019 = vmatmul.mubr.bf16.gmra.mrb[0].mxu0 %v688
        %v3020 = vpop.f32.mrb[0].mxu0
        %v3021 = vadd.f32 0.0, %v3020
        %v3022 = vpop.f32.mrb[0].mxu0
        %v3023 = vpop.f32.mrb[0].mxu0
        %v3024 = vpop.f32.mrb[0].mxu0
        %3025 = vmatprep.mubr.bf16.mxu0 0
        %3026 = vmatmul.mubr.bf16.gmra.mrb[0].mxu0 %v689
        %v3027 = vpop.f32.mrb[0].mxu0
        %v3028 = vadd.f32 0.0, %v3027
        %v3029 = vpop.f32.mrb[0].mxu0
        %v3030 = vpop.f32.mrb[0].mxu0
        %v3031 = vadd.f32 0.0, %v3030
        %v3032 = vpop.f32.mrb[0].mxu0
        %3033 = vmatprep.mubr.bf16.mxu0 0
        %3034 = vmatmul.mubr.bf16.gmra.mrb[0].mxu0 %v690
        %v3035 = vpop.f32.mrb[0].mxu0
        %v3036 = vpop.f32.mrb[0].mxu0
        %v3037 = vpop.f32.mrb[0].mxu0
        %v3038 = vadd.f32 0.0, %v3037
        %v3039 = vpop.f32.mrb[0].mxu0
        %3040 = vmatprep.mubr.bf16.mxu0 0
        %3041 = vmatmul.mubr.bf16.gmra.mrb[0].mxu0 %v691
        %v3042 = vpop.f32.mrb[0].mxu0
        %v3043 = vadd.f32 0.0, %v3042
        %v3044 = vpop.f32.mrb[0].mxu0
        %v3045 = vpop.f32.mrb[0].mxu0
        %v3046 = vpop.f32.mrb[0].mxu0
        %3047 = vmatprep.mubr.bf16.mxu0 0
        %3048 = vmatmul.mubr.bf16.gmra.mrb[0].mxu0 %v692
        %v3049 = vpop.f32.mrb[0].mxu0
        %v3050 = vadd.f32 0.0, %v3049
        %v3051 = vpop.f32.mrb[0].mxu0
        %v3052 = vpop.f32.mrb[0].mxu0
        %v3053 = vadd.f32 0.0, %v3052
        %v3054 = vpop.f32.mrb[0].mxu0
        %3055 = vmatprep.mubr.bf16.mxu0 0
        %3056 = vmatmul.mubr.bf16.gmra.mrb[0].mxu0 %v693
        %v3057 = vpop.f32.mrb[0].mxu0
        %v3058 = vpop.f32.mrb[0].mxu0
        %v3059 = vpop.f32.mrb[0].mxu0
        %v3060 = vadd.f32 0.0, %v3059
        %v3061 = vpop.f32.mrb[0].mxu0
        %3062 = vmatprep.mubr.bf16.mxu0 0
        %3063 = vmatmul.mubr.bf16.gmra.mrb[0].mxu0 %v694
        %v3064 = vpop.f32.mrb[0].mxu0
        %v3065 = vadd.f32 0.0, %v3064
        %v3066 = vpop.f32.mrb[0].mxu0
        %v3067 = vpop.f32.mrb[0].mxu0
        %v3068 = vpop.f32.mrb[0].mxu0
        %3069 = vmatprep.mubr.bf16.mxu0 0
        %3070 = vmatmul.mubr.bf16.gmra.mrb[0].mxu0 %v695
        %v3071 = vpop.f32.mrb[0].mxu0
        %v3072 = vadd.f32 0.0, %v3071
        %v3073 = vpop.f32.mrb[0].mxu0
        %v3074 = vpop.f32.mrb[0].mxu0
        %v3075 = vadd.f32 0.0, %v3074
        %v3076 = vpop.f32.mrb[0].mxu0
        %3077 = vmatprep.mubr.bf16.mxu0 0
        %3078 = vmatmul.mubr.bf16.gmra.mrb[0].mxu0 %v696
        %v3079 = vpop.f32.mrb[0].mxu0
        %v3080 = vpop.f32.mrb[0].mxu0
        %v3081 = vpop.f32.mrb[0].mxu0
        %v3082 = vadd.f32 0.0, %v3081
        %v3083 = vpop.f32.mrb[0].mxu0
        %3084 = vmatprep.mubr.bf16.mxu0 0
        %3085 = vmatmul.mubr.bf16.gmra.mrb[0].mxu0 %v697
        %v3086 = vpop.f32.mrb[0].mxu0
        %v3087 = vadd.f32 0.0, %v3086
        %v3088 = vpop.f32.mrb[0].mxu0
        %v3089 = vpop.f32.mrb[0].mxu0
        %v3090 = vpop.f32.mrb[0].mxu0
        %3091 = vdwg.mxu0
        %v3092 = vadd.f32 %v2786, %v2918
        %v3093 = vadd.f32 %v2787, %v2921
        %v3094 = vadd.f32 %v2788, %v2928
        %v3095 = vadd.f32 %v2789, %v2933
        %v3096 = vadd.f32 %v2790, %v2940
        %v3097 = vadd.f32 %v2791, %v2943
        %v3098 = vadd.f32 %v2792, %v2950
        %v3099 = vadd.f32 %v2793, %v2955
        %v3100 = vadd.f32 %v2794, %v2962
        %v3101 = vadd.f32 %v2795, %v2965
        %v3102 = vadd.f32 %v2796, %v2972
        %v3103 = vadd.f32 %v2797, %v2977
        %v3104 = vadd.f32 %v2798, %v2984
        %v3105 = vadd.f32 %v2799, %v2987
        %v3106 = vadd.f32 %v2800, %v2994
        %v3107 = vadd.f32 %v2801, %v2999
        %v3108 = vadd.f32 %v2802, %v3006
        %v3109 = vadd.f32 %v2803, %v3009
        %v3110 = vadd.f32 %v2804, %v3016
        %v3111 = vadd.f32 %v2805, %v3021
        %v3112 = vadd.f32 %v2806, %v3028
        %v3113 = vadd.f32 %v2807, %v3031
        %v3114 = vadd.f32 %v2808, %v3038
        %v3115 = vadd.f32 %v2809, %v3043
        %v3116 = vadd.f32 %v2810, %v3050
        %v3117 = vadd.f32 %v2811, %v3053
        %v3118 = vadd.f32 %v2812, %v3060
        %v3119 = vadd.f32 %v2813, %v3065
        %v3120 = vadd.f32 %v2814, %v3072
        %v3121 = vadd.f32 %v2815, %v3075
        %v3122 = vadd.f32 %v2816, %v3082
        %v3123 = vadd.f32 %v2817, %v3087
        %s3124 = scalar_lea.vmem [#allocation6], 448
        %v3125 = vld [vmem:[%s3124] sm:$0xf]
        %v3126 = vld [vmem:[%s3124 + $0x4] sm:$0xf]
        %v3127 = vld [vmem:[%s3124 + $0x8] sm:$0xf]
        %v3128 = vld [vmem:[%s3124 + $0xc] sm:$0xf]
        %v3129 = vld [vmem:[%s3124 + $0x10] sm:$0xf]
        %v3130 = vld [vmem:[%s3124 + $0x14] sm:$0xf]
        %v3131 = vld [vmem:[%s3124 + $0x18] sm:$0xf]
        %v3132 = vld [vmem:[%s3124 + $0x1c] sm:$0xf]
        %v3133 = vld [vmem:[%s3124 + $0x20] sm:$0xf]
        %v3134 = vld [vmem:[%s3124 + $0x24] sm:$0xf]
        %v3135 = vld [vmem:[%s3124 + $0x28] sm:$0xf]
        %v3136 = vld [vmem:[%s3124 + $0x2c] sm:$0xf]
        %v3137 = vld [vmem:[%s3124 + $0x30] sm:$0xf]
        %v3138 = vld [vmem:[%s3124 + $0x34] sm:$0xf]
        %v3139 = vld [vmem:[%s3124 + $0x38] sm:$0xf]
        %v3140 = vld [vmem:[%s3124 + $0x3c] sm:$0xf]
        %v3157 = vunpack.c.l.b16 %v3125
        %v3158 = vunpack.c.l.b16 %v3126
        %v3159 = vunpack.c.l.b16 %v3127
        %v3160 = vunpack.c.l.b16 %v3128
        %v3161 = vunpack.c.l.b16 %v3129
        %v3162 = vunpack.c.l.b16 %v3130
        %v3163 = vunpack.c.l.b16 %v3131
        %v3164 = vunpack.c.l.b16 %v3132
        %v3165 = vunpack.c.l.b16 %v3133
        %v3166 = vunpack.c.l.b16 %v3134
        %v3167 = vunpack.c.l.b16 %v3135
        %v3168 = vunpack.c.l.b16 %v3136
        %v3169 = vunpack.c.l.b16 %v3137
        %v3170 = vunpack.c.l.b16 %v3138
        %v3171 = vunpack.c.l.b16 %v3139
        %v3172 = vunpack.c.l.b16 %v3140
        %v3173 = vpack.c.b16 %v3158, %v3157
        %v3174 = vpack.c.b16 %v3160, %v3159
        %v3175 = vpack.c.b16 %v3162, %v3161
        %v3176 = vpack.c.b16 %v3164, %v3163
        %v3177 = vpack.c.b16 %v3166, %v3165
        %v3178 = vpack.c.b16 %v3168, %v3167
        %v3179 = vpack.c.b16 %v3170, %v3169
        %v3180 = vpack.c.b16 %v3172, %v3171
        %3189 = vmatprep.subr.bf16.mxu0 0
        %3190 = vmatpush1.bf16.msra.mxu0 %v3173
        %3191 = vmatprep.subr.bf16.mxu0 0
        %3192 = vmatpush1.bf16.msra.mxu0 %v3174
        %3193 = vmatprep.subr.bf16.mxu0 0
        %3194 = vmatpush1.bf16.msra.mxu0 %v3175
        %3195 = vmatprep.subr.bf16.mxu0 0
        %3196 = vmatpush1.bf16.msra.mxu0 %v3176
        %3197 = vmatprep.subr.bf16.mxu0 0
        %3198 = vmatpush1.bf16.msra.mxu0 %v3177
        %3199 = vmatprep.subr.bf16.mxu0 0
        %3200 = vmatpush1.bf16.msra.mxu0 %v3178
        %3201 = vmatprep.subr.bf16.mxu0 0
        %3202 = vmatpush1.bf16.msra.mxu0 %v3179
        %3203 = vmatprep.subr.bf16.mxu0 0
        %3204 = vmatpush1.bf16.msra.mxu0 %v3180
        %3205 = vmatprep.subr.bf16.mxu0 0
        %3206 = vmatpush1.bf16.msra.mxu0 0
        %3207 = vmatprep.subr.bf16.mxu0 0
        %3208 = vmatpush1.bf16.msra.mxu0 0
        %3209 = vmatprep.subr.bf16.mxu0 0
        %3210 = vmatpush1.bf16.msra.mxu0 0
        %3211 = vmatprep.subr.bf16.mxu0 0
        %3212 = vmatpush1.bf16.msra.mxu0 0
        %3213 = vmatprep.subr.bf16.mxu0 0
        %3214 = vmatpush1.bf16.msra.mxu0 0
        %3215 = vmatprep.subr.bf16.mxu0 0
        %3216 = vmatpush1.bf16.msra.mxu0 0
        %3217 = vmatprep.subr.bf16.mxu0 0
        %3218 = vmatpush1.bf16.msra.mxu0 0
        %3219 = vmatprep.subr.bf16.mxu0 0
        %3220 = vmatpush1.bf16.msra.mxu0 0
        %3221 = vmatprep.mubr.bf16.mxu0 0
        %3222 = vmatmul.mubr.bf16.gmra.mrb[0].mxu0 %v701
        %v3223 = vpop.f32.mrb[0].mxu0
        %v3224 = vadd.f32 0.0, %v3223
        %v3225 = vpop.f32.mrb[0].mxu0
        %v3226 = vpop.f32.mrb[0].mxu0
        %v3227 = vadd.f32 0.0, %v3226
        %v3228 = vpop.f32.mrb[0].mxu0
        %3229 = vmatprep.mubr.bf16.mxu0 0
        %3230 = vmatmul.mubr.bf16.gmra.mrb[0].mxu0 %v702
        %v3231 = vpop.f32.mrb[0].mxu0
        %v3232 = vpop.f32.mrb[0].mxu0
        %v3233 = vpop.f32.mrb[0].mxu0
        %v3234 = vadd.f32 0.0, %v3233
        %v3235 = vpop.f32.mrb[0].mxu0
        %3236 = vmatprep.mubr.bf16.mxu0 0
        %3237 = vmatmul.mubr.bf16.gmra.mrb[0].mxu0 %v703
        %v3238 = vpop.f32.mrb[0].mxu0
        %v3239 = vadd.f32 0.0, %v3238
        %v3240 = vpop.f32.mrb[0].mxu0
        %v3241 = vpop.f32.mrb[0].mxu0
        %v3242 = vpop.f32.mrb[0].mxu0
        %3243 = vmatprep.mubr.bf16.mxu0 0
        %3244 = vmatmul.mubr.bf16.gmra.mrb[0].mxu0 %v704
        %v3245 = vpop.f32.mrb[0].mxu0
        %v3246 = vadd.f32 0.0, %v3245
        %v3247 = vpop.f32.mrb[0].mxu0
        %v3248 = vpop.f32.mrb[0].mxu0
        %v3249 = vadd.f32 0.0, %v3248
        %v3250 = vpop.f32.mrb[0].mxu0
        %3251 = vmatprep.mubr.bf16.mxu0 0
        %3252 = vmatmul.mubr.bf16.gmra.mrb[0].mxu0 %v705
        %v3253 = vpop.f32.mrb[0].mxu0
        %v3254 = vpop.f32.mrb[0].mxu0
        %v3255 = vpop.f32.mrb[0].mxu0
        %v3256 = vadd.f32 0.0, %v3255
        %v3257 = vpop.f32.mrb[0].mxu0
        %3258 = vmatprep.mubr.bf16.mxu0 0
        %3259 = vmatmul.mubr.bf16.gmra.mrb[0].mxu0 %v706
        %v3260 = vpop.f32.mrb[0].mxu0
        %v3261 = vadd.f32 0.0, %v3260
        %v3262 = vpop.f32.mrb[0].mxu0
        %v3263 = vpop.f32.mrb[0].mxu0
        %v3264 = vpop.f32.mrb[0].mxu0
        %3265 = vmatprep.mubr.bf16.mxu0 0
        %3266 = vmatmul.mubr.bf16.gmra.mrb[0].mxu0 %v707
        %v3267 = vpop.f32.mrb[0].mxu0
        %v3268 = vadd.f32 0.0, %v3267
        %v3269 = vpop.f32.mrb[0].mxu0
        %v3270 = vpop.f32.mrb[0].mxu0
        %v3271 = vadd.f32 0.0, %v3270
        %v3272 = vpop.f32.mrb[0].mxu0
        %3273 = vmatprep.mubr.bf16.mxu0 0
        %3274 = vmatmul.mubr.bf16.gmra.mrb[0].mxu0 %v708
        %v3275 = vpop.f32.mrb[0].mxu0
        %v3276 = vpop.f32.mrb[0].mxu0
        %v3277 = vpop.f32.mrb[0].mxu0
        %v3278 = vadd.f32 0.0, %v3277
        %v3279 = vpop.f32.mrb[0].mxu0
        %3280 = vmatprep.mubr.bf16.mxu0 0
        %3281 = vmatmul.mubr.bf16.gmra.mrb[0].mxu0 %v709
        %v3282 = vpop.f32.mrb[0].mxu0
        %v3283 = vadd.f32 0.0, %v3282
        %v3284 = vpop.f32.mrb[0].mxu0
        %v3285 = vpop.f32.mrb[0].mxu0
        %v3286 = vpop.f32.mrb[0].mxu0
        %3287 = vmatprep.mubr.bf16.mxu0 0
        %3288 = vmatmul.mubr.bf16.gmra.mrb[0].mxu0 %v710
        %v3289 = vpop.f32.mrb[0].mxu0
        %v3290 = vadd.f32 0.0, %v3289
        %v3291 = vpop.f32.mrb[0].mxu0
        %v3292 = vpop.f32.mrb[0].mxu0
        %v3293 = vadd.f32 0.0, %v3292
        %v3294 = vpop.f32.mrb[0].mxu0
        %3295 = vmatprep.mubr.bf16.mxu0 0
        %3296 = vmatmul.mubr.bf16.gmra.mrb[0].mxu0 %v711
        %v3297 = vpop.f32.mrb[0].mxu0
        %v3298 = vpop.f32.mrb[0].mxu0
        %v3299 = vpop.f32.mrb[0].mxu0
        %v3300 = vadd.f32 0.0, %v3299
        %v3301 = vpop.f32.mrb[0].mxu0
        %3302 = vmatprep.mubr.bf16.mxu0 0
        %3303 = vmatmul.mubr.bf16.gmra.mrb[0].mxu0 %v712
        %v3304 = vpop.f32.mrb[0].mxu0
        %v3305 = vadd.f32 0.0, %v3304
        %v3306 = vpop.f32.mrb[0].mxu0
        %v3307 = vpop.f32.mrb[0].mxu0
        %v3308 = vpop.f32.mrb[0].mxu0
        %3309 = vmatprep.mubr.bf16.mxu0 0
        %3310 = vmatmul.mubr.bf16.gmra.mrb[0].mxu0 %v713
        %v3311 = vpop.f32.mrb[0].mxu0
        %v3312 = vadd.f32 0.0, %v3311
        %v3313 = vpop.f32.mrb[0].mxu0
        %v3314 = vpop.f32.mrb[0].mxu0
        %v3315 = vadd.f32 0.0, %v3314
        %v3316 = vpop.f32.mrb[0].mxu0
        %3317 = vmatprep.mubr.bf16.mxu0 0
        %3318 = vmatmul.mubr.bf16.gmra.mrb[0].mxu0 %v714
        %v3319 = vpop.f32.mrb[0].mxu0
        %v3320 = vpop.f32.mrb[0].mxu0
        %v3321 = vpop.f32.mrb[0].mxu0
        %v3322 = vadd.f32 0.0, %v3321
        %v3323 = vpop.f32.mrb[0].mxu0
        %3324 = vmatprep.mubr.bf16.mxu0 0
        %3325 = vmatmul.mubr.bf16.gmra.mrb[0].mxu0 %v715
        %v3326 = vpop.f32.mrb[0].mxu0
        %v3327 = vadd.f32 0.0, %v3326
        %v3328 = vpop.f32.mrb[0].mxu0
        %v3329 = vpop.f32.mrb[0].mxu0
        %v3330 = vpop.f32.mrb[0].mxu0
        %3331 = vmatprep.mubr.bf16.mxu0 0
        %3332 = vmatmul.mubr.bf16.gmra.mrb[0].mxu0 %v716
        %v3333 = vpop.f32.mrb[0].mxu0
        %v3334 = vadd.f32 0.0, %v3333
        %v3335 = vpop.f32.mrb[0].mxu0
        %v3336 = vpop.f32.mrb[0].mxu0
        %v3337 = vadd.f32 0.0, %v3336
        %v3338 = vpop.f32.mrb[0].mxu0
        %3339 = vmatprep.mubr.bf16.mxu0 0
        %3340 = vmatmul.mubr.bf16.gmra.mrb[0].mxu0 %v717
        %v3341 = vpop.f32.mrb[0].mxu0
        %v3342 = vpop.f32.mrb[0].mxu0
        %v3343 = vpop.f32.mrb[0].mxu0
        %v3344 = vadd.f32 0.0, %v3343
        %v3345 = vpop.f32.mrb[0].mxu0
        %3346 = vmatprep.mubr.bf16.mxu0 0
        %3347 = vmatmul.mubr.bf16.gmra.mrb[0].mxu0 %v718
        %v3348 = vpop.f32.mrb[0].mxu0
        %v3349 = vadd.f32 0.0, %v3348
        %v3350 = vpop.f32.mrb[0].mxu0
        %v3351 = vpop.f32.mrb[0].mxu0
        %v3352 = vpop.f32.mrb[0].mxu0
        %3353 = vmatprep.mubr.bf16.mxu0 0
        %3354 = vmatmul.mubr.bf16.gmra.mrb[0].mxu0 %v719
        %v3355 = vpop.f32.mrb[0].mxu0
        %v3356 = vadd.f32 0.0, %v3355
        %v3357 = vpop.f32.mrb[0].mxu0
        %v3358 = vpop.f32.mrb[0].mxu0
        %v3359 = vadd.f32 0.0, %v3358
        %v3360 = vpop.f32.mrb[0].mxu0
        %3361 = vmatprep.mubr.bf16.mxu0 0
        %3362 = vmatmul.mubr.bf16.gmra.mrb[0].mxu0 %v720
        %v3363 = vpop.f32.mrb[0].mxu0
        %v3364 = vpop.f32.mrb[0].mxu0
        %v3365 = vpop.f32.mrb[0].mxu0
        %v3366 = vadd.f32 0.0, %v3365
        %v3367 = vpop.f32.mrb[0].mxu0
        %3368 = vmatprep.mubr.bf16.mxu0 0
        %3369 = vmatmul.mubr.bf16.gmra.mrb[0].mxu0 %v721
        %v3370 = vpop.f32.mrb[0].mxu0
        %v3371 = vadd.f32 0.0, %v3370
        %v3372 = vpop.f32.mrb[0].mxu0
        %v3373 = vpop.f32.mrb[0].mxu0
        %v3374 = vpop.f32.mrb[0].mxu0
        %3375 = vmatprep.mubr.bf16.mxu0 0
        %3376 = vmatmul.mubr.bf16.gmra.mrb[0].mxu0 %v722
        %v3377 = vpop.f32.mrb[0].mxu0
        %v3378 = vadd.f32 0.0, %v3377
        %v3379 = vpop.f32.mrb[0].mxu0
        %v3380 = vpop.f32.mrb[0].mxu0
        %v3381 = vadd.f32 0.0, %v3380
        %v3382 = vpop.f32.mrb[0].mxu0
        %3383 = vmatprep.mubr.bf16.mxu0 0
        %3384 = vmatmul.mubr.bf16.gmra.mrb[0].mxu0 %v723
        %v3385 = vpop.f32.mrb[0].mxu0
        %v3386 = vpop.f32.mrb[0].mxu0
        %v3387 = vpop.f32.mrb[0].mxu0
        %v3388 = vadd.f32 0.0, %v3387
        %v3389 = vpop.f32.mrb[0].mxu0
        %3390 = vmatprep.mubr.bf16.mxu0 0
        %3391 = vmatmul.mubr.bf16.gmra.mrb[0].mxu0 %v724
        %v3392 = vpop.f32.mrb[0].mxu0
        %v3393 = vadd.f32 0.0, %v3392
        %v3394 = vpop.f32.mrb[0].mxu0
        %v3395 = vpop.f32.mrb[0].mxu0
        %v3396 = vpop.f32.mrb[0].mxu0
        %3397 = vdwg.mxu0
        %v3398 = vadd.f32 %v3092, %v3224
        %v3399 = vadd.f32 %v3093, %v3227
        %v3400 = vadd.f32 %v3094, %v3234
        %v3401 = vadd.f32 %v3095, %v3239
        %v3402 = vadd.f32 %v3096, %v3246
        %v3403 = vadd.f32 %v3097, %v3249
        %v3404 = vadd.f32 %v3098, %v3256
        %v3405 = vadd.f32 %v3099, %v3261
        %v3406 = vadd.f32 %v3100, %v3268
        %v3407 = vadd.f32 %v3101, %v3271
        %v3408 = vadd.f32 %v3102, %v3278
        %v3409 = vadd.f32 %v3103, %v3283
        %v3410 = vadd.f32 %v3104, %v3290
        %v3411 = vadd.f32 %v3105, %v3293
        %v3412 = vadd.f32 %v3106, %v3300
        %v3413 = vadd.f32 %v3107, %v3305
        %v3414 = vadd.f32 %v3108, %v3312
        %v3415 = vadd.f32 %v3109, %v3315
        %v3416 = vadd.f32 %v3110, %v3322
        %v3417 = vadd.f32 %v3111, %v3327
        %v3418 = vadd.f32 %v3112, %v3334
        %v3419 = vadd.f32 %v3113, %v3337
        %v3420 = vadd.f32 %v3114, %v3344
        %v3421 = vadd.f32 %v3115, %v3349
        %v3422 = vadd.f32 %v3116, %v3356
        %v3423 = vadd.f32 %v3117, %v3359
        %v3424 = vadd.f32 %v3118, %v3366
        %v3425 = vadd.f32 %v3119, %v3371
        %v3426 = vadd.f32 %v3120, %v3378
        %v3427 = vadd.f32 %v3121, %v3381
        %v3428 = vadd.f32 %v3122, %v3388
        %v3429 = vadd.f32 %v3123, %v3393
        %s3430 = scalar_lea.vmem [#allocation6], 512
        %v3431 = vld [vmem:[%s3430] sm:$0xf]
        %v3432 = vld [vmem:[%s3430 + $0x4] sm:$0xf]
        %v3433 = vld [vmem:[%s3430 + $0x8] sm:$0xf]
        %v3434 = vld [vmem:[%s3430 + $0xc] sm:$0xf]
        %v3435 = vld [vmem:[%s3430 + $0x10] sm:$0xf]
        %v3436 = vld [vmem:[%s3430 + $0x14] sm:$0xf]
        %v3437 = vld [vmem:[%s3430 + $0x18] sm:$0xf]
        %v3438 = vld [vmem:[%s3430 + $0x1c] sm:$0xf]
        %v3439 = vld [vmem:[%s3430 + $0x20] sm:$0xf]
        %v3440 = vld [vmem:[%s3430 + $0x24] sm:$0xf]
        %v3441 = vld [vmem:[%s3430 + $0x28] sm:$0xf]
        %v3442 = vld [vmem:[%s3430 + $0x2c] sm:$0xf]
        %v3443 = vld [vmem:[%s3430 + $0x30] sm:$0xf]
        %v3444 = vld [vmem:[%s3430 + $0x34] sm:$0xf]
        %v3445 = vld [vmem:[%s3430 + $0x38] sm:$0xf]
        %v3446 = vld [vmem:[%s3430 + $0x3c] sm:$0xf]
        %v3463 = vunpack.c.l.b16 %v3431
        %v3464 = vunpack.c.l.b16 %v3432
        %v3465 = vunpack.c.l.b16 %v3433
        %v3466 = vunpack.c.l.b16 %v3434
        %v3467 = vunpack.c.l.b16 %v3435
        %v3468 = vunpack.c.l.b16 %v3436
        %v3469 = vunpack.c.l.b16 %v3437
        %v3470 = vunpack.c.l.b16 %v3438
        %v3471 = vunpack.c.l.b16 %v3439
        %v3472 = vunpack.c.l.b16 %v3440
        %v3473 = vunpack.c.l.b16 %v3441
        %v3474 = vunpack.c.l.b16 %v3442
        %v3475 = vunpack.c.l.b16 %v3443
        %v3476 = vunpack.c.l.b16 %v3444
        %v3477 = vunpack.c.l.b16 %v3445
        %v3478 = vunpack.c.l.b16 %v3446
        %v3479 = vpack.c.b16 %v3464, %v3463
        %v3480 = vpack.c.b16 %v3466, %v3465
        %v3481 = vpack.c.b16 %v3468, %v3467
        %v3482 = vpack.c.b16 %v3470, %v3469
        %v3483 = vpack.c.b16 %v3472, %v3471
        %v3484 = vpack.c.b16 %v3474, %v3473
        %v3485 = vpack.c.b16 %v3476, %v3475
        %v3486 = vpack.c.b16 %v3478, %v3477
        %3495 = vmatprep.subr.bf16.mxu0 0
        %3496 = vmatpush1.bf16.msra.mxu0 %v3479
        %3497 = vmatprep.subr.bf16.mxu0 0
        %3498 = vmatpush1.bf16.msra.mxu0 %v3480
        %3499 = vmatprep.subr.bf16.mxu0 0
        %3500 = vmatpush1.bf16.msra.mxu0 %v3481
        %3501 = vmatprep.subr.bf16.mxu0 0
        %3502 = vmatpush1.bf16.msra.mxu0 %v3482
        %3503 = vmatprep.subr.bf16.mxu0 0
        %3504 = vmatpush1.bf16.msra.mxu0 %v3483
        %3505 = vmatprep.subr.bf16.mxu0 0
        %3506 = vmatpush1.bf16.msra.mxu0 %v3484
        %3507 = vmatprep.subr.bf16.mxu0 0
        %3508 = vmatpush1.bf16.msra.mxu0 %v3485
        %3509 = vmatprep.subr.bf16.mxu0 0
        %3510 = vmatpush1.bf16.msra.mxu0 %v3486
        %3511 = vmatprep.subr.bf16.mxu0 0
        %3512 = vmatpush1.bf16.msra.mxu0 0
        %3513 = vmatprep.subr.bf16.mxu0 0
        %3514 = vmatpush1.bf16.msra.mxu0 0
        %3515 = vmatprep.subr.bf16.mxu0 0
        %3516 = vmatpush1.bf16.msra.mxu0 0
        %3517 = vmatprep.subr.bf16.mxu0 0
        %3518 = vmatpush1.bf16.msra.mxu0 0
        %3519 = vmatprep.subr.bf16.mxu0 0
        %3520 = vmatpush1.bf16.msra.mxu0 0
        %3521 = vmatprep.subr.bf16.mxu0 0
        %3522 = vmatpush1.bf16.msra.mxu0 0
        %3523 = vmatprep.subr.bf16.mxu0 0
        %3524 = vmatpush1.bf16.msra.mxu0 0
        %3525 = vmatprep.subr.bf16.mxu0 0
        %3526 = vmatpush1.bf16.msra.mxu0 0
        %3527 = vmatprep.mubr.bf16.mxu0 0
        %3528 = vmatmul.mubr.bf16.gmra.mrb[0].mxu0 %v728
        %v3529 = vpop.f32.mrb[0].mxu0
        %v3530 = vadd.f32 0.0, %v3529
        %v3531 = vpop.f32.mrb[0].mxu0
        %v3532 = vpop.f32.mrb[0].mxu0
        %v3533 = vadd.f32 0.0, %v3532
        %v3534 = vpop.f32.mrb[0].mxu0
        %3535 = vmatprep.mubr.bf16.mxu0 0
        %3536 = vmatmul.mubr.bf16.gmra.mrb[0].mxu0 %v729
        %v3537 = vpop.f32.mrb[0].mxu0
        %v3538 = vpop.f32.mrb[0].mxu0
        %v3539 = vpop.f32.mrb[0].mxu0
        %v3540 = vadd.f32 0.0, %v3539
        %v3541 = vpop.f32.mrb[0].mxu0
        %3542 = vmatprep.mubr.bf16.mxu0 0
        %3543 = vmatmul.mubr.bf16.gmra.mrb[0].mxu0 %v730
        %v3544 = vpop.f32.mrb[0].mxu0
        %v3545 = vadd.f32 0.0, %v3544
        %v3546 = vpop.f32.mrb[0].mxu0
        %v3547 = vpop.f32.mrb[0].mxu0
        %v3548 = vpop.f32.mrb[0].mxu0
        %3549 = vmatprep.mubr.bf16.mxu0 0
        %3550 = vmatmul.mubr.bf16.gmra.mrb[0].mxu0 %v731
        %v3551 = vpop.f32.mrb[0].mxu0
        %v3552 = vadd.f32 0.0, %v3551
        %v3553 = vpop.f32.mrb[0].mxu0
        %v3554 = vpop.f32.mrb[0].mxu0
        %v3555 = vadd.f32 0.0, %v3554
        %v3556 = vpop.f32.mrb[0].mxu0
        %3557 = vmatprep.mubr.bf16.mxu0 0
        %3558 = vmatmul.mubr.bf16.gmra.mrb[0].mxu0 %v732
        %v3559 = vpop.f32.mrb[0].mxu0
        %v3560 = vpop.f32.mrb[0].mxu0
        %v3561 = vpop.f32.mrb[0].mxu0
        %v3562 = vadd.f32 0.0, %v3561
        %v3563 = vpop.f32.mrb[0].mxu0
        %3564 = vmatprep.mubr.bf16.mxu0 0
        %3565 = vmatmul.mubr.bf16.gmra.mrb[0].mxu0 %v733
        %v3566 = vpop.f32.mrb[0].mxu0
        %v3567 = vadd.f32 0.0, %v3566
        %v3568 = vpop.f32.mrb[0].mxu0
        %v3569 = vpop.f32.mrb[0].mxu0
        %v3570 = vpop.f32.mrb[0].mxu0
        %3571 = vmatprep.mubr.bf16.mxu0 0
        %3572 = vmatmul.mubr.bf16.gmra.mrb[0].mxu0 %v734
        %v3573 = vpop.f32.mrb[0].mxu0
        %v3574 = vadd.f32 0.0, %v3573
        %v3575 = vpop.f32.mrb[0].mxu0
        %v3576 = vpop.f32.mrb[0].mxu0
        %v3577 = vadd.f32 0.0, %v3576
        %v3578 = vpop.f32.mrb[0].mxu0
        %3579 = vmatprep.mubr.bf16.mxu0 0
        %3580 = vmatmul.mubr.bf16.gmra.mrb[0].mxu0 %v735
        %v3581 = vpop.f32.mrb[0].mxu0
        %v3582 = vpop.f32.mrb[0].mxu0
        %v3583 = vpop.f32.mrb[0].mxu0
        %v3584 = vadd.f32 0.0, %v3583
        %v3585 = vpop.f32.mrb[0].mxu0
        %3586 = vmatprep.mubr.bf16.mxu0 0
        %3587 = vmatmul.mubr.bf16.gmra.mrb[0].mxu0 %v736
        %v3588 = vpop.f32.mrb[0].mxu0
        %v3589 = vadd.f32 0.0, %v3588
        %v3590 = vpop.f32.mrb[0].mxu0
        %v3591 = vpop.f32.mrb[0].mxu0
        %v3592 = vpop.f32.mrb[0].mxu0
        %3593 = vmatprep.mubr.bf16.mxu0 0
        %3594 = vmatmul.mubr.bf16.gmra.mrb[0].mxu0 %v737
        %v3595 = vpop.f32.mrb[0].mxu0
        %v3596 = vadd.f32 0.0, %v3595
        %v3597 = vpop.f32.mrb[0].mxu0
        %v3598 = vpop.f32.mrb[0].mxu0
        %v3599 = vadd.f32 0.0, %v3598
        %v3600 = vpop.f32.mrb[0].mxu0
        %3601 = vmatprep.mubr.bf16.mxu0 0
        %3602 = vmatmul.mubr.bf16.gmra.mrb[0].mxu0 %v738
        %v3603 = vpop.f32.mrb[0].mxu0
        %v3604 = vpop.f32.mrb[0].mxu0
        %v3605 = vpop.f32.mrb[0].mxu0
        %v3606 = vadd.f32 0.0, %v3605
        %v3607 = vpop.f32.mrb[0].mxu0
        %3608 = vmatprep.mubr.bf16.mxu0 0
        %3609 = vmatmul.mubr.bf16.gmra.mrb[0].mxu0 %v739
        %v3610 = vpop.f32.mrb[0].mxu0
        %v3611 = vadd.f32 0.0, %v3610
        %v3612 = vpop.f32.mrb[0].mxu0
        %v3613 = vpop.f32.mrb[0].mxu0
        %v3614 = vpop.f32.mrb[0].mxu0
        %3615 = vmatprep.mubr.bf16.mxu0 0
        %3616 = vmatmul.mubr.bf16.gmra.mrb[0].mxu0 %v740
        %v3617 = vpop.f32.mrb[0].mxu0
        %v3618 = vadd.f32 0.0, %v3617
        %v3619 = vpop.f32.mrb[0].mxu0
        %v3620 = vpop.f32.mrb[0].mxu0
        %v3621 = vadd.f32 0.0, %v3620
        %v3622 = vpop.f32.mrb[0].mxu0
        %3623 = vmatprep.mubr.bf16.mxu0 0
        %3624 = vmatmul.mubr.bf16.gmra.mrb[0].mxu0 %v741
        %v3625 = vpop.f32.mrb[0].mxu0
        %v3626 = vpop.f32.mrb[0].mxu0
        %v3627 = vpop.f32.mrb[0].mxu0
        %v3628 = vadd.f32 0.0, %v3627
        %v3629 = vpop.f32.mrb[0].mxu0
        %3630 = vmatprep.mubr.bf16.mxu0 0
        %3631 = vmatmul.mubr.bf16.gmra.mrb[0].mxu0 %v742
        %v3632 = vpop.f32.mrb[0].mxu0
        %v3633 = vadd.f32 0.0, %v3632
        %v3634 = vpop.f32.mrb[0].mxu0
        %v3635 = vpop.f32.mrb[0].mxu0
        %v3636 = vpop.f32.mrb[0].mxu0
        %3637 = vmatprep.mubr.bf16.mxu0 0
        %3638 = vmatmul.mubr.bf16.gmra.mrb[0].mxu0 %v743
        %v3639 = vpop.f32.mrb[0].mxu0
        %v3640 = vadd.f32 0.0, %v3639
        %v3641 = vpop.f32.mrb[0].mxu0
        %v3642 = vpop.f32.mrb[0].mxu0
        %v3643 = vadd.f32 0.0, %v3642
        %v3644 = vpop.f32.mrb[0].mxu0
        %3645 = vmatprep.mubr.bf16.mxu0 0
        %3646 = vmatmul.mubr.bf16.gmra.mrb[0].mxu0 %v744
        %v3647 = vpop.f32.mrb[0].mxu0
        %v3648 = vpop.f32.mrb[0].mxu0
        %v3649 = vpop.f32.mrb[0].mxu0
        %v3650 = vadd.f32 0.0, %v3649
        %v3651 = vpop.f32.mrb[0].mxu0
        %3652 = vmatprep.mubr.bf16.mxu0 0
        %3653 = vmatmul.mubr.bf16.gmra.mrb[0].mxu0 %v745
        %v3654 = vpop.f32.mrb[0].mxu0
        %v3655 = vadd.f32 0.0, %v3654
        %v3656 = vpop.f32.mrb[0].mxu0
        %v3657 = vpop.f32.mrb[0].mxu0
        %v3658 = vpop.f32.mrb[0].mxu0
        %3659 = vmatprep.mubr.bf16.mxu0 0
        %3660 = vmatmul.mubr.bf16.gmra.mrb[0].mxu0 %v746
        %v3661 = vpop.f32.mrb[0].mxu0
        %v3662 = vadd.f32 0.0, %v3661
        %v3663 = vpop.f32.mrb[0].mxu0
        %v3664 = vpop.f32.mrb[0].mxu0
        %v3665 = vadd.f32 0.0, %v3664
        %v3666 = vpop.f32.mrb[0].mxu0
        %3667 = vmatprep.mubr.bf16.mxu0 0
        %3668 = vmatmul.mubr.bf16.gmra.mrb[0].mxu0 %v747
        %v3669 = vpop.f32.mrb[0].mxu0
        %v3670 = vpop.f32.mrb[0].mxu0
        %v3671 = vpop.f32.mrb[0].mxu0
        %v3672 = vadd.f32 0.0, %v3671
        %v3673 = vpop.f32.mrb[0].mxu0
        %3674 = vmatprep.mubr.bf16.mxu0 0
        %3675 = vmatmul.mubr.bf16.gmra.mrb[0].mxu0 %v748
        %v3676 = vpop.f32.mrb[0].mxu0
        %v3677 = vadd.f32 0.0, %v3676
        %v3678 = vpop.f32.mrb[0].mxu0
        %v3679 = vpop.f32.mrb[0].mxu0
        %v3680 = vpop.f32.mrb[0].mxu0
        %3681 = vmatprep.mubr.bf16.mxu0 0
        %3682 = vmatmul.mubr.bf16.gmra.mrb[0].mxu0 %v749
        %v3683 = vpop.f32.mrb[0].mxu0
        %v3684 = vadd.f32 0.0, %v3683
        %v3685 = vpop.f32.mrb[0].mxu0
        %v3686 = vpop.f32.mrb[0].mxu0
        %v3687 = vadd.f32 0.0, %v3686
        %v3688 = vpop.f32.mrb[0].mxu0
        %3689 = vmatprep.mubr.bf16.mxu0 0
        %3690 = vmatmul.mubr.bf16.gmra.mrb[0].mxu0 %v750
        %v3691 = vpop.f32.mrb[0].mxu0
        %v3692 = vpop.f32.mrb[0].mxu0
        %v3693 = vpop.f32.mrb[0].mxu0
        %v3694 = vadd.f32 0.0, %v3693
        %v3695 = vpop.f32.mrb[0].mxu0
        %3696 = vmatprep.mubr.bf16.mxu0 0
        %3697 = vmatmul.mubr.bf16.gmra.mrb[0].mxu0 %v751
        %v3698 = vpop.f32.mrb[0].mxu0
        %v3699 = vadd.f32 0.0, %v3698
        %v3700 = vpop.f32.mrb[0].mxu0
        %v3701 = vpop.f32.mrb[0].mxu0
        %v3702 = vpop.f32.mrb[0].mxu0
        %3703 = vdwg.mxu0
        %v3704 = vadd.f32 %v3398, %v3530
        %v3705 = vadd.f32 %v3399, %v3533
        %v3706 = vadd.f32 %v3400, %v3540
        %v3707 = vadd.f32 %v3401, %v3545
        %v3708 = vadd.f32 %v3402, %v3552
        %v3709 = vadd.f32 %v3403, %v3555
        %v3710 = vadd.f32 %v3404, %v3562
        %v3711 = vadd.f32 %v3405, %v3567
        %v3712 = vadd.f32 %v3406, %v3574
        %v3713 = vadd.f32 %v3407, %v3577
        %v3714 = vadd.f32 %v3408, %v3584
        %v3715 = vadd.f32 %v3409, %v3589
        %v3716 = vadd.f32 %v3410, %v3596
        %v3717 = vadd.f32 %v3411, %v3599
        %v3718 = vadd.f32 %v3412, %v3606
        %v3719 = vadd.f32 %v3413, %v3611
        %v3720 = vadd.f32 %v3414, %v3618
        %v3721 = vadd.f32 %v3415, %v3621
        %v3722 = vadd.f32 %v3416, %v3628
        %v3723 = vadd.f32 %v3417, %v3633
        %v3724 = vadd.f32 %v3418, %v3640
        %v3725 = vadd.f32 %v3419, %v3643
        %v3726 = vadd.f32 %v3420, %v3650
        %v3727 = vadd.f32 %v3421, %v3655
        %v3728 = vadd.f32 %v3422, %v3662
        %v3729 = vadd.f32 %v3423, %v3665
        %v3730 = vadd.f32 %v3424, %v3672
        %v3731 = vadd.f32 %v3425, %v3677
        %v3732 = vadd.f32 %v3426, %v3684
        %v3733 = vadd.f32 %v3427, %v3687
        %v3734 = vadd.f32 %v3428, %v3694
        %v3735 = vadd.f32 %v3429, %v3699
        %v3736 = vld [vmem:[%s3] sm:$0x1]
        %v3737 = vlaneseq
        %v3738 = vshrl.u32 %v3737, 7
        %v3739 = vsub.s32 0, %v3738
        %v3740 = vrot.slane %v3736, %v3739
        %v3741 = vmul.f32 %v3704, %v3740
        %v3742 = vmul.f32 %v3705, %v3740
        %v3743 = vmul.f32 %v3706, %v3740
        %v3744 = vmul.f32 %v3707, %v3740
        %v3745 = vmul.f32 %v3708, %v3740
        %v3746 = vmul.f32 %v3709, %v3740
        %v3747 = vmul.f32 %v3710, %v3740
        %v3748 = vmul.f32 %v3711, %v3740
        %v3749 = vmul.f32 %v3712, %v3740
        %v3750 = vmul.f32 %v3713, %v3740
        %v3751 = vmul.f32 %v3714, %v3740
        %v3752 = vmul.f32 %v3715, %v3740
        %v3753 = vmul.f32 %v3716, %v3740
        %v3754 = vmul.f32 %v3717, %v3740
        %v3755 = vmul.f32 %v3718, %v3740
        %v3756 = vmul.f32 %v3719, %v3740
        %v3757 = vmul.f32 %v3720, %v3740
        %v3758 = vmul.f32 %v3721, %v3740
        %v3759 = vmul.f32 %v3722, %v3740
        %v3760 = vmul.f32 %v3723, %v3740
        %v3761 = vmul.f32 %v3724, %v3740
        %v3762 = vmul.f32 %v3725, %v3740
        %v3763 = vmul.f32 %v3726, %v3740
        %v3764 = vmul.f32 %v3727, %v3740
        %v3765 = vmul.f32 %v3728, %v3740
        %v3766 = vmul.f32 %v3729, %v3740
        %v3767 = vmul.f32 %v3730, %v3740
        %v3768 = vmul.f32 %v3731, %v3740
        %v3769 = vmul.f32 %v3732, %v3740
        %v3770 = vmul.f32 %v3733, %v3740
        %v3771 = vmul.f32 %v3734, %v3740
        %v3772 = vmul.f32 %v3735, %v3740
        %v3773 = vld [vmem:[%s3 + $0x1] sm:$0x1]
        %v3774 = vlaneseq
        %v3775 = vshrl.u32 %v3774, 7
        %v3776 = vsub.s32 0, %v3775
        %v3777 = vrot.slane %v3773, %v3776
        %v3778 = vadd.f32 %v3741, %v3777
        %v3779 = vadd.f32 %v3742, %v3777
        %v3780 = vadd.f32 %v3743, %v3777
        %v3781 = vadd.f32 %v3744, %v3777
        %v3782 = vadd.f32 %v3745, %v3777
        %v3783 = vadd.f32 %v3746, %v3777
        %v3784 = vadd.f32 %v3747, %v3777
        %v3785 = vadd.f32 %v3748, %v3777
        %v3786 = vadd.f32 %v3749, %v3777
        %v3787 = vadd.f32 %v3750, %v3777
        %v3788 = vadd.f32 %v3751, %v3777
        %v3789 = vadd.f32 %v3752, %v3777
        %v3790 = vadd.f32 %v3753, %v3777
        %v3791 = vadd.f32 %v3754, %v3777
        %v3792 = vadd.f32 %v3755, %v3777
        %v3793 = vadd.f32 %v3756, %v3777
        %v3794 = vadd.f32 %v3757, %v3777
        %v3795 = vadd.f32 %v3758, %v3777
        %v3796 = vadd.f32 %v3759, %v3777
        %v3797 = vadd.f32 %v3760, %v3777
        %v3798 = vadd.f32 %v3761, %v3777
        %v3799 = vadd.f32 %v3762, %v3777
        %v3800 = vadd.f32 %v3763, %v3777
        %v3801 = vadd.f32 %v3764, %v3777
        %v3802 = vadd.f32 %v3765, %v3777
        %v3803 = vadd.f32 %v3766, %v3777
        %v3804 = vadd.f32 %v3767, %v3777
        %v3805 = vadd.f32 %v3768, %v3777
        %v3806 = vadd.f32 %v3769, %v3777
        %v3807 = vadd.f32 %v3770, %v3777
        %v3808 = vadd.f32 %v3771, %v3777
        %v3809 = vadd.f32 %v3772, %v3777
        %v3810 = vmax.f32 %v3778, 0.0
        %v3811 = vmax.f32 %v3779, 0.0
        %v3812 = vmax.f32 %v3780, 0.0
        %v3813 = vmax.f32 %v3781, 0.0
        %v3814 = vmax.f32 %v3782, 0.0
        %v3815 = vmax.f32 %v3783, 0.0
        %v3816 = vmax.f32 %v3784, 0.0
        %v3817 = vmax.f32 %v3785, 0.0
        %v3818 = vmax.f32 %v3786, 0.0
        %v3819 = vmax.f32 %v3787, 0.0
        %v3820 = vmax.f32 %v3788, 0.0
        %v3821 = vmax.f32 %v3789, 0.0
        %v3822 = vmax.f32 %v3790, 0.0
        %v3823 = vmax.f32 %v3791, 0.0
        %v3824 = vmax.f32 %v3792, 0.0
        %v3825 = vmax.f32 %v3793, 0.0
        %v3826 = vmax.f32 %v3794, 0.0
        %v3827 = vmax.f32 %v3795, 0.0
        %v3828 = vmax.f32 %v3796, 0.0
        %v3829 = vmax.f32 %v3797, 0.0
        %v3830 = vmax.f32 %v3798, 0.0
        %v3831 = vmax.f32 %v3799, 0.0
        %v3832 = vmax.f32 %v3800, 0.0
        %v3833 = vmax.f32 %v3801, 0.0
        %v3834 = vmax.f32 %v3802, 0.0
        %v3835 = vmax.f32 %v3803, 0.0
        %v3836 = vmax.f32 %v3804, 0.0
        %v3837 = vmax.f32 %v3805, 0.0
        %v3838 = vmax.f32 %v3806, 0.0
        %v3839 = vmax.f32 %v3807, 0.0
        %v3840 = vmax.f32 %v3808, 0.0
        %v3841 = vmax.f32 %v3809, 0.0
        %3842 = vst [vmem:[%s364] sm:$0xff] %v3810
        %3843 = vst [vmem:[%s364 + $0x8] sm:$0xff] %v3811
        %3844 = vst [vmem:[%s364 + $0x18] sm:$0xff] %v3812
        %3845 = vst [vmem:[%s364 + $0x20] sm:$0xff] %v3813
        %3846 = vst [vmem:[%s364 + $0x30] sm:$0xff] %v3814
        %3847 = vst [vmem:[%s364 + $0x38] sm:$0xff] %v3815
        %3848 = vst [vmem:[%s364 + $0x48] sm:$0xff] %v3816
        %3849 = vst [vmem:[%s364 + $0x50] sm:$0xff] %v3817
        %3850 = vst [vmem:[%s364 + $0x60] sm:$0xff] %v3818
        %3851 = vst [vmem:[%s364 + $0x68] sm:$0xff] %v3819
        %3852 = vst [vmem:[%s364 + $0x78] sm:$0xff] %v3820
        %3853 = vst [vmem:[%s364 + $0x80] sm:$0xff] %v3821
        %3854 = vst [vmem:[%s364 + $0x90] sm:$0xff] %v3822
        %3855 = vst [vmem:[%s364 + $0x98] sm:$0xff] %v3823
        %3856 = vst [vmem:[%s364 + $0xa8] sm:$0xff] %v3824
        %3857 = vst [vmem:[%s364 + $0xb0] sm:$0xff] %v3825
        %3858 = vst [vmem:[%s364 + $0xc0] sm:$0xff] %v3826
        %3859 = vst [vmem:[%s364 + $0xc8] sm:$0xff] %v3827
        %3860 = vst [vmem:[%s364 + $0xd8] sm:$0xff] %v3828
        %3861 = vst [vmem:[%s364 + $0xe0] sm:$0xff] %v3829
        %3862 = vst [vmem:[%s364 + $0xf0] sm:$0xff] %v3830
        %3863 = vst [vmem:[%s364 + $0xf8] sm:$0xff] %v3831
        %3864 = vst [vmem:[%s364 + $0x108] sm:$0xff] %v3832
        %3865 = vst [vmem:[%s364 + $0x110] sm:$0xff] %v3833
        %3866 = vst [vmem:[%s364 + $0x120] sm:$0xff] %v3834
        %3867 = vst [vmem:[%s364 + $0x128] sm:$0xff] %v3835
        %3868 = vst [vmem:[%s364 + $0x138] sm:$0xff] %v3836
        %3869 = vst [vmem:[%s364 + $0x140] sm:$0xff] %v3837
        %3870 = vst [vmem:[%s364 + $0x150] sm:$0xff] %v3838
        %3871 = vst [vmem:[%s364 + $0x158] sm:$0xff] %v3839
        %3872 = vst [vmem:[%s364 + $0x168] sm:$0xff] %v3840
        %3873 = vst [vmem:[%s364 + $0x170] sm:$0xff] %v3841
        %v3874 = vld [vmem:[#allocation2] sm:$0xff]
        %v3875 = vld [vmem:[#allocation2 + $0x8] sm:$0xff]
        %v3876 = vld [vmem:[#allocation2 + $0x10] sm:$0xff]
        %v3877 = vld [vmem:[#allocation2 + $0x18] sm:$0xff]
        %v3878 = vld [vmem:[#allocation2 + $0x20] sm:$0xff]
        %v3879 = vld [vmem:[#allocation2 + $0x28] sm:$0xff]
        %v3880 = vld [vmem:[#allocation2 + $0x30] sm:$0xff]
        %v3881 = vld [vmem:[#allocation2 + $0x38] sm:$0xff]
        %v3882 = vld [vmem:[#allocation2 + $0x40] sm:$0xff]
        %v3883 = vld [vmem:[#allocation2 + $0x48] sm:$0xff]
        %v3884 = vld [vmem:[#allocation2 + $0x50] sm:$0xff]
        %v3885 = vld [vmem:[#allocation2 + $0x58] sm:$0xff]
        %v3886 = vld [vmem:[#allocation2 + $0x60] sm:$0xff]
        %v3887 = vld [vmem:[#allocation2 + $0x68] sm:$0xff]
        %v3888 = vld [vmem:[#allocation2 + $0x70] sm:$0xff]
        %v3889 = vld [vmem:[#allocation2 + $0x78] sm:$0xff]
        %v3890 = vld [vmem:[#allocation2 + $0x80] sm:$0xff]
        %v3891 = vld [vmem:[#allocation2 + $0x88] sm:$0xff]
        %v3892 = vld [vmem:[#allocation2 + $0x90] sm:$0xff]
        %v3893 = vld [vmem:[#allocation2 + $0x98] sm:$0xff]
        %v3894 = vld [vmem:[#allocation2 + $0xa0] sm:$0xff]
        %v3895 = vld [vmem:[#allocation2 + $0xa8] sm:$0xff]
        %v3896 = vld [vmem:[#allocation2 + $0xb0] sm:$0xff]
        %v3897 = vld [vmem:[#allocation2 + $0xb8] sm:$0xff]
        %v3898 = vld [vmem:[#allocation2 + $0xc0] sm:$0xff]
        %v3899 = vld [vmem:[#allocation2 + $0xc8] sm:$0xff]
        %v3900 = vld [vmem:[#allocation2 + $0xd0] sm:$0xff]
        %v3901 = vld [vmem:[#allocation2 + $0xd8] sm:$0xff]
        %v3902 = vld [vmem:[#allocation2 + $0xe0] sm:$0xff]
        %v3903 = vld [vmem:[#allocation2 + $0xe8] sm:$0xff]
        %v3904 = vld [vmem:[#allocation2 + $0xf0] sm:$0xff]
        %v3905 = vld [vmem:[#allocation2 + $0xf8] sm:$0xff]
        %v3906 = vld [vmem:[#allocation2 + $0x100] sm:$0xff]
        %v3907 = vld [vmem:[#allocation2 + $0x108] sm:$0xff]
        %v3908 = vld [vmem:[#allocation2 + $0x110] sm:$0xff]
        %v3909 = vld [vmem:[#allocation2 + $0x118] sm:$0xff]
        %v3910 = vld [vmem:[#allocation2 + $0x120] sm:$0xff]
        %v3911 = vld [vmem:[#allocation2 + $0x128] sm:$0xff]
        %v3912 = vld [vmem:[#allocation2 + $0x130] sm:$0xff]
        %v3913 = vld [vmem:[#allocation2 + $0x138] sm:$0xff]
        %v3914 = vld [vmem:[#allocation2 + $0x140] sm:$0xff]
        %v3915 = vld [vmem:[#allocation2 + $0x148] sm:$0xff]
        %v3916 = vld [vmem:[#allocation2 + $0x150] sm:$0xff]
        %v3917 = vld [vmem:[#allocation2 + $0x158] sm:$0xff]
        %v3918 = vld [vmem:[#allocation2 + $0x160] sm:$0xff]
        %v3919 = vld [vmem:[#allocation2 + $0x168] sm:$0xff]
        %v3920 = vld [vmem:[#allocation2 + $0x170] sm:$0xff]
        %v3921 = vld [vmem:[#allocation2 + $0x178] sm:$0xff]
        %v3922 = vld [vmem:[#allocation2 + $0x180] sm:$0xff]
        %v3923 = vld [vmem:[#allocation2 + $0x188] sm:$0xff]
        %v3924 = vld [vmem:[#allocation2 + $0x190] sm:$0xff]
        %v3925 = vld [vmem:[#allocation2 + $0x198] sm:$0xff]
        %v3926 = vld [vmem:[#allocation2 + $0x1a0] sm:$0xff]
        %v3927 = vld [vmem:[#allocation2 + $0x1a8] sm:$0xff]
        %v3928 = vrot.slane %v3874, 7
        %v3929 = vrot.slane %v3875, 7
        %v3930 = vrot.slane %v3876, 7
        %v3931 = vrot.slane %v3877, 7
        %v3932 = vrot.slane %v3878, 7
        %v3933 = vrot.slane %v3879, 7
        %v3934 = vrot.slane %v3880, 7
        %v3935 = vrot.slane %v3881, 7
        %v3936 = vrot.slane %v3882, 7
        %v3937 = vrot.slane %v3883, 7
        %v3938 = vrot.slane %v3884, 7
        %v3939 = vrot.slane %v3885, 7
        %v3940 = vrot.slane %v3886, 7
        %v3941 = vrot.slane %v3887, 7
        %v3942 = vrot.slane %v3888, 7
        %v3943 = vrot.slane %v3889, 7
        %v3944 = vrot.slane %v3890, 7
        %v3945 = vrot.slane %v3891, 7
        %v3946 = vrot.slane %v3892, 7
        %v3947 = vrot.slane %v3893, 7
        %v3948 = vrot.slane %v3894, 7
        %v3949 = vrot.slane %v3895, 7
        %v3950 = vrot.slane %v3896, 7
        %v3951 = vrot.slane %v3897, 7
        %v3952 = vrot.slane %v3898, 7
        %v3953 = vrot.slane %v3899, 7
        %v3954 = vrot.slane %v3900, 7
        %v3955 = vrot.slane %v3901, 7
        %v3956 = vrot.slane %v3902, 7
        %v3957 = vrot.slane %v3903, 7
        %v3958 = vrot.slane %v3904, 7
        %v3959 = vrot.slane %v3905, 7
        %v3960 = vrot.slane %v3906, 7
        %v3961 = vrot.slane %v3907, 7
        %v3962 = vrot.slane %v3908, 7
        %v3963 = vrot.slane %v3909, 7
        %v3964 = vrot.slane %v3910, 7
        %v3965 = vrot.slane %v3911, 7
        %v3966 = vrot.slane %v3912, 7
        %v3967 = vrot.slane %v3913, 7
        %v3968 = vrot.slane %v3914, 7
        %v3969 = vrot.slane %v3915, 7
        %v3970 = vrot.slane %v3916, 7
        %v3971 = vrot.slane %v3917, 7
        %v3972 = vrot.slane %v3918, 7
        %v3973 = vrot.slane %v3919, 7
        %v3974 = vrot.slane %v3920, 7
        %v3975 = vrot.slane %v3921, 7
        %v3976 = vrot.slane %v3922, 7
        %v3977 = vrot.slane %v3923, 7
        %v3978 = vrot.slane %v3924, 7
        %v3979 = vrot.slane %v3925, 7
        %v3980 = vrot.slane %v3926, 7
        %v3981 = vrot.slane %v3927, 7
        %v3982 = vsel %vm507, %v3980, %v3981
        %v3983 = vsel %vm507, %v3979, %v3980
        %v3984 = vsel %vm507, %v3978, %v3979
        %v3985 = vsel %vm507, %v3977, %v3978
        %v3986 = vsel %vm507, %v3976, %v3977
        %v3987 = vsel %vm507, %v3975, %v3976
        %v3988 = vsel %vm507, %v3974, %v3975
        %v3989 = vsel %vm507, %v3973, %v3974
        %v3990 = vsel %vm507, %v3972, %v3973
        %v3991 = vsel %vm507, %v3971, %v3972
        %v3992 = vsel %vm507, %v3970, %v3971
        %v3993 = vsel %vm507, %v3969, %v3970
        %v3994 = vsel %vm507, %v3968, %v3969
        %v3995 = vsel %vm507, %v3967, %v3968
        %v3996 = vsel %vm507, %v3966, %v3967
        %v3997 = vsel %vm507, %v3965, %v3966
        %v3998 = vsel %vm507, %v3964, %v3965
        %v3999 = vsel %vm507, %v3963, %v3964
        %v4000 = vsel %vm507, %v3962, %v3963
        %v4001 = vsel %vm507, %v3961, %v3962
        %v4002 = vsel %vm507, %v3960, %v3961
        %v4003 = vsel %vm507, %v3959, %v3960
        %v4004 = vsel %vm507, %v3958, %v3959
        %v4005 = vsel %vm507, %v3957, %v3958
        %v4006 = vsel %vm507, %v3956, %v3957
        %v4007 = vsel %vm507, %v3955, %v3956
        %v4008 = vsel %vm507, %v3954, %v3955
        %v4009 = vsel %vm507, %v3953, %v3954
        %v4010 = vsel %vm507, %v3952, %v3953
        %v4011 = vsel %vm507, %v3951, %v3952
        %v4012 = vsel %vm507, %v3950, %v3951
        %v4013 = vsel %vm507, %v3949, %v3950
        %v4014 = vsel %vm507, %v3948, %v3949
        %v4015 = vsel %vm507, %v3947, %v3948
        %v4016 = vsel %vm507, %v3946, %v3947
        %v4017 = vsel %vm507, %v3945, %v3946
        %v4018 = vsel %vm507, %v3944, %v3945
        %v4019 = vsel %vm507, %v3943, %v3944
        %v4020 = vsel %vm507, %v3942, %v3943
        %v4021 = vsel %vm507, %v3941, %v3942
        %v4022 = vsel %vm507, %v3940, %v3941
        %v4023 = vsel %vm507, %v3939, %v3940
        %v4024 = vsel %vm507, %v3938, %v3939
        %v4025 = vsel %vm507, %v3937, %v3938
        %v4026 = vsel %vm507, %v3936, %v3937
        %v4027 = vsel %vm507, %v3935, %v3936
        %v4028 = vsel %vm507, %v3934, %v3935
        %v4029 = vsel %vm507, %v3933, %v3934
        %v4030 = vsel %vm507, %v3932, %v3933
        %v4031 = vsel %vm507, %v3931, %v3932
        %v4032 = vsel %vm507, %v3930, %v3931
        %v4033 = vsel %vm507, %v3929, %v3930
        %v4034 = vsel %vm507, %v3928, %v3929
        %v4035 = vsel %vm507, %v3981, %v3928
        %v4036 = vrot.slane %v3874, 1
        %v4037 = vrot.slane %v3875, 1
        %v4038 = vrot.slane %v3876, 1
        %v4039 = vrot.slane %v3877, 1
        %v4040 = vrot.slane %v3878, 1
        %v4041 = vrot.slane %v3879, 1
        %v4042 = vrot.slane %v3880, 1
        %v4043 = vrot.slane %v3881, 1
        %v4044 = vrot.slane %v3882, 1
        %v4045 = vrot.slane %v3883, 1
        %v4046 = vrot.slane %v3884, 1
        %v4047 = vrot.slane %v3885, 1
        %v4048 = vrot.slane %v3886, 1
        %v4049 = vrot.slane %v3887, 1
        %v4050 = vrot.slane %v3888, 1
        %v4051 = vrot.slane %v3889, 1
        %v4052 = vrot.slane %v3890, 1
        %v4053 = vrot.slane %v3891, 1
        %v4054 = vrot.slane %v3892, 1
        %v4055 = vrot.slane %v3893, 1
        %v4056 = vrot.slane %v3894, 1
        %v4057 = vrot.slane %v3895, 1
        %v4058 = vrot.slane %v3896, 1
        %v4059 = vrot.slane %v3897, 1
        %v4060 = vrot.slane %v3898, 1
        %v4061 = vrot.slane %v3899, 1
        %v4062 = vrot.slane %v3900, 1
        %v4063 = vrot.slane %v3901, 1
        %v4064 = vrot.slane %v3902, 1
        %v4065 = vrot.slane %v3903, 1
        %v4066 = vrot.slane %v3904, 1
        %v4067 = vrot.slane %v3905, 1
        %v4068 = vrot.slane %v3906, 1
        %v4069 = vrot.slane %v3907, 1
        %v4070 = vrot.slane %v3908, 1
        %v4071 = vrot.slane %v3909, 1
        %v4072 = vrot.slane %v3910, 1
        %v4073 = vrot.slane %v3911, 1
        %v4074 = vrot.slane %v3912, 1
        %v4075 = vrot.slane %v3913, 1
        %v4076 = vrot.slane %v3914, 1
        %v4077 = vrot.slane %v3915, 1
        %v4078 = vrot.slane %v3916, 1
        %v4079 = vrot.slane %v3917, 1
        %v4080 = vrot.slane %v3918, 1
        %v4081 = vrot.slane %v3919, 1
        %v4082 = vrot.slane %v3920, 1
        %v4083 = vrot.slane %v3921, 1
        %v4084 = vrot.slane %v3922, 1
        %v4085 = vrot.slane %v3923, 1
        %v4086 = vrot.slane %v3924, 1
        %v4087 = vrot.slane %v3925, 1
        %v4088 = vrot.slane %v3926, 1
        %v4089 = vrot.slane %v3927, 1
        %v4090 = vsel %vm616, %v4088, %v4089
        %v4091 = vsel %vm616, %v4087, %v4088
        %v4092 = vsel %vm616, %v4086, %v4087
        %v4093 = vsel %vm616, %v4085, %v4086
        %v4094 = vsel %vm616, %v4084, %v4085
        %v4095 = vsel %vm616, %v4083, %v4084
        %v4096 = vsel %vm616, %v4082, %v4083
        %v4097 = vsel %vm616, %v4081, %v4082
        %v4098 = vsel %vm616, %v4080, %v4081
        %v4099 = vsel %vm616, %v4079, %v4080
        %v4100 = vsel %vm616, %v4078, %v4079
        %v4101 = vsel %vm616, %v4077, %v4078
        %v4102 = vsel %vm616, %v4076, %v4077
        %v4103 = vsel %vm616, %v4075, %v4076
        %v4104 = vsel %vm616, %v4074, %v4075
        %v4105 = vsel %vm616, %v4073, %v4074
        %v4106 = vsel %vm616, %v4072, %v4073
        %v4107 = vsel %vm616, %v4071, %v4072
        %v4108 = vsel %vm616, %v4070, %v4071
        %v4109 = vsel %vm616, %v4069, %v4070
        %v4110 = vsel %vm616, %v4068, %v4069
        %v4111 = vsel %vm616, %v4067, %v4068
        %v4112 = vsel %vm616, %v4066, %v4067
        %v4113 = vsel %vm616, %v4065, %v4066
        %v4114 = vsel %vm616, %v4064, %v4065
        %v4115 = vsel %vm616, %v4063, %v4064
        %v4116 = vsel %vm616, %v4062, %v4063
        %v4117 = vsel %vm616, %v4061, %v4062
        %v4118 = vsel %vm616, %v4060, %v4061
        %v4119 = vsel %vm616, %v4059, %v4060
        %v4120 = vsel %vm616, %v4058, %v4059
        %v4121 = vsel %vm616, %v4057, %v4058
        %v4122 = vsel %vm616, %v4056, %v4057
        %v4123 = vsel %vm616, %v4055, %v4056
        %v4124 = vsel %vm616, %v4054, %v4055
        %v4125 = vsel %vm616, %v4053, %v4054
        %v4126 = vsel %vm616, %v4052, %v4053
        %v4127 = vsel %vm616, %v4051, %v4052
        %v4128 = vsel %vm616, %v4050, %v4051
        %v4129 = vsel %vm616, %v4049, %v4050
        %v4130 = vsel %vm616, %v4048, %v4049
        %v4131 = vsel %vm616, %v4047, %v4048
        %v4132 = vsel %vm616, %v4046, %v4047
        %v4133 = vsel %vm616, %v4045, %v4046
        %v4134 = vsel %vm616, %v4044, %v4045
        %v4135 = vsel %vm616, %v4043, %v4044
        %v4136 = vsel %vm616, %v4042, %v4043
        %v4137 = vsel %vm616, %v4041, %v4042
        %v4138 = vsel %vm616, %v4040, %v4041
        %v4139 = vsel %vm616, %v4039, %v4040
        %v4140 = vsel %vm616, %v4038, %v4039
        %v4141 = vsel %vm616, %v4037, %v4038
        %v4142 = vsel %vm616, %v4036, %v4037
        %v4143 = vsel %vm616, %v4089, %v4036
        %v4144 = vpack.c.bf16 %v4034, %v4035
        %v4145 = vpack.c.bf16 %v4032, %v4033
        %v4146 = vpack.c.bf16 %v4030, %v4031
        %v4147 = vpack.c.bf16 %v4028, %v4029
        %v4148 = vpack.c.bf16 %v4026, %v4027
        %v4149 = vpack.c.bf16 %v4024, %v4025
        %v4150 = vpack.c.bf16 %v4022, %v4023
        %v4151 = vpack.c.bf16 %v4020, %v4021
        %v4152 = vpack.c.bf16 %v4018, %v4019
        %v4153 = vpack.c.bf16 %v4016, %v4017
        %v4154 = vpack.c.bf16 %v4014, %v4015
        %v4155 = vpack.c.bf16 %v4012, %v4013
        %v4156 = vpack.c.bf16 %v4010, %v4011
        %v4157 = vpack.c.bf16 %v4008, %v4009
        %v4158 = vpack.c.bf16 %v4006, %v4007
        %v4159 = vpack.c.bf16 %v4004, %v4005
        %v4160 = vpack.c.bf16 %v4002, %v4003
        %v4161 = vpack.c.bf16 %v4000, %v4001
        %v4162 = vpack.c.bf16 %v3998, %v3999
        %v4163 = vpack.c.bf16 %v3996, %v3997
        %v4164 = vpack.c.bf16 %v3994, %v3995
        %v4165 = vpack.c.bf16 %v3992, %v3993
        %v4166 = vpack.c.bf16 %v3990, %v3991
        %v4167 = vpack.c.bf16 %v3988, %v3989
        %v4168 = vpack.c.bf16 %v3986, %v3987
        %v4169 = vpack.c.bf16 %v3984, %v3985
        %v4170 = vpack.c.bf16 %v3982, %v3983
        %v4171 = vpack.c.bf16 %v3875, %v3874
        %v4172 = vpack.c.bf16 %v3877, %v3876
        %v4173 = vpack.c.bf16 %v3879, %v3878
        %v4174 = vpack.c.bf16 %v3881, %v3880
        %v4175 = vpack.c.bf16 %v3883, %v3882
        %v4176 = vpack.c.bf16 %v3885, %v3884
        %v4177 = vpack.c.bf16 %v3887, %v3886
        %v4178 = vpack.c.bf16 %v3889, %v3888
        %v4179 = vpack.c.bf16 %v3891, %v3890
        %v4180 = vpack.c.bf16 %v3893, %v3892
        %v4181 = vpack.c.bf16 %v3895, %v3894
        %v4182 = vpack.c.bf16 %v3897, %v3896
        %v4183 = vpack.c.bf16 %v3899, %v3898
        %v4184 = vpack.c.bf16 %v3901, %v3900
        %v4185 = vpack.c.bf16 %v3903, %v3902
        %v4186 = vpack.c.bf16 %v3905, %v3904
        %v4187 = vpack.c.bf16 %v3907, %v3906
        %v4188 = vpack.c.bf16 %v3909, %v3908
        %v4189 = vpack.c.bf16 %v3911, %v3910
        %v4190 = vpack.c.bf16 %v3913, %v3912
        %v4191 = vpack.c.bf16 %v3915, %v3914
        %v4192 = vpack.c.bf16 %v3917, %v3916
        %v4193 = vpack.c.bf16 %v3919, %v3918
        %v4194 = vpack.c.bf16 %v3921, %v3920
        %v4195 = vpack.c.bf16 %v3923, %v3922
        %v4196 = vpack.c.bf16 %v3925, %v3924
        %v4197 = vpack.c.bf16 %v3927, %v3926
        %v4198 = vpack.c.bf16 %v4141, %v4142
        %v4199 = vpack.c.bf16 %v4139, %v4140
        %v4200 = vpack.c.bf16 %v4137, %v4138
        %v4201 = vpack.c.bf16 %v4135, %v4136
        %v4202 = vpack.c.bf16 %v4133, %v4134
        %v4203 = vpack.c.bf16 %v4131, %v4132
        %v4204 = vpack.c.bf16 %v4129, %v4130
        %v4205 = vpack.c.bf16 %v4127, %v4128
        %v4206 = vpack.c.bf16 %v4125, %v4126
        %v4207 = vpack.c.bf16 %v4123, %v4124
        %v4208 = vpack.c.bf16 %v4121, %v4122
        %v4209 = vpack.c.bf16 %v4119, %v4120
        %v4210 = vpack.c.bf16 %v4117, %v4118
        %v4211 = vpack.c.bf16 %v4115, %v4116
        %v4212 = vpack.c.bf16 %v4113, %v4114
        %v4213 = vpack.c.bf16 %v4111, %v4112
        %v4214 = vpack.c.bf16 %v4109, %v4110
        %v4215 = vpack.c.bf16 %v4107, %v4108
        %v4216 = vpack.c.bf16 %v4105, %v4106
        %v4217 = vpack.c.bf16 %v4103, %v4104
        %v4218 = vpack.c.bf16 %v4101, %v4102
        %v4219 = vpack.c.bf16 %v4099, %v4100
        %v4220 = vpack.c.bf16 %v4097, %v4098
        %v4221 = vpack.c.bf16 %v4095, %v4096
        %v4222 = vpack.c.bf16 %v4093, %v4094
        %v4223 = vpack.c.bf16 %v4091, %v4092
        %v4224 = vpack.c.bf16 %v4143, %v4090
        %v4225 = vld [vmem:[#allocation8] sm:$0xf]
        %v4226 = vld [vmem:[#allocation8 + $0x4] sm:$0xf]
        %v4227 = vld [vmem:[#allocation8 + $0x8] sm:$0xf]
        %v4228 = vld [vmem:[#allocation8 + $0xc] sm:$0xf]
        %v4229 = vld [vmem:[#allocation8 + $0x10] sm:$0xf]
        %v4230 = vld [vmem:[#allocation8 + $0x14] sm:$0xf]
        %v4231 = vld [vmem:[#allocation8 + $0x18] sm:$0xf]
        %v4232 = vld [vmem:[#allocation8 + $0x1c] sm:$0xf]
        %v4233 = vld [vmem:[#allocation8 + $0x20] sm:$0xf]
        %v4234 = vld [vmem:[#allocation8 + $0x24] sm:$0xf]
        %v4235 = vld [vmem:[#allocation8 + $0x28] sm:$0xf]
        %v4236 = vld [vmem:[#allocation8 + $0x2c] sm:$0xf]
        %v4237 = vld [vmem:[#allocation8 + $0x30] sm:$0xf]
        %v4238 = vld [vmem:[#allocation8 + $0x34] sm:$0xf]
        %v4239 = vld [vmem:[#allocation8 + $0x38] sm:$0xf]
        %v4240 = vld [vmem:[#allocation8 + $0x3c] sm:$0xf]
        %s4241 = scalar_lea.vmem [#allocation8], 64
        %v4242 = vld [vmem:[%s4241] sm:$0xf]
        %v4243 = vld [vmem:[%s4241 + $0x4] sm:$0xf]
        %v4244 = vld [vmem:[%s4241 + $0x8] sm:$0xf]
        %v4245 = vld [vmem:[%s4241 + $0xc] sm:$0xf]
        %v4246 = vld [vmem:[%s4241 + $0x10] sm:$0xf]
        %v4247 = vld [vmem:[%s4241 + $0x14] sm:$0xf]
        %v4248 = vld [vmem:[%s4241 + $0x18] sm:$0xf]
        %v4249 = vld [vmem:[%s4241 + $0x1c] sm:$0xf]
        %v4250 = vld [vmem:[%s4241 + $0x20] sm:$0xf]
        %v4251 = vld [vmem:[%s4241 + $0x24] sm:$0xf]
        %v4252 = vld [vmem:[%s4241 + $0x28] sm:$0xf]
        %v4253 = vld [vmem:[%s4241 + $0x2c] sm:$0xf]
        %v4254 = vld [vmem:[%s4241 + $0x30] sm:$0xf]
        %v4255 = vld [vmem:[%s4241 + $0x34] sm:$0xf]
        %v4256 = vld [vmem:[%s4241 + $0x38] sm:$0xf]
        %v4257 = vld [vmem:[%s4241 + $0x3c] sm:$0xf]
        %v4274 = vunpack.c.l.b16 %v4242
        %v4275 = vunpack.c.l.b16 %v4243
        %v4276 = vunpack.c.l.b16 %v4244
        %v4277 = vunpack.c.l.b16 %v4245
        %v4278 = vunpack.c.l.b16 %v4246
        %v4279 = vunpack.c.l.b16 %v4247
        %v4280 = vunpack.c.l.b16 %v4248
        %v4281 = vunpack.c.l.b16 %v4249
        %v4282 = vunpack.c.l.b16 %v4250
        %v4283 = vunpack.c.l.b16 %v4251
        %v4284 = vunpack.c.l.b16 %v4252
        %v4285 = vunpack.c.l.b16 %v4253
        %v4286 = vunpack.c.l.b16 %v4254
        %v4287 = vunpack.c.l.b16 %v4255
        %v4288 = vunpack.c.l.b16 %v4256
        %v4289 = vunpack.c.l.b16 %v4257
        %v4290 = vpack.c.b16 %v4275, %v4274
        %v4291 = vpack.c.b16 %v4277, %v4276
        %v4292 = vpack.c.b16 %v4279, %v4278
        %v4293 = vpack.c.b16 %v4281, %v4280
        %v4294 = vpack.c.b16 %v4283, %v4282
        %v4295 = vpack.c.b16 %v4285, %v4284
        %v4296 = vpack.c.b16 %v4287, %v4286
        %v4297 = vpack.c.b16 %v4289, %v4288
        %4306 = vmatprep.subr.bf16.mxu0 0
        %4307 = vmatpush1.bf16.msra.mxu0 %v4290
        %4308 = vmatprep.subr.bf16.mxu0 0
        %4309 = vmatpush1.bf16.msra.mxu0 %v4291
        %4310 = vmatprep.subr.bf16.mxu0 0
        %4311 = vmatpush1.bf16.msra.mxu0 %v4292
        %4312 = vmatprep.subr.bf16.mxu0 0
        %4313 = vmatpush1.bf16.msra.mxu0 %v4293
        %4314 = vmatprep.subr.bf16.mxu0 0
        %4315 = vmatpush1.bf16.msra.mxu0 %v4294
        %4316 = vmatprep.subr.bf16.mxu0 0
        %4317 = vmatpush1.bf16.msra.mxu0 %v4295
        %4318 = vmatprep.subr.bf16.mxu0 0
        %4319 = vmatpush1.bf16.msra.mxu0 %v4296
        %4320 = vmatprep.subr.bf16.mxu0 0
        %4321 = vmatpush1.bf16.msra.mxu0 %v4297
        %4322 = vmatprep.subr.bf16.mxu0 0
        %4323 = vmatpush1.bf16.msra.mxu0 0
        %4324 = vmatprep.subr.bf16.mxu0 0
        %4325 = vmatpush1.bf16.msra.mxu0 0
        %4326 = vmatprep.subr.bf16.mxu0 0
        %4327 = vmatpush1.bf16.msra.mxu0 0
        %4328 = vmatprep.subr.bf16.mxu0 0
        %4329 = vmatpush1.bf16.msra.mxu0 0
        %4330 = vmatprep.subr.bf16.mxu0 0
        %4331 = vmatpush1.bf16.msra.mxu0 0
        %4332 = vmatprep.subr.bf16.mxu0 0
        %4333 = vmatpush1.bf16.msra.mxu0 0
        %4334 = vmatprep.subr.bf16.mxu0 0
        %4335 = vmatpush1.bf16.msra.mxu0 0
        %4336 = vmatprep.subr.bf16.mxu0 0
        %4337 = vmatpush1.bf16.msra.mxu0 0
        %4338 = vmatprep.mubr.bf16.mxu0 0
        %4339 = vmatmul.mubr.bf16.gmra.mrb[0].mxu0 %v4171
        %v4340 = vpop.f32.mrb[0].mxu0
        %v4341 = vadd.f32 0.0, %v4340
        %v4342 = vpop.f32.mrb[0].mxu0
        %v4343 = vpop.f32.mrb[0].mxu0
        %v4344 = vadd.f32 0.0, %v4343
        %v4345 = vpop.f32.mrb[0].mxu0
        %4346 = vmatprep.mubr.bf16.mxu0 0
        %4347 = vmatmul.mubr.bf16.gmra.mrb[0].mxu0 %v4172
        %v4348 = vpop.f32.mrb[0].mxu0
        %v4349 = vpop.f32.mrb[0].mxu0
        %v4350 = vpop.f32.mrb[0].mxu0
        %v4351 = vadd.f32 0.0, %v4350
        %v4352 = vpop.f32.mrb[0].mxu0
        %4353 = vmatprep.mubr.bf16.mxu0 0
        %4354 = vmatmul.mubr.bf16.gmra.mrb[0].mxu0 %v4173
        %v4355 = vpop.f32.mrb[0].mxu0
        %v4356 = vadd.f32 0.0, %v4355
        %v4357 = vpop.f32.mrb[0].mxu0
        %v4358 = vpop.f32.mrb[0].mxu0
        %v4359 = vpop.f32.mrb[0].mxu0
        %4360 = vmatprep.mubr.bf16.mxu0 0
        %4361 = vmatmul.mubr.bf16.gmra.mrb[0].mxu0 %v4174
        %v4362 = vpop.f32.mrb[0].mxu0
        %v4363 = vadd.f32 0.0, %v4362
        %v4364 = vpop.f32.mrb[0].mxu0
        %v4365 = vpop.f32.mrb[0].mxu0
        %v4366 = vadd.f32 0.0, %v4365
        %v4367 = vpop.f32.mrb[0].mxu0
        %4368 = vmatprep.mubr.bf16.mxu0 0
        %4369 = vmatmul.mubr.bf16.gmra.mrb[0].mxu0 %v4175
        %v4370 = vpop.f32.mrb[0].mxu0
        %v4371 = vpop.f32.mrb[0].mxu0
        %v4372 = vpop.f32.mrb[0].mxu0
        %v4373 = vadd.f32 0.0, %v4372
        %v4374 = vpop.f32.mrb[0].mxu0
        %4375 = vmatprep.mubr.bf16.mxu0 0
        %4376 = vmatmul.mubr.bf16.gmra.mrb[0].mxu0 %v4176
        %v4377 = vpop.f32.mrb[0].mxu0
        %v4378 = vadd.f32 0.0, %v4377
        %v4379 = vpop.f32.mrb[0].mxu0
        %v4380 = vpop.f32.mrb[0].mxu0
        %v4381 = vpop.f32.mrb[0].mxu0
        %4382 = vmatprep.mubr.bf16.mxu0 0
        %4383 = vmatmul.mubr.bf16.gmra.mrb[0].mxu0 %v4177
        %v4384 = vpop.f32.mrb[0].mxu0
        %v4385 = vadd.f32 0.0, %v4384
        %v4386 = vpop.f32.mrb[0].mxu0
        %v4387 = vpop.f32.mrb[0].mxu0
        %v4388 = vadd.f32 0.0, %v4387
        %v4389 = vpop.f32.mrb[0].mxu0
        %4390 = vmatprep.mubr.bf16.mxu0 0
        %4391 = vmatmul.mubr.bf16.gmra.mrb[0].mxu0 %v4178
        %v4392 = vpop.f32.mrb[0].mxu0
        %v4393 = vpop.f32.mrb[0].mxu0
        %v4394 = vpop.f32.mrb[0].mxu0
        %v4395 = vadd.f32 0.0, %v4394
        %v4396 = vpop.f32.mrb[0].mxu0
        %4397 = vmatprep.mubr.bf16.mxu0 0
        %4398 = vmatmul.mubr.bf16.gmra.mrb[0].mxu0 %v4179
        %v4399 = vpop.f32.mrb[0].mxu0
        %v4400 = vadd.f32 0.0, %v4399
        %v4401 = vpop.f32.mrb[0].mxu0
        %v4402 = vpop.f32.mrb[0].mxu0
        %v4403 = vpop.f32.mrb[0].mxu0
        %4404 = vmatprep.mubr.bf16.mxu0 0
        %4405 = vmatmul.mubr.bf16.gmra.mrb[0].mxu0 %v4180
        %v4406 = vpop.f32.mrb[0].mxu0
        %v4407 = vadd.f32 0.0, %v4406
        %v4408 = vpop.f32.mrb[0].mxu0
        %v4409 = vpop.f32.mrb[0].mxu0
        %v4410 = vadd.f32 0.0, %v4409
        %v4411 = vpop.f32.mrb[0].mxu0
        %4412 = vmatprep.mubr.bf16.mxu0 0
        %4413 = vmatmul.mubr.bf16.gmra.mrb[0].mxu0 %v4181
        %v4414 = vpop.f32.mrb[0].mxu0
        %v4415 = vpop.f32.mrb[0].mxu0
        %v4416 = vpop.f32.mrb[0].mxu0
        %v4417 = vadd.f32 0.0, %v4416
        %v4418 = vpop.f32.mrb[0].mxu0
        %4419 = vmatprep.mubr.bf16.mxu0 0
        %4420 = vmatmul.mubr.bf16.gmra.mrb[0].mxu0 %v4182
        %v4421 = vpop.f32.mrb[0].mxu0
        %v4422 = vadd.f32 0.0, %v4421
        %v4423 = vpop.f32.mrb[0].mxu0
        %v4424 = vpop.f32.mrb[0].mxu0
        %v4425 = vpop.f32.mrb[0].mxu0
        %4426 = vmatprep.mubr.bf16.mxu0 0
        %4427 = vmatmul.mubr.bf16.gmra.mrb[0].mxu0 %v4183
        %v4428 = vpop.f32.mrb[0].mxu0
        %v4429 = vadd.f32 0.0, %v4428
        %v4430 = vpop.f32.mrb[0].mxu0
        %v4431 = vpop.f32.mrb[0].mxu0
        %v4432 = vadd.f32 0.0, %v4431
        %v4433 = vpop.f32.mrb[0].mxu0
        %4434 = vmatprep.mubr.bf16.mxu0 0
        %4435 = vmatmul.mubr.bf16.gmra.mrb[0].mxu0 %v4184
        %v4436 = vpop.f32.mrb[0].mxu0
        %v4437 = vpop.f32.mrb[0].mxu0
        %v4438 = vpop.f32.mrb[0].mxu0
        %v4439 = vadd.f32 0.0, %v4438
        %v4440 = vpop.f32.mrb[0].mxu0
        %4441 = vmatprep.mubr.bf16.mxu0 0
        %4442 = vmatmul.mubr.bf16.gmra.mrb[0].mxu0 %v4185
        %v4443 = vpop.f32.mrb[0].mxu0
        %v4444 = vadd.f32 0.0, %v4443
        %v4445 = vpop.f32.mrb[0].mxu0
        %v4446 = vpop.f32.mrb[0].mxu0
        %v4447 = vpop.f32.mrb[0].mxu0
        %4448 = vmatprep.mubr.bf16.mxu0 0
        %4449 = vmatmul.mubr.bf16.gmra.mrb[0].mxu0 %v4186
        %v4450 = vpop.f32.mrb[0].mxu0
        %v4451 = vadd.f32 0.0, %v4450
        %v4452 = vpop.f32.mrb[0].mxu0
        %v4453 = vpop.f32.mrb[0].mxu0
        %v4454 = vadd.f32 0.0, %v4453
        %v4455 = vpop.f32.mrb[0].mxu0
        %4456 = vmatprep.mubr.bf16.mxu0 0
        %4457 = vmatmul.mubr.bf16.gmra.mrb[0].mxu0 %v4187
        %v4458 = vpop.f32.mrb[0].mxu0
        %v4459 = vpop.f32.mrb[0].mxu0
        %v4460 = vpop.f32.mrb[0].mxu0
        %v4461 = vadd.f32 0.0, %v4460
        %v4462 = vpop.f32.mrb[0].mxu0
        %4463 = vmatprep.mubr.bf16.mxu0 0
        %4464 = vmatmul.mubr.bf16.gmra.mrb[0].mxu0 %v4188
        %v4465 = vpop.f32.mrb[0].mxu0
        %v4466 = vadd.f32 0.0, %v4465
        %v4467 = vpop.f32.mrb[0].mxu0
        %v4468 = vpop.f32.mrb[0].mxu0
        %v4469 = vpop.f32.mrb[0].mxu0
        %4470 = vmatprep.mubr.bf16.mxu0 0
        %4471 = vmatmul.mubr.bf16.gmra.mrb[0].mxu0 %v4189
        %v4472 = vpop.f32.mrb[0].mxu0
        %v4473 = vadd.f32 0.0, %v4472
        %v4474 = vpop.f32.mrb[0].mxu0
        %v4475 = vpop.f32.mrb[0].mxu0
        %v4476 = vadd.f32 0.0, %v4475
        %v4477 = vpop.f32.mrb[0].mxu0
        %4478 = vmatprep.mubr.bf16.mxu0 0
        %4479 = vmatmul.mubr.bf16.gmra.mrb[0].mxu0 %v4190
        %v4480 = vpop.f32.mrb[0].mxu0
        %v4481 = vpop.f32.mrb[0].mxu0
        %v4482 = vpop.f32.mrb[0].mxu0
        %v4483 = vadd.f32 0.0, %v4482
        %v4484 = vpop.f32.mrb[0].mxu0
        %4485 = vmatprep.mubr.bf16.mxu0 0
        %4486 = vmatmul.mubr.bf16.gmra.mrb[0].mxu0 %v4191
        %v4487 = vpop.f32.mrb[0].mxu0
        %v4488 = vadd.f32 0.0, %v4487
        %v4489 = vpop.f32.mrb[0].mxu0
        %v4490 = vpop.f32.mrb[0].mxu0
        %v4491 = vpop.f32.mrb[0].mxu0
        %4492 = vmatprep.mubr.bf16.mxu0 0
        %4493 = vmatmul.mubr.bf16.gmra.mrb[0].mxu0 %v4192
        %v4494 = vpop.f32.mrb[0].mxu0
        %v4495 = vadd.f32 0.0, %v4494
        %v4496 = vpop.f32.mrb[0].mxu0
        %v4497 = vpop.f32.mrb[0].mxu0
        %v4498 = vadd.f32 0.0, %v4497
        %v4499 = vpop.f32.mrb[0].mxu0
        %4500 = vmatprep.mubr.bf16.mxu0 0
        %4501 = vmatmul.mubr.bf16.gmra.mrb[0].mxu0 %v4193
        %v4502 = vpop.f32.mrb[0].mxu0
        %v4503 = vpop.f32.mrb[0].mxu0
        %v4504 = vpop.f32.mrb[0].mxu0
        %v4505 = vadd.f32 0.0, %v4504
        %v4506 = vpop.f32.mrb[0].mxu0
        %4507 = vmatprep.mubr.bf16.mxu0 0
        %4508 = vmatmul.mubr.bf16.gmra.mrb[0].mxu0 %v4194
        %v4509 = vpop.f32.mrb[0].mxu0
        %v4510 = vadd.f32 0.0, %v4509
        %v4511 = vpop.f32.mrb[0].mxu0
        %v4512 = vpop.f32.mrb[0].mxu0
        %v4513 = vpop.f32.mrb[0].mxu0
        %4514 = vdwg.mxu0
        %v4531 = vunpack.c.l.b16 %v4225
        %v4532 = vunpack.c.l.b16 %v4226
        %v4533 = vunpack.c.l.b16 %v4227
        %v4534 = vunpack.c.l.b16 %v4228
        %v4535 = vunpack.c.l.b16 %v4229
        %v4536 = vunpack.c.l.b16 %v4230
        %v4537 = vunpack.c.l.b16 %v4231
        %v4538 = vunpack.c.l.b16 %v4232
        %v4539 = vunpack.c.l.b16 %v4233
        %v4540 = vunpack.c.l.b16 %v4234
        %v4541 = vunpack.c.l.b16 %v4235
        %v4542 = vunpack.c.l.b16 %v4236
        %v4543 = vunpack.c.l.b16 %v4237
        %v4544 = vunpack.c.l.b16 %v4238
        %v4545 = vunpack.c.l.b16 %v4239
        %v4546 = vunpack.c.l.b16 %v4240
        %v4547 = vpack.c.b16 %v4532, %v4531
        %v4548 = vpack.c.b16 %v4534, %v4533
        %v4549 = vpack.c.b16 %v4536, %v4535
        %v4550 = vpack.c.b16 %v4538, %v4537
        %v4551 = vpack.c.b16 %v4540, %v4539
        %v4552 = vpack.c.b16 %v4542, %v4541
        %v4553 = vpack.c.b16 %v4544, %v4543
        %v4554 = vpack.c.b16 %v4546, %v4545
        %4563 = vmatprep.subr.bf16.mxu0 0
        %4564 = vmatpush1.bf16.msra.mxu0 %v4547
        %4565 = vmatprep.subr.bf16.mxu0 0
        %4566 = vmatpush1.bf16.msra.mxu0 %v4548
        %4567 = vmatprep.subr.bf16.mxu0 0
        %4568 = vmatpush1.bf16.msra.mxu0 %v4549
        %4569 = vmatprep.subr.bf16.mxu0 0
        %4570 = vmatpush1.bf16.msra.mxu0 %v4550
        %4571 = vmatprep.subr.bf16.mxu0 0
        %4572 = vmatpush1.bf16.msra.mxu0 %v4551
        %4573 = vmatprep.subr.bf16.mxu0 0
        %4574 = vmatpush1.bf16.msra.mxu0 %v4552
        %4575 = vmatprep.subr.bf16.mxu0 0
        %4576 = vmatpush1.bf16.msra.mxu0 %v4553
        %4577 = vmatprep.subr.bf16.mxu0 0
        %4578 = vmatpush1.bf16.msra.mxu0 %v4554
        %4579 = vmatprep.subr.bf16.mxu0 0
        %4580 = vmatpush1.bf16.msra.mxu0 0
        %4581 = vmatprep.subr.bf16.mxu0 0
        %4582 = vmatpush1.bf16.msra.mxu0 0
        %4583 = vmatprep.subr.bf16.mxu0 0
        %4584 = vmatpush1.bf16.msra.mxu0 0
        %4585 = vmatprep.subr.bf16.mxu0 0
        %4586 = vmatpush1.bf16.msra.mxu0 0
        %4587 = vmatprep.subr.bf16.mxu0 0
        %4588 = vmatpush1.bf16.msra.mxu0 0
        %4589 = vmatprep.subr.bf16.mxu0 0
        %4590 = vmatpush1.bf16.msra.mxu0 0
        %4591 = vmatprep.subr.bf16.mxu0 0
        %4592 = vmatpush1.bf16.msra.mxu0 0
        %4593 = vmatprep.subr.bf16.mxu0 0
        %4594 = vmatpush1.bf16.msra.mxu0 0
        %4595 = vmatprep.mubr.bf16.mxu0 0
        %4596 = vmatmul.mubr.bf16.gmra.mrb[0].mxu0 %v4144
        %v4597 = vpop.f32.mrb[0].mxu0
        %v4598 = vadd.f32 %v4341, %v4597
        %v4599 = vpop.f32.mrb[0].mxu0
        %v4600 = vpop.f32.mrb[0].mxu0
        %v4601 = vadd.f32 %v4344, %v4600
        %v4602 = vpop.f32.mrb[0].mxu0
        %4603 = vmatprep.mubr.bf16.mxu0 0
        %4604 = vmatmul.mubr.bf16.gmra.mrb[0].mxu0 %v4145
        %v4605 = vpop.f32.mrb[0].mxu0
        %v4606 = vpop.f32.mrb[0].mxu0
        %v4607 = vpop.f32.mrb[0].mxu0
        %v4608 = vadd.f32 %v4351, %v4607
        %v4609 = vpop.f32.mrb[0].mxu0
        %4610 = vmatprep.mubr.bf16.mxu0 0
        %4611 = vmatmul.mubr.bf16.gmra.mrb[0].mxu0 %v4146
        %v4612 = vpop.f32.mrb[0].mxu0
        %v4613 = vadd.f32 %v4356, %v4612
        %v4614 = vpop.f32.mrb[0].mxu0
        %v4615 = vpop.f32.mrb[0].mxu0
        %v4616 = vpop.f32.mrb[0].mxu0
        %4617 = vmatprep.mubr.bf16.mxu0 0
        %4618 = vmatmul.mubr.bf16.gmra.mrb[0].mxu0 %v4147
        %v4619 = vpop.f32.mrb[0].mxu0
        %v4620 = vadd.f32 %v4363, %v4619
        %v4621 = vpop.f32.mrb[0].mxu0
        %v4622 = vpop.f32.mrb[0].mxu0
        %v4623 = vadd.f32 %v4366, %v4622
        %v4624 = vpop.f32.mrb[0].mxu0
        %4625 = vmatprep.mubr.bf16.mxu0 0
        %4626 = vmatmul.mubr.bf16.gmra.mrb[0].mxu0 %v4148
        %v4627 = vpop.f32.mrb[0].mxu0
        %v4628 = vpop.f32.mrb[0].mxu0
        %v4629 = vpop.f32.mrb[0].mxu0
        %v4630 = vadd.f32 %v4373, %v4629
        %v4631 = vpop.f32.mrb[0].mxu0
        %4632 = vmatprep.mubr.bf16.mxu0 0
        %4633 = vmatmul.mubr.bf16.gmra.mrb[0].mxu0 %v4149
        %v4634 = vpop.f32.mrb[0].mxu0
        %v4635 = vadd.f32 %v4378, %v4634
        %v4636 = vpop.f32.mrb[0].mxu0
        %v4637 = vpop.f32.mrb[0].mxu0
        %v4638 = vpop.f32.mrb[0].mxu0
        %4639 = vmatprep.mubr.bf16.mxu0 0
        %4640 = vmatmul.mubr.bf16.gmra.mrb[0].mxu0 %v4150
        %v4641 = vpop.f32.mrb[0].mxu0
        %v4642 = vadd.f32 %v4385, %v4641
        %v4643 = vpop.f32.mrb[0].mxu0
        %v4644 = vpop.f32.mrb[0].mxu0
        %v4645 = vadd.f32 %v4388, %v4644
        %v4646 = vpop.f32.mrb[0].mxu0
        %4647 = vmatprep.mubr.bf16.mxu0 0
        %4648 = vmatmul.mubr.bf16.gmra.mrb[0].mxu0 %v4151
        %v4649 = vpop.f32.mrb[0].mxu0
        %v4650 = vpop.f32.mrb[0].mxu0
        %v4651 = vpop.f32.mrb[0].mxu0
        %v4652 = vadd.f32 %v4395, %v4651
        %v4653 = vpop.f32.mrb[0].mxu0
        %4654 = vmatprep.mubr.bf16.mxu0 0
        %4655 = vmatmul.mubr.bf16.gmra.mrb[0].mxu0 %v4152
        %v4656 = vpop.f32.mrb[0].mxu0
        %v4657 = vadd.f32 %v4400, %v4656
        %v4658 = vpop.f32.mrb[0].mxu0
        %v4659 = vpop.f32.mrb[0].mxu0
        %v4660 = vpop.f32.mrb[0].mxu0
        %4661 = vmatprep.mubr.bf16.mxu0 0
        %4662 = vmatmul.mubr.bf16.gmra.mrb[0].mxu0 %v4153
        %v4663 = vpop.f32.mrb[0].mxu0
        %v4664 = vadd.f32 %v4407, %v4663
        %v4665 = vpop.f32.mrb[0].mxu0
        %v4666 = vpop.f32.mrb[0].mxu0
        %v4667 = vadd.f32 %v4410, %v4666
        %v4668 = vpop.f32.mrb[0].mxu0
        %4669 = vmatprep.mubr.bf16.mxu0 0
        %4670 = vmatmul.mubr.bf16.gmra.mrb[0].mxu0 %v4154
        %v4671 = vpop.f32.mrb[0].mxu0
        %v4672 = vpop.f32.mrb[0].mxu0
        %v4673 = vpop.f32.mrb[0].mxu0
        %v4674 = vadd.f32 %v4417, %v4673
        %v4675 = vpop.f32.mrb[0].mxu0
        %4676 = vmatprep.mubr.bf16.mxu0 0
        %4677 = vmatmul.mubr.bf16.gmra.mrb[0].mxu0 %v4155
        %v4678 = vpop.f32.mrb[0].mxu0
        %v4679 = vadd.f32 %v4422, %v4678
        %v4680 = vpop.f32.mrb[0].mxu0
        %v4681 = vpop.f32.mrb[0].mxu0
        %v4682 = vpop.f32.mrb[0].mxu0
        %4683 = vmatprep.mubr.bf16.mxu0 0
        %4684 = vmatmul.mubr.bf16.gmra.mrb[0].mxu0 %v4156
        %v4685 = vpop.f32.mrb[0].mxu0
        %v4686 = vadd.f32 %v4429, %v4685
        %v4687 = vpop.f32.mrb[0].mxu0
        %v4688 = vpop.f32.mrb[0].mxu0
        %v4689 = vadd.f32 %v4432, %v4688
        %v4690 = vpop.f32.mrb[0].mxu0
        %4691 = vmatprep.mubr.bf16.mxu0 0
        %4692 = vmatmul.mubr.bf16.gmra.mrb[0].mxu0 %v4157
        %v4693 = vpop.f32.mrb[0].mxu0
        %v4694 = vpop.f32.mrb[0].mxu0
        %v4695 = vpop.f32.mrb[0].mxu0
        %v4696 = vadd.f32 %v4439, %v4695
        %v4697 = vpop.f32.mrb[0].mxu0
        %4698 = vmatprep.mubr.bf16.mxu0 0
        %4699 = vmatmul.mubr.bf16.gmra.mrb[0].mxu0 %v4158
        %v4700 = vpop.f32.mrb[0].mxu0
        %v4701 = vadd.f32 %v4444, %v4700
        %v4702 = vpop.f32.mrb[0].mxu0
        %v4703 = vpop.f32.mrb[0].mxu0
        %v4704 = vpop.f32.mrb[0].mxu0
        %4705 = vmatprep.mubr.bf16.mxu0 0
        %4706 = vmatmul.mubr.bf16.gmra.mrb[0].mxu0 %v4159
        %v4707 = vpop.f32.mrb[0].mxu0
        %v4708 = vadd.f32 %v4451, %v4707
        %v4709 = vpop.f32.mrb[0].mxu0
        %v4710 = vpop.f32.mrb[0].mxu0
        %v4711 = vadd.f32 %v4454, %v4710
        %v4712 = vpop.f32.mrb[0].mxu0
        %4713 = vmatprep.mubr.bf16.mxu0 0
        %4714 = vmatmul.mubr.bf16.gmra.mrb[0].mxu0 %v4160
        %v4715 = vpop.f32.mrb[0].mxu0
        %v4716 = vpop.f32.mrb[0].mxu0
        %v4717 = vpop.f32.mrb[0].mxu0
        %v4718 = vadd.f32 %v4461, %v4717
        %v4719 = vpop.f32.mrb[0].mxu0
        %4720 = vmatprep.mubr.bf16.mxu0 0
        %4721 = vmatmul.mubr.bf16.gmra.mrb[0].mxu0 %v4161
        %v4722 = vpop.f32.mrb[0].mxu0
        %v4723 = vadd.f32 %v4466, %v4722
        %v4724 = vpop.f32.mrb[0].mxu0
        %v4725 = vpop.f32.mrb[0].mxu0
        %v4726 = vpop.f32.mrb[0].mxu0
        %4727 = vmatprep.mubr.bf16.mxu0 0
        %4728 = vmatmul.mubr.bf16.gmra.mrb[0].mxu0 %v4162
        %v4729 = vpop.f32.mrb[0].mxu0
        %v4730 = vadd.f32 %v4473, %v4729
        %v4731 = vpop.f32.mrb[0].mxu0
        %v4732 = vpop.f32.mrb[0].mxu0
        %v4733 = vadd.f32 %v4476, %v4732
        %v4734 = vpop.f32.mrb[0].mxu0
        %4735 = vmatprep.mubr.bf16.mxu0 0
        %4736 = vmatmul.mubr.bf16.gmra.mrb[0].mxu0 %v4163
        %v4737 = vpop.f32.mrb[0].mxu0
        %v4738 = vpop.f32.mrb[0].mxu0
        %v4739 = vpop.f32.mrb[0].mxu0
        %v4740 = vadd.f32 %v4483, %v4739
        %v4741 = vpop.f32.mrb[0].mxu0
        %4742 = vmatprep.mubr.bf16.mxu0 0
        %4743 = vmatmul.mubr.bf16.gmra.mrb[0].mxu0 %v4164
        %v4744 = vpop.f32.mrb[0].mxu0
        %v4745 = vadd.f32 %v4488, %v4744
        %v4746 = vpop.f32.mrb[0].mxu0
        %v4747 = vpop.f32.mrb[0].mxu0
        %v4748 = vpop.f32.mrb[0].mxu0
        %4749 = vmatprep.mubr.bf16.mxu0 0
        %4750 = vmatmul.mubr.bf16.gmra.mrb[0].mxu0 %v4165
        %v4751 = vpop.f32.mrb[0].mxu0
        %v4752 = vadd.f32 %v4495, %v4751
        %v4753 = vpop.f32.mrb[0].mxu0
        %v4754 = vpop.f32.mrb[0].mxu0
        %v4755 = vadd.f32 %v4498, %v4754
        %v4756 = vpop.f32.mrb[0].mxu0
        %4757 = vmatprep.mubr.bf16.mxu0 0
        %4758 = vmatmul.mubr.bf16.gmra.mrb[0].mxu0 %v4166
        %v4759 = vpop.f32.mrb[0].mxu0
        %v4760 = vpop.f32.mrb[0].mxu0
        %v4761 = vpop.f32.mrb[0].mxu0
        %v4762 = vadd.f32 %v4505, %v4761
        %v4763 = vpop.f32.mrb[0].mxu0
        %4764 = vmatprep.mubr.bf16.mxu0 0
        %4765 = vmatmul.mubr.bf16.gmra.mrb[0].mxu0 %v4167
        %v4766 = vpop.f32.mrb[0].mxu0
        %v4767 = vadd.f32 %v4510, %v4766
        %v4768 = vpop.f32.mrb[0].mxu0
        %v4769 = vpop.f32.mrb[0].mxu0
        %v4770 = vpop.f32.mrb[0].mxu0
        %4771 = vdwg.mxu0
        %s4772 = scalar_lea.vmem [#allocation8], 128
        %v4773 = vld [vmem:[%s4772] sm:$0xf]
        %v4774 = vld [vmem:[%s4772 + $0x4] sm:$0xf]
        %v4775 = vld [vmem:[%s4772 + $0x8] sm:$0xf]
        %v4776 = vld [vmem:[%s4772 + $0xc] sm:$0xf]
        %v4777 = vld [vmem:[%s4772 + $0x10] sm:$0xf]
        %v4778 = vld [vmem:[%s4772 + $0x14] sm:$0xf]
        %v4779 = vld [vmem:[%s4772 + $0x18] sm:$0xf]
        %v4780 = vld [vmem:[%s4772 + $0x1c] sm:$0xf]
        %v4781 = vld [vmem:[%s4772 + $0x20] sm:$0xf]
        %v4782 = vld [vmem:[%s4772 + $0x24] sm:$0xf]
        %v4783 = vld [vmem:[%s4772 + $0x28] sm:$0xf]
        %v4784 = vld [vmem:[%s4772 + $0x2c] sm:$0xf]
        %v4785 = vld [vmem:[%s4772 + $0x30] sm:$0xf]
        %v4786 = vld [vmem:[%s4772 + $0x34] sm:$0xf]
        %v4787 = vld [vmem:[%s4772 + $0x38] sm:$0xf]
        %v4788 = vld [vmem:[%s4772 + $0x3c] sm:$0xf]
        %v4805 = vunpack.c.l.b16 %v4773
        %v4806 = vunpack.c.l.b16 %v4774
        %v4807 = vunpack.c.l.b16 %v4775
        %v4808 = vunpack.c.l.b16 %v4776
        %v4809 = vunpack.c.l.b16 %v4777
        %v4810 = vunpack.c.l.b16 %v4778
        %v4811 = vunpack.c.l.b16 %v4779
        %v4812 = vunpack.c.l.b16 %v4780
        %v4813 = vunpack.c.l.b16 %v4781
        %v4814 = vunpack.c.l.b16 %v4782
        %v4815 = vunpack.c.l.b16 %v4783
        %v4816 = vunpack.c.l.b16 %v4784
        %v4817 = vunpack.c.l.b16 %v4785
        %v4818 = vunpack.c.l.b16 %v4786
        %v4819 = vunpack.c.l.b16 %v4787
        %v4820 = vunpack.c.l.b16 %v4788
        %v4821 = vpack.c.b16 %v4806, %v4805
        %v4822 = vpack.c.b16 %v4808, %v4807
        %v4823 = vpack.c.b16 %v4810, %v4809
        %v4824 = vpack.c.b16 %v4812, %v4811
        %v4825 = vpack.c.b16 %v4814, %v4813
        %v4826 = vpack.c.b16 %v4816, %v4815
        %v4827 = vpack.c.b16 %v4818, %v4817
        %v4828 = vpack.c.b16 %v4820, %v4819
        %4837 = vmatprep.subr.bf16.mxu0 0
        %4838 = vmatpush1.bf16.msra.mxu0 %v4821
        %4839 = vmatprep.subr.bf16.mxu0 0
        %4840 = vmatpush1.bf16.msra.mxu0 %v4822
        %4841 = vmatprep.subr.bf16.mxu0 0
        %4842 = vmatpush1.bf16.msra.mxu0 %v4823
        %4843 = vmatprep.subr.bf16.mxu0 0
        %4844 = vmatpush1.bf16.msra.mxu0 %v4824
        %4845 = vmatprep.subr.bf16.mxu0 0
        %4846 = vmatpush1.bf16.msra.mxu0 %v4825
        %4847 = vmatprep.subr.bf16.mxu0 0
        %4848 = vmatpush1.bf16.msra.mxu0 %v4826
        %4849 = vmatprep.subr.bf16.mxu0 0
        %4850 = vmatpush1.bf16.msra.mxu0 %v4827
        %4851 = vmatprep.subr.bf16.mxu0 0
        %4852 = vmatpush1.bf16.msra.mxu0 %v4828
        %4853 = vmatprep.subr.bf16.mxu0 0
        %4854 = vmatpush1.bf16.msra.mxu0 0
        %4855 = vmatprep.subr.bf16.mxu0 0
        %4856 = vmatpush1.bf16.msra.mxu0 0
        %4857 = vmatprep.subr.bf16.mxu0 0
        %4858 = vmatpush1.bf16.msra.mxu0 0
        %4859 = vmatprep.subr.bf16.mxu0 0
        %4860 = vmatpush1.bf16.msra.mxu0 0
        %4861 = vmatprep.subr.bf16.mxu0 0
        %4862 = vmatpush1.bf16.msra.mxu0 0
        %4863 = vmatprep.subr.bf16.mxu0 0
        %4864 = vmatpush1.bf16.msra.mxu0 0
        %4865 = vmatprep.subr.bf16.mxu0 0
        %4866 = vmatpush1.bf16.msra.mxu0 0
        %4867 = vmatprep.subr.bf16.mxu0 0
        %4868 = vmatpush1.bf16.msra.mxu0 0
        %4869 = vmatprep.mubr.bf16.mxu0 0
        %4870 = vmatmul.mubr.bf16.gmra.mrb[0].mxu0 %v4198
        %v4871 = vpop.f32.mrb[0].mxu0
        %v4872 = vadd.f32 0.0, %v4871
        %v4873 = vpop.f32.mrb[0].mxu0
        %v4874 = vpop.f32.mrb[0].mxu0
        %v4875 = vadd.f32 0.0, %v4874
        %v4876 = vpop.f32.mrb[0].mxu0
        %4877 = vmatprep.mubr.bf16.mxu0 0
        %4878 = vmatmul.mubr.bf16.gmra.mrb[0].mxu0 %v4199
        %v4879 = vpop.f32.mrb[0].mxu0
        %v4880 = vpop.f32.mrb[0].mxu0
        %v4881 = vpop.f32.mrb[0].mxu0
        %v4882 = vadd.f32 0.0, %v4881
        %v4883 = vpop.f32.mrb[0].mxu0
        %4884 = vmatprep.mubr.bf16.mxu0 0
        %4885 = vmatmul.mubr.bf16.gmra.mrb[0].mxu0 %v4200
        %v4886 = vpop.f32.mrb[0].mxu0
        %v4887 = vadd.f32 0.0, %v4886
        %v4888 = vpop.f32.mrb[0].mxu0
        %v4889 = vpop.f32.mrb[0].mxu0
        %v4890 = vpop.f32.mrb[0].mxu0
        %4891 = vmatprep.mubr.bf16.mxu0 0
        %4892 = vmatmul.mubr.bf16.gmra.mrb[0].mxu0 %v4201
        %v4893 = vpop.f32.mrb[0].mxu0
        %v4894 = vadd.f32 0.0, %v4893
        %v4895 = vpop.f32.mrb[0].mxu0
        %v4896 = vpop.f32.mrb[0].mxu0
        %v4897 = vadd.f32 0.0, %v4896
        %v4898 = vpop.f32.mrb[0].mxu0
        %4899 = vmatprep.mubr.bf16.mxu0 0
        %4900 = vmatmul.mubr.bf16.gmra.mrb[0].mxu0 %v4202
        %v4901 = vpop.f32.mrb[0].mxu0
        %v4902 = vpop.f32.mrb[0].mxu0
        %v4903 = vpop.f32.mrb[0].mxu0
        %v4904 = vadd.f32 0.0, %v4903
        %v4905 = vpop.f32.mrb[0].mxu0
        %4906 = vmatprep.mubr.bf16.mxu0 0
        %4907 = vmatmul.mubr.bf16.gmra.mrb[0].mxu0 %v4203
        %v4908 = vpop.f32.mrb[0].mxu0
        %v4909 = vadd.f32 0.0, %v4908
        %v4910 = vpop.f32.mrb[0].mxu0
        %v4911 = vpop.f32.mrb[0].mxu0
        %v4912 = vpop.f32.mrb[0].mxu0
        %4913 = vmatprep.mubr.bf16.mxu0 0
        %4914 = vmatmul.mubr.bf16.gmra.mrb[0].mxu0 %v4204
        %v4915 = vpop.f32.mrb[0].mxu0
        %v4916 = vadd.f32 0.0, %v4915
        %v4917 = vpop.f32.mrb[0].mxu0
        %v4918 = vpop.f32.mrb[0].mxu0
        %v4919 = vadd.f32 0.0, %v4918
        %v4920 = vpop.f32.mrb[0].mxu0
        %4921 = vmatprep.mubr.bf16.mxu0 0
        %4922 = vmatmul.mubr.bf16.gmra.mrb[0].mxu0 %v4205
        %v4923 = vpop.f32.mrb[0].mxu0
        %v4924 = vpop.f32.mrb[0].mxu0
        %v4925 = vpop.f32.mrb[0].mxu0
        %v4926 = vadd.f32 0.0, %v4925
        %v4927 = vpop.f32.mrb[0].mxu0
        %4928 = vmatprep.mubr.bf16.mxu0 0
        %4929 = vmatmul.mubr.bf16.gmra.mrb[0].mxu0 %v4206
        %v4930 = vpop.f32.mrb[0].mxu0
        %v4931 = vadd.f32 0.0, %v4930
        %v4932 = vpop.f32.mrb[0].mxu0
        %v4933 = vpop.f32.mrb[0].mxu0
        %v4934 = vpop.f32.mrb[0].mxu0
        %4935 = vmatprep.mubr.bf16.mxu0 0
        %4936 = vmatmul.mubr.bf16.gmra.mrb[0].mxu0 %v4207
        %v4937 = vpop.f32.mrb[0].mxu0
        %v4938 = vadd.f32 0.0, %v4937
        %v4939 = vpop.f32.mrb[0].mxu0
        %v4940 = vpop.f32.mrb[0].mxu0
        %v4941 = vadd.f32 0.0, %v4940
        %v4942 = vpop.f32.mrb[0].mxu0
        %4943 = vmatprep.mubr.bf16.mxu0 0
        %4944 = vmatmul.mubr.bf16.gmra.mrb[0].mxu0 %v4208
        %v4945 = vpop.f32.mrb[0].mxu0
        %v4946 = vpop.f32.mrb[0].mxu0
        %v4947 = vpop.f32.mrb[0].mxu0
        %v4948 = vadd.f32 0.0, %v4947
        %v4949 = vpop.f32.mrb[0].mxu0
        %4950 = vmatprep.mubr.bf16.mxu0 0
        %4951 = vmatmul.mubr.bf16.gmra.mrb[0].mxu0 %v4209
        %v4952 = vpop.f32.mrb[0].mxu0
        %v4953 = vadd.f32 0.0, %v4952
        %v4954 = vpop.f32.mrb[0].mxu0
        %v4955 = vpop.f32.mrb[0].mxu0
        %v4956 = vpop.f32.mrb[0].mxu0
        %4957 = vmatprep.mubr.bf16.mxu0 0
        %4958 = vmatmul.mubr.bf16.gmra.mrb[0].mxu0 %v4210
        %v4959 = vpop.f32.mrb[0].mxu0
        %v4960 = vadd.f32 0.0, %v4959
        %v4961 = vpop.f32.mrb[0].mxu0
        %v4962 = vpop.f32.mrb[0].mxu0
        %v4963 = vadd.f32 0.0, %v4962
        %v4964 = vpop.f32.mrb[0].mxu0
        %4965 = vmatprep.mubr.bf16.mxu0 0
        %4966 = vmatmul.mubr.bf16.gmra.mrb[0].mxu0 %v4211
        %v4967 = vpop.f32.mrb[0].mxu0
        %v4968 = vpop.f32.mrb[0].mxu0
        %v4969 = vpop.f32.mrb[0].mxu0
        %v4970 = vadd.f32 0.0, %v4969
        %v4971 = vpop.f32.mrb[0].mxu0
        %4972 = vmatprep.mubr.bf16.mxu0 0
        %4973 = vmatmul.mubr.bf16.gmra.mrb[0].mxu0 %v4212
        %v4974 = vpop.f32.mrb[0].mxu0
        %v4975 = vadd.f32 0.0, %v4974
        %v4976 = vpop.f32.mrb[0].mxu0
        %v4977 = vpop.f32.mrb[0].mxu0
        %v4978 = vpop.f32.mrb[0].mxu0
        %4979 = vmatprep.mubr.bf16.mxu0 0
        %4980 = vmatmul.mubr.bf16.gmra.mrb[0].mxu0 %v4213
        %v4981 = vpop.f32.mrb[0].mxu0
        %v4982 = vadd.f32 0.0, %v4981
        %v4983 = vpop.f32.mrb[0].mxu0
        %v4984 = vpop.f32.mrb[0].mxu0
        %v4985 = vadd.f32 0.0, %v4984
        %v4986 = vpop.f32.mrb[0].mxu0
        %4987 = vmatprep.mubr.bf16.mxu0 0
        %4988 = vmatmul.mubr.bf16.gmra.mrb[0].mxu0 %v4214
        %v4989 = vpop.f32.mrb[0].mxu0
        %v4990 = vpop.f32.mrb[0].mxu0
        %v4991 = vpop.f32.mrb[0].mxu0
        %v4992 = vadd.f32 0.0, %v4991
        %v4993 = vpop.f32.mrb[0].mxu0
        %4994 = vmatprep.mubr.bf16.mxu0 0
        %4995 = vmatmul.mubr.bf16.gmra.mrb[0].mxu0 %v4215
        %v4996 = vpop.f32.mrb[0].mxu0
        %v4997 = vadd.f32 0.0, %v4996
        %v4998 = vpop.f32.mrb[0].mxu0
        %v4999 = vpop.f32.mrb[0].mxu0
        %v5000 = vpop.f32.mrb[0].mxu0
        %5001 = vmatprep.mubr.bf16.mxu0 0
        %5002 = vmatmul.mubr.bf16.gmra.mrb[0].mxu0 %v4216
        %v5003 = vpop.f32.mrb[0].mxu0
        %v5004 = vadd.f32 0.0, %v5003
        %v5005 = vpop.f32.mrb[0].mxu0
        %v5006 = vpop.f32.mrb[0].mxu0
        %v5007 = vadd.f32 0.0, %v5006
        %v5008 = vpop.f32.mrb[0].mxu0
        %5009 = vmatprep.mubr.bf16.mxu0 0
        %5010 = vmatmul.mubr.bf16.gmra.mrb[0].mxu0 %v4217
        %v5011 = vpop.f32.mrb[0].mxu0
        %v5012 = vpop.f32.mrb[0].mxu0
        %v5013 = vpop.f32.mrb[0].mxu0
        %v5014 = vadd.f32 0.0, %v5013
        %v5015 = vpop.f32.mrb[0].mxu0
        %5016 = vmatprep.mubr.bf16.mxu0 0
        %5017 = vmatmul.mubr.bf16.gmra.mrb[0].mxu0 %v4218
        %v5018 = vpop.f32.mrb[0].mxu0
        %v5019 = vadd.f32 0.0, %v5018
        %v5020 = vpop.f32.mrb[0].mxu0
        %v5021 = vpop.f32.mrb[0].mxu0
        %v5022 = vpop.f32.mrb[0].mxu0
        %5023 = vmatprep.mubr.bf16.mxu0 0
        %5024 = vmatmul.mubr.bf16.gmra.mrb[0].mxu0 %v4219
        %v5025 = vpop.f32.mrb[0].mxu0
        %v5026 = vadd.f32 0.0, %v5025
        %v5027 = vpop.f32.mrb[0].mxu0
        %v5028 = vpop.f32.mrb[0].mxu0
        %v5029 = vadd.f32 0.0, %v5028
        %v5030 = vpop.f32.mrb[0].mxu0
        %5031 = vmatprep.mubr.bf16.mxu0 0
        %5032 = vmatmul.mubr.bf16.gmra.mrb[0].mxu0 %v4220
        %v5033 = vpop.f32.mrb[0].mxu0
        %v5034 = vpop.f32.mrb[0].mxu0
        %v5035 = vpop.f32.mrb[0].mxu0
        %v5036 = vadd.f32 0.0, %v5035
        %v5037 = vpop.f32.mrb[0].mxu0
        %5038 = vmatprep.mubr.bf16.mxu0 0
        %5039 = vmatmul.mubr.bf16.gmra.mrb[0].mxu0 %v4221
        %v5040 = vpop.f32.mrb[0].mxu0
        %v5041 = vadd.f32 0.0, %v5040
        %v5042 = vpop.f32.mrb[0].mxu0
        %v5043 = vpop.f32.mrb[0].mxu0
        %v5044 = vpop.f32.mrb[0].mxu0
        %5045 = vdwg.mxu0
        %v5046 = vadd.f32 %v4598, %v4872
        %v5047 = vadd.f32 %v4601, %v4875
        %v5048 = vadd.f32 %v4608, %v4882
        %v5049 = vadd.f32 %v4613, %v4887
        %v5050 = vadd.f32 %v4620, %v4894
        %v5051 = vadd.f32 %v4623, %v4897
        %v5052 = vadd.f32 %v4630, %v4904
        %v5053 = vadd.f32 %v4635, %v4909
        %v5054 = vadd.f32 %v4642, %v4916
        %v5055 = vadd.f32 %v4645, %v4919
        %v5056 = vadd.f32 %v4652, %v4926
        %v5057 = vadd.f32 %v4657, %v4931
        %v5058 = vadd.f32 %v4664, %v4938
        %v5059 = vadd.f32 %v4667, %v4941
        %v5060 = vadd.f32 %v4674, %v4948
        %v5061 = vadd.f32 %v4679, %v4953
        %v5062 = vadd.f32 %v4686, %v4960
        %v5063 = vadd.f32 %v4689, %v4963
        %v5064 = vadd.f32 %v4696, %v4970
        %v5065 = vadd.f32 %v4701, %v4975
        %v5066 = vadd.f32 %v4708, %v4982
        %v5067 = vadd.f32 %v4711, %v4985
        %v5068 = vadd.f32 %v4718, %v4992
        %v5069 = vadd.f32 %v4723, %v4997
        %v5070 = vadd.f32 %v4730, %v5004
        %v5071 = vadd.f32 %v4733, %v5007
        %v5072 = vadd.f32 %v4740, %v5014
        %v5073 = vadd.f32 %v4745, %v5019
        %v5074 = vadd.f32 %v4752, %v5026
        %v5075 = vadd.f32 %v4755, %v5029
        %v5076 = vadd.f32 %v4762, %v5036
        %v5077 = vadd.f32 %v4767, %v5041
        %s5078 = scalar_lea.vmem [#allocation8], 192
        %v5079 = vld [vmem:[%s5078] sm:$0xf]
        %v5080 = vld [vmem:[%s5078 + $0x4] sm:$0xf]
        %v5081 = vld [vmem:[%s5078 + $0x8] sm:$0xf]
        %v5082 = vld [vmem:[%s5078 + $0xc] sm:$0xf]
        %v5083 = vld [vmem:[%s5078 + $0x10] sm:$0xf]
        %v5084 = vld [vmem:[%s5078 + $0x14] sm:$0xf]
        %v5085 = vld [vmem:[%s5078 + $0x18] sm:$0xf]
        %v5086 = vld [vmem:[%s5078 + $0x1c] sm:$0xf]
        %v5087 = vld [vmem:[%s5078 + $0x20] sm:$0xf]
        %v5088 = vld [vmem:[%s5078 + $0x24] sm:$0xf]
        %v5089 = vld [vmem:[%s5078 + $0x28] sm:$0xf]
        %v5090 = vld [vmem:[%s5078 + $0x2c] sm:$0xf]
        %v5091 = vld [vmem:[%s5078 + $0x30] sm:$0xf]
        %v5092 = vld [vmem:[%s5078 + $0x34] sm:$0xf]
        %v5093 = vld [vmem:[%s5078 + $0x38] sm:$0xf]
        %v5094 = vld [vmem:[%s5078 + $0x3c] sm:$0xf]
        %v5120 = vrot.slane %v4145, 4
        %v5121 = vrot.slane %v4146, 4
        %v5122 = vsel %vm1647, %v5120, %v5121
        %v5123 = vrot.slane %v4147, 4
        %v5124 = vsel %vm1647, %v5121, %v5123
        %v5125 = vrot.slane %v4148, 4
        %v5126 = vsel %vm1647, %v5123, %v5125
        %v5127 = vrot.slane %v4149, 4
        %v5128 = vsel %vm1647, %v5125, %v5127
        %v5129 = vrot.slane %v4150, 4
        %v5130 = vsel %vm1647, %v5127, %v5129
        %v5131 = vrot.slane %v4151, 4
        %v5132 = vsel %vm1647, %v5129, %v5131
        %v5133 = vrot.slane %v4152, 4
        %v5134 = vsel %vm1647, %v5131, %v5133
        %v5135 = vrot.slane %v4153, 4
        %v5136 = vsel %vm1647, %v5133, %v5135
        %v5137 = vrot.slane %v4154, 4
        %v5138 = vsel %vm1647, %v5135, %v5137
        %v5139 = vrot.slane %v4155, 4
        %v5140 = vsel %vm1647, %v5137, %v5139
        %v5141 = vrot.slane %v4156, 4
        %v5142 = vsel %vm1647, %v5139, %v5141
        %v5143 = vrot.slane %v4157, 4
        %v5144 = vsel %vm1647, %v5141, %v5143
        %v5145 = vrot.slane %v4158, 4
        %v5146 = vsel %vm1647, %v5143, %v5145
        %v5147 = vrot.slane %v4159, 4
        %v5148 = vsel %vm1647, %v5145, %v5147
        %v5149 = vrot.slane %v4160, 4
        %v5150 = vsel %vm1647, %v5147, %v5149
        %v5151 = vrot.slane %v4161, 4
        %v5152 = vsel %vm1647, %v5149, %v5151
        %v5153 = vrot.slane %v4162, 4
        %v5154 = vsel %vm1647, %v5151, %v5153
        %v5155 = vrot.slane %v4163, 4
        %v5156 = vsel %vm1647, %v5153, %v5155
        %v5157 = vrot.slane %v4164, 4
        %v5158 = vsel %vm1647, %v5155, %v5157
        %v5159 = vrot.slane %v4165, 4
        %v5160 = vsel %vm1647, %v5157, %v5159
        %v5161 = vrot.slane %v4166, 4
        %v5162 = vsel %vm1647, %v5159, %v5161
        %v5163 = vrot.slane %v4167, 4
        %v5164 = vsel %vm1647, %v5161, %v5163
        %v5165 = vrot.slane %v4168, 4
        %v5166 = vsel %vm1647, %v5163, %v5165
        %v5167 = vrot.slane %v4169, 4
        %v5168 = vsel %vm1647, %v5165, %v5167
        %v5209 = vunpack.c.l.b16 %v5079
        %v5210 = vunpack.c.l.b16 %v5080
        %v5211 = vunpack.c.l.b16 %v5081
        %v5212 = vunpack.c.l.b16 %v5082
        %v5213 = vunpack.c.l.b16 %v5083
        %v5214 = vunpack.c.l.b16 %v5084
        %v5215 = vunpack.c.l.b16 %v5085
        %v5216 = vunpack.c.l.b16 %v5086
        %v5217 = vunpack.c.l.b16 %v5087
        %v5218 = vunpack.c.l.b16 %v5088
        %v5219 = vunpack.c.l.b16 %v5089
        %v5220 = vunpack.c.l.b16 %v5090
        %v5221 = vunpack.c.l.b16 %v5091
        %v5222 = vunpack.c.l.b16 %v5092
        %v5223 = vunpack.c.l.b16 %v5093
        %v5224 = vunpack.c.l.b16 %v5094
        %v5225 = vpack.c.b16 %v5210, %v5209
        %v5226 = vpack.c.b16 %v5212, %v5211
        %v5227 = vpack.c.b16 %v5214, %v5213
        %v5228 = vpack.c.b16 %v5216, %v5215
        %v5229 = vpack.c.b16 %v5218, %v5217
        %v5230 = vpack.c.b16 %v5220, %v5219
        %v5231 = vpack.c.b16 %v5222, %v5221
        %v5232 = vpack.c.b16 %v5224, %v5223
        %5241 = vmatprep.subr.bf16.mxu0 0
        %5242 = vmatpush1.bf16.msra.mxu0 %v5225
        %5243 = vmatprep.subr.bf16.mxu0 0
        %5244 = vmatpush1.bf16.msra.mxu0 %v5226
        %5245 = vmatprep.subr.bf16.mxu0 0
        %5246 = vmatpush1.bf16.msra.mxu0 %v5227
        %5247 = vmatprep.subr.bf16.mxu0 0
        %5248 = vmatpush1.bf16.msra.mxu0 %v5228
        %5249 = vmatprep.subr.bf16.mxu0 0
        %5250 = vmatpush1.bf16.msra.mxu0 %v5229
        %5251 = vmatprep.subr.bf16.mxu0 0
        %5252 = vmatpush1.bf16.msra.mxu0 %v5230
        %5253 = vmatprep.subr.bf16.mxu0 0
        %5254 = vmatpush1.bf16.msra.mxu0 %v5231
        %5255 = vmatprep.subr.bf16.mxu0 0
        %5256 = vmatpush1.bf16.msra.mxu0 %v5232
        %5257 = vmatprep.subr.bf16.mxu0 0
        %5258 = vmatpush1.bf16.msra.mxu0 0
        %5259 = vmatprep.subr.bf16.mxu0 0
        %5260 = vmatpush1.bf16.msra.mxu0 0
        %5261 = vmatprep.subr.bf16.mxu0 0
        %5262 = vmatpush1.bf16.msra.mxu0 0
        %5263 = vmatprep.subr.bf16.mxu0 0
        %5264 = vmatpush1.bf16.msra.mxu0 0
        %5265 = vmatprep.subr.bf16.mxu0 0
        %5266 = vmatpush1.bf16.msra.mxu0 0
        %5267 = vmatprep.subr.bf16.mxu0 0
        %5268 = vmatpush1.bf16.msra.mxu0 0
        %5269 = vmatprep.subr.bf16.mxu0 0
        %5270 = vmatpush1.bf16.msra.mxu0 0
        %5271 = vmatprep.subr.bf16.mxu0 0
        %5272 = vmatpush1.bf16.msra.mxu0 0
        %5273 = vmatprep.mubr.bf16.mxu0 0
        %5274 = vmatmul.mubr.bf16.gmra.mrb[0].mxu0 %v5122
        %v5275 = vpop.f32.mrb[0].mxu0
        %v5276 = vadd.f32 0.0, %v5275
        %v5277 = vpop.f32.mrb[0].mxu0
        %v5278 = vpop.f32.mrb[0].mxu0
        %v5279 = vadd.f32 0.0, %v5278
        %v5280 = vpop.f32.mrb[0].mxu0
        %5281 = vmatprep.mubr.bf16.mxu0 0
        %5282 = vmatmul.mubr.bf16.gmra.mrb[0].mxu0 %v5124
        %v5283 = vpop.f32.mrb[0].mxu0
        %v5284 = vpop.f32.mrb[0].mxu0
        %v5285 = vpop.f32.mrb[0].mxu0
        %v5286 = vadd.f32 0.0, %v5285
        %v5287 = vpop.f32.mrb[0].mxu0
        %5288 = vmatprep.mubr.bf16.mxu0 0
        %5289 = vmatmul.mubr.bf16.gmra.mrb[0].mxu0 %v5126
        %v5290 = vpop.f32.mrb[0].mxu0
        %v5291 = vadd.f32 0.0, %v5290
        %v5292 = vpop.f32.mrb[0].mxu0
        %v5293 = vpop.f32.mrb[0].mxu0
        %v5294 = vpop.f32.mrb[0].mxu0
        %5295 = vmatprep.mubr.bf16.mxu0 0
        %5296 = vmatmul.mubr.bf16.gmra.mrb[0].mxu0 %v5128
        %v5297 = vpop.f32.mrb[0].mxu0
        %v5298 = vadd.f32 0.0, %v5297
        %v5299 = vpop.f32.mrb[0].mxu0
        %v5300 = vpop.f32.mrb[0].mxu0
        %v5301 = vadd.f32 0.0, %v5300
        %v5302 = vpop.f32.mrb[0].mxu0
        %5303 = vmatprep.mubr.bf16.mxu0 0
        %5304 = vmatmul.mubr.bf16.gmra.mrb[0].mxu0 %v5130
        %v5305 = vpop.f32.mrb[0].mxu0
        %v5306 = vpop.f32.mrb[0].mxu0
        %v5307 = vpop.f32.mrb[0].mxu0
        %v5308 = vadd.f32 0.0, %v5307
        %v5309 = vpop.f32.mrb[0].mxu0
        %5310 = vmatprep.mubr.bf16.mxu0 0
        %5311 = vmatmul.mubr.bf16.gmra.mrb[0].mxu0 %v5132
        %v5312 = vpop.f32.mrb[0].mxu0
        %v5313 = vadd.f32 0.0, %v5312
        %v5314 = vpop.f32.mrb[0].mxu0
        %v5315 = vpop.f32.mrb[0].mxu0
        %v5316 = vpop.f32.mrb[0].mxu0
        %5317 = vmatprep.mubr.bf16.mxu0 0
        %5318 = vmatmul.mubr.bf16.gmra.mrb[0].mxu0 %v5134
        %v5319 = vpop.f32.mrb[0].mxu0
        %v5320 = vadd.f32 0.0, %v5319
        %v5321 = vpop.f32.mrb[0].mxu0
        %v5322 = vpop.f32.mrb[0].mxu0
        %v5323 = vadd.f32 0.0, %v5322
        %v5324 = vpop.f32.mrb[0].mxu0
        %5325 = vmatprep.mubr.bf16.mxu0 0
        %5326 = vmatmul.mubr.bf16.gmra.mrb[0].mxu0 %v5136
        %v5327 = vpop.f32.mrb[0].mxu0
        %v5328 = vpop.f32.mrb[0].mxu0
        %v5329 = vpop.f32.mrb[0].mxu0
        %v5330 = vadd.f32 0.0, %v5329
        %v5331 = vpop.f32.mrb[0].mxu0
        %5332 = vmatprep.mubr.bf16.mxu0 0
        %5333 = vmatmul.mubr.bf16.gmra.mrb[0].mxu0 %v5138
        %v5334 = vpop.f32.mrb[0].mxu0
        %v5335 = vadd.f32 0.0, %v5334
        %v5336 = vpop.f32.mrb[0].mxu0
        %v5337 = vpop.f32.mrb[0].mxu0
        %v5338 = vpop.f32.mrb[0].mxu0
        %5339 = vmatprep.mubr.bf16.mxu0 0
        %5340 = vmatmul.mubr.bf16.gmra.mrb[0].mxu0 %v5140
        %v5341 = vpop.f32.mrb[0].mxu0
        %v5342 = vadd.f32 0.0, %v5341
        %v5343 = vpop.f32.mrb[0].mxu0
        %v5344 = vpop.f32.mrb[0].mxu0
        %v5345 = vadd.f32 0.0, %v5344
        %v5346 = vpop.f32.mrb[0].mxu0
        %5347 = vmatprep.mubr.bf16.mxu0 0
        %5348 = vmatmul.mubr.bf16.gmra.mrb[0].mxu0 %v5142
        %v5349 = vpop.f32.mrb[0].mxu0
        %v5350 = vpop.f32.mrb[0].mxu0
        %v5351 = vpop.f32.mrb[0].mxu0
        %v5352 = vadd.f32 0.0, %v5351
        %v5353 = vpop.f32.mrb[0].mxu0
        %5354 = vmatprep.mubr.bf16.mxu0 0
        %5355 = vmatmul.mubr.bf16.gmra.mrb[0].mxu0 %v5144
        %v5356 = vpop.f32.mrb[0].mxu0
        %v5357 = vadd.f32 0.0, %v5356
        %v5358 = vpop.f32.mrb[0].mxu0
        %v5359 = vpop.f32.mrb[0].mxu0
        %v5360 = vpop.f32.mrb[0].mxu0
        %5361 = vmatprep.mubr.bf16.mxu0 0
        %5362 = vmatmul.mubr.bf16.gmra.mrb[0].mxu0 %v5146
        %v5363 = vpop.f32.mrb[0].mxu0
        %v5364 = vadd.f32 0.0, %v5363
        %v5365 = vpop.f32.mrb[0].mxu0
        %v5366 = vpop.f32.mrb[0].mxu0
        %v5367 = vadd.f32 0.0, %v5366
        %v5368 = vpop.f32.mrb[0].mxu0
        %5369 = vmatprep.mubr.bf16.mxu0 0
        %5370 = vmatmul.mubr.bf16.gmra.mrb[0].mxu0 %v5148
        %v5371 = vpop.f32.mrb[0].mxu0
        %v5372 = vpop.f32.mrb[0].mxu0
        %v5373 = vpop.f32.mrb[0].mxu0
        %v5374 = vadd.f32 0.0, %v5373
        %v5375 = vpop.f32.mrb[0].mxu0
        %5376 = vmatprep.mubr.bf16.mxu0 0
        %5377 = vmatmul.mubr.bf16.gmra.mrb[0].mxu0 %v5150
        %v5378 = vpop.f32.mrb[0].mxu0
        %v5379 = vadd.f32 0.0, %v5378
        %v5380 = vpop.f32.mrb[0].mxu0
        %v5381 = vpop.f32.mrb[0].mxu0
        %v5382 = vpop.f32.mrb[0].mxu0
        %5383 = vmatprep.mubr.bf16.mxu0 0
        %5384 = vmatmul.mubr.bf16.gmra.mrb[0].mxu0 %v5152
        %v5385 = vpop.f32.mrb[0].mxu0
        %v5386 = vadd.f32 0.0, %v5385
        %v5387 = vpop.f32.mrb[0].mxu0
        %v5388 = vpop.f32.mrb[0].mxu0
        %v5389 = vadd.f32 0.0, %v5388
        %v5390 = vpop.f32.mrb[0].mxu0
        %5391 = vmatprep.mubr.bf16.mxu0 0
        %5392 = vmatmul.mubr.bf16.gmra.mrb[0].mxu0 %v5154
        %v5393 = vpop.f32.mrb[0].mxu0
        %v5394 = vpop.f32.mrb[0].mxu0
        %v5395 = vpop.f32.mrb[0].mxu0
        %v5396 = vadd.f32 0.0, %v5395
        %v5397 = vpop.f32.mrb[0].mxu0
        %5398 = vmatprep.mubr.bf16.mxu0 0
        %5399 = vmatmul.mubr.bf16.gmra.mrb[0].mxu0 %v5156
        %v5400 = vpop.f32.mrb[0].mxu0
        %v5401 = vadd.f32 0.0, %v5400
        %v5402 = vpop.f32.mrb[0].mxu0
        %v5403 = vpop.f32.mrb[0].mxu0
        %v5404 = vpop.f32.mrb[0].mxu0
        %5405 = vmatprep.mubr.bf16.mxu0 0
        %5406 = vmatmul.mubr.bf16.gmra.mrb[0].mxu0 %v5158
        %v5407 = vpop.f32.mrb[0].mxu0
        %v5408 = vadd.f32 0.0, %v5407
        %v5409 = vpop.f32.mrb[0].mxu0
        %v5410 = vpop.f32.mrb[0].mxu0
        %v5411 = vadd.f32 0.0, %v5410
        %v5412 = vpop.f32.mrb[0].mxu0
        %5413 = vmatprep.mubr.bf16.mxu0 0
        %5414 = vmatmul.mubr.bf16.gmra.mrb[0].mxu0 %v5160
        %v5415 = vpop.f32.mrb[0].mxu0
        %v5416 = vpop.f32.mrb[0].mxu0
        %v5417 = vpop.f32.mrb[0].mxu0
        %v5418 = vadd.f32 0.0, %v5417
        %v5419 = vpop.f32.mrb[0].mxu0
        %5420 = vmatprep.mubr.bf16.mxu0 0
        %5421 = vmatmul.mubr.bf16.gmra.mrb[0].mxu0 %v5162
        %v5422 = vpop.f32.mrb[0].mxu0
        %v5423 = vadd.f32 0.0, %v5422
        %v5424 = vpop.f32.mrb[0].mxu0
        %v5425 = vpop.f32.mrb[0].mxu0
        %v5426 = vpop.f32.mrb[0].mxu0
        %5427 = vmatprep.mubr.bf16.mxu0 0
        %5428 = vmatmul.mubr.bf16.gmra.mrb[0].mxu0 %v5164
        %v5429 = vpop.f32.mrb[0].mxu0
        %v5430 = vadd.f32 0.0, %v5429
        %v5431 = vpop.f32.mrb[0].mxu0
        %v5432 = vpop.f32.mrb[0].mxu0
        %v5433 = vadd.f32 0.0, %v5432
        %v5434 = vpop.f32.mrb[0].mxu0
        %5435 = vmatprep.mubr.bf16.mxu0 0
        %5436 = vmatmul.mubr.bf16.gmra.mrb[0].mxu0 %v5166
        %v5437 = vpop.f32.mrb[0].mxu0
        %v5438 = vpop.f32.mrb[0].mxu0
        %v5439 = vpop.f32.mrb[0].mxu0
        %v5440 = vadd.f32 0.0, %v5439
        %v5441 = vpop.f32.mrb[0].mxu0
        %5442 = vmatprep.mubr.bf16.mxu0 0
        %5443 = vmatmul.mubr.bf16.gmra.mrb[0].mxu0 %v5168
        %v5444 = vpop.f32.mrb[0].mxu0
        %v5445 = vadd.f32 0.0, %v5444
        %v5446 = vpop.f32.mrb[0].mxu0
        %v5447 = vpop.f32.mrb[0].mxu0
        %v5448 = vpop.f32.mrb[0].mxu0
        %5449 = vdwg.mxu0
        %v5450 = vadd.f32 %v5046, %v5276
        %v5451 = vadd.f32 %v5047, %v5279
        %v5452 = vadd.f32 %v5048, %v5286
        %v5453 = vadd.f32 %v5049, %v5291
        %v5454 = vadd.f32 %v5050, %v5298
        %v5455 = vadd.f32 %v5051, %v5301
        %v5456 = vadd.f32 %v5052, %v5308
        %v5457 = vadd.f32 %v5053, %v5313
        %v5458 = vadd.f32 %v5054, %v5320
        %v5459 = vadd.f32 %v5055, %v5323
        %v5460 = vadd.f32 %v5056, %v5330
        %v5461 = vadd.f32 %v5057, %v5335
        %v5462 = vadd.f32 %v5058, %v5342
        %v5463 = vadd.f32 %v5059, %v5345
        %v5464 = vadd.f32 %v5060, %v5352
        %v5465 = vadd.f32 %v5061, %v5357
        %v5466 = vadd.f32 %v5062, %v5364
        %v5467 = vadd.f32 %v5063, %v5367
        %v5468 = vadd.f32 %v5064, %v5374
        %v5469 = vadd.f32 %v5065, %v5379
        %v5470 = vadd.f32 %v5066, %v5386
        %v5471 = vadd.f32 %v5067, %v5389
        %v5472 = vadd.f32 %v5068, %v5396
        %v5473 = vadd.f32 %v5069, %v5401
        %v5474 = vadd.f32 %v5070, %v5408
        %v5475 = vadd.f32 %v5071, %v5411
        %v5476 = vadd.f32 %v5072, %v5418
        %v5477 = vadd.f32 %v5073, %v5423
        %v5478 = vadd.f32 %v5074, %v5430
        %v5479 = vadd.f32 %v5075, %v5433
        %v5480 = vadd.f32 %v5076, %v5440
        %v5481 = vadd.f32 %v5077, %v5445
        %s5482 = scalar_lea.vmem [#allocation8], 256
        %v5483 = vld [vmem:[%s5482] sm:$0xf]
        %v5484 = vld [vmem:[%s5482 + $0x4] sm:$0xf]
        %v5485 = vld [vmem:[%s5482 + $0x8] sm:$0xf]
        %v5486 = vld [vmem:[%s5482 + $0xc] sm:$0xf]
        %v5487 = vld [vmem:[%s5482 + $0x10] sm:$0xf]
        %v5488 = vld [vmem:[%s5482 + $0x14] sm:$0xf]
        %v5489 = vld [vmem:[%s5482 + $0x18] sm:$0xf]
        %v5490 = vld [vmem:[%s5482 + $0x1c] sm:$0xf]
        %v5491 = vld [vmem:[%s5482 + $0x20] sm:$0xf]
        %v5492 = vld [vmem:[%s5482 + $0x24] sm:$0xf]
        %v5493 = vld [vmem:[%s5482 + $0x28] sm:$0xf]
        %v5494 = vld [vmem:[%s5482 + $0x2c] sm:$0xf]
        %v5495 = vld [vmem:[%s5482 + $0x30] sm:$0xf]
        %v5496 = vld [vmem:[%s5482 + $0x34] sm:$0xf]
        %v5497 = vld [vmem:[%s5482 + $0x38] sm:$0xf]
        %v5498 = vld [vmem:[%s5482 + $0x3c] sm:$0xf]
        %v5524 = vrot.slane %v4172, 4
        %v5525 = vrot.slane %v4173, 4
        %v5526 = vsel %vm1647, %v5524, %v5525
        %v5527 = vrot.slane %v4174, 4
        %v5528 = vsel %vm1647, %v5525, %v5527
        %v5529 = vrot.slane %v4175, 4
        %v5530 = vsel %vm1647, %v5527, %v5529
        %v5531 = vrot.slane %v4176, 4
        %v5532 = vsel %vm1647, %v5529, %v5531
        %v5533 = vrot.slane %v4177, 4
        %v5534 = vsel %vm1647, %v5531, %v5533
        %v5535 = vrot.slane %v4178, 4
        %v5536 = vsel %vm1647, %v5533, %v5535
        %v5537 = vrot.slane %v4179, 4
        %v5538 = vsel %vm1647, %v5535, %v5537
        %v5539 = vrot.slane %v4180, 4
        %v5540 = vsel %vm1647, %v5537, %v5539
        %v5541 = vrot.slane %v4181, 4
        %v5542 = vsel %vm1647, %v5539, %v5541
        %v5543 = vrot.slane %v4182, 4
        %v5544 = vsel %vm1647, %v5541, %v5543
        %v5545 = vrot.slane %v4183, 4
        %v5546 = vsel %vm1647, %v5543, %v5545
        %v5547 = vrot.slane %v4184, 4
        %v5548 = vsel %vm1647, %v5545, %v5547
        %v5549 = vrot.slane %v4185, 4
        %v5550 = vsel %vm1647, %v5547, %v5549
        %v5551 = vrot.slane %v4186, 4
        %v5552 = vsel %vm1647, %v5549, %v5551
        %v5553 = vrot.slane %v4187, 4
        %v5554 = vsel %vm1647, %v5551, %v5553
        %v5555 = vrot.slane %v4188, 4
        %v5556 = vsel %vm1647, %v5553, %v5555
        %v5557 = vrot.slane %v4189, 4
        %v5558 = vsel %vm1647, %v5555, %v5557
        %v5559 = vrot.slane %v4190, 4
        %v5560 = vsel %vm1647, %v5557, %v5559
        %v5561 = vrot.slane %v4191, 4
        %v5562 = vsel %vm1647, %v5559, %v5561
        %v5563 = vrot.slane %v4192, 4
        %v5564 = vsel %vm1647, %v5561, %v5563
        %v5565 = vrot.slane %v4193, 4
        %v5566 = vsel %vm1647, %v5563, %v5565
        %v5567 = vrot.slane %v4194, 4
        %v5568 = vsel %vm1647, %v5565, %v5567
        %v5569 = vrot.slane %v4195, 4
        %v5570 = vsel %vm1647, %v5567, %v5569
        %v5571 = vrot.slane %v4196, 4
        %v5572 = vsel %vm1647, %v5569, %v5571
        %v5613 = vunpack.c.l.b16 %v5483
        %v5614 = vunpack.c.l.b16 %v5484
        %v5615 = vunpack.c.l.b16 %v5485
        %v5616 = vunpack.c.l.b16 %v5486
        %v5617 = vunpack.c.l.b16 %v5487
        %v5618 = vunpack.c.l.b16 %v5488
        %v5619 = vunpack.c.l.b16 %v5489
        %v5620 = vunpack.c.l.b16 %v5490
        %v5621 = vunpack.c.l.b16 %v5491
        %v5622 = vunpack.c.l.b16 %v5492
        %v5623 = vunpack.c.l.b16 %v5493
        %v5624 = vunpack.c.l.b16 %v5494
        %v5625 = vunpack.c.l.b16 %v5495
        %v5626 = vunpack.c.l.b16 %v5496
        %v5627 = vunpack.c.l.b16 %v5497
        %v5628 = vunpack.c.l.b16 %v5498
        %v5629 = vpack.c.b16 %v5614, %v5613
        %v5630 = vpack.c.b16 %v5616, %v5615
        %v5631 = vpack.c.b16 %v5618, %v5617
        %v5632 = vpack.c.b16 %v5620, %v5619
        %v5633 = vpack.c.b16 %v5622, %v5621
        %v5634 = vpack.c.b16 %v5624, %v5623
        %v5635 = vpack.c.b16 %v5626, %v5625
        %v5636 = vpack.c.b16 %v5628, %v5627
        %5645 = vmatprep.subr.bf16.mxu0 0
        %5646 = vmatpush1.bf16.msra.mxu0 %v5629
        %5647 = vmatprep.subr.bf16.mxu0 0
        %5648 = vmatpush1.bf16.msra.mxu0 %v5630
        %5649 = vmatprep.subr.bf16.mxu0 0
        %5650 = vmatpush1.bf16.msra.mxu0 %v5631
        %5651 = vmatprep.subr.bf16.mxu0 0
        %5652 = vmatpush1.bf16.msra.mxu0 %v5632
        %5653 = vmatprep.subr.bf16.mxu0 0
        %5654 = vmatpush1.bf16.msra.mxu0 %v5633
        %5655 = vmatprep.subr.bf16.mxu0 0
        %5656 = vmatpush1.bf16.msra.mxu0 %v5634
        %5657 = vmatprep.subr.bf16.mxu0 0
        %5658 = vmatpush1.bf16.msra.mxu0 %v5635
        %5659 = vmatprep.subr.bf16.mxu0 0
        %5660 = vmatpush1.bf16.msra.mxu0 %v5636
        %5661 = vmatprep.subr.bf16.mxu0 0
        %5662 = vmatpush1.bf16.msra.mxu0 0
        %5663 = vmatprep.subr.bf16.mxu0 0
        %5664 = vmatpush1.bf16.msra.mxu0 0
        %5665 = vmatprep.subr.bf16.mxu0 0
        %5666 = vmatpush1.bf16.msra.mxu0 0
        %5667 = vmatprep.subr.bf16.mxu0 0
        %5668 = vmatpush1.bf16.msra.mxu0 0
        %5669 = vmatprep.subr.bf16.mxu0 0
        %5670 = vmatpush1.bf16.msra.mxu0 0
        %5671 = vmatprep.subr.bf16.mxu0 0
        %5672 = vmatpush1.bf16.msra.mxu0 0
        %5673 = vmatprep.subr.bf16.mxu0 0
        %5674 = vmatpush1.bf16.msra.mxu0 0
        %5675 = vmatprep.subr.bf16.mxu0 0
        %5676 = vmatpush1.bf16.msra.mxu0 0
        %5677 = vmatprep.mubr.bf16.mxu0 0
        %5678 = vmatmul.mubr.bf16.gmra.mrb[0].mxu0 %v5526
        %v5679 = vpop.f32.mrb[0].mxu0
        %v5680 = vadd.f32 0.0, %v5679
        %v5681 = vpop.f32.mrb[0].mxu0
        %v5682 = vpop.f32.mrb[0].mxu0
        %v5683 = vadd.f32 0.0, %v5682
        %v5684 = vpop.f32.mrb[0].mxu0
        %5685 = vmatprep.mubr.bf16.mxu0 0
        %5686 = vmatmul.mubr.bf16.gmra.mrb[0].mxu0 %v5528
        %v5687 = vpop.f32.mrb[0].mxu0
        %v5688 = vpop.f32.mrb[0].mxu0
        %v5689 = vpop.f32.mrb[0].mxu0
        %v5690 = vadd.f32 0.0, %v5689
        %v5691 = vpop.f32.mrb[0].mxu0
        %5692 = vmatprep.mubr.bf16.mxu0 0
        %5693 = vmatmul.mubr.bf16.gmra.mrb[0].mxu0 %v5530
        %v5694 = vpop.f32.mrb[0].mxu0
        %v5695 = vadd.f32 0.0, %v5694
        %v5696 = vpop.f32.mrb[0].mxu0
        %v5697 = vpop.f32.mrb[0].mxu0
        %v5698 = vpop.f32.mrb[0].mxu0
        %5699 = vmatprep.mubr.bf16.mxu0 0
        %5700 = vmatmul.mubr.bf16.gmra.mrb[0].mxu0 %v5532
        %v5701 = vpop.f32.mrb[0].mxu0
        %v5702 = vadd.f32 0.0, %v5701
        %v5703 = vpop.f32.mrb[0].mxu0
        %v5704 = vpop.f32.mrb[0].mxu0
        %v5705 = vadd.f32 0.0, %v5704
        %v5706 = vpop.f32.mrb[0].mxu0
        %5707 = vmatprep.mubr.bf16.mxu0 0
        %5708 = vmatmul.mubr.bf16.gmra.mrb[0].mxu0 %v5534
        %v5709 = vpop.f32.mrb[0].mxu0
        %v5710 = vpop.f32.mrb[0].mxu0
        %v5711 = vpop.f32.mrb[0].mxu0
        %v5712 = vadd.f32 0.0, %v5711
        %v5713 = vpop.f32.mrb[0].mxu0
        %5714 = vmatprep.mubr.bf16.mxu0 0
        %5715 = vmatmul.mubr.bf16.gmra.mrb[0].mxu0 %v5536
        %v5716 = vpop.f32.mrb[0].mxu0
        %v5717 = vadd.f32 0.0, %v5716
        %v5718 = vpop.f32.mrb[0].mxu0
        %v5719 = vpop.f32.mrb[0].mxu0
        %v5720 = vpop.f32.mrb[0].mxu0
        %5721 = vmatprep.mubr.bf16.mxu0 0
        %5722 = vmatmul.mubr.bf16.gmra.mrb[0].mxu0 %v5538
        %v5723 = vpop.f32.mrb[0].mxu0
        %v5724 = vadd.f32 0.0, %v5723
        %v5725 = vpop.f32.mrb[0].mxu0
        %v5726 = vpop.f32.mrb[0].mxu0
        %v5727 = vadd.f32 0.0, %v5726
        %v5728 = vpop.f32.mrb[0].mxu0
        %5729 = vmatprep.mubr.bf16.mxu0 0
        %5730 = vmatmul.mubr.bf16.gmra.mrb[0].mxu0 %v5540
        %v5731 = vpop.f32.mrb[0].mxu0
        %v5732 = vpop.f32.mrb[0].mxu0
        %v5733 = vpop.f32.mrb[0].mxu0
        %v5734 = vadd.f32 0.0, %v5733
        %v5735 = vpop.f32.mrb[0].mxu0
        %5736 = vmatprep.mubr.bf16.mxu0 0
        %5737 = vmatmul.mubr.bf16.gmra.mrb[0].mxu0 %v5542
        %v5738 = vpop.f32.mrb[0].mxu0
        %v5739 = vadd.f32 0.0, %v5738
        %v5740 = vpop.f32.mrb[0].mxu0
        %v5741 = vpop.f32.mrb[0].mxu0
        %v5742 = vpop.f32.mrb[0].mxu0
        %5743 = vmatprep.mubr.bf16.mxu0 0
        %5744 = vmatmul.mubr.bf16.gmra.mrb[0].mxu0 %v5544
        %v5745 = vpop.f32.mrb[0].mxu0
        %v5746 = vadd.f32 0.0, %v5745
        %v5747 = vpop.f32.mrb[0].mxu0
        %v5748 = vpop.f32.mrb[0].mxu0
        %v5749 = vadd.f32 0.0, %v5748
        %v5750 = vpop.f32.mrb[0].mxu0
        %5751 = vmatprep.mubr.bf16.mxu0 0
        %5752 = vmatmul.mubr.bf16.gmra.mrb[0].mxu0 %v5546
        %v5753 = vpop.f32.mrb[0].mxu0
        %v5754 = vpop.f32.mrb[0].mxu0
        %v5755 = vpop.f32.mrb[0].mxu0
        %v5756 = vadd.f32 0.0, %v5755
        %v5757 = vpop.f32.mrb[0].mxu0
        %5758 = vmatprep.mubr.bf16.mxu0 0
        %5759 = vmatmul.mubr.bf16.gmra.mrb[0].mxu0 %v5548
        %v5760 = vpop.f32.mrb[0].mxu0
        %v5761 = vadd.f32 0.0, %v5760
        %v5762 = vpop.f32.mrb[0].mxu0
        %v5763 = vpop.f32.mrb[0].mxu0
        %v5764 = vpop.f32.mrb[0].mxu0
        %5765 = vmatprep.mubr.bf16.mxu0 0
        %5766 = vmatmul.mubr.bf16.gmra.mrb[0].mxu0 %v5550
        %v5767 = vpop.f32.mrb[0].mxu0
        %v5768 = vadd.f32 0.0, %v5767
        %v5769 = vpop.f32.mrb[0].mxu0
        %v5770 = vpop.f32.mrb[0].mxu0
        %v5771 = vadd.f32 0.0, %v5770
        %v5772 = vpop.f32.mrb[0].mxu0
        %5773 = vmatprep.mubr.bf16.mxu0 0
        %5774 = vmatmul.mubr.bf16.gmra.mrb[0].mxu0 %v5552
        %v5775 = vpop.f32.mrb[0].mxu0
        %v5776 = vpop.f32.mrb[0].mxu0
        %v5777 = vpop.f32.mrb[0].mxu0
        %v5778 = vadd.f32 0.0, %v5777
        %v5779 = vpop.f32.mrb[0].mxu0
        %5780 = vmatprep.mubr.bf16.mxu0 0
        %5781 = vmatmul.mubr.bf16.gmra.mrb[0].mxu0 %v5554
        %v5782 = vpop.f32.mrb[0].mxu0
        %v5783 = vadd.f32 0.0, %v5782
        %v5784 = vpop.f32.mrb[0].mxu0
        %v5785 = vpop.f32.mrb[0].mxu0
        %v5786 = vpop.f32.mrb[0].mxu0
        %5787 = vmatprep.mubr.bf16.mxu0 0
        %5788 = vmatmul.mubr.bf16.gmra.mrb[0].mxu0 %v5556
        %v5789 = vpop.f32.mrb[0].mxu0
        %v5790 = vadd.f32 0.0, %v5789
        %v5791 = vpop.f32.mrb[0].mxu0
        %v5792 = vpop.f32.mrb[0].mxu0
        %v5793 = vadd.f32 0.0, %v5792
        %v5794 = vpop.f32.mrb[0].mxu0
        %5795 = vmatprep.mubr.bf16.mxu0 0
        %5796 = vmatmul.mubr.bf16.gmra.mrb[0].mxu0 %v5558
        %v5797 = vpop.f32.mrb[0].mxu0
        %v5798 = vpop.f32.mrb[0].mxu0
        %v5799 = vpop.f32.mrb[0].mxu0
        %v5800 = vadd.f32 0.0, %v5799
        %v5801 = vpop.f32.mrb[0].mxu0
        %5802 = vmatprep.mubr.bf16.mxu0 0
        %5803 = vmatmul.mubr.bf16.gmra.mrb[0].mxu0 %v5560
        %v5804 = vpop.f32.mrb[0].mxu0
        %v5805 = vadd.f32 0.0, %v5804
        %v5806 = vpop.f32.mrb[0].mxu0
        %v5807 = vpop.f32.mrb[0].mxu0
        %v5808 = vpop.f32.mrb[0].mxu0
        %5809 = vmatprep.mubr.bf16.mxu0 0
        %5810 = vmatmul.mubr.bf16.gmra.mrb[0].mxu0 %v5562
        %v5811 = vpop.f32.mrb[0].mxu0
        %v5812 = vadd.f32 0.0, %v5811
        %v5813 = vpop.f32.mrb[0].mxu0
        %v5814 = vpop.f32.mrb[0].mxu0
        %v5815 = vadd.f32 0.0, %v5814
        %v5816 = vpop.f32.mrb[0].mxu0
        %5817 = vmatprep.mubr.bf16.mxu0 0
        %5818 = vmatmul.mubr.bf16.gmra.mrb[0].mxu0 %v5564
        %v5819 = vpop.f32.mrb[0].mxu0
        %v5820 = vpop.f32.mrb[0].mxu0
        %v5821 = vpop.f32.mrb[0].mxu0
        %v5822 = vadd.f32 0.0, %v5821
        %v5823 = vpop.f32.mrb[0].mxu0
        %5824 = vmatprep.mubr.bf16.mxu0 0
        %5825 = vmatmul.mubr.bf16.gmra.mrb[0].mxu0 %v5566
        %v5826 = vpop.f32.mrb[0].mxu0
        %v5827 = vadd.f32 0.0, %v5826
        %v5828 = vpop.f32.mrb[0].mxu0
        %v5829 = vpop.f32.mrb[0].mxu0
        %v5830 = vpop.f32.mrb[0].mxu0
        %5831 = vmatprep.mubr.bf16.mxu0 0
        %5832 = vmatmul.mubr.bf16.gmra.mrb[0].mxu0 %v5568
        %v5833 = vpop.f32.mrb[0].mxu0
        %v5834 = vadd.f32 0.0, %v5833
        %v5835 = vpop.f32.mrb[0].mxu0
        %v5836 = vpop.f32.mrb[0].mxu0
        %v5837 = vadd.f32 0.0, %v5836
        %v5838 = vpop.f32.mrb[0].mxu0
        %5839 = vmatprep.mubr.bf16.mxu0 0
        %5840 = vmatmul.mubr.bf16.gmra.mrb[0].mxu0 %v5570
        %v5841 = vpop.f32.mrb[0].mxu0
        %v5842 = vpop.f32.mrb[0].mxu0
        %v5843 = vpop.f32.mrb[0].mxu0
        %v5844 = vadd.f32 0.0, %v5843
        %v5845 = vpop.f32.mrb[0].mxu0
        %5846 = vmatprep.mubr.bf16.mxu0 0
        %5847 = vmatmul.mubr.bf16.gmra.mrb[0].mxu0 %v5572
        %v5848 = vpop.f32.mrb[0].mxu0
        %v5849 = vadd.f32 0.0, %v5848
        %v5850 = vpop.f32.mrb[0].mxu0
        %v5851 = vpop.f32.mrb[0].mxu0
        %v5852 = vpop.f32.mrb[0].mxu0
        %5853 = vdwg.mxu0
        %v5854 = vadd.f32 %v5450, %v5680
        %v5855 = vadd.f32 %v5451, %v5683
        %v5856 = vadd.f32 %v5452, %v5690
        %v5857 = vadd.f32 %v5453, %v5695
        %v5858 = vadd.f32 %v5454, %v5702
        %v5859 = vadd.f32 %v5455, %v5705
        %v5860 = vadd.f32 %v5456, %v5712
        %v5861 = vadd.f32 %v5457, %v5717
        %v5862 = vadd.f32 %v5458, %v5724
        %v5863 = vadd.f32 %v5459, %v5727
        %v5864 = vadd.f32 %v5460, %v5734
        %v5865 = vadd.f32 %v5461, %v5739
        %v5866 = vadd.f32 %v5462, %v5746
        %v5867 = vadd.f32 %v5463, %v5749
        %v5868 = vadd.f32 %v5464, %v5756
        %v5869 = vadd.f32 %v5465, %v5761
        %v5870 = vadd.f32 %v5466, %v5768
        %v5871 = vadd.f32 %v5467, %v5771
        %v5872 = vadd.f32 %v5468, %v5778
        %v5873 = vadd.f32 %v5469, %v5783
        %v5874 = vadd.f32 %v5470, %v5790
        %v5875 = vadd.f32 %v5471, %v5793
        %v5876 = vadd.f32 %v5472, %v5800
        %v5877 = vadd.f32 %v5473, %v5805
        %v5878 = vadd.f32 %v5474, %v5812
        %v5879 = vadd.f32 %v5475, %v5815
        %v5880 = vadd.f32 %v5476, %v5822
        %v5881 = vadd.f32 %v5477, %v5827
        %v5882 = vadd.f32 %v5478, %v5834
        %v5883 = vadd.f32 %v5479, %v5837
        %v5884 = vadd.f32 %v5480, %v5844
        %v5885 = vadd.f32 %v5481, %v5849
        %s5886 = scalar_lea.vmem [#allocation8], 320
        %v5887 = vld [vmem:[%s5886] sm:$0xf]
        %v5888 = vld [vmem:[%s5886 + $0x4] sm:$0xf]
        %v5889 = vld [vmem:[%s5886 + $0x8] sm:$0xf]
        %v5890 = vld [vmem:[%s5886 + $0xc] sm:$0xf]
        %v5891 = vld [vmem:[%s5886 + $0x10] sm:$0xf]
        %v5892 = vld [vmem:[%s5886 + $0x14] sm:$0xf]
        %v5893 = vld [vmem:[%s5886 + $0x18] sm:$0xf]
        %v5894 = vld [vmem:[%s5886 + $0x1c] sm:$0xf]
        %v5895 = vld [vmem:[%s5886 + $0x20] sm:$0xf]
        %v5896 = vld [vmem:[%s5886 + $0x24] sm:$0xf]
        %v5897 = vld [vmem:[%s5886 + $0x28] sm:$0xf]
        %v5898 = vld [vmem:[%s5886 + $0x2c] sm:$0xf]
        %v5899 = vld [vmem:[%s5886 + $0x30] sm:$0xf]
        %v5900 = vld [vmem:[%s5886 + $0x34] sm:$0xf]
        %v5901 = vld [vmem:[%s5886 + $0x38] sm:$0xf]
        %v5902 = vld [vmem:[%s5886 + $0x3c] sm:$0xf]
        %v5928 = vrot.slane %v4199, 4
        %v5929 = vrot.slane %v4200, 4
        %v5930 = vsel %vm1647, %v5928, %v5929
        %v5931 = vrot.slane %v4201, 4
        %v5932 = vsel %vm1647, %v5929, %v5931
        %v5933 = vrot.slane %v4202, 4
        %v5934 = vsel %vm1647, %v5931, %v5933
        %v5935 = vrot.slane %v4203, 4
        %v5936 = vsel %vm1647, %v5933, %v5935
        %v5937 = vrot.slane %v4204, 4
        %v5938 = vsel %vm1647, %v5935, %v5937
        %v5939 = vrot.slane %v4205, 4
        %v5940 = vsel %vm1647, %v5937, %v5939
        %v5941 = vrot.slane %v4206, 4
        %v5942 = vsel %vm1647, %v5939, %v5941
        %v5943 = vrot.slane %v4207, 4
        %v5944 = vsel %vm1647, %v5941, %v5943
        %v5945 = vrot.slane %v4208, 4
        %v5946 = vsel %vm1647, %v5943, %v5945
        %v5947 = vrot.slane %v4209, 4
        %v5948 = vsel %vm1647, %v5945, %v5947
        %v5949 = vrot.slane %v4210, 4
        %v5950 = vsel %vm1647, %v5947, %v5949
        %v5951 = vrot.slane %v4211, 4
        %v5952 = vsel %vm1647, %v5949, %v5951
        %v5953 = vrot.slane %v4212, 4
        %v5954 = vsel %vm1647, %v5951, %v5953
        %v5955 = vrot.slane %v4213, 4
        %v5956 = vsel %vm1647, %v5953, %v5955
        %v5957 = vrot.slane %v4214, 4
        %v5958 = vsel %vm1647, %v5955, %v5957
        %v5959 = vrot.slane %v4215, 4
        %v5960 = vsel %vm1647, %v5957, %v5959
        %v5961 = vrot.slane %v4216, 4
        %v5962 = vsel %vm1647, %v5959, %v5961
        %v5963 = vrot.slane %v4217, 4
        %v5964 = vsel %vm1647, %v5961, %v5963
        %v5965 = vrot.slane %v4218, 4
        %v5966 = vsel %vm1647, %v5963, %v5965
        %v5967 = vrot.slane %v4219, 4
        %v5968 = vsel %vm1647, %v5965, %v5967
        %v5969 = vrot.slane %v4220, 4
        %v5970 = vsel %vm1647, %v5967, %v5969
        %v5971 = vrot.slane %v4221, 4
        %v5972 = vsel %vm1647, %v5969, %v5971
        %v5973 = vrot.slane %v4222, 4
        %v5974 = vsel %vm1647, %v5971, %v5973
        %v5975 = vrot.slane %v4223, 4
        %v5976 = vsel %vm1647, %v5973, %v5975
        %v6017 = vunpack.c.l.b16 %v5887
        %v6018 = vunpack.c.l.b16 %v5888
        %v6019 = vunpack.c.l.b16 %v5889
        %v6020 = vunpack.c.l.b16 %v5890
        %v6021 = vunpack.c.l.b16 %v5891
        %v6022 = vunpack.c.l.b16 %v5892
        %v6023 = vunpack.c.l.b16 %v5893
        %v6024 = vunpack.c.l.b16 %v5894
        %v6025 = vunpack.c.l.b16 %v5895
        %v6026 = vunpack.c.l.b16 %v5896
        %v6027 = vunpack.c.l.b16 %v5897
        %v6028 = vunpack.c.l.b16 %v5898
        %v6029 = vunpack.c.l.b16 %v5899
        %v6030 = vunpack.c.l.b16 %v5900
        %v6031 = vunpack.c.l.b16 %v5901
        %v6032 = vunpack.c.l.b16 %v5902
        %v6033 = vpack.c.b16 %v6018, %v6017
        %v6034 = vpack.c.b16 %v6020, %v6019
        %v6035 = vpack.c.b16 %v6022, %v6021
        %v6036 = vpack.c.b16 %v6024, %v6023
        %v6037 = vpack.c.b16 %v6026, %v6025
        %v6038 = vpack.c.b16 %v6028, %v6027
        %v6039 = vpack.c.b16 %v6030, %v6029
        %v6040 = vpack.c.b16 %v6032, %v6031
        %6049 = vmatprep.subr.bf16.mxu0 0
        %6050 = vmatpush1.bf16.msra.mxu0 %v6033
        %6051 = vmatprep.subr.bf16.mxu0 0
        %6052 = vmatpush1.bf16.msra.mxu0 %v6034
        %6053 = vmatprep.subr.bf16.mxu0 0
        %6054 = vmatpush1.bf16.msra.mxu0 %v6035
        %6055 = vmatprep.subr.bf16.mxu0 0
        %6056 = vmatpush1.bf16.msra.mxu0 %v6036
        %6057 = vmatprep.subr.bf16.mxu0 0
        %6058 = vmatpush1.bf16.msra.mxu0 %v6037
        %6059 = vmatprep.subr.bf16.mxu0 0
        %6060 = vmatpush1.bf16.msra.mxu0 %v6038
        %6061 = vmatprep.subr.bf16.mxu0 0
        %6062 = vmatpush1.bf16.msra.mxu0 %v6039
        %6063 = vmatprep.subr.bf16.mxu0 0
        %6064 = vmatpush1.bf16.msra.mxu0 %v6040
        %6065 = vmatprep.subr.bf16.mxu0 0
        %6066 = vmatpush1.bf16.msra.mxu0 0
        %6067 = vmatprep.subr.bf16.mxu0 0
        %6068 = vmatpush1.bf16.msra.mxu0 0
        %6069 = vmatprep.subr.bf16.mxu0 0
        %6070 = vmatpush1.bf16.msra.mxu0 0
        %6071 = vmatprep.subr.bf16.mxu0 0
        %6072 = vmatpush1.bf16.msra.mxu0 0
        %6073 = vmatprep.subr.bf16.mxu0 0
        %6074 = vmatpush1.bf16.msra.mxu0 0
        %6075 = vmatprep.subr.bf16.mxu0 0
        %6076 = vmatpush1.bf16.msra.mxu0 0
        %6077 = vmatprep.subr.bf16.mxu0 0
        %6078 = vmatpush1.bf16.msra.mxu0 0
        %6079 = vmatprep.subr.bf16.mxu0 0
        %6080 = vmatpush1.bf16.msra.mxu0 0
        %6081 = vmatprep.mubr.bf16.mxu0 0
        %6082 = vmatmul.mubr.bf16.gmra.mrb[0].mxu0 %v5930
        %v6083 = vpop.f32.mrb[0].mxu0
        %v6084 = vadd.f32 0.0, %v6083
        %v6085 = vpop.f32.mrb[0].mxu0
        %v6086 = vpop.f32.mrb[0].mxu0
        %v6087 = vadd.f32 0.0, %v6086
        %v6088 = vpop.f32.mrb[0].mxu0
        %6089 = vmatprep.mubr.bf16.mxu0 0
        %6090 = vmatmul.mubr.bf16.gmra.mrb[0].mxu0 %v5932
        %v6091 = vpop.f32.mrb[0].mxu0
        %v6092 = vpop.f32.mrb[0].mxu0
        %v6093 = vpop.f32.mrb[0].mxu0
        %v6094 = vadd.f32 0.0, %v6093
        %v6095 = vpop.f32.mrb[0].mxu0
        %6096 = vmatprep.mubr.bf16.mxu0 0
        %6097 = vmatmul.mubr.bf16.gmra.mrb[0].mxu0 %v5934
        %v6098 = vpop.f32.mrb[0].mxu0
        %v6099 = vadd.f32 0.0, %v6098
        %v6100 = vpop.f32.mrb[0].mxu0
        %v6101 = vpop.f32.mrb[0].mxu0
        %v6102 = vpop.f32.mrb[0].mxu0
        %6103 = vmatprep.mubr.bf16.mxu0 0
        %6104 = vmatmul.mubr.bf16.gmra.mrb[0].mxu0 %v5936
        %v6105 = vpop.f32.mrb[0].mxu0
        %v6106 = vadd.f32 0.0, %v6105
        %v6107 = vpop.f32.mrb[0].mxu0
        %v6108 = vpop.f32.mrb[0].mxu0
        %v6109 = vadd.f32 0.0, %v6108
        %v6110 = vpop.f32.mrb[0].mxu0
        %6111 = vmatprep.mubr.bf16.mxu0 0
        %6112 = vmatmul.mubr.bf16.gmra.mrb[0].mxu0 %v5938
        %v6113 = vpop.f32.mrb[0].mxu0
        %v6114 = vpop.f32.mrb[0].mxu0
        %v6115 = vpop.f32.mrb[0].mxu0
        %v6116 = vadd.f32 0.0, %v6115
        %v6117 = vpop.f32.mrb[0].mxu0
        %6118 = vmatprep.mubr.bf16.mxu0 0
        %6119 = vmatmul.mubr.bf16.gmra.mrb[0].mxu0 %v5940
        %v6120 = vpop.f32.mrb[0].mxu0
        %v6121 = vadd.f32 0.0, %v6120
        %v6122 = vpop.f32.mrb[0].mxu0
        %v6123 = vpop.f32.mrb[0].mxu0
        %v6124 = vpop.f32.mrb[0].mxu0
        %6125 = vmatprep.mubr.bf16.mxu0 0
        %6126 = vmatmul.mubr.bf16.gmra.mrb[0].mxu0 %v5942
        %v6127 = vpop.f32.mrb[0].mxu0
        %v6128 = vadd.f32 0.0, %v6127
        %v6129 = vpop.f32.mrb[0].mxu0
        %v6130 = vpop.f32.mrb[0].mxu0
        %v6131 = vadd.f32 0.0, %v6130
        %v6132 = vpop.f32.mrb[0].mxu0
        %6133 = vmatprep.mubr.bf16.mxu0 0
        %6134 = vmatmul.mubr.bf16.gmra.mrb[0].mxu0 %v5944
        %v6135 = vpop.f32.mrb[0].mxu0
        %v6136 = vpop.f32.mrb[0].mxu0
        %v6137 = vpop.f32.mrb[0].mxu0
        %v6138 = vadd.f32 0.0, %v6137
        %v6139 = vpop.f32.mrb[0].mxu0
        %6140 = vmatprep.mubr.bf16.mxu0 0
        %6141 = vmatmul.mubr.bf16.gmra.mrb[0].mxu0 %v5946
        %v6142 = vpop.f32.mrb[0].mxu0
        %v6143 = vadd.f32 0.0, %v6142
        %v6144 = vpop.f32.mrb[0].mxu0
        %v6145 = vpop.f32.mrb[0].mxu0
        %v6146 = vpop.f32.mrb[0].mxu0
        %6147 = vmatprep.mubr.bf16.mxu0 0
        %6148 = vmatmul.mubr.bf16.gmra.mrb[0].mxu0 %v5948
        %v6149 = vpop.f32.mrb[0].mxu0
        %v6150 = vadd.f32 0.0, %v6149
        %v6151 = vpop.f32.mrb[0].mxu0
        %v6152 = vpop.f32.mrb[0].mxu0
        %v6153 = vadd.f32 0.0, %v6152
        %v6154 = vpop.f32.mrb[0].mxu0
        %6155 = vmatprep.mubr.bf16.mxu0 0
        %6156 = vmatmul.mubr.bf16.gmra.mrb[0].mxu0 %v5950
        %v6157 = vpop.f32.mrb[0].mxu0
        %v6158 = vpop.f32.mrb[0].mxu0
        %v6159 = vpop.f32.mrb[0].mxu0
        %v6160 = vadd.f32 0.0, %v6159
        %v6161 = vpop.f32.mrb[0].mxu0
        %6162 = vmatprep.mubr.bf16.mxu0 0
        %6163 = vmatmul.mubr.bf16.gmra.mrb[0].mxu0 %v5952
        %v6164 = vpop.f32.mrb[0].mxu0
        %v6165 = vadd.f32 0.0, %v6164
        %v6166 = vpop.f32.mrb[0].mxu0
        %v6167 = vpop.f32.mrb[0].mxu0
        %v6168 = vpop.f32.mrb[0].mxu0
        %6169 = vmatprep.mubr.bf16.mxu0 0
        %6170 = vmatmul.mubr.bf16.gmra.mrb[0].mxu0 %v5954
        %v6171 = vpop.f32.mrb[0].mxu0
        %v6172 = vadd.f32 0.0, %v6171
        %v6173 = vpop.f32.mrb[0].mxu0
        %v6174 = vpop.f32.mrb[0].mxu0
        %v6175 = vadd.f32 0.0, %v6174
        %v6176 = vpop.f32.mrb[0].mxu0
        %6177 = vmatprep.mubr.bf16.mxu0 0
        %6178 = vmatmul.mubr.bf16.gmra.mrb[0].mxu0 %v5956
        %v6179 = vpop.f32.mrb[0].mxu0
        %v6180 = vpop.f32.mrb[0].mxu0
        %v6181 = vpop.f32.mrb[0].mxu0
        %v6182 = vadd.f32 0.0, %v6181
        %v6183 = vpop.f32.mrb[0].mxu0
        %6184 = vmatprep.mubr.bf16.mxu0 0
        %6185 = vmatmul.mubr.bf16.gmra.mrb[0].mxu0 %v5958
        %v6186 = vpop.f32.mrb[0].mxu0
        %v6187 = vadd.f32 0.0, %v6186
        %v6188 = vpop.f32.mrb[0].mxu0
        %v6189 = vpop.f32.mrb[0].mxu0
        %v6190 = vpop.f32.mrb[0].mxu0
        %6191 = vmatprep.mubr.bf16.mxu0 0
        %6192 = vmatmul.mubr.bf16.gmra.mrb[0].mxu0 %v5960
        %v6193 = vpop.f32.mrb[0].mxu0
        %v6194 = vadd.f32 0.0, %v6193
        %v6195 = vpop.f32.mrb[0].mxu0
        %v6196 = vpop.f32.mrb[0].mxu0
        %v6197 = vadd.f32 0.0, %v6196
        %v6198 = vpop.f32.mrb[0].mxu0
        %6199 = vmatprep.mubr.bf16.mxu0 0
        %6200 = vmatmul.mubr.bf16.gmra.mrb[0].mxu0 %v5962
        %v6201 = vpop.f32.mrb[0].mxu0
        %v6202 = vpop.f32.mrb[0].mxu0
        %v6203 = vpop.f32.mrb[0].mxu0
        %v6204 = vadd.f32 0.0, %v6203
        %v6205 = vpop.f32.mrb[0].mxu0
        %6206 = vmatprep.mubr.bf16.mxu0 0
        %6207 = vmatmul.mubr.bf16.gmra.mrb[0].mxu0 %v5964
        %v6208 = vpop.f32.mrb[0].mxu0
        %v6209 = vadd.f32 0.0, %v6208
        %v6210 = vpop.f32.mrb[0].mxu0
        %v6211 = vpop.f32.mrb[0].mxu0
        %v6212 = vpop.f32.mrb[0].mxu0
        %6213 = vmatprep.mubr.bf16.mxu0 0
        %6214 = vmatmul.mubr.bf16.gmra.mrb[0].mxu0 %v5966
        %v6215 = vpop.f32.mrb[0].mxu0
        %v6216 = vadd.f32 0.0, %v6215
        %v6217 = vpop.f32.mrb[0].mxu0
        %v6218 = vpop.f32.mrb[0].mxu0
        %v6219 = vadd.f32 0.0, %v6218
        %v6220 = vpop.f32.mrb[0].mxu0
        %6221 = vmatprep.mubr.bf16.mxu0 0
        %6222 = vmatmul.mubr.bf16.gmra.mrb[0].mxu0 %v5968
        %v6223 = vpop.f32.mrb[0].mxu0
        %v6224 = vpop.f32.mrb[0].mxu0
        %v6225 = vpop.f32.mrb[0].mxu0
        %v6226 = vadd.f32 0.0, %v6225
        %v6227 = vpop.f32.mrb[0].mxu0
        %6228 = vmatprep.mubr.bf16.mxu0 0
        %6229 = vmatmul.mubr.bf16.gmra.mrb[0].mxu0 %v5970
        %v6230 = vpop.f32.mrb[0].mxu0
        %v6231 = vadd.f32 0.0, %v6230
        %v6232 = vpop.f32.mrb[0].mxu0
        %v6233 = vpop.f32.mrb[0].mxu0
        %v6234 = vpop.f32.mrb[0].mxu0
        %6235 = vmatprep.mubr.bf16.mxu0 0
        %6236 = vmatmul.mubr.bf16.gmra.mrb[0].mxu0 %v5972
        %v6237 = vpop.f32.mrb[0].mxu0
        %v6238 = vadd.f32 0.0, %v6237
        %v6239 = vpop.f32.mrb[0].mxu0
        %v6240 = vpop.f32.mrb[0].mxu0
        %v6241 = vadd.f32 0.0, %v6240
        %v6242 = vpop.f32.mrb[0].mxu0
        %6243 = vmatprep.mubr.bf16.mxu0 0
        %6244 = vmatmul.mubr.bf16.gmra.mrb[0].mxu0 %v5974
        %v6245 = vpop.f32.mrb[0].mxu0
        %v6246 = vpop.f32.mrb[0].mxu0
        %v6247 = vpop.f32.mrb[0].mxu0
        %v6248 = vadd.f32 0.0, %v6247
        %v6249 = vpop.f32.mrb[0].mxu0
        %6250 = vmatprep.mubr.bf16.mxu0 0
        %6251 = vmatmul.mubr.bf16.gmra.mrb[0].mxu0 %v5976
        %v6252 = vpop.f32.mrb[0].mxu0
        %v6253 = vadd.f32 0.0, %v6252
        %v6254 = vpop.f32.mrb[0].mxu0
        %v6255 = vpop.f32.mrb[0].mxu0
        %v6256 = vpop.f32.mrb[0].mxu0
        %6257 = vdwg.mxu0
        %v6258 = vadd.f32 %v5854, %v6084
        %v6259 = vadd.f32 %v5855, %v6087
        %v6260 = vadd.f32 %v5856, %v6094
        %v6261 = vadd.f32 %v5857, %v6099
        %v6262 = vadd.f32 %v5858, %v6106
        %v6263 = vadd.f32 %v5859, %v6109
        %v6264 = vadd.f32 %v5860, %v6116
        %v6265 = vadd.f32 %v5861, %v6121
        %v6266 = vadd.f32 %v5862, %v6128
        %v6267 = vadd.f32 %v5863, %v6131
        %v6268 = vadd.f32 %v5864, %v6138
        %v6269 = vadd.f32 %v5865, %v6143
        %v6270 = vadd.f32 %v5866, %v6150
        %v6271 = vadd.f32 %v5867, %v6153
        %v6272 = vadd.f32 %v5868, %v6160
        %v6273 = vadd.f32 %v5869, %v6165
        %v6274 = vadd.f32 %v5870, %v6172
        %v6275 = vadd.f32 %v5871, %v6175
        %v6276 = vadd.f32 %v5872, %v6182
        %v6277 = vadd.f32 %v5873, %v6187
        %v6278 = vadd.f32 %v5874, %v6194
        %v6279 = vadd.f32 %v5875, %v6197
        %v6280 = vadd.f32 %v5876, %v6204
        %v6281 = vadd.f32 %v5877, %v6209
        %v6282 = vadd.f32 %v5878, %v6216
        %v6283 = vadd.f32 %v5879, %v6219
        %v6284 = vadd.f32 %v5880, %v6226
        %v6285 = vadd.f32 %v5881, %v6231
        %v6286 = vadd.f32 %v5882, %v6238
        %v6287 = vadd.f32 %v5883, %v6241
        %v6288 = vadd.f32 %v5884, %v6248
        %v6289 = vadd.f32 %v5885, %v6253
        %s6290 = scalar_lea.vmem [#allocation8], 384
        %v6291 = vld [vmem:[%s6290] sm:$0xf]
        %v6292 = vld [vmem:[%s6290 + $0x4] sm:$0xf]
        %v6293 = vld [vmem:[%s6290 + $0x8] sm:$0xf]
        %v6294 = vld [vmem:[%s6290 + $0xc] sm:$0xf]
        %v6295 = vld [vmem:[%s6290 + $0x10] sm:$0xf]
        %v6296 = vld [vmem:[%s6290 + $0x14] sm:$0xf]
        %v6297 = vld [vmem:[%s6290 + $0x18] sm:$0xf]
        %v6298 = vld [vmem:[%s6290 + $0x1c] sm:$0xf]
        %v6299 = vld [vmem:[%s6290 + $0x20] sm:$0xf]
        %v6300 = vld [vmem:[%s6290 + $0x24] sm:$0xf]
        %v6301 = vld [vmem:[%s6290 + $0x28] sm:$0xf]
        %v6302 = vld [vmem:[%s6290 + $0x2c] sm:$0xf]
        %v6303 = vld [vmem:[%s6290 + $0x30] sm:$0xf]
        %v6304 = vld [vmem:[%s6290 + $0x34] sm:$0xf]
        %v6305 = vld [vmem:[%s6290 + $0x38] sm:$0xf]
        %v6306 = vld [vmem:[%s6290 + $0x3c] sm:$0xf]
        %v6323 = vunpack.c.l.b16 %v6291
        %v6324 = vunpack.c.l.b16 %v6292
        %v6325 = vunpack.c.l.b16 %v6293
        %v6326 = vunpack.c.l.b16 %v6294
        %v6327 = vunpack.c.l.b16 %v6295
        %v6328 = vunpack.c.l.b16 %v6296
        %v6329 = vunpack.c.l.b16 %v6297
        %v6330 = vunpack.c.l.b16 %v6298
        %v6331 = vunpack.c.l.b16 %v6299
        %v6332 = vunpack.c.l.b16 %v6300
        %v6333 = vunpack.c.l.b16 %v6301
        %v6334 = vunpack.c.l.b16 %v6302
        %v6335 = vunpack.c.l.b16 %v6303
        %v6336 = vunpack.c.l.b16 %v6304
        %v6337 = vunpack.c.l.b16 %v6305
        %v6338 = vunpack.c.l.b16 %v6306
        %v6339 = vpack.c.b16 %v6324, %v6323
        %v6340 = vpack.c.b16 %v6326, %v6325
        %v6341 = vpack.c.b16 %v6328, %v6327
        %v6342 = vpack.c.b16 %v6330, %v6329
        %v6343 = vpack.c.b16 %v6332, %v6331
        %v6344 = vpack.c.b16 %v6334, %v6333
        %v6345 = vpack.c.b16 %v6336, %v6335
        %v6346 = vpack.c.b16 %v6338, %v6337
        %6355 = vmatprep.subr.bf16.mxu0 0
        %6356 = vmatpush1.bf16.msra.mxu0 %v6339
        %6357 = vmatprep.subr.bf16.mxu0 0
        %6358 = vmatpush1.bf16.msra.mxu0 %v6340
        %6359 = vmatprep.subr.bf16.mxu0 0
        %6360 = vmatpush1.bf16.msra.mxu0 %v6341
        %6361 = vmatprep.subr.bf16.mxu0 0
        %6362 = vmatpush1.bf16.msra.mxu0 %v6342
        %6363 = vmatprep.subr.bf16.mxu0 0
        %6364 = vmatpush1.bf16.msra.mxu0 %v6343
        %6365 = vmatprep.subr.bf16.mxu0 0
        %6366 = vmatpush1.bf16.msra.mxu0 %v6344
        %6367 = vmatprep.subr.bf16.mxu0 0
        %6368 = vmatpush1.bf16.msra.mxu0 %v6345
        %6369 = vmatprep.subr.bf16.mxu0 0
        %6370 = vmatpush1.bf16.msra.mxu0 %v6346
        %6371 = vmatprep.subr.bf16.mxu0 0
        %6372 = vmatpush1.bf16.msra.mxu0 0
        %6373 = vmatprep.subr.bf16.mxu0 0
        %6374 = vmatpush1.bf16.msra.mxu0 0
        %6375 = vmatprep.subr.bf16.mxu0 0
        %6376 = vmatpush1.bf16.msra.mxu0 0
        %6377 = vmatprep.subr.bf16.mxu0 0
        %6378 = vmatpush1.bf16.msra.mxu0 0
        %6379 = vmatprep.subr.bf16.mxu0 0
        %6380 = vmatpush1.bf16.msra.mxu0 0
        %6381 = vmatprep.subr.bf16.mxu0 0
        %6382 = vmatpush1.bf16.msra.mxu0 0
        %6383 = vmatprep.subr.bf16.mxu0 0
        %6384 = vmatpush1.bf16.msra.mxu0 0
        %6385 = vmatprep.subr.bf16.mxu0 0
        %6386 = vmatpush1.bf16.msra.mxu0 0
        %6387 = vmatprep.mubr.bf16.mxu0 0
        %6388 = vmatmul.mubr.bf16.gmra.mrb[0].mxu0 %v4147
        %v6389 = vpop.f32.mrb[0].mxu0
        %v6390 = vadd.f32 0.0, %v6389
        %v6391 = vpop.f32.mrb[0].mxu0
        %v6392 = vpop.f32.mrb[0].mxu0
        %v6393 = vadd.f32 0.0, %v6392
        %v6394 = vpop.f32.mrb[0].mxu0
        %6395 = vmatprep.mubr.bf16.mxu0 0
        %6396 = vmatmul.mubr.bf16.gmra.mrb[0].mxu0 %v4148
        %v6397 = vpop.f32.mrb[0].mxu0
        %v6398 = vpop.f32.mrb[0].mxu0
        %v6399 = vpop.f32.mrb[0].mxu0
        %v6400 = vadd.f32 0.0, %v6399
        %v6401 = vpop.f32.mrb[0].mxu0
        %6402 = vmatprep.mubr.bf16.mxu0 0
        %6403 = vmatmul.mubr.bf16.gmra.mrb[0].mxu0 %v4149
        %v6404 = vpop.f32.mrb[0].mxu0
        %v6405 = vadd.f32 0.0, %v6404
        %v6406 = vpop.f32.mrb[0].mxu0
        %v6407 = vpop.f32.mrb[0].mxu0
        %v6408 = vpop.f32.mrb[0].mxu0
        %6409 = vmatprep.mubr.bf16.mxu0 0
        %6410 = vmatmul.mubr.bf16.gmra.mrb[0].mxu0 %v4150
        %v6411 = vpop.f32.mrb[0].mxu0
        %v6412 = vadd.f32 0.0, %v6411
        %v6413 = vpop.f32.mrb[0].mxu0
        %v6414 = vpop.f32.mrb[0].mxu0
        %v6415 = vadd.f32 0.0, %v6414
        %v6416 = vpop.f32.mrb[0].mxu0
        %6417 = vmatprep.mubr.bf16.mxu0 0
        %6418 = vmatmul.mubr.bf16.gmra.mrb[0].mxu0 %v4151
        %v6419 = vpop.f32.mrb[0].mxu0
        %v6420 = vpop.f32.mrb[0].mxu0
        %v6421 = vpop.f32.mrb[0].mxu0
        %v6422 = vadd.f32 0.0, %v6421
        %v6423 = vpop.f32.mrb[0].mxu0
        %6424 = vmatprep.mubr.bf16.mxu0 0
        %6425 = vmatmul.mubr.bf16.gmra.mrb[0].mxu0 %v4152
        %v6426 = vpop.f32.mrb[0].mxu0
        %v6427 = vadd.f32 0.0, %v6426
        %v6428 = vpop.f32.mrb[0].mxu0
        %v6429 = vpop.f32.mrb[0].mxu0
        %v6430 = vpop.f32.mrb[0].mxu0
        %6431 = vmatprep.mubr.bf16.mxu0 0
        %6432 = vmatmul.mubr.bf16.gmra.mrb[0].mxu0 %v4153
        %v6433 = vpop.f32.mrb[0].mxu0
        %v6434 = vadd.f32 0.0, %v6433
        %v6435 = vpop.f32.mrb[0].mxu0
        %v6436 = vpop.f32.mrb[0].mxu0
        %v6437 = vadd.f32 0.0, %v6436
        %v6438 = vpop.f32.mrb[0].mxu0
        %6439 = vmatprep.mubr.bf16.mxu0 0
        %6440 = vmatmul.mubr.bf16.gmra.mrb[0].mxu0 %v4154
        %v6441 = vpop.f32.mrb[0].mxu0
        %v6442 = vpop.f32.mrb[0].mxu0
        %v6443 = vpop.f32.mrb[0].mxu0
        %v6444 = vadd.f32 0.0, %v6443
        %v6445 = vpop.f32.mrb[0].mxu0
        %6446 = vmatprep.mubr.bf16.mxu0 0
        %6447 = vmatmul.mubr.bf16.gmra.mrb[0].mxu0 %v4155
        %v6448 = vpop.f32.mrb[0].mxu0
        %v6449 = vadd.f32 0.0, %v6448
        %v6450 = vpop.f32.mrb[0].mxu0
        %v6451 = vpop.f32.mrb[0].mxu0
        %v6452 = vpop.f32.mrb[0].mxu0
        %6453 = vmatprep.mubr.bf16.mxu0 0
        %6454 = vmatmul.mubr.bf16.gmra.mrb[0].mxu0 %v4156
        %v6455 = vpop.f32.mrb[0].mxu0
        %v6456 = vadd.f32 0.0, %v6455
        %v6457 = vpop.f32.mrb[0].mxu0
        %v6458 = vpop.f32.mrb[0].mxu0
        %v6459 = vadd.f32 0.0, %v6458
        %v6460 = vpop.f32.mrb[0].mxu0
        %6461 = vmatprep.mubr.bf16.mxu0 0
        %6462 = vmatmul.mubr.bf16.gmra.mrb[0].mxu0 %v4157
        %v6463 = vpop.f32.mrb[0].mxu0
        %v6464 = vpop.f32.mrb[0].mxu0
        %v6465 = vpop.f32.mrb[0].mxu0
        %v6466 = vadd.f32 0.0, %v6465
        %v6467 = vpop.f32.mrb[0].mxu0
        %6468 = vmatprep.mubr.bf16.mxu0 0
        %6469 = vmatmul.mubr.bf16.gmra.mrb[0].mxu0 %v4158
        %v6470 = vpop.f32.mrb[0].mxu0
        %v6471 = vadd.f32 0.0, %v6470
        %v6472 = vpop.f32.mrb[0].mxu0
        %v6473 = vpop.f32.mrb[0].mxu0
        %v6474 = vpop.f32.mrb[0].mxu0
        %6475 = vmatprep.mubr.bf16.mxu0 0
        %6476 = vmatmul.mubr.bf16.gmra.mrb[0].mxu0 %v4159
        %v6477 = vpop.f32.mrb[0].mxu0
        %v6478 = vadd.f32 0.0, %v6477
        %v6479 = vpop.f32.mrb[0].mxu0
        %v6480 = vpop.f32.mrb[0].mxu0
        %v6481 = vadd.f32 0.0, %v6480
        %v6482 = vpop.f32.mrb[0].mxu0
        %6483 = vmatprep.mubr.bf16.mxu0 0
        %6484 = vmatmul.mubr.bf16.gmra.mrb[0].mxu0 %v4160
        %v6485 = vpop.f32.mrb[0].mxu0
        %v6486 = vpop.f32.mrb[0].mxu0
        %v6487 = vpop.f32.mrb[0].mxu0
        %v6488 = vadd.f32 0.0, %v6487
        %v6489 = vpop.f32.mrb[0].mxu0
        %6490 = vmatprep.mubr.bf16.mxu0 0
        %6491 = vmatmul.mubr.bf16.gmra.mrb[0].mxu0 %v4161
        %v6492 = vpop.f32.mrb[0].mxu0
        %v6493 = vadd.f32 0.0, %v6492
        %v6494 = vpop.f32.mrb[0].mxu0
        %v6495 = vpop.f32.mrb[0].mxu0
        %v6496 = vpop.f32.mrb[0].mxu0
        %6497 = vmatprep.mubr.bf16.mxu0 0
        %6498 = vmatmul.mubr.bf16.gmra.mrb[0].mxu0 %v4162
        %v6499 = vpop.f32.mrb[0].mxu0
        %v6500 = vadd.f32 0.0, %v6499
        %v6501 = vpop.f32.mrb[0].mxu0
        %v6502 = vpop.f32.mrb[0].mxu0
        %v6503 = vadd.f32 0.0, %v6502
        %v6504 = vpop.f32.mrb[0].mxu0
        %6505 = vmatprep.mubr.bf16.mxu0 0
        %6506 = vmatmul.mubr.bf16.gmra.mrb[0].mxu0 %v4163
        %v6507 = vpop.f32.mrb[0].mxu0
        %v6508 = vpop.f32.mrb[0].mxu0
        %v6509 = vpop.f32.mrb[0].mxu0
        %v6510 = vadd.f32 0.0, %v6509
        %v6511 = vpop.f32.mrb[0].mxu0
        %6512 = vmatprep.mubr.bf16.mxu0 0
        %6513 = vmatmul.mubr.bf16.gmra.mrb[0].mxu0 %v4164
        %v6514 = vpop.f32.mrb[0].mxu0
        %v6515 = vadd.f32 0.0, %v6514
        %v6516 = vpop.f32.mrb[0].mxu0
        %v6517 = vpop.f32.mrb[0].mxu0
        %v6518 = vpop.f32.mrb[0].mxu0
        %6519 = vmatprep.mubr.bf16.mxu0 0
        %6520 = vmatmul.mubr.bf16.gmra.mrb[0].mxu0 %v4165
        %v6521 = vpop.f32.mrb[0].mxu0
        %v6522 = vadd.f32 0.0, %v6521
        %v6523 = vpop.f32.mrb[0].mxu0
        %v6524 = vpop.f32.mrb[0].mxu0
        %v6525 = vadd.f32 0.0, %v6524
        %v6526 = vpop.f32.mrb[0].mxu0
        %6527 = vmatprep.mubr.bf16.mxu0 0
        %6528 = vmatmul.mubr.bf16.gmra.mrb[0].mxu0 %v4166
        %v6529 = vpop.f32.mrb[0].mxu0
        %v6530 = vpop.f32.mrb[0].mxu0
        %v6531 = vpop.f32.mrb[0].mxu0
        %v6532 = vadd.f32 0.0, %v6531
        %v6533 = vpop.f32.mrb[0].mxu0
        %6534 = vmatprep.mubr.bf16.mxu0 0
        %6535 = vmatmul.mubr.bf16.gmra.mrb[0].mxu0 %v4167
        %v6536 = vpop.f32.mrb[0].mxu0
        %v6537 = vadd.f32 0.0, %v6536
        %v6538 = vpop.f32.mrb[0].mxu0
        %v6539 = vpop.f32.mrb[0].mxu0
        %v6540 = vpop.f32.mrb[0].mxu0
        %6541 = vmatprep.mubr.bf16.mxu0 0
        %6542 = vmatmul.mubr.bf16.gmra.mrb[0].mxu0 %v4168
        %v6543 = vpop.f32.mrb[0].mxu0
        %v6544 = vadd.f32 0.0, %v6543
        %v6545 = vpop.f32.mrb[0].mxu0
        %v6546 = vpop.f32.mrb[0].mxu0
        %v6547 = vadd.f32 0.0, %v6546
        %v6548 = vpop.f32.mrb[0].mxu0
        %6549 = vmatprep.mubr.bf16.mxu0 0
        %6550 = vmatmul.mubr.bf16.gmra.mrb[0].mxu0 %v4169
        %v6551 = vpop.f32.mrb[0].mxu0
        %v6552 = vpop.f32.mrb[0].mxu0
        %v6553 = vpop.f32.mrb[0].mxu0
        %v6554 = vadd.f32 0.0, %v6553
        %v6555 = vpop.f32.mrb[0].mxu0
        %6556 = vmatprep.mubr.bf16.mxu0 0
        %6557 = vmatmul.mubr.bf16.gmra.mrb[0].mxu0 %v4170
        %v6558 = vpop.f32.mrb[0].mxu0
        %v6559 = vadd.f32 0.0, %v6558
        %v6560 = vpop.f32.mrb[0].mxu0
        %v6561 = vpop.f32.mrb[0].mxu0
        %v6562 = vpop.f32.mrb[0].mxu0
        %6563 = vdwg.mxu0
        %v6564 = vadd.f32 %v6258, %v6390
        %v6565 = vadd.f32 %v6259, %v6393
        %v6566 = vadd.f32 %v6260, %v6400
        %v6567 = vadd.f32 %v6261, %v6405
        %v6568 = vadd.f32 %v6262, %v6412
        %v6569 = vadd.f32 %v6263, %v6415
        %v6570 = vadd.f32 %v6264, %v6422
        %v6571 = vadd.f32 %v6265, %v6427
        %v6572 = vadd.f32 %v6266, %v6434
        %v6573 = vadd.f32 %v6267, %v6437
        %v6574 = vadd.f32 %v6268, %v6444
        %v6575 = vadd.f32 %v6269, %v6449
        %v6576 = vadd.f32 %v6270, %v6456
        %v6577 = vadd.f32 %v6271, %v6459
        %v6578 = vadd.f32 %v6272, %v6466
        %v6579 = vadd.f32 %v6273, %v6471
        %v6580 = vadd.f32 %v6274, %v6478
        %v6581 = vadd.f32 %v6275, %v6481
        %v6582 = vadd.f32 %v6276, %v6488
        %v6583 = vadd.f32 %v6277, %v6493
        %v6584 = vadd.f32 %v6278, %v6500
        %v6585 = vadd.f32 %v6279, %v6503
        %v6586 = vadd.f32 %v6280, %v6510
        %v6587 = vadd.f32 %v6281, %v6515
        %v6588 = vadd.f32 %v6282, %v6522
        %v6589 = vadd.f32 %v6283, %v6525
        %v6590 = vadd.f32 %v6284, %v6532
        %v6591 = vadd.f32 %v6285, %v6537
        %v6592 = vadd.f32 %v6286, %v6544
        %v6593 = vadd.f32 %v6287, %v6547
        %v6594 = vadd.f32 %v6288, %v6554
        %v6595 = vadd.f32 %v6289, %v6559
        %s6596 = scalar_lea.vmem [#allocation8], 448
        %v6597 = vld [vmem:[%s6596] sm:$0xf]
        %v6598 = vld [vmem:[%s6596 + $0x4] sm:$0xf]
        %v6599 = vld [vmem:[%s6596 + $0x8] sm:$0xf]
        %v6600 = vld [vmem:[%s6596 + $0xc] sm:$0xf]
        %v6601 = vld [vmem:[%s6596 + $0x10] sm:$0xf]
        %v6602 = vld [vmem:[%s6596 + $0x14] sm:$0xf]
        %v6603 = vld [vmem:[%s6596 + $0x18] sm:$0xf]
        %v6604 = vld [vmem:[%s6596 + $0x1c] sm:$0xf]
        %v6605 = vld [vmem:[%s6596 + $0x20] sm:$0xf]
        %v6606 = vld [vmem:[%s6596 + $0x24] sm:$0xf]
        %v6607 = vld [vmem:[%s6596 + $0x28] sm:$0xf]
        %v6608 = vld [vmem:[%s6596 + $0x2c] sm:$0xf]
        %v6609 = vld [vmem:[%s6596 + $0x30] sm:$0xf]
        %v6610 = vld [vmem:[%s6596 + $0x34] sm:$0xf]
        %v6611 = vld [vmem:[%s6596 + $0x38] sm:$0xf]
        %v6612 = vld [vmem:[%s6596 + $0x3c] sm:$0xf]
        %v6629 = vunpack.c.l.b16 %v6597
        %v6630 = vunpack.c.l.b16 %v6598
        %v6631 = vunpack.c.l.b16 %v6599
        %v6632 = vunpack.c.l.b16 %v6600
        %v6633 = vunpack.c.l.b16 %v6601
        %v6634 = vunpack.c.l.b16 %v6602
        %v6635 = vunpack.c.l.b16 %v6603
        %v6636 = vunpack.c.l.b16 %v6604
        %v6637 = vunpack.c.l.b16 %v6605
        %v6638 = vunpack.c.l.b16 %v6606
        %v6639 = vunpack.c.l.b16 %v6607
        %v6640 = vunpack.c.l.b16 %v6608
        %v6641 = vunpack.c.l.b16 %v6609
        %v6642 = vunpack.c.l.b16 %v6610
        %v6643 = vunpack.c.l.b16 %v6611
        %v6644 = vunpack.c.l.b16 %v6612
        %v6645 = vpack.c.b16 %v6630, %v6629
        %v6646 = vpack.c.b16 %v6632, %v6631
        %v6647 = vpack.c.b16 %v6634, %v6633
        %v6648 = vpack.c.b16 %v6636, %v6635
        %v6649 = vpack.c.b16 %v6638, %v6637
        %v6650 = vpack.c.b16 %v6640, %v6639
        %v6651 = vpack.c.b16 %v6642, %v6641
        %v6652 = vpack.c.b16 %v6644, %v6643
        %6661 = vmatprep.subr.bf16.mxu0 0
        %6662 = vmatpush1.bf16.msra.mxu0 %v6645
        %6663 = vmatprep.subr.bf16.mxu0 0
        %6664 = vmatpush1.bf16.msra.mxu0 %v6646
        %6665 = vmatprep.subr.bf16.mxu0 0
        %6666 = vmatpush1.bf16.msra.mxu0 %v6647
        %6667 = vmatprep.subr.bf16.mxu0 0
        %6668 = vmatpush1.bf16.msra.mxu0 %v6648
        %6669 = vmatprep.subr.bf16.mxu0 0
        %6670 = vmatpush1.bf16.msra.mxu0 %v6649
        %6671 = vmatprep.subr.bf16.mxu0 0
        %6672 = vmatpush1.bf16.msra.mxu0 %v6650
        %6673 = vmatprep.subr.bf16.mxu0 0
        %6674 = vmatpush1.bf16.msra.mxu0 %v6651
        %6675 = vmatprep.subr.bf16.mxu0 0
        %6676 = vmatpush1.bf16.msra.mxu0 %v6652
        %6677 = vmatprep.subr.bf16.mxu0 0
        %6678 = vmatpush1.bf16.msra.mxu0 0
        %6679 = vmatprep.subr.bf16.mxu0 0
        %6680 = vmatpush1.bf16.msra.mxu0 0
        %6681 = vmatprep.subr.bf16.mxu0 0
        %6682 = vmatpush1.bf16.msra.mxu0 0
        %6683 = vmatprep.subr.bf16.mxu0 0
        %6684 = vmatpush1.bf16.msra.mxu0 0
        %6685 = vmatprep.subr.bf16.mxu0 0
        %6686 = vmatpush1.bf16.msra.mxu0 0
        %6687 = vmatprep.subr.bf16.mxu0 0
        %6688 = vmatpush1.bf16.msra.mxu0 0
        %6689 = vmatprep.subr.bf16.mxu0 0
        %6690 = vmatpush1.bf16.msra.mxu0 0
        %6691 = vmatprep.subr.bf16.mxu0 0
        %6692 = vmatpush1.bf16.msra.mxu0 0
        %6693 = vmatprep.mubr.bf16.mxu0 0
        %6694 = vmatmul.mubr.bf16.gmra.mrb[0].mxu0 %v4174
        %v6695 = vpop.f32.mrb[0].mxu0
        %v6696 = vadd.f32 0.0, %v6695
        %v6697 = vpop.f32.mrb[0].mxu0
        %v6698 = vpop.f32.mrb[0].mxu0
        %v6699 = vadd.f32 0.0, %v6698
        %v6700 = vpop.f32.mrb[0].mxu0
        %6701 = vmatprep.mubr.bf16.mxu0 0
        %6702 = vmatmul.mubr.bf16.gmra.mrb[0].mxu0 %v4175
        %v6703 = vpop.f32.mrb[0].mxu0
        %v6704 = vpop.f32.mrb[0].mxu0
        %v6705 = vpop.f32.mrb[0].mxu0
        %v6706 = vadd.f32 0.0, %v6705
        %v6707 = vpop.f32.mrb[0].mxu0
        %6708 = vmatprep.mubr.bf16.mxu0 0
        %6709 = vmatmul.mubr.bf16.gmra.mrb[0].mxu0 %v4176
        %v6710 = vpop.f32.mrb[0].mxu0
        %v6711 = vadd.f32 0.0, %v6710
        %v6712 = vpop.f32.mrb[0].mxu0
        %v6713 = vpop.f32.mrb[0].mxu0
        %v6714 = vpop.f32.mrb[0].mxu0
        %6715 = vmatprep.mubr.bf16.mxu0 0
        %6716 = vmatmul.mubr.bf16.gmra.mrb[0].mxu0 %v4177
        %v6717 = vpop.f32.mrb[0].mxu0
        %v6718 = vadd.f32 0.0, %v6717
        %v6719 = vpop.f32.mrb[0].mxu0
        %v6720 = vpop.f32.mrb[0].mxu0
        %v6721 = vadd.f32 0.0, %v6720
        %v6722 = vpop.f32.mrb[0].mxu0
        %6723 = vmatprep.mubr.bf16.mxu0 0
        %6724 = vmatmul.mubr.bf16.gmra.mrb[0].mxu0 %v4178
        %v6725 = vpop.f32.mrb[0].mxu0
        %v6726 = vpop.f32.mrb[0].mxu0
        %v6727 = vpop.f32.mrb[0].mxu0
        %v6728 = vadd.f32 0.0, %v6727
        %v6729 = vpop.f32.mrb[0].mxu0
        %6730 = vmatprep.mubr.bf16.mxu0 0
        %6731 = vmatmul.mubr.bf16.gmra.mrb[0].mxu0 %v4179
        %v6732 = vpop.f32.mrb[0].mxu0
        %v6733 = vadd.f32 0.0, %v6732
        %v6734 = vpop.f32.mrb[0].mxu0
        %v6735 = vpop.f32.mrb[0].mxu0
        %v6736 = vpop.f32.mrb[0].mxu0
        %6737 = vmatprep.mubr.bf16.mxu0 0
        %6738 = vmatmul.mubr.bf16.gmra.mrb[0].mxu0 %v4180
        %v6739 = vpop.f32.mrb[0].mxu0
        %v6740 = vadd.f32 0.0, %v6739
        %v6741 = vpop.f32.mrb[0].mxu0
        %v6742 = vpop.f32.mrb[0].mxu0
        %v6743 = vadd.f32 0.0, %v6742
        %v6744 = vpop.f32.mrb[0].mxu0
        %6745 = vmatprep.mubr.bf16.mxu0 0
        %6746 = vmatmul.mubr.bf16.gmra.mrb[0].mxu0 %v4181
        %v6747 = vpop.f32.mrb[0].mxu0
        %v6748 = vpop.f32.mrb[0].mxu0
        %v6749 = vpop.f32.mrb[0].mxu0
        %v6750 = vadd.f32 0.0, %v6749
        %v6751 = vpop.f32.mrb[0].mxu0
        %6752 = vmatprep.mubr.bf16.mxu0 0
        %6753 = vmatmul.mubr.bf16.gmra.mrb[0].mxu0 %v4182
        %v6754 = vpop.f32.mrb[0].mxu0
        %v6755 = vadd.f32 0.0, %v6754
        %v6756 = vpop.f32.mrb[0].mxu0
        %v6757 = vpop.f32.mrb[0].mxu0
        %v6758 = vpop.f32.mrb[0].mxu0
        %6759 = vmatprep.mubr.bf16.mxu0 0
        %6760 = vmatmul.mubr.bf16.gmra.mrb[0].mxu0 %v4183
        %v6761 = vpop.f32.mrb[0].mxu0
        %v6762 = vadd.f32 0.0, %v6761
        %v6763 = vpop.f32.mrb[0].mxu0
        %v6764 = vpop.f32.mrb[0].mxu0
        %v6765 = vadd.f32 0.0, %v6764
        %v6766 = vpop.f32.mrb[0].mxu0
        %6767 = vmatprep.mubr.bf16.mxu0 0
        %6768 = vmatmul.mubr.bf16.gmra.mrb[0].mxu0 %v4184
        %v6769 = vpop.f32.mrb[0].mxu0
        %v6770 = vpop.f32.mrb[0].mxu0
        %v6771 = vpop.f32.mrb[0].mxu0
        %v6772 = vadd.f32 0.0, %v6771
        %v6773 = vpop.f32.mrb[0].mxu0
        %6774 = vmatprep.mubr.bf16.mxu0 0
        %6775 = vmatmul.mubr.bf16.gmra.mrb[0].mxu0 %v4185
        %v6776 = vpop.f32.mrb[0].mxu0
        %v6777 = vadd.f32 0.0, %v6776
        %v6778 = vpop.f32.mrb[0].mxu0
        %v6779 = vpop.f32.mrb[0].mxu0
        %v6780 = vpop.f32.mrb[0].mxu0
        %6781 = vmatprep.mubr.bf16.mxu0 0
        %6782 = vmatmul.mubr.bf16.gmra.mrb[0].mxu0 %v4186
        %v6783 = vpop.f32.mrb[0].mxu0
        %v6784 = vadd.f32 0.0, %v6783
        %v6785 = vpop.f32.mrb[0].mxu0
        %v6786 = vpop.f32.mrb[0].mxu0
        %v6787 = vadd.f32 0.0, %v6786
        %v6788 = vpop.f32.mrb[0].mxu0
        %6789 = vmatprep.mubr.bf16.mxu0 0
        %6790 = vmatmul.mubr.bf16.gmra.mrb[0].mxu0 %v4187
        %v6791 = vpop.f32.mrb[0].mxu0
        %v6792 = vpop.f32.mrb[0].mxu0
        %v6793 = vpop.f32.mrb[0].mxu0
        %v6794 = vadd.f32 0.0, %v6793
        %v6795 = vpop.f32.mrb[0].mxu0
        %6796 = vmatprep.mubr.bf16.mxu0 0
        %6797 = vmatmul.mubr.bf16.gmra.mrb[0].mxu0 %v4188
        %v6798 = vpop.f32.mrb[0].mxu0
        %v6799 = vadd.f32 0.0, %v6798
        %v6800 = vpop.f32.mrb[0].mxu0
        %v6801 = vpop.f32.mrb[0].mxu0
        %v6802 = vpop.f32.mrb[0].mxu0
        %6803 = vmatprep.mubr.bf16.mxu0 0
        %6804 = vmatmul.mubr.bf16.gmra.mrb[0].mxu0 %v4189
        %v6805 = vpop.f32.mrb[0].mxu0
        %v6806 = vadd.f32 0.0, %v6805
        %v6807 = vpop.f32.mrb[0].mxu0
        %v6808 = vpop.f32.mrb[0].mxu0
        %v6809 = vadd.f32 0.0, %v6808
        %v6810 = vpop.f32.mrb[0].mxu0
        %6811 = vmatprep.mubr.bf16.mxu0 0
        %6812 = vmatmul.mubr.bf16.gmra.mrb[0].mxu0 %v4190
        %v6813 = vpop.f32.mrb[0].mxu0
        %v6814 = vpop.f32.mrb[0].mxu0
        %v6815 = vpop.f32.mrb[0].mxu0
        %v6816 = vadd.f32 0.0, %v6815
        %v6817 = vpop.f32.mrb[0].mxu0
        %6818 = vmatprep.mubr.bf16.mxu0 0
        %6819 = vmatmul.mubr.bf16.gmra.mrb[0].mxu0 %v4191
        %v6820 = vpop.f32.mrb[0].mxu0
        %v6821 = vadd.f32 0.0, %v6820
        %v6822 = vpop.f32.mrb[0].mxu0
        %v6823 = vpop.f32.mrb[0].mxu0
        %v6824 = vpop.f32.mrb[0].mxu0
        %6825 = vmatprep.mubr.bf16.mxu0 0
        %6826 = vmatmul.mubr.bf16.gmra.mrb[0].mxu0 %v4192
        %v6827 = vpop.f32.mrb[0].mxu0
        %v6828 = vadd.f32 0.0, %v6827
        %v6829 = vpop.f32.mrb[0].mxu0
        %v6830 = vpop.f32.mrb[0].mxu0
        %v6831 = vadd.f32 0.0, %v6830
        %v6832 = vpop.f32.mrb[0].mxu0
        %6833 = vmatprep.mubr.bf16.mxu0 0
        %6834 = vmatmul.mubr.bf16.gmra.mrb[0].mxu0 %v4193
        %v6835 = vpop.f32.mrb[0].mxu0
        %v6836 = vpop.f32.mrb[0].mxu0
        %v6837 = vpop.f32.mrb[0].mxu0
        %v6838 = vadd.f32 0.0, %v6837
        %v6839 = vpop.f32.mrb[0].mxu0
        %6840 = vmatprep.mubr.bf16.mxu0 0
        %6841 = vmatmul.mubr.bf16.gmra.mrb[0].mxu0 %v4194
        %v6842 = vpop.f32.mrb[0].mxu0
        %v6843 = vadd.f32 0.0, %v6842
        %v6844 = vpop.f32.mrb[0].mxu0
        %v6845 = vpop.f32.mrb[0].mxu0
        %v6846 = vpop.f32.mrb[0].mxu0
        %6847 = vmatprep.mubr.bf16.mxu0 0
        %6848 = vmatmul.mubr.bf16.gmra.mrb[0].mxu0 %v4195
        %v6849 = vpop.f32.mrb[0].mxu0
        %v6850 = vadd.f32 0.0, %v6849
        %v6851 = vpop.f32.mrb[0].mxu0
        %v6852 = vpop.f32.mrb[0].mxu0
        %v6853 = vadd.f32 0.0, %v6852
        %v6854 = vpop.f32.mrb[0].mxu0
        %6855 = vmatprep.mubr.bf16.mxu0 0
        %6856 = vmatmul.mubr.bf16.gmra.mrb[0].mxu0 %v4196
        %v6857 = vpop.f32.mrb[0].mxu0
        %v6858 = vpop.f32.mrb[0].mxu0
        %v6859 = vpop.f32.mrb[0].mxu0
        %v6860 = vadd.f32 0.0, %v6859
        %v6861 = vpop.f32.mrb[0].mxu0
        %6862 = vmatprep.mubr.bf16.mxu0 0
        %6863 = vmatmul.mubr.bf16.gmra.mrb[0].mxu0 %v4197
        %v6864 = vpop.f32.mrb[0].mxu0
        %v6865 = vadd.f32 0.0, %v6864
        %v6866 = vpop.f32.mrb[0].mxu0
        %v6867 = vpop.f32.mrb[0].mxu0
        %v6868 = vpop.f32.mrb[0].mxu0
        %6869 = vdwg.mxu0
        %v6870 = vadd.f32 %v6564, %v6696
        %v6871 = vadd.f32 %v6565, %v6699
        %v6872 = vadd.f32 %v6566, %v6706
        %v6873 = vadd.f32 %v6567, %v6711
        %v6874 = vadd.f32 %v6568, %v6718
        %v6875 = vadd.f32 %v6569, %v6721
        %v6876 = vadd.f32 %v6570, %v6728
        %v6877 = vadd.f32 %v6571, %v6733
        %v6878 = vadd.f32 %v6572, %v6740
        %v6879 = vadd.f32 %v6573, %v6743
        %v6880 = vadd.f32 %v6574, %v6750
        %v6881 = vadd.f32 %v6575, %v6755
        %v6882 = vadd.f32 %v6576, %v6762
        %v6883 = vadd.f32 %v6577, %v6765
        %v6884 = vadd.f32 %v6578, %v6772
        %v6885 = vadd.f32 %v6579, %v6777
        %v6886 = vadd.f32 %v6580, %v6784
        %v6887 = vadd.f32 %v6581, %v6787
        %v6888 = vadd.f32 %v6582, %v6794
        %v6889 = vadd.f32 %v6583, %v6799
        %v6890 = vadd.f32 %v6584, %v6806
        %v6891 = vadd.f32 %v6585, %v6809
        %v6892 = vadd.f32 %v6586, %v6816
        %v6893 = vadd.f32 %v6587, %v6821
        %v6894 = vadd.f32 %v6588, %v6828
        %v6895 = vadd.f32 %v6589, %v6831
        %v6896 = vadd.f32 %v6590, %v6838
        %v6897 = vadd.f32 %v6591, %v6843
        %v6898 = vadd.f32 %v6592, %v6850
        %v6899 = vadd.f32 %v6593, %v6853
        %v6900 = vadd.f32 %v6594, %v6860
        %v6901 = vadd.f32 %v6595, %v6865
        %s6902 = scalar_lea.vmem [#allocation8], 512
        %v6903 = vld [vmem:[%s6902] sm:$0xf]
        %v6904 = vld [vmem:[%s6902 + $0x4] sm:$0xf]
        %v6905 = vld [vmem:[%s6902 + $0x8] sm:$0xf]
        %v6906 = vld [vmem:[%s6902 + $0xc] sm:$0xf]
        %v6907 = vld [vmem:[%s6902 + $0x10] sm:$0xf]
        %v6908 = vld [vmem:[%s6902 + $0x14] sm:$0xf]
        %v6909 = vld [vmem:[%s6902 + $0x18] sm:$0xf]
        %v6910 = vld [vmem:[%s6902 + $0x1c] sm:$0xf]
        %v6911 = vld [vmem:[%s6902 + $0x20] sm:$0xf]
        %v6912 = vld [vmem:[%s6902 + $0x24] sm:$0xf]
        %v6913 = vld [vmem:[%s6902 + $0x28] sm:$0xf]
        %v6914 = vld [vmem:[%s6902 + $0x2c] sm:$0xf]
        %v6915 = vld [vmem:[%s6902 + $0x30] sm:$0xf]
        %v6916 = vld [vmem:[%s6902 + $0x34] sm:$0xf]
        %v6917 = vld [vmem:[%s6902 + $0x38] sm:$0xf]
        %v6918 = vld [vmem:[%s6902 + $0x3c] sm:$0xf]
        %v6935 = vunpack.c.l.b16 %v6903
        %v6936 = vunpack.c.l.b16 %v6904
        %v6937 = vunpack.c.l.b16 %v6905
        %v6938 = vunpack.c.l.b16 %v6906
        %v6939 = vunpack.c.l.b16 %v6907
        %v6940 = vunpack.c.l.b16 %v6908
        %v6941 = vunpack.c.l.b16 %v6909
        %v6942 = vunpack.c.l.b16 %v6910
        %v6943 = vunpack.c.l.b16 %v6911
        %v6944 = vunpack.c.l.b16 %v6912
        %v6945 = vunpack.c.l.b16 %v6913
        %v6946 = vunpack.c.l.b16 %v6914
        %v6947 = vunpack.c.l.b16 %v6915
        %v6948 = vunpack.c.l.b16 %v6916
        %v6949 = vunpack.c.l.b16 %v6917
        %v6950 = vunpack.c.l.b16 %v6918
        %v6951 = vpack.c.b16 %v6936, %v6935
        %v6952 = vpack.c.b16 %v6938, %v6937
        %v6953 = vpack.c.b16 %v6940, %v6939
        %v6954 = vpack.c.b16 %v6942, %v6941
        %v6955 = vpack.c.b16 %v6944, %v6943
        %v6956 = vpack.c.b16 %v6946, %v6945
        %v6957 = vpack.c.b16 %v6948, %v6947
        %v6958 = vpack.c.b16 %v6950, %v6949
        %6967 = vmatprep.subr.bf16.mxu0 0
        %6968 = vmatpush1.bf16.msra.mxu0 %v6951
        %6969 = vmatprep.subr.bf16.mxu0 0
        %6970 = vmatpush1.bf16.msra.mxu0 %v6952
        %6971 = vmatprep.subr.bf16.mxu0 0
        %6972 = vmatpush1.bf16.msra.mxu0 %v6953
        %6973 = vmatprep.subr.bf16.mxu0 0
        %6974 = vmatpush1.bf16.msra.mxu0 %v6954
        %6975 = vmatprep.subr.bf16.mxu0 0
        %6976 = vmatpush1.bf16.msra.mxu0 %v6955
        %6977 = vmatprep.subr.bf16.mxu0 0
        %6978 = vmatpush1.bf16.msra.mxu0 %v6956
        %6979 = vmatprep.subr.bf16.mxu0 0
        %6980 = vmatpush1.bf16.msra.mxu0 %v6957
        %6981 = vmatprep.subr.bf16.mxu0 0
        %6982 = vmatpush1.bf16.msra.mxu0 %v6958
        %6983 = vmatprep.subr.bf16.mxu0 0
        %6984 = vmatpush1.bf16.msra.mxu0 0
        %6985 = vmatprep.subr.bf16.mxu0 0
        %6986 = vmatpush1.bf16.msra.mxu0 0
        %6987 = vmatprep.subr.bf16.mxu0 0
        %6988 = vmatpush1.bf16.msra.mxu0 0
        %6989 = vmatprep.subr.bf16.mxu0 0
        %6990 = vmatpush1.bf16.msra.mxu0 0
        %6991 = vmatprep.subr.bf16.mxu0 0
        %6992 = vmatpush1.bf16.msra.mxu0 0
        %6993 = vmatprep.subr.bf16.mxu0 0
        %6994 = vmatpush1.bf16.msra.mxu0 0
        %6995 = vmatprep.subr.bf16.mxu0 0
        %6996 = vmatpush1.bf16.msra.mxu0 0
        %6997 = vmatprep.subr.bf16.mxu0 0
        %6998 = vmatpush1.bf16.msra.mxu0 0
        %6999 = vmatprep.mubr.bf16.mxu0 0
        %7000 = vmatmul.mubr.bf16.gmra.mrb[0].mxu0 %v4201
        %v7001 = vpop.f32.mrb[0].mxu0
        %v7002 = vadd.f32 0.0, %v7001
        %v7003 = vpop.f32.mrb[0].mxu0
        %v7004 = vpop.f32.mrb[0].mxu0
        %v7005 = vadd.f32 0.0, %v7004
        %v7006 = vpop.f32.mrb[0].mxu0
        %7007 = vmatprep.mubr.bf16.mxu0 0
        %7008 = vmatmul.mubr.bf16.gmra.mrb[0].mxu0 %v4202
        %v7009 = vpop.f32.mrb[0].mxu0
        %v7010 = vpop.f32.mrb[0].mxu0
        %v7011 = vpop.f32.mrb[0].mxu0
        %v7012 = vadd.f32 0.0, %v7011
        %v7013 = vpop.f32.mrb[0].mxu0
        %7014 = vmatprep.mubr.bf16.mxu0 0
        %7015 = vmatmul.mubr.bf16.gmra.mrb[0].mxu0 %v4203
        %v7016 = vpop.f32.mrb[0].mxu0
        %v7017 = vadd.f32 0.0, %v7016
        %v7018 = vpop.f32.mrb[0].mxu0
        %v7019 = vpop.f32.mrb[0].mxu0
        %v7020 = vpop.f32.mrb[0].mxu0
        %7021 = vmatprep.mubr.bf16.mxu0 0
        %7022 = vmatmul.mubr.bf16.gmra.mrb[0].mxu0 %v4204
        %v7023 = vpop.f32.mrb[0].mxu0
        %v7024 = vadd.f32 0.0, %v7023
        %v7025 = vpop.f32.mrb[0].mxu0
        %v7026 = vpop.f32.mrb[0].mxu0
        %v7027 = vadd.f32 0.0, %v7026
        %v7028 = vpop.f32.mrb[0].mxu0
        %7029 = vmatprep.mubr.bf16.mxu0 0
        %7030 = vmatmul.mubr.bf16.gmra.mrb[0].mxu0 %v4205
        %v7031 = vpop.f32.mrb[0].mxu0
        %v7032 = vpop.f32.mrb[0].mxu0
        %v7033 = vpop.f32.mrb[0].mxu0
        %v7034 = vadd.f32 0.0, %v7033
        %v7035 = vpop.f32.mrb[0].mxu0
        %7036 = vmatprep.mubr.bf16.mxu0 0
        %7037 = vmatmul.mubr.bf16.gmra.mrb[0].mxu0 %v4206
        %v7038 = vpop.f32.mrb[0].mxu0
        %v7039 = vadd.f32 0.0, %v7038
        %v7040 = vpop.f32.mrb[0].mxu0
        %v7041 = vpop.f32.mrb[0].mxu0
        %v7042 = vpop.f32.mrb[0].mxu0
        %7043 = vmatprep.mubr.bf16.mxu0 0
        %7044 = vmatmul.mubr.bf16.gmra.mrb[0].mxu0 %v4207
        %v7045 = vpop.f32.mrb[0].mxu0
        %v7046 = vadd.f32 0.0, %v7045
        %v7047 = vpop.f32.mrb[0].mxu0
        %v7048 = vpop.f32.mrb[0].mxu0
        %v7049 = vadd.f32 0.0, %v7048
        %v7050 = vpop.f32.mrb[0].mxu0
        %7051 = vmatprep.mubr.bf16.mxu0 0
        %7052 = vmatmul.mubr.bf16.gmra.mrb[0].mxu0 %v4208
        %v7053 = vpop.f32.mrb[0].mxu0
        %v7054 = vpop.f32.mrb[0].mxu0
        %v7055 = vpop.f32.mrb[0].mxu0
        %v7056 = vadd.f32 0.0, %v7055
        %v7057 = vpop.f32.mrb[0].mxu0
        %7058 = vmatprep.mubr.bf16.mxu0 0
        %7059 = vmatmul.mubr.bf16.gmra.mrb[0].mxu0 %v4209
        %v7060 = vpop.f32.mrb[0].mxu0
        %v7061 = vadd.f32 0.0, %v7060
        %v7062 = vpop.f32.mrb[0].mxu0
        %v7063 = vpop.f32.mrb[0].mxu0
        %v7064 = vpop.f32.mrb[0].mxu0
        %7065 = vmatprep.mubr.bf16.mxu0 0
        %7066 = vmatmul.mubr.bf16.gmra.mrb[0].mxu0 %v4210
        %v7067 = vpop.f32.mrb[0].mxu0
        %v7068 = vadd.f32 0.0, %v7067
        %v7069 = vpop.f32.mrb[0].mxu0
        %v7070 = vpop.f32.mrb[0].mxu0
        %v7071 = vadd.f32 0.0, %v7070
        %v7072 = vpop.f32.mrb[0].mxu0
        %7073 = vmatprep.mubr.bf16.mxu0 0
        %7074 = vmatmul.mubr.bf16.gmra.mrb[0].mxu0 %v4211
        %v7075 = vpop.f32.mrb[0].mxu0
        %v7076 = vpop.f32.mrb[0].mxu0
        %v7077 = vpop.f32.mrb[0].mxu0
        %v7078 = vadd.f32 0.0, %v7077
        %v7079 = vpop.f32.mrb[0].mxu0
        %7080 = vmatprep.mubr.bf16.mxu0 0
        %7081 = vmatmul.mubr.bf16.gmra.mrb[0].mxu0 %v4212
        %v7082 = vpop.f32.mrb[0].mxu0
        %v7083 = vadd.f32 0.0, %v7082
        %v7084 = vpop.f32.mrb[0].mxu0
        %v7085 = vpop.f32.mrb[0].mxu0
        %v7086 = vpop.f32.mrb[0].mxu0
        %7087 = vmatprep.mubr.bf16.mxu0 0
        %7088 = vmatmul.mubr.bf16.gmra.mrb[0].mxu0 %v4213
        %v7089 = vpop.f32.mrb[0].mxu0
        %v7090 = vadd.f32 0.0, %v7089
        %v7091 = vpop.f32.mrb[0].mxu0
        %v7092 = vpop.f32.mrb[0].mxu0
        %v7093 = vadd.f32 0.0, %v7092
        %v7094 = vpop.f32.mrb[0].mxu0
        %7095 = vmatprep.mubr.bf16.mxu0 0
        %7096 = vmatmul.mubr.bf16.gmra.mrb[0].mxu0 %v4214
        %v7097 = vpop.f32.mrb[0].mxu0
        %v7098 = vpop.f32.mrb[0].mxu0
        %v7099 = vpop.f32.mrb[0].mxu0
        %v7100 = vadd.f32 0.0, %v7099
        %v7101 = vpop.f32.mrb[0].mxu0
        %7102 = vmatprep.mubr.bf16.mxu0 0
        %7103 = vmatmul.mubr.bf16.gmra.mrb[0].mxu0 %v4215
        %v7104 = vpop.f32.mrb[0].mxu0
        %v7105 = vadd.f32 0.0, %v7104
        %v7106 = vpop.f32.mrb[0].mxu0
        %v7107 = vpop.f32.mrb[0].mxu0
        %v7108 = vpop.f32.mrb[0].mxu0
        %7109 = vmatprep.mubr.bf16.mxu0 0
        %7110 = vmatmul.mubr.bf16.gmra.mrb[0].mxu0 %v4216
        %v7111 = vpop.f32.mrb[0].mxu0
        %v7112 = vadd.f32 0.0, %v7111
        %v7113 = vpop.f32.mrb[0].mxu0
        %v7114 = vpop.f32.mrb[0].mxu0
        %v7115 = vadd.f32 0.0, %v7114
        %v7116 = vpop.f32.mrb[0].mxu0
        %7117 = vmatprep.mubr.bf16.mxu0 0
        %7118 = vmatmul.mubr.bf16.gmra.mrb[0].mxu0 %v4217
        %v7119 = vpop.f32.mrb[0].mxu0
        %v7120 = vpop.f32.mrb[0].mxu0
        %v7121 = vpop.f32.mrb[0].mxu0
        %v7122 = vadd.f32 0.0, %v7121
        %v7123 = vpop.f32.mrb[0].mxu0
        %7124 = vmatprep.mubr.bf16.mxu0 0
        %7125 = vmatmul.mubr.bf16.gmra.mrb[0].mxu0 %v4218
        %v7126 = vpop.f32.mrb[0].mxu0
        %v7127 = vadd.f32 0.0, %v7126
        %v7128 = vpop.f32.mrb[0].mxu0
        %v7129 = vpop.f32.mrb[0].mxu0
        %v7130 = vpop.f32.mrb[0].mxu0
        %7131 = vmatprep.mubr.bf16.mxu0 0
        %7132 = vmatmul.mubr.bf16.gmra.mrb[0].mxu0 %v4219
        %v7133 = vpop.f32.mrb[0].mxu0
        %v7134 = vadd.f32 0.0, %v7133
        %v7135 = vpop.f32.mrb[0].mxu0
        %v7136 = vpop.f32.mrb[0].mxu0
        %v7137 = vadd.f32 0.0, %v7136
        %v7138 = vpop.f32.mrb[0].mxu0
        %7139 = vmatprep.mubr.bf16.mxu0 0
        %7140 = vmatmul.mubr.bf16.gmra.mrb[0].mxu0 %v4220
        %v7141 = vpop.f32.mrb[0].mxu0
        %v7142 = vpop.f32.mrb[0].mxu0
        %v7143 = vpop.f32.mrb[0].mxu0
        %v7144 = vadd.f32 0.0, %v7143
        %v7145 = vpop.f32.mrb[0].mxu0
        %7146 = vmatprep.mubr.bf16.mxu0 0
        %7147 = vmatmul.mubr.bf16.gmra.mrb[0].mxu0 %v4221
        %v7148 = vpop.f32.mrb[0].mxu0
        %v7149 = vadd.f32 0.0, %v7148
        %v7150 = vpop.f32.mrb[0].mxu0
        %v7151 = vpop.f32.mrb[0].mxu0
        %v7152 = vpop.f32.mrb[0].mxu0
        %7153 = vmatprep.mubr.bf16.mxu0 0
        %7154 = vmatmul.mubr.bf16.gmra.mrb[0].mxu0 %v4222
        %v7155 = vpop.f32.mrb[0].mxu0
        %v7156 = vadd.f32 0.0, %v7155
        %v7157 = vpop.f32.mrb[0].mxu0
        %v7158 = vpop.f32.mrb[0].mxu0
        %v7159 = vadd.f32 0.0, %v7158
        %v7160 = vpop.f32.mrb[0].mxu0
        %7161 = vmatprep.mubr.bf16.mxu0 0
        %7162 = vmatmul.mubr.bf16.gmra.mrb[0].mxu0 %v4223
        %v7163 = vpop.f32.mrb[0].mxu0
        %v7164 = vpop.f32.mrb[0].mxu0
        %v7165 = vpop.f32.mrb[0].mxu0
        %v7166 = vadd.f32 0.0, %v7165
        %v7167 = vpop.f32.mrb[0].mxu0
        %7168 = vmatprep.mubr.bf16.mxu0 0
        %7169 = vmatmul.mubr.bf16.gmra.mrb[0].mxu0 %v4224
        %v7170 = vpop.f32.mrb[0].mxu0
        %v7171 = vadd.f32 0.0, %v7170
        %v7172 = vpop.f32.mrb[0].mxu0
        %v7173 = vpop.f32.mrb[0].mxu0
        %v7174 = vpop.f32.mrb[0].mxu0
        %7175 = vdwg.mxu0
        %v7176 = vadd.f32 %v6870, %v7002
        %v7177 = vadd.f32 %v6871, %v7005
        %v7178 = vadd.f32 %v6872, %v7012
        %v7179 = vadd.f32 %v6873, %v7017
        %v7180 = vadd.f32 %v6874, %v7024
        %v7181 = vadd.f32 %v6875, %v7027
        %v7182 = vadd.f32 %v6876, %v7034
        %v7183 = vadd.f32 %v6877, %v7039
        %v7184 = vadd.f32 %v6878, %v7046
        %v7185 = vadd.f32 %v6879, %v7049
        %v7186 = vadd.f32 %v6880, %v7056
        %v7187 = vadd.f32 %v6881, %v7061
        %v7188 = vadd.f32 %v6882, %v7068
        %v7189 = vadd.f32 %v6883, %v7071
        %v7190 = vadd.f32 %v6884, %v7078
        %v7191 = vadd.f32 %v6885, %v7083
        %v7192 = vadd.f32 %v6886, %v7090
        %v7193 = vadd.f32 %v6887, %v7093
        %v7194 = vadd.f32 %v6888, %v7100
        %v7195 = vadd.f32 %v6889, %v7105
        %v7196 = vadd.f32 %v6890, %v7112
        %v7197 = vadd.f32 %v6891, %v7115
        %v7198 = vadd.f32 %v6892, %v7122
        %v7199 = vadd.f32 %v6893, %v7127
        %v7200 = vadd.f32 %v6894, %v7134
        %v7201 = vadd.f32 %v6895, %v7137
        %v7202 = vadd.f32 %v6896, %v7144
        %v7203 = vadd.f32 %v6897, %v7149
        %v7204 = vadd.f32 %v6898, %v7156
        %v7205 = vadd.f32 %v6899, %v7159
        %v7206 = vadd.f32 %v6900, %v7166
        %v7207 = vadd.f32 %v6901, %v7171
        %v7208 = vld [vmem:[%s3 + $0x2] sm:$0x1]
        %v7209 = vlaneseq
        %v7210 = vshrl.u32 %v7209, 7
        %v7211 = vsub.s32 0, %v7210
        %v7212 = vrot.slane %v7208, %v7211
        %v7213 = vmul.f32 %v7176, %v7212
        %v7214 = vmul.f32 %v7177, %v7212
        %v7215 = vmul.f32 %v7178, %v7212
        %v7216 = vmul.f32 %v7179, %v7212
        %v7217 = vmul.f32 %v7180, %v7212
        %v7218 = vmul.f32 %v7181, %v7212
        %v7219 = vmul.f32 %v7182, %v7212
        %v7220 = vmul.f32 %v7183, %v7212
        %v7221 = vmul.f32 %v7184, %v7212
        %v7222 = vmul.f32 %v7185, %v7212
        %v7223 = vmul.f32 %v7186, %v7212
        %v7224 = vmul.f32 %v7187, %v7212
        %v7225 = vmul.f32 %v7188, %v7212
        %v7226 = vmul.f32 %v7189, %v7212
        %v7227 = vmul.f32 %v7190, %v7212
        %v7228 = vmul.f32 %v7191, %v7212
        %v7229 = vmul.f32 %v7192, %v7212
        %v7230 = vmul.f32 %v7193, %v7212
        %v7231 = vmul.f32 %v7194, %v7212
        %v7232 = vmul.f32 %v7195, %v7212
        %v7233 = vmul.f32 %v7196, %v7212
        %v7234 = vmul.f32 %v7197, %v7212
        %v7235 = vmul.f32 %v7198, %v7212
        %v7236 = vmul.f32 %v7199, %v7212
        %v7237 = vmul.f32 %v7200, %v7212
        %v7238 = vmul.f32 %v7201, %v7212
        %v7239 = vmul.f32 %v7202, %v7212
        %v7240 = vmul.f32 %v7203, %v7212
        %v7241 = vmul.f32 %v7204, %v7212
        %v7242 = vmul.f32 %v7205, %v7212
        %v7243 = vmul.f32 %v7206, %v7212
        %v7244 = vmul.f32 %v7207, %v7212
        %v7245 = vld [vmem:[%s3 + $0x3] sm:$0x1]
        %v7246 = vlaneseq
        %v7247 = vshrl.u32 %v7246, 7
        %v7248 = vsub.s32 0, %v7247
        %v7249 = vrot.slane %v7245, %v7248
        %v7250 = vadd.f32 %v7213, %v7249
        %v7251 = vadd.f32 %v7214, %v7249
        %v7252 = vadd.f32 %v7215, %v7249
        %v7253 = vadd.f32 %v7216, %v7249
        %v7254 = vadd.f32 %v7217, %v7249
        %v7255 = vadd.f32 %v7218, %v7249
        %v7256 = vadd.f32 %v7219, %v7249
        %v7257 = vadd.f32 %v7220, %v7249
        %v7258 = vadd.f32 %v7221, %v7249
        %v7259 = vadd.f32 %v7222, %v7249
        %v7260 = vadd.f32 %v7223, %v7249
        %v7261 = vadd.f32 %v7224, %v7249
        %v7262 = vadd.f32 %v7225, %v7249
        %v7263 = vadd.f32 %v7226, %v7249
        %v7264 = vadd.f32 %v7227, %v7249
        %v7265 = vadd.f32 %v7228, %v7249
        %v7266 = vadd.f32 %v7229, %v7249
        %v7267 = vadd.f32 %v7230, %v7249
        %v7268 = vadd.f32 %v7231, %v7249
        %v7269 = vadd.f32 %v7232, %v7249
        %v7270 = vadd.f32 %v7233, %v7249
        %v7271 = vadd.f32 %v7234, %v7249
        %v7272 = vadd.f32 %v7235, %v7249
        %v7273 = vadd.f32 %v7236, %v7249
        %v7274 = vadd.f32 %v7237, %v7249
        %v7275 = vadd.f32 %v7238, %v7249
        %v7276 = vadd.f32 %v7239, %v7249
        %v7277 = vadd.f32 %v7240, %v7249
        %v7278 = vadd.f32 %v7241, %v7249
        %v7279 = vadd.f32 %v7242, %v7249
        %v7280 = vadd.f32 %v7243, %v7249
        %v7281 = vadd.f32 %v7244, %v7249
        %v7282 = vadd.f32 %v7250, %v278
        %v7283 = vadd.f32 %v7251, %v279
        %v7284 = vadd.f32 %v7252, %v280
        %v7285 = vadd.f32 %v7253, %v281
        %v7286 = vadd.f32 %v7254, %v282
        %v7287 = vadd.f32 %v7255, %v283
        %v7288 = vadd.f32 %v7256, %v284
        %v7289 = vadd.f32 %v7257, %v285
        %v7290 = vadd.f32 %v7258, %v286
        %v7291 = vadd.f32 %v7259, %v287
        %v7292 = vadd.f32 %v7260, %v288
        %v7293 = vadd.f32 %v7261, %v289
        %v7294 = vadd.f32 %v7262, %v290
        %v7295 = vadd.f32 %v7263, %v291
        %v7296 = vadd.f32 %v7264, %v292
        %v7297 = vadd.f32 %v7265, %v293
        %v7298 = vadd.f32 %v7266, %v294
        %v7299 = vadd.f32 %v7267, %v295
        %v7300 = vadd.f32 %v7268, %v296
        %v7301 = vadd.f32 %v7269, %v297
        %v7302 = vadd.f32 %v7270, %v298
        %v7303 = vadd.f32 %v7271, %v299
        %v7304 = vadd.f32 %v7272, %v300
        %v7305 = vadd.f32 %v7273, %v301
        %v7306 = vadd.f32 %v7274, %v302
        %v7307 = vadd.f32 %v7275, %v303
        %v7308 = vadd.f32 %v7276, %v304
        %v7309 = vadd.f32 %v7277, %v305
        %v7310 = vadd.f32 %v7278, %v306
        %v7311 = vadd.f32 %v7279, %v307
        %v7312 = vadd.f32 %v7280, %v308
        %v7313 = vadd.f32 %v7281, %v309
        %v7314 = vmax.f32 %v7282, 0.0
        %v7315 = vmax.f32 %v7283, 0.0
        %v7316 = vmax.f32 %v7284, 0.0
        %v7317 = vmax.f32 %v7285, 0.0
        %v7318 = vmax.f32 %v7286, 0.0
        %v7319 = vmax.f32 %v7287, 0.0
        %v7320 = vmax.f32 %v7288, 0.0
        %v7321 = vmax.f32 %v7289, 0.0
        %v7322 = vmax.f32 %v7290, 0.0
        %v7323 = vmax.f32 %v7291, 0.0
        %v7324 = vmax.f32 %v7292, 0.0
        %v7325 = vmax.f32 %v7293, 0.0
        %v7326 = vmax.f32 %v7294, 0.0
        %v7327 = vmax.f32 %v7295, 0.0
        %v7328 = vmax.f32 %v7296, 0.0
        %v7329 = vmax.f32 %v7297, 0.0
        %v7330 = vmax.f32 %v7298, 0.0
        %v7331 = vmax.f32 %v7299, 0.0
        %v7332 = vmax.f32 %v7300, 0.0
        %v7333 = vmax.f32 %v7301, 0.0
        %v7334 = vmax.f32 %v7302, 0.0
        %v7335 = vmax.f32 %v7303, 0.0
        %v7336 = vmax.f32 %v7304, 0.0
        %v7337 = vmax.f32 %v7305, 0.0
        %v7338 = vmax.f32 %v7306, 0.0
        %v7339 = vmax.f32 %v7307, 0.0
        %v7340 = vmax.f32 %v7308, 0.0
        %v7341 = vmax.f32 %v7309, 0.0
        %v7342 = vmax.f32 %v7310, 0.0
        %v7343 = vmax.f32 %v7311, 0.0
        %v7344 = vmax.f32 %v7312, 0.0
        %v7345 = vmax.f32 %v7313, 0.0
        %v7346 = vpack.c.bf16 %v7315, %v7314
        %v7347 = vpack.c.bf16 %v7317, %v7316
        %v7348 = vpack.c.bf16 %v7319, %v7318
        %v7349 = vpack.c.bf16 %v7321, %v7320
        %v7350 = vpack.c.bf16 %v7323, %v7322
        %v7351 = vpack.c.bf16 %v7325, %v7324
        %v7352 = vpack.c.bf16 %v7327, %v7326
        %v7353 = vpack.c.bf16 %v7329, %v7328
        %v7354 = vpack.c.bf16 %v7331, %v7330
        %v7355 = vpack.c.bf16 %v7333, %v7332
        %v7356 = vpack.c.bf16 %v7335, %v7334
        %v7357 = vpack.c.bf16 %v7337, %v7336
        %v7358 = vpack.c.bf16 %v7339, %v7338
        %v7359 = vpack.c.bf16 %v7341, %v7340
        %v7360 = vpack.c.bf16 %v7343, %v7342
        %v7361 = vpack.c.bf16 %v7345, %v7344
        %v7378 = vunpack.c.l.b16 %v7346
        %v7379 = vunpack.c.h.b16 %v7346
        %v7380 = vunpack.c.l.b16 %v7347
        %v7381 = vunpack.c.h.b16 %v7347
        %v7382 = vunpack.c.l.b16 %v7348
        %v7383 = vunpack.c.h.b16 %v7348
        %v7384 = vunpack.c.l.b16 %v7349
        %v7385 = vunpack.c.h.b16 %v7349
        %v7386 = vunpack.c.l.b16 %v7350
        %v7387 = vunpack.c.h.b16 %v7350
        %v7388 = vunpack.c.l.b16 %v7351
        %v7389 = vunpack.c.h.b16 %v7351
        %v7390 = vunpack.c.l.b16 %v7352
        %v7391 = vunpack.c.h.b16 %v7352
        %v7392 = vunpack.c.l.b16 %v7353
        %v7393 = vunpack.c.h.b16 %v7353
        %v7394 = vunpack.c.l.b16 %v7354
        %v7395 = vunpack.c.h.b16 %v7354
        %v7396 = vunpack.c.l.b16 %v7355
        %v7397 = vunpack.c.h.b16 %v7355
        %v7398 = vunpack.c.l.b16 %v7356
        %v7399 = vunpack.c.h.b16 %v7356
        %v7400 = vunpack.c.l.b16 %v7357
        %v7401 = vunpack.c.h.b16 %v7357
        %v7402 = vunpack.c.l.b16 %v7358
        %v7403 = vunpack.c.h.b16 %v7358
        %v7404 = vunpack.c.l.b16 %v7359
        %v7405 = vunpack.c.h.b16 %v7359
        %v7406 = vunpack.c.l.b16 %v7360
        %v7407 = vunpack.c.h.b16 %v7360
        %v7408 = vunpack.c.l.b16 %v7361
        %v7409 = vunpack.c.h.b16 %v7361
        %v7410 = vpack.c.b16 %v7378, %v7378
        %v7411 = vpack.c.b16 %v7379, %v7379
        %v7412 = vpack.c.b16 %v7380, %v7380
        %v7413 = vpack.c.b16 %v7381, %v7381
        %v7414 = vpack.c.b16 %v7382, %v7382
        %v7415 = vpack.c.b16 %v7383, %v7383
        %v7416 = vpack.c.b16 %v7384, %v7384
        %v7417 = vpack.c.b16 %v7385, %v7385
        %v7418 = vpack.c.b16 %v7386, %v7386
        %v7419 = vpack.c.b16 %v7387, %v7387
        %v7420 = vpack.c.b16 %v7388, %v7388
        %v7421 = vpack.c.b16 %v7389, %v7389
        %v7422 = vpack.c.b16 %v7390, %v7390
        %v7423 = vpack.c.b16 %v7391, %v7391
        %v7424 = vpack.c.b16 %v7392, %v7392
        %v7425 = vpack.c.b16 %v7393, %v7393
        %v7426 = vpack.c.b16 %v7394, %v7394
        %v7427 = vpack.c.b16 %v7395, %v7395
        %v7428 = vpack.c.b16 %v7396, %v7396
        %v7429 = vpack.c.b16 %v7397, %v7397
        %v7430 = vpack.c.b16 %v7398, %v7398
        %v7431 = vpack.c.b16 %v7399, %v7399
        %v7432 = vpack.c.b16 %v7400, %v7400
        %v7433 = vpack.c.b16 %v7401, %v7401
        %v7434 = vpack.c.b16 %v7402, %v7402
        %v7435 = vpack.c.b16 %v7403, %v7403
        %v7436 = vpack.c.b16 %v7404, %v7404
        %v7437 = vpack.c.b16 %v7405, %v7405
        %v7438 = vpack.c.b16 %v7406, %v7406
        %v7439 = vpack.c.b16 %v7407, %v7407
        %v7440 = vpack.c.b16 %v7408, %v7408
        %v7441 = vpack.c.b16 %v7409, %v7409
        %7474 = vst [vmem:[%s244] sm:$0xf] %v7410
        %7475 = vst [vmem:[%s244 + $0x4] sm:$0xf] %v7411
        %7476 = vst [vmem:[%s244 + $0x8] sm:$0xf] %v7412
        %7477 = vst [vmem:[%s244 + $0xc] sm:$0xf] %v7413
        %7478 = vst [vmem:[%s244 + $0x10] sm:$0xf] %v7414
        %7479 = vst [vmem:[%s244 + $0x14] sm:$0xf] %v7415
        %7480 = vst [vmem:[%s244 + $0x18] sm:$0xf] %v7416
        %7481 = vst [vmem:[%s244 + $0x1c] sm:$0xf] %v7417
        %7482 = vst [vmem:[%s244 + $0x20] sm:$0xf] %v7418
        %7483 = vst [vmem:[%s244 + $0x24] sm:$0xf] %v7419
        %7484 = vst [vmem:[%s244 + $0x28] sm:$0xf] %v7420
        %7485 = vst [vmem:[%s244 + $0x2c] sm:$0xf] %v7421
        %7486 = vst [vmem:[%s244 + $0x30] sm:$0xf] %v7422
        %7487 = vst [vmem:[%s244 + $0x34] sm:$0xf] %v7423
        %7488 = vst [vmem:[%s244 + $0x38] sm:$0xf] %v7424
        %7489 = vst [vmem:[%s244 + $0x3c] sm:$0xf] %v7425
        %7490 = vst [vmem:[%s244 + $0x40] sm:$0xf] %v7426
        %7491 = vst [vmem:[%s244 + $0x44] sm:$0xf] %v7427
        %7492 = vst [vmem:[%s244 + $0x48] sm:$0xf] %v7428
        %7493 = vst [vmem:[%s244 + $0x4c] sm:$0xf] %v7429
        %7494 = vst [vmem:[%s244 + $0x50] sm:$0xf] %v7430
        %7495 = vst [vmem:[%s244 + $0x54] sm:$0xf] %v7431
        %7496 = vst [vmem:[%s244 + $0x58] sm:$0xf] %v7432
        %7497 = vst [vmem:[%s244 + $0x5c] sm:$0xf] %v7433
        %7498 = vst [vmem:[%s244 + $0x60] sm:$0xf] %v7434
        %7499 = vst [vmem:[%s244 + $0x64] sm:$0xf] %v7435
        %7500 = vst [vmem:[%s244 + $0x68] sm:$0xf] %v7436
        %7501 = vst [vmem:[%s244 + $0x6c] sm:$0xf] %v7437
        %7502 = vst [vmem:[%s244 + $0x70] sm:$0xf] %v7438
        %7503 = vst [vmem:[%s244 + $0x74] sm:$0xf] %v7439
        %7504 = vst [vmem:[%s244 + $0x78] sm:$0xf] %v7440
        %7505 = vst [vmem:[%s244 + $0x7c] sm:$0xf] %v7441
        %s7506 = sand.u32 %s119, 1
        %s7507 = scalar_lea.sflag [#allocation5], %s7506
        %s7508 = sand.u32 %s119, 1
        %s7509 = smul.addr %s7508, 128
        %s7510 = scalar_lea.vmem [#allocation9], %s7509
        // Predicated region
        $region49: #{tpu_custom_call.1} parent=35 // pred_check
          %p7511 = pneg %p129
        $region50: #{tpu_custom_call.1} parent=35 // pred_check_branch
          %7513 = sbr.rel (%p7511) target = $region52
        $region51: #{tpu_custom_call.1} parent=35 // pred_region
          %s7515 = ssub.s32 2048, 2048
          %7516 = vsyncadd %s7507, %s7515
          %s7517 = smul.addr %s22, 32
          %s7518 = smul.addr %s7517, 64
          %s7519 = scalar_lea.hbm %s4, %s7518
          %s7520 = sshll.u32 %s7510, 4
          %s7521 = int_to_ptr.vmem [resolvable:$true] %s7520
          %7526 = dma.vmem_to_hbm [thread:$0]  %s7521, 2048, %s7519, %s7507, 64, 64, 4
        $region52: #{tpu_custom_call.1} parent=35 // pred_fallthru
          _
      $region36: #{tpu_custom_call.1} parent=5 // pred_fallthru
        _
      %p7527 = scmp.le.s32.totalorder 2, %s17
      // Predicated region
      $region53: #{tpu_custom_call.1} parent=5 // pred_check
        %p7528 = pneg %p7527
      $region54: #{tpu_custom_call.1} parent=5 // pred_check_branch
        %7530 = sbr.rel (%p7528) target = $region56
      $region55: #{tpu_custom_call.1} parent=5 // pred_region
        %s7531 = ssub.s32 %s17, 2
        // Predicated region
        $region57: #{tpu_custom_call.1} parent=55 // pred_check
          %p7532 = pneg %p135
        $region58: #{tpu_custom_call.1} parent=55 // pred_check_branch
          %7534 = sbr.rel (%p7532) target = $region60
        $region59: #{tpu_custom_call.1} parent=55 // pred_region
          %s7535 = sand.u32 %s120, 1
          %s7536 = scalar_lea.sflag [#allocation5], %s7535
          %s7537 = sand.u32 %s120, 1
          %s7538 = smul.addr %s7537, 128
          %s7539 = scalar_lea.vmem [#allocation9], %s7538
          %7540 = dma.done %s7536, 2048
        $region60: #{tpu_custom_call.1} parent=55 // pred_fallthru
          _
      $region56: #{tpu_custom_call.1} parent=5 // pred_fallthru
        _
    $region6: #{tpu_custom_call.1} parent=1 // loop_footer
      %s21 = sadd.s32 1, %s17
    $region7: #{tpu_custom_call.1} parent=1 // loop_footer_branch
      %16 = sbr.rel target = $region3
    $region8: #{tpu_custom_call.1} parent=1 // loop_exit
      _
    %7541 = vsyncpa [#allocation4], 1
    %s7542 = scalar_lea.sflag [#allocation4], 1
    %7543 = vsyncpa %s7542, 1
    %7544 = vsyncpa [#allocation7], 1
    %7545 = vsyncpa [#allocation5], 1
    %s7546 = scalar_lea.sflag [#allocation5], 1
    %7547 = vsyncpa %s7546, 1

</llo_original>
